<compile_context>
chip_gen: v6e
topology: v6e:2x2x1
jax: 0.10.0
libtpu: 0.0.40
codegen_flags: <defaults>
</compile_context>

<pallas_src>
import functools
import numpy as np
import jax
import jax.numpy as jnp
from jax.experimental import pallas as pl
from jax.experimental.pallas import tpu as pltpu


# ----------------------------------------------------------------------------
# Pallas kernel: one block of TB (batch*width) slices per grid step.
# ----------------------------------------------------------------------------
def _axial_kernel(xy_ref, w_ref, b_ref, qe_ref, ke_ref, ve_ref, out_ref,
                  *, num_heads, dh, H, TB):
    dh2 = dh // 2
    nK = num_heads * dh2

    # Fused 1x1-conv projections of [x; y] (+ folded eval-mode BN; the K rows
    # also carry the per-head logits_bn qk-scale): a single MXU matmul.
    proj = (jnp.dot(w_ref[...], xy_ref[...], preferred_element_type=jnp.float32)
            + b_ref[...])                                      # (R, H*TB)

    qe = qe_ref[...]                                           # (nh*dh2, H_x, H_y)
    ke = ke_ref[...]                                           # (nh*dh2, H_x, H_y)
    ve = ve_ref[...]                                           # (dh,      H_x, H_y)

    for n in range(num_heads):
        k0 = n * dh2                     # k rows of this head
        q0 = nK + n * dh2                # q rows
        v0 = 2 * nK + n * dh             # v rows
        e0 = n * dh2                     # per-head encoding rows

        # q with the query position on sublanes: one (H_x, TB) tile per channel.
        q_rows = [
            jnp.concatenate(
                [proj[q0 + d:q0 + d + 1, xx * TB:(xx + 1) * TB] for xx in range(H)],
                axis=0)
            for d in range(dh2)
        ]

        # ---- logits: one (H_x, TB) slab per key position y ------------------
        # logits[y][x, b] = sum_d  q_d[x,b]*(s_qk*k_d[y,b] + s_qr*q_enc[d,x,y])
        #                        + s_qk*k_d[y,b]*(s_kr/s_qk)*k_enc[d,y,x]
        # (s_qk already folded into the K rows; the logits_bn shift is constant
        #  along the softmax axis and hence dropped.)
        slabs = []
        for y in range(H):
            c0 = y * TB
            acc = None
            for d in range(dh2):
                kc = proj[k0 + d:k0 + d + 1, c0:c0 + TB]             # (1, TB)
                t = (q_rows[d] * (kc + qe[e0 + d, :, y:y + 1])
                     + kc * ke[e0 + d, :, y:y + 1])                  # (H_x, TB)
                acc = t if acc is None else acc + t
            slabs.append(acc)

        # ---- softmax over the key axis: pure element-wise across slabs ------
        m = slabs[0]
        for y in range(1, H):
            m = jnp.maximum(m, slabs[y])
        p = [jnp.exp(s - m) for s in slabs]
        tot = p[0]
        for y in range(1, H):
            tot = tot + p[y]
        inv = 1.0 / tot                      # exact reciprocal (accuracy fix)

        # ---- output: out[e, x, b] = sum_y w[x,y,b]*(v[e,y,b] + v_enc[e,x,y])
        for e in range(dh):
            acc = None
            for y in range(H):
                vc = proj[v0 + e:v0 + e + 1, y * TB:(y + 1) * TB]    # (1, TB)
                t = p[y] * (vc + ve[e, :, y:y + 1])                  # (H_x, TB)
                acc = t if acc is None else acc + t
            out_ref[n * dh + e] = (acc * inv).astype(out_ref.dtype)


# ----------------------------------------------------------------------------
# Parameter construction (deterministic, synthetic).
# ----------------------------------------------------------------------------
def make_params(key, in_channels, num_heads, kernel_size):
    depth = in_channels
    dh = depth // num_heads
    ks = kernel_size
    keys = jax.random.split(key, 8)

    def conv_w(k, out_c, in_c):
        return jax.random.normal(k, (out_c, in_c), jnp.float32) / np.sqrt(in_c)

    def bn_params(k, c):
        k1, k2, k3, k4 = jax.random.split(k, 4)
        gamma = 1.0 + 0.1 * jax.random.normal(k1, (c,), jnp.float32)
        beta = 0.1 * jax.random.normal(k2, (c,), jnp.float32)
        mean = 0.1 * jax.random.normal(k3, (c,), jnp.float32)
        var = jnp.abs(jax.random.normal(k4, (c,), jnp.float32)) + 0.5
        scale = gamma / jnp.sqrt(var + 1e-5)
        shift = beta - mean * scale
        return scale, shift

    Wk = conv_w(keys[0], depth // 2, depth)     # k_conv
    Wq = conv_w(keys[1], depth // 2, depth)     # q_conv
    Wv = conv_w(keys[2], depth, depth)          # v_conv
    sk, bk = bn_params(keys[3], depth // 2)     # k_bn
    sq, bq = bn_params(keys[4], depth // 2)     # q_bn
    sv, bv = bn_params(keys[5], depth)          # kq_bn (applied to v, as in torch)
    sl, bl = bn_params(keys[6], 3 * num_heads)  # logits_bn
    rel = jax.random.normal(keys[7], (dh * 2, ks * 2 - 1), jnp.float32)

    idx = np.arange(ks)
    dist = (idx[None, :] - idx[:, None] + ks - 1).reshape(ks * ks)

    return dict(Wk=Wk, Wq=Wq, Wv=Wv, sk=sk, bk=bk, sq=sq, bq=bq, sv=sv, bv=bv,
                sl=sl, bl=bl, rel=rel, dist=jnp.asarray(dist, jnp.int32))


# ----------------------------------------------------------------------------
# Wrapper: layout glue + pallas_call.
# ----------------------------------------------------------------------------
def axial_layer_cross(x, y, params, *, num_heads, kernel_size, height_dim=True,
                      block_bw=128):
    # x, y come in NCHW (B, C, H, W), exactly like the torch module.
    if height_dim:
        xq = jnp.transpose(x, (0, 3, 1, 2))        # (B, W, C, H): axial axis = H
        yq = jnp.transpose(y, (0, 3, 1, 2))
    else:
        xq = jnp.transpose(x, (0, 2, 1, 3))        # (B, H, C, W): axial axis = W
        yq = jnp.transpose(y, (0, 2, 1, 3))
    B, G, depth, L = xq.shape
    assert L == kernel_size, "axial length must equal kernel_size"
    nh = num_heads
    assert depth % nh == 0
    dh = depth // nh
    assert dh % 2 == 0
    dh2 = dh // 2
    H = L
    nK = nh * dh2
    R = 2 * nK + depth                              # = 2 * depth

    TB = block_bw                                   # batch*width tile (lane dim)
    assert TB % 128 == 0
    BW = B * G
    NB = (BW + TB - 1) // TB
    BWp = NB * TB

    # ---- inputs: (BW, depth, H) -> lane-dense blocks; x and y fused on depth
    def prep(a):
        a = a.reshape(BW, depth, H)
        if BWp != BW:
            a = jnp.pad(a, ((0, BWp - BW), (0, 0), (0, 0)))
        a = a.reshape(NB, TB, depth, H)
        a = jnp.transpose(a, (0, 2, 3, 1))          # (NB, depth, H, TB)
        return a.reshape(NB, depth, H * TB)         # column = h*TB + b

    xy_blk = jnp.concatenate([prep(xq), prep(yq)], axis=1)   # (NB, 2*depth, H*TB)

    # ---- fold eval-mode BN into the conv weights -----------------------------
    Wk_eff = params['sk'][:, None] * params['Wk']
    Wq_eff = params['sq'][:, None] * params['Wq']
    Wv_eff = params['sv'][:, None] * params['Wv']
    zero_h = jnp.zeros((depth // 2, depth), jnp.float32)
    zero_f = jnp.zeros((depth, depth), jnp.float32)
    # concat-channel space of torch's cat([k, q, v], dim=1); the fused weight
    # acts on the stacked [x; y] input (k/v read x, q reads y):
    Wcat = jnp.concatenate([
        jnp.concatenate([Wk_eff, zero_h], axis=1),
        jnp.concatenate([zero_h, Wq_eff], axis=1),
        jnp.concatenate([Wv_eff, zero_f], axis=1),
    ], axis=0)                                      # (2*depth, 2*depth)
    bcat = jnp.concatenate([params['bk'], params['bq'], params['bv']])

    # kernel row order: K rows (head-major), Q rows, V rows; mapped through
    # torch's cat/reshape/split channel layout (which scrambles k/q/v across
    # heads — reproduced exactly, same as the reference).
    idx = []
    for n in range(nh):
        idx += [n * 2 * dh + d for d in range(dh2)]            # "k" part of head n
    for n in range(nh):
        idx += [n * 2 * dh + dh2 + d for d in range(dh2)]      # "q" part
    for n in range(nh):
        idx += [n * 2 * dh + dh + d for d in range(dh)]        # "v" part
    idx = np.asarray(idx, np.int64)
    W_rows = Wcat[idx]                              # (R, 2*depth)
    b_rows = bcat[idx]                              # (R,)

    # ---- logits_bn scales (eval mode) ----------------------------------------
    sl = params['sl']
    s_qk, s_qr, s_kr = sl[:nh], sl[nh:2 * nh], sl[2 * nh:3 * nh]
    # (the per-head logits_bn shift is constant along the softmax axis -> dropped)
    # Fold s_qk into the K projection rows (weights + bias); the kr term then
    # uses the k-encoding divided by s_qk.  BN scales (gamma/sqrt(var+eps)) are
    # never ~0 in practice; the clamp below only guards that division.
    s_qk_safe = jnp.where(jnp.abs(s_qk) < 1e-6, 1e-6, s_qk)
    row_scale = jnp.concatenate(
        [jnp.repeat(s_qk, dh2), jnp.ones((nK + depth,), jnp.float32)])
    W_rows = W_rows * row_scale[:, None]
    b_rows = (b_rows * row_scale)[:, None]          # (R, 1)

    # ---- compact relative-position encodings (no TB broadcast) --------------
    rel_g = params['rel'][:, params['dist']].reshape(2 * dh, H, H)   # [d, a, b]
    q_enc, k_enc, v_enc = rel_g[:dh2], rel_g[dh2:dh], rel_g[dh:]
    # qe[(n,d), x, y] = s_qr[n] * q_enc[d, x, y]
    qe_c = (s_qr[:, None, None, None] * q_enc[None]).reshape(nh * dh2, H, H)
    # ke[(n,d), x, y] = (s_kr[n] / s_qk[n]) * k_enc[d, y, x]
    ke_c = ((s_kr / s_qk_safe)[:, None, None, None]
            * jnp.transpose(k_enc, (0, 2, 1))[None]).reshape(nh * dh2, H, H)
    ve_c = v_enc                                    # (dh, H, H), indexed [e, x, y]

    kernel = functools.partial(_axial_kernel, num_heads=nh, dh=dh, H=H, TB=TB)

    flops = int(2 * R * (2 * depth) * H * BWp                 # projection matmul
                + nh * H * H * BWp * (6 * dh2 + 4 * dh))      # attention elementwise
    transcendentals = int(nh * H * H * BWp)
    bytes_accessed = int(4 * (xy_blk.size + W_rows.size + b_rows.size
                              + qe_c.size + ke_c.size + ve_c.size
                              + depth * H * BWp))

    out = pl.pallas_call(
        kernel,
        out_shape=jax.ShapeDtypeStruct((depth, H, BWp), jnp.float32),
        grid=(NB,),
        in_specs=[
            pl.BlockSpec((None, 2 * depth, H * TB), lambda i: (i, 0, 0)),  # [x;y]
            pl.BlockSpec((R, 2 * depth), lambda i: (0, 0)),                # weights
            pl.BlockSpec((R, 1), lambda i: (0, 0)),                        # bias
            pl.BlockSpec((nh * dh2, H, H), lambda i: (0, 0, 0)),           # q_enc*s_qr
            pl.BlockSpec((nh * dh2, H, H), lambda i: (0, 0, 0)),           # k_enc*s_kr/s_qk
            pl.BlockSpec((dh, H, H), lambda i: (0, 0, 0)),                 # v_enc
        ],
        out_specs=pl.BlockSpec((depth, H, TB), lambda i: (0, 0, i)),
        compiler_params=pltpu.CompilerParams(
            dimension_semantics=("parallel",)),
        cost_estimate=pl.CostEstimate(flops=flops,
                                      transcendentals=transcendentals,
                                      bytes_accessed=bytes_accessed),
    )(xy_blk, W_rows, b_rows, qe_c, ke_c, ve_c)

    # ---- undo blocking / padding, back to NCHW -------------------------------
    out = out[:, :, :BW].reshape(depth, H, B, G)
    if height_dim:
        return jnp.transpose(out, (2, 0, 1, 3))     # (B, depth, H, W)
    return jnp.transpose(out, (2, 0, 3, 1))         # (B, depth, H, W)


# ----------------------------------------------------------------------------
# Pure-JAX reference mirroring the PyTorch forward (for validation).
# ----------------------------------------------------------------------------
def reference_forward(x, y, p, num_heads, kernel_size, height_dim=True):
    PREC = jax.lax.Precision.HIGHEST
    if height_dim:
        xp = jnp.transpose(x, (0, 3, 1, 2)); yp = jnp.transpose(y, (0, 3, 1, 2))
    else:
        xp = jnp.transpose(x, (0, 2, 1, 3)); yp = jnp.transpose(y, (0, 2, 1, 3))
    B, Wd, depth, H = xp.shape
    dh = depth // num_heads
    xp = xp.reshape(B * Wd, depth, H)
    yp = yp.reshape(B * Wd, depth, H)

    def bn(t, s, b):
        return t * s[None, :, None] + b[None, :, None]

    k = bn(jnp.einsum('oc,bch->boh', p['Wk'], xp, precision=PREC), p['sk'], p['bk'])
    v = bn(jnp.einsum('oc,bch->boh', p['Wv'], xp, precision=PREC), p['sv'], p['bv'])
    q = bn(jnp.einsum('oc,bch->boh', p['Wq'], yp, precision=PREC), p['sq'], p['bq'])
    kqv = jnp.concatenate([k, q, v], axis=1).reshape(B * Wd, num_heads, 2 * dh, H)
    kh, qh, vh = kqv[:, :, :dh // 2], kqv[:, :, dh // 2:dh], kqv[:, :, dh:]
    rel_g = p['rel'][:, p['dist']].reshape(2 * dh, kernel_size, kernel_size)
    q_enc, k_enc, v_enc = rel_g[:dh // 2], rel_g[dh // 2:dh], rel_g[dh:]
    qk = jnp.einsum('bndx,bndy->bnxy', qh, kh, precision=PREC)
    qr = jnp.einsum('bndx,dxy->bnxy', qh, q_enc, precision=PREC)
    kr = jnp.swapaxes(jnp.einsum('bndx,dxy->bnxy', kh, k_enc, precision=PREC), 2, 3)
    logits = jnp.concatenate([qk, qr, kr], axis=1)
    logits = logits * p['sl'][None, :, None, None] + p['bl'][None, :, None, None]
    logits = logits.reshape(B * Wd, 3, num_heads, H, H).sum(axis=1)
    wts = jax.nn.softmax(logits, axis=3)
    attn = jnp.einsum('bnxy,bndy->bndx', wts, vh, precision=PREC)
    attn_enc = jnp.einsum('bnxy,dxy->bndx', wts, v_enc, precision=PREC)
    out = (attn + attn_enc).reshape(B, Wd, depth, H)
    if height_dim:
        return jnp.transpose(out, (0, 2, 3, 1))
    return jnp.transpose(out, (0, 2, 1, 3))


if __name__ == "__main__":
    B, C, H, W = 2, 16, 8, 128          # in_channels=16, B*W=256 -> 2 grid steps
    num_heads, kernel_size = 2, 8       # axial length H == kernel_size
    key = jax.random.PRNGKey(0)
    kx, ky, kp = jax.random.split(key, 3)
    x = jax.random.normal(kx, (B, C, H, W), jnp.float32)
    y = jax.random.normal(ky, (B, C, H, W), jnp.float32)
    params = make_params(kp, C, num_heads, kernel_size)

    fwd = jax.jit(functools.partial(axial_layer_cross, num_heads=num_heads,
                                    kernel_size=kernel_size, height_dim=True,
                                    block_bw=128))
    out = jax.block_until_ready(fwd(x, y, params))

    ref = reference_forward(x, y, params, num_heads, kernel_size, height_dim=True)
    ref = jax.block_until_ready(ref)
    np.testing.assert_allclose(np.asarray(out), np.asarray(ref),
                               rtol=2e-3, atol=2e-3)
    print("KERNEL_OK")
</pallas_src>

<mosaic_0001>
module attributes {stable_mosaic.version = 11 : i64} {
  func.func @_axial_kernel(%arg0: i32, %arg1: memref<1x32x1024xf32, #tpu.memory_space<vmem>>, %arg2: memref<32x32xf32, #tpu.memory_space<vmem>>, %arg3: memref<32x1xf32, #tpu.memory_space<vmem>>, %arg4: memref<8x8x8xf32, #tpu.memory_space<vmem>>, %arg5: memref<8x8x8xf32, #tpu.memory_space<vmem>>, %arg6: memref<8x8x8xf32, #tpu.memory_space<vmem>>, %arg7: memref<16x8x128xf32, #tpu.memory_space<vmem>>) attributes {dimension_semantics = [#tpu.dimension_semantics<parallel>], iteration_bounds = array<i64: 2>, scalar_prefetch = 0 : i64, scratch_operands = 0 : i64, tpu.core_type = #tpu.core_type<tc>, window_params = [{transform_indices = @transform_0, window_bounds = array<i64: 1, 32, 1024>}, {pipeline_mode = #tpu.pipeline_mode<synchronous>, transform_indices = @transform_1, window_bounds = array<i64: 32, 32>}, {pipeline_mode = #tpu.pipeline_mode<synchronous>, transform_indices = @transform_2, window_bounds = array<i64: 32, 1>}, {pipeline_mode = #tpu.pipeline_mode<synchronous>, transform_indices = @transform_3, window_bounds = array<i64: 8, 8, 8>}, {pipeline_mode = #tpu.pipeline_mode<synchronous>, transform_indices = @transform_4, window_bounds = array<i64: 8, 8, 8>}, {pipeline_mode = #tpu.pipeline_mode<synchronous>, transform_indices = @transform_5, window_bounds = array<i64: 8, 8, 8>}, {transform_indices = @transform_6, window_bounds = array<i64: 16, 8, 128>}]} {
    %c0 = arith.constant 0 : index
    %c0_0 = arith.constant 0 : index
    %0 = vector.load %arg2[%c0, %c0_0] : memref<32x32xf32, #tpu.memory_space<vmem>>, vector<32x32xf32>
    %c0_1 = arith.constant 0 : index
    %c0_2 = arith.constant 0 : index
    %c0_3 = arith.constant 0 : index
    %1 = vector.load %arg1[%c0_1, %c0_2, %c0_3] : memref<1x32x1024xf32, #tpu.memory_space<vmem>>, vector<1x32x1024xf32>
    %2 = vector.shape_cast %1 : vector<1x32x1024xf32> to vector<32x1024xf32>
    %cst = arith.constant dense<0.000000e+00> : vector<32x1024xf32>
    %3 = tpu.matmul %0, %2, %cst {dimension_numbers = #tpu.dot_dimension_numbers<[1], [0], [0], [1], [0, 0, 1, 1], [], []>} : vector<32x32xf32>, vector<32x1024xf32>, vector<32x1024xf32> -> vector<32x1024xf32>
    %c0_4 = arith.constant 0 : index
    %c0_5 = arith.constant 0 : index
    %4 = vector.load %arg3[%c0_4, %c0_5] : memref<32x1xf32, #tpu.memory_space<vmem>>, vector<32x1xf32>
    %5 = vector.broadcast %4 : vector<32x1xf32> to vector<32x1024xf32>
    %6 = arith.addf %3, %5 : vector<32x1024xf32>
    %c0_6 = arith.constant 0 : index
    %c0_7 = arith.constant 0 : index
    %c0_8 = arith.constant 0 : index
    %7 = vector.load %arg4[%c0_6, %c0_7, %c0_8] : memref<8x8x8xf32, #tpu.memory_space<vmem>>, vector<8x8x8xf32>
    %c0_9 = arith.constant 0 : index
    %c0_10 = arith.constant 0 : index
    %c0_11 = arith.constant 0 : index
    %8 = vector.load %arg5[%c0_9, %c0_10, %c0_11] : memref<8x8x8xf32, #tpu.memory_space<vmem>>, vector<8x8x8xf32>
    %c0_12 = arith.constant 0 : index
    %c0_13 = arith.constant 0 : index
    %c0_14 = arith.constant 0 : index
    %9 = vector.load %arg6[%c0_12, %c0_13, %c0_14] : memref<8x8x8xf32, #tpu.memory_space<vmem>>, vector<8x8x8xf32>
    %10 = vector.extract_strided_slice %6 {offsets = [8, 0], sizes = [1, 128], strides = [1, 1]} : vector<32x1024xf32> to vector<1x128xf32>
    %11 = vector.extract_strided_slice %6 {offsets = [8, 128], sizes = [1, 128], strides = [1, 1]} : vector<32x1024xf32> to vector<1x128xf32>
    %12 = vector.extract_strided_slice %6 {offsets = [8, 256], sizes = [1, 128], strides = [1, 1]} : vector<32x1024xf32> to vector<1x128xf32>
    %13 = vector.extract_strided_slice %6 {offsets = [8, 384], sizes = [1, 128], strides = [1, 1]} : vector<32x1024xf32> to vector<1x128xf32>
    %14 = vector.extract_strided_slice %6 {offsets = [8, 512], sizes = [1, 128], strides = [1, 1]} : vector<32x1024xf32> to vector<1x128xf32>
    %15 = vector.extract_strided_slice %6 {offsets = [8, 640], sizes = [1, 128], strides = [1, 1]} : vector<32x1024xf32> to vector<1x128xf32>
    %16 = vector.extract_strided_slice %6 {offsets = [8, 768], sizes = [1, 128], strides = [1, 1]} : vector<32x1024xf32> to vector<1x128xf32>
    %17 = vector.extract_strided_slice %6 {offsets = [8, 896], sizes = [1, 128], strides = [1, 1]} : vector<32x1024xf32> to vector<1x128xf32>
    %18 = tpu.concatenate %10, %11, %12, %13, %14, %15, %16, %17 in 0 : vector<1x128xf32>, vector<1x128xf32>, vector<1x128xf32>, vector<1x128xf32>, vector<1x128xf32>, vector<1x128xf32>, vector<1x128xf32>, vector<1x128xf32> -> vector<8x128xf32>
    %19 = vector.extract_strided_slice %6 {offsets = [9, 0], sizes = [1, 128], strides = [1, 1]} : vector<32x1024xf32> to vector<1x128xf32>
    %20 = vector.extract_strided_slice %6 {offsets = [9, 128], sizes = [1, 128], strides = [1, 1]} : vector<32x1024xf32> to vector<1x128xf32>
    %21 = vector.extract_strided_slice %6 {offsets = [9, 256], sizes = [1, 128], strides = [1, 1]} : vector<32x1024xf32> to vector<1x128xf32>
    %22 = vector.extract_strided_slice %6 {offsets = [9, 384], sizes = [1, 128], strides = [1, 1]} : vector<32x1024xf32> to vector<1x128xf32>
    %23 = vector.extract_strided_slice %6 {offsets = [9, 512], sizes = [1, 128], strides = [1, 1]} : vector<32x1024xf32> to vector<1x128xf32>
    %24 = vector.extract_strided_slice %6 {offsets = [9, 640], sizes = [1, 128], strides = [1, 1]} : vector<32x1024xf32> to vector<1x128xf32>
    %25 = vector.extract_strided_slice %6 {offsets = [9, 768], sizes = [1, 128], strides = [1, 1]} : vector<32x1024xf32> to vector<1x128xf32>
    %26 = vector.extract_strided_slice %6 {offsets = [9, 896], sizes = [1, 128], strides = [1, 1]} : vector<32x1024xf32> to vector<1x128xf32>
    %27 = tpu.concatenate %19, %20, %21, %22, %23, %24, %25, %26 in 0 : vector<1x128xf32>, vector<1x128xf32>, vector<1x128xf32>, vector<1x128xf32>, vector<1x128xf32>, vector<1x128xf32>, vector<1x128xf32>, vector<1x128xf32> -> vector<8x128xf32>
    %28 = vector.extract_strided_slice %6 {offsets = [10, 0], sizes = [1, 128], strides = [1, 1]} : vector<32x1024xf32> to vector<1x128xf32>
    %29 = vector.extract_strided_slice %6 {offsets = [10, 128], sizes = [1, 128], strides = [1, 1]} : vector<32x1024xf32> to vector<1x128xf32>
    %30 = vector.extract_strided_slice %6 {offsets = [10, 256], sizes = [1, 128], strides = [1, 1]} : vector<32x1024xf32> to vector<1x128xf32>
    %31 = vector.extract_strided_slice %6 {offsets = [10, 384], sizes = [1, 128], strides = [1, 1]} : vector<32x1024xf32> to vector<1x128xf32>
    %32 = vector.extract_strided_slice %6 {offsets = [10, 512], sizes = [1, 128], strides = [1, 1]} : vector<32x1024xf32> to vector<1x128xf32>
    %33 = vector.extract_strided_slice %6 {offsets = [10, 640], sizes = [1, 128], strides = [1, 1]} : vector<32x1024xf32> to vector<1x128xf32>
    %34 = vector.extract_strided_slice %6 {offsets = [10, 768], sizes = [1, 128], strides = [1, 1]} : vector<32x1024xf32> to vector<1x128xf32>
    %35 = vector.extract_strided_slice %6 {offsets = [10, 896], sizes = [1, 128], strides = [1, 1]} : vector<32x1024xf32> to vector<1x128xf32>
    %36 = tpu.concatenate %28, %29, %30, %31, %32, %33, %34, %35 in 0 : vector<1x128xf32>, vector<1x128xf32>, vector<1x128xf32>, vector<1x128xf32>, vector<1x128xf32>, vector<1x128xf32>, vector<1x128xf32>, vector<1x128xf32> -> vector<8x128xf32>
    %37 = vector.extract_strided_slice %6 {offsets = [11, 0], sizes = [1, 128], strides = [1, 1]} : vector<32x1024xf32> to vector<1x128xf32>
    %38 = vector.extract_strided_slice %6 {offsets = [11, 128], sizes = [1, 128], strides = [1, 1]} : vector<32x1024xf32> to vector<1x128xf32>
    %39 = vector.extract_strided_slice %6 {offsets = [11, 256], sizes = [1, 128], strides = [1, 1]} : vector<32x1024xf32> to vector<1x128xf32>
    %40 = vector.extract_strided_slice %6 {offsets = [11, 384], sizes = [1, 128], strides = [1, 1]} : vector<32x1024xf32> to vector<1x128xf32>
    %41 = vector.extract_strided_slice %6 {offsets = [11, 512], sizes = [1, 128], strides = [1, 1]} : vector<32x1024xf32> to vector<1x128xf32>
    %42 = vector.extract_strided_slice %6 {offsets = [11, 640], sizes = [1, 128], strides = [1, 1]} : vector<32x1024xf32> to vector<1x128xf32>
    %43 = vector.extract_strided_slice %6 {offsets = [11, 768], sizes = [1, 128], strides = [1, 1]} : vector<32x1024xf32> to vector<1x128xf32>
    %44 = vector.extract_strided_slice %6 {offsets = [11, 896], sizes = [1, 128], strides = [1, 1]} : vector<32x1024xf32> to vector<1x128xf32>
    %45 = tpu.concatenate %37, %38, %39, %40, %41, %42, %43, %44 in 0 : vector<1x128xf32>, vector<1x128xf32>, vector<1x128xf32>, vector<1x128xf32>, vector<1x128xf32>, vector<1x128xf32>, vector<1x128xf32>, vector<1x128xf32> -> vector<8x128xf32>
    %46 = vector.extract_strided_slice %6 {offsets = [0, 0], sizes = [1, 128], strides = [1, 1]} : vector<32x1024xf32> to vector<1x128xf32>
    %47 = vector.extract_strided_slice %7 {offsets = [0, 0, 0], sizes = [1, 8, 1], strides = [1, 1, 1]} : vector<8x8x8xf32> to vector<1x8x1xf32>
    %48 = vector.shape_cast %47 : vector<1x8x1xf32> to vector<8x1xf32>
    %49 = vector.broadcast %46 : vector<1x128xf32> to vector<8x128xf32>
    %50 = vector.broadcast %48 : vector<8x1xf32> to vector<8x128xf32>
    %51 = arith.addf %49, %50 : vector<8x128xf32>
    %52 = arith.mulf %18, %51 : vector<8x128xf32>
    %53 = vector.extract_strided_slice %8 {offsets = [0, 0, 0], sizes = [1, 8, 1], strides = [1, 1, 1]} : vector<8x8x8xf32> to vector<1x8x1xf32>
    %54 = vector.shape_cast %53 : vector<1x8x1xf32> to vector<8x1xf32>
    %55 = vector.broadcast %46 : vector<1x128xf32> to vector<8x128xf32>
    %56 = vector.broadcast %54 : vector<8x1xf32> to vector<8x128xf32>
    %57 = arith.mulf %55, %56 : vector<8x128xf32>
    %58 = arith.addf %52, %57 : vector<8x128xf32>
    %59 = vector.extract_strided_slice %6 {offsets = [1, 0], sizes = [1, 128], strides = [1, 1]} : vector<32x1024xf32> to vector<1x128xf32>
    %60 = vector.extract_strided_slice %7 {offsets = [1, 0, 0], sizes = [1, 8, 1], strides = [1, 1, 1]} : vector<8x8x8xf32> to vector<1x8x1xf32>
    %61 = vector.shape_cast %60 : vector<1x8x1xf32> to vector<8x1xf32>
    %62 = vector.broadcast %59 : vector<1x128xf32> to vector<8x128xf32>
    %63 = vector.broadcast %61 : vector<8x1xf32> to vector<8x128xf32>
    %64 = arith.addf %62, %63 : vector<8x128xf32>
    %65 = arith.mulf %27, %64 : vector<8x128xf32>
    %66 = vector.extract_strided_slice %8 {offsets = [1, 0, 0], sizes = [1, 8, 1], strides = [1, 1, 1]} : vector<8x8x8xf32> to vector<1x8x1xf32>
    %67 = vector.shape_cast %66 : vector<1x8x1xf32> to vector<8x1xf32>
    %68 = vector.broadcast %59 : vector<1x128xf32> to vector<8x128xf32>
    %69 = vector.broadcast %67 : vector<8x1xf32> to vector<8x128xf32>
    %70 = arith.mulf %68, %69 : vector<8x128xf32>
    %71 = arith.addf %65, %70 : vector<8x128xf32>
    %72 = arith.addf %58, %71 : vector<8x128xf32>
    %73 = vector.extract_strided_slice %6 {offsets = [2, 0], sizes = [1, 128], strides = [1, 1]} : vector<32x1024xf32> to vector<1x128xf32>
    %74 = vector.extract_strided_slice %7 {offsets = [2, 0, 0], sizes = [1, 8, 1], strides = [1, 1, 1]} : vector<8x8x8xf32> to vector<1x8x1xf32>
    %75 = vector.shape_cast %74 : vector<1x8x1xf32> to vector<8x1xf32>
    %76 = vector.broadcast %73 : vector<1x128xf32> to vector<8x128xf32>
    %77 = vector.broadcast %75 : vector<8x1xf32> to vector<8x128xf32>
    %78 = arith.addf %76, %77 : vector<8x128xf32>
    %79 = arith.mulf %36, %78 : vector<8x128xf32>
    %80 = vector.extract_strided_slice %8 {offsets = [2, 0, 0], sizes = [1, 8, 1], strides = [1, 1, 1]} : vector<8x8x8xf32> to vector<1x8x1xf32>
    %81 = vector.shape_cast %80 : vector<1x8x1xf32> to vector<8x1xf32>
    %82 = vector.broadcast %73 : vector<1x128xf32> to vector<8x128xf32>
    %83 = vector.broadcast %81 : vector<8x1xf32> to vector<8x128xf32>
    %84 = arith.mulf %82, %83 : vector<8x128xf32>
    %85 = arith.addf %79, %84 : vector<8x128xf32>
    %86 = arith.addf %72, %85 : vector<8x128xf32>
    %87 = vector.extract_strided_slice %6 {offsets = [3, 0], sizes = [1, 128], strides = [1, 1]} : vector<32x1024xf32> to vector<1x128xf32>
    %88 = vector.extract_strided_slice %7 {offsets = [3, 0, 0], sizes = [1, 8, 1], strides = [1, 1, 1]} : vector<8x8x8xf32> to vector<1x8x1xf32>
    %89 = vector.shape_cast %88 : vector<1x8x1xf32> to vector<8x1xf32>
    %90 = vector.broadcast %87 : vector<1x128xf32> to vector<8x128xf32>
    %91 = vector.broadcast %89 : vector<8x1xf32> to vector<8x128xf32>
    %92 = arith.addf %90, %91 : vector<8x128xf32>
    %93 = arith.mulf %45, %92 : vector<8x128xf32>
    %94 = vector.extract_strided_slice %8 {offsets = [3, 0, 0], sizes = [1, 8, 1], strides = [1, 1, 1]} : vector<8x8x8xf32> to vector<1x8x1xf32>
    %95 = vector.shape_cast %94 : vector<1x8x1xf32> to vector<8x1xf32>
    %96 = vector.broadcast %87 : vector<1x128xf32> to vector<8x128xf32>
    %97 = vector.broadcast %95 : vector<8x1xf32> to vector<8x128xf32>
    %98 = arith.mulf %96, %97 : vector<8x128xf32>
    %99 = arith.addf %93, %98 : vector<8x128xf32>
    %100 = arith.addf %86, %99 : vector<8x128xf32>
    %101 = vector.extract_strided_slice %6 {offsets = [0, 128], sizes = [1, 128], strides = [1, 1]} : vector<32x1024xf32> to vector<1x128xf32>
    %102 = vector.extract_strided_slice %7 {offsets = [0, 0, 1], sizes = [1, 8, 1], strides = [1, 1, 1]} : vector<8x8x8xf32> to vector<1x8x1xf32>
    %103 = vector.shape_cast %102 : vector<1x8x1xf32> to vector<8x1xf32>
    %104 = vector.broadcast %101 : vector<1x128xf32> to vector<8x128xf32>
    %105 = vector.broadcast %103 : vector<8x1xf32> to vector<8x128xf32>
    %106 = arith.addf %104, %105 : vector<8x128xf32>
    %107 = arith.mulf %18, %106 : vector<8x128xf32>
    %108 = vector.extract_strided_slice %8 {offsets = [0, 0, 1], sizes = [1, 8, 1], strides = [1, 1, 1]} : vector<8x8x8xf32> to vector<1x8x1xf32>
    %109 = vector.shape_cast %108 : vector<1x8x1xf32> to vector<8x1xf32>
    %110 = vector.broadcast %101 : vector<1x128xf32> to vector<8x128xf32>
    %111 = vector.broadcast %109 : vector<8x1xf32> to vector<8x128xf32>
    %112 = arith.mulf %110, %111 : vector<8x128xf32>
    %113 = arith.addf %107, %112 : vector<8x128xf32>
    %114 = vector.extract_strided_slice %6 {offsets = [1, 128], sizes = [1, 128], strides = [1, 1]} : vector<32x1024xf32> to vector<1x128xf32>
    %115 = vector.extract_strided_slice %7 {offsets = [1, 0, 1], sizes = [1, 8, 1], strides = [1, 1, 1]} : vector<8x8x8xf32> to vector<1x8x1xf32>
    %116 = vector.shape_cast %115 : vector<1x8x1xf32> to vector<8x1xf32>
    %117 = vector.broadcast %114 : vector<1x128xf32> to vector<8x128xf32>
    %118 = vector.broadcast %116 : vector<8x1xf32> to vector<8x128xf32>
    %119 = arith.addf %117, %118 : vector<8x128xf32>
    %120 = arith.mulf %27, %119 : vector<8x128xf32>
    %121 = vector.extract_strided_slice %8 {offsets = [1, 0, 1], sizes = [1, 8, 1], strides = [1, 1, 1]} : vector<8x8x8xf32> to vector<1x8x1xf32>
    %122 = vector.shape_cast %121 : vector<1x8x1xf32> to vector<8x1xf32>
    %123 = vector.broadcast %114 : vector<1x128xf32> to vector<8x128xf32>
    %124 = vector.broadcast %122 : vector<8x1xf32> to vector<8x128xf32>
    %125 = arith.mulf %123, %124 : vector<8x128xf32>
    %126 = arith.addf %120, %125 : vector<8x128xf32>
    %127 = arith.addf %113, %126 : vector<8x128xf32>
    %128 = vector.extract_strided_slice %6 {offsets = [2, 128], sizes = [1, 128], strides = [1, 1]} : vector<32x1024xf32> to vector<1x128xf32>
    %129 = vector.extract_strided_slice %7 {offsets = [2, 0, 1], sizes = [1, 8, 1], strides = [1, 1, 1]} : vector<8x8x8xf32> to vector<1x8x1xf32>
    %130 = vector.shape_cast %129 : vector<1x8x1xf32> to vector<8x1xf32>
    %131 = vector.broadcast %128 : vector<1x128xf32> to vector<8x128xf32>
    %132 = vector.broadcast %130 : vector<8x1xf32> to vector<8x128xf32>
    %133 = arith.addf %131, %132 : vector<8x128xf32>
    %134 = arith.mulf %36, %133 : vector<8x128xf32>
    %135 = vector.extract_strided_slice %8 {offsets = [2, 0, 1], sizes = [1, 8, 1], strides = [1, 1, 1]} : vector<8x8x8xf32> to vector<1x8x1xf32>
    %136 = vector.shape_cast %135 : vector<1x8x1xf32> to vector<8x1xf32>
    %137 = vector.broadcast %128 : vector<1x128xf32> to vector<8x128xf32>
    %138 = vector.broadcast %136 : vector<8x1xf32> to vector<8x128xf32>
    %139 = arith.mulf %137, %138 : vector<8x128xf32>
    %140 = arith.addf %134, %139 : vector<8x128xf32>
    %141 = arith.addf %127, %140 : vector<8x128xf32>
    %142 = vector.extract_strided_slice %6 {offsets = [3, 128], sizes = [1, 128], strides = [1, 1]} : vector<32x1024xf32> to vector<1x128xf32>
    %143 = vector.extract_strided_slice %7 {offsets = [3, 0, 1], sizes = [1, 8, 1], strides = [1, 1, 1]} : vector<8x8x8xf32> to vector<1x8x1xf32>
    %144 = vector.shape_cast %143 : vector<1x8x1xf32> to vector<8x1xf32>
    %145 = vector.broadcast %142 : vector<1x128xf32> to vector<8x128xf32>
    %146 = vector.broadcast %144 : vector<8x1xf32> to vector<8x128xf32>
    %147 = arith.addf %145, %146 : vector<8x128xf32>
    %148 = arith.mulf %45, %147 : vector<8x128xf32>
    %149 = vector.extract_strided_slice %8 {offsets = [3, 0, 1], sizes = [1, 8, 1], strides = [1, 1, 1]} : vector<8x8x8xf32> to vector<1x8x1xf32>
    %150 = vector.shape_cast %149 : vector<1x8x1xf32> to vector<8x1xf32>
    %151 = vector.broadcast %142 : vector<1x128xf32> to vector<8x128xf32>
    %152 = vector.broadcast %150 : vector<8x1xf32> to vector<8x128xf32>
    %153 = arith.mulf %151, %152 : vector<8x128xf32>
    %154 = arith.addf %148, %153 : vector<8x128xf32>
    %155 = arith.addf %141, %154 : vector<8x128xf32>
    %156 = vector.extract_strided_slice %6 {offsets = [0, 256], sizes = [1, 128], strides = [1, 1]} : vector<32x1024xf32> to vector<1x128xf32>
    %157 = vector.extract_strided_slice %7 {offsets = [0, 0, 2], sizes = [1, 8, 1], strides = [1, 1, 1]} : vector<8x8x8xf32> to vector<1x8x1xf32>
    %158 = vector.shape_cast %157 : vector<1x8x1xf32> to vector<8x1xf32>
    %159 = vector.broadcast %156 : vector<1x128xf32> to vector<8x128xf32>
    %160 = vector.broadcast %158 : vector<8x1xf32> to vector<8x128xf32>
    %161 = arith.addf %159, %160 : vector<8x128xf32>
    %162 = arith.mulf %18, %161 : vector<8x128xf32>
    %163 = vector.extract_strided_slice %8 {offsets = [0, 0, 2], sizes = [1, 8, 1], strides = [1, 1, 1]} : vector<8x8x8xf32> to vector<1x8x1xf32>
    %164 = vector.shape_cast %163 : vector<1x8x1xf32> to vector<8x1xf32>
    %165 = vector.broadcast %156 : vector<1x128xf32> to vector<8x128xf32>
    %166 = vector.broadcast %164 : vector<8x1xf32> to vector<8x128xf32>
    %167 = arith.mulf %165, %166 : vector<8x128xf32>
    %168 = arith.addf %162, %167 : vector<8x128xf32>
    %169 = vector.extract_strided_slice %6 {offsets = [1, 256], sizes = [1, 128], strides = [1, 1]} : vector<32x1024xf32> to vector<1x128xf32>
    %170 = vector.extract_strided_slice %7 {offsets = [1, 0, 2], sizes = [1, 8, 1], strides = [1, 1, 1]} : vector<8x8x8xf32> to vector<1x8x1xf32>
    %171 = vector.shape_cast %170 : vector<1x8x1xf32> to vector<8x1xf32>
    %172 = vector.broadcast %169 : vector<1x128xf32> to vector<8x128xf32>
    %173 = vector.broadcast %171 : vector<8x1xf32> to vector<8x128xf32>
    %174 = arith.addf %172, %173 : vector<8x128xf32>
    %175 = arith.mulf %27, %174 : vector<8x128xf32>
    %176 = vector.extract_strided_slice %8 {offsets = [1, 0, 2], sizes = [1, 8, 1], strides = [1, 1, 1]} : vector<8x8x8xf32> to vector<1x8x1xf32>
    %177 = vector.shape_cast %176 : vector<1x8x1xf32> to vector<8x1xf32>
    %178 = vector.broadcast %169 : vector<1x128xf32> to vector<8x128xf32>
    %179 = vector.broadcast %177 : vector<8x1xf32> to vector<8x128xf32>
    %180 = arith.mulf %178, %179 : vector<8x128xf32>
    %181 = arith.addf %175, %180 : vector<8x128xf32>
    %182 = arith.addf %168, %181 : vector<8x128xf32>
    %183 = vector.extract_strided_slice %6 {offsets = [2, 256], sizes = [1, 128], strides = [1, 1]} : vector<32x1024xf32> to vector<1x128xf32>
    %184 = vector.extract_strided_slice %7 {offsets = [2, 0, 2], sizes = [1, 8, 1], strides = [1, 1, 1]} : vector<8x8x8xf32> to vector<1x8x1xf32>
    %185 = vector.shape_cast %184 : vector<1x8x1xf32> to vector<8x1xf32>
    %186 = vector.broadcast %183 : vector<1x128xf32> to vector<8x128xf32>
    %187 = vector.broadcast %185 : vector<8x1xf32> to vector<8x128xf32>
    %188 = arith.addf %186, %187 : vector<8x128xf32>
    %189 = arith.mulf %36, %188 : vector<8x128xf32>
    %190 = vector.extract_strided_slice %8 {offsets = [2, 0, 2], sizes = [1, 8, 1], strides = [1, 1, 1]} : vector<8x8x8xf32> to vector<1x8x1xf32>
    %191 = vector.shape_cast %190 : vector<1x8x1xf32> to vector<8x1xf32>
    %192 = vector.broadcast %183 : vector<1x128xf32> to vector<8x128xf32>
    %193 = vector.broadcast %191 : vector<8x1xf32> to vector<8x128xf32>
    %194 = arith.mulf %192, %193 : vector<8x128xf32>
    %195 = arith.addf %189, %194 : vector<8x128xf32>
    %196 = arith.addf %182, %195 : vector<8x128xf32>
    %197 = vector.extract_strided_slice %6 {offsets = [3, 256], sizes = [1, 128], strides = [1, 1]} : vector<32x1024xf32> to vector<1x128xf32>
    %198 = vector.extract_strided_slice %7 {offsets = [3, 0, 2], sizes = [1, 8, 1], strides = [1, 1, 1]} : vector<8x8x8xf32> to vector<1x8x1xf32>
    %199 = vector.shape_cast %198 : vector<1x8x1xf32> to vector<8x1xf32>
    %200 = vector.broadcast %197 : vector<1x128xf32> to vector<8x128xf32>
    %201 = vector.broadcast %199 : vector<8x1xf32> to vector<8x128xf32>
    %202 = arith.addf %200, %201 : vector<8x128xf32>
    %203 = arith.mulf %45, %202 : vector<8x128xf32>
    %204 = vector.extract_strided_slice %8 {offsets = [3, 0, 2], sizes = [1, 8, 1], strides = [1, 1, 1]} : vector<8x8x8xf32> to vector<1x8x1xf32>
    %205 = vector.shape_cast %204 : vector<1x8x1xf32> to vector<8x1xf32>
    %206 = vector.broadcast %197 : vector<1x128xf32> to vector<8x128xf32>
    %207 = vector.broadcast %205 : vector<8x1xf32> to vector<8x128xf32>
    %208 = arith.mulf %206, %207 : vector<8x128xf32>
    %209 = arith.addf %203, %208 : vector<8x128xf32>
    %210 = arith.addf %196, %209 : vector<8x128xf32>
    %211 = vector.extract_strided_slice %6 {offsets = [0, 384], sizes = [1, 128], strides = [1, 1]} : vector<32x1024xf32> to vector<1x128xf32>
    %212 = vector.extract_strided_slice %7 {offsets = [0, 0, 3], sizes = [1, 8, 1], strides = [1, 1, 1]} : vector<8x8x8xf32> to vector<1x8x1xf32>
    %213 = vector.shape_cast %212 : vector<1x8x1xf32> to vector<8x1xf32>
    %214 = vector.broadcast %211 : vector<1x128xf32> to vector<8x128xf32>
    %215 = vector.broadcast %213 : vector<8x1xf32> to vector<8x128xf32>
    %216 = arith.addf %214, %215 : vector<8x128xf32>
    %217 = arith.mulf %18, %216 : vector<8x128xf32>
    %218 = vector.extract_strided_slice %8 {offsets = [0, 0, 3], sizes = [1, 8, 1], strides = [1, 1, 1]} : vector<8x8x8xf32> to vector<1x8x1xf32>
    %219 = vector.shape_cast %218 : vector<1x8x1xf32> to vector<8x1xf32>
    %220 = vector.broadcast %211 : vector<1x128xf32> to vector<8x128xf32>
    %221 = vector.broadcast %219 : vector<8x1xf32> to vector<8x128xf32>
    %222 = arith.mulf %220, %221 : vector<8x128xf32>
    %223 = arith.addf %217, %222 : vector<8x128xf32>
    %224 = vector.extract_strided_slice %6 {offsets = [1, 384], sizes = [1, 128], strides = [1, 1]} : vector<32x1024xf32> to vector<1x128xf32>
    %225 = vector.extract_strided_slice %7 {offsets = [1, 0, 3], sizes = [1, 8, 1], strides = [1, 1, 1]} : vector<8x8x8xf32> to vector<1x8x1xf32>
    %226 = vector.shape_cast %225 : vector<1x8x1xf32> to vector<8x1xf32>
    %227 = vector.broadcast %224 : vector<1x128xf32> to vector<8x128xf32>
    %228 = vector.broadcast %226 : vector<8x1xf32> to vector<8x128xf32>
    %229 = arith.addf %227, %228 : vector<8x128xf32>
    %230 = arith.mulf %27, %229 : vector<8x128xf32>
    %231 = vector.extract_strided_slice %8 {offsets = [1, 0, 3], sizes = [1, 8, 1], strides = [1, 1, 1]} : vector<8x8x8xf32> to vector<1x8x1xf32>
    %232 = vector.shape_cast %231 : vector<1x8x1xf32> to vector<8x1xf32>
    %233 = vector.broadcast %224 : vector<1x128xf32> to vector<8x128xf32>
    %234 = vector.broadcast %232 : vector<8x1xf32> to vector<8x128xf32>
    %235 = arith.mulf %233, %234 : vector<8x128xf32>
    %236 = arith.addf %230, %235 : vector<8x128xf32>
    %237 = arith.addf %223, %236 : vector<8x128xf32>
    %238 = vector.extract_strided_slice %6 {offsets = [2, 384], sizes = [1, 128], strides = [1, 1]} : vector<32x1024xf32> to vector<1x128xf32>
    %239 = vector.extract_strided_slice %7 {offsets = [2, 0, 3], sizes = [1, 8, 1], strides = [1, 1, 1]} : vector<8x8x8xf32> to vector<1x8x1xf32>
    %240 = vector.shape_cast %239 : vector<1x8x1xf32> to vector<8x1xf32>
    %241 = vector.broadcast %238 : vector<1x128xf32> to vector<8x128xf32>
    %242 = vector.broadcast %240 : vector<8x1xf32> to vector<8x128xf32>
    %243 = arith.addf %241, %242 : vector<8x128xf32>
    %244 = arith.mulf %36, %243 : vector<8x128xf32>
    %245 = vector.extract_strided_slice %8 {offsets = [2, 0, 3], sizes = [1, 8, 1], strides = [1, 1, 1]} : vector<8x8x8xf32> to vector<1x8x1xf32>
    %246 = vector.shape_cast %245 : vector<1x8x1xf32> to vector<8x1xf32>
    %247 = vector.broadcast %238 : vector<1x128xf32> to vector<8x128xf32>
    %248 = vector.broadcast %246 : vector<8x1xf32> to vector<8x128xf32>
    %249 = arith.mulf %247, %248 : vector<8x128xf32>
    %250 = arith.addf %244, %249 : vector<8x128xf32>
    %251 = arith.addf %237, %250 : vector<8x128xf32>
    %252 = vector.extract_strided_slice %6 {offsets = [3, 384], sizes = [1, 128], strides = [1, 1]} : vector<32x1024xf32> to vector<1x128xf32>
    %253 = vector.extract_strided_slice %7 {offsets = [3, 0, 3], sizes = [1, 8, 1], strides = [1, 1, 1]} : vector<8x8x8xf32> to vector<1x8x1xf32>
    %254 = vector.shape_cast %253 : vector<1x8x1xf32> to vector<8x1xf32>
    %255 = vector.broadcast %252 : vector<1x128xf32> to vector<8x128xf32>
    %256 = vector.broadcast %254 : vector<8x1xf32> to vector<8x128xf32>
    %257 = arith.addf %255, %256 : vector<8x128xf32>
    %258 = arith.mulf %45, %257 : vector<8x128xf32>
    %259 = vector.extract_strided_slice %8 {offsets = [3, 0, 3], sizes = [1, 8, 1], strides = [1, 1, 1]} : vector<8x8x8xf32> to vector<1x8x1xf32>
    %260 = vector.shape_cast %259 : vector<1x8x1xf32> to vector<8x1xf32>
    %261 = vector.broadcast %252 : vector<1x128xf32> to vector<8x128xf32>
    %262 = vector.broadcast %260 : vector<8x1xf32> to vector<8x128xf32>
    %263 = arith.mulf %261, %262 : vector<8x128xf32>
    %264 = arith.addf %258, %263 : vector<8x128xf32>
    %265 = arith.addf %251, %264 : vector<8x128xf32>
    %266 = vector.extract_strided_slice %6 {offsets = [0, 512], sizes = [1, 128], strides = [1, 1]} : vector<32x1024xf32> to vector<1x128xf32>
    %267 = vector.extract_strided_slice %7 {offsets = [0, 0, 4], sizes = [1, 8, 1], strides = [1, 1, 1]} : vector<8x8x8xf32> to vector<1x8x1xf32>
    %268 = vector.shape_cast %267 : vector<1x8x1xf32> to vector<8x1xf32>
    %269 = vector.broadcast %266 : vector<1x128xf32> to vector<8x128xf32>
    %270 = vector.broadcast %268 : vector<8x1xf32> to vector<8x128xf32>
    %271 = arith.addf %269, %270 : vector<8x128xf32>
    %272 = arith.mulf %18, %271 : vector<8x128xf32>
    %273 = vector.extract_strided_slice %8 {offsets = [0, 0, 4], sizes = [1, 8, 1], strides = [1, 1, 1]} : vector<8x8x8xf32> to vector<1x8x1xf32>
    %274 = vector.shape_cast %273 : vector<1x8x1xf32> to vector<8x1xf32>
    %275 = vector.broadcast %266 : vector<1x128xf32> to vector<8x128xf32>
    %276 = vector.broadcast %274 : vector<8x1xf32> to vector<8x128xf32>
    %277 = arith.mulf %275, %276 : vector<8x128xf32>
    %278 = arith.addf %272, %277 : vector<8x128xf32>
    %279 = vector.extract_strided_slice %6 {offsets = [1, 512], sizes = [1, 128], strides = [1, 1]} : vector<32x1024xf32> to vector<1x128xf32>
    %280 = vector.extract_strided_slice %7 {offsets = [1, 0, 4], sizes = [1, 8, 1], strides = [1, 1, 1]} : vector<8x8x8xf32> to vector<1x8x1xf32>
    %281 = vector.shape_cast %280 : vector<1x8x1xf32> to vector<8x1xf32>
    %282 = vector.broadcast %279 : vector<1x128xf32> to vector<8x128xf32>
    %283 = vector.broadcast %281 : vector<8x1xf32> to vector<8x128xf32>
    %284 = arith.addf %282, %283 : vector<8x128xf32>
    %285 = arith.mulf %27, %284 : vector<8x128xf32>
    %286 = vector.extract_strided_slice %8 {offsets = [1, 0, 4], sizes = [1, 8, 1], strides = [1, 1, 1]} : vector<8x8x8xf32> to vector<1x8x1xf32>
    %287 = vector.shape_cast %286 : vector<1x8x1xf32> to vector<8x1xf32>
    %288 = vector.broadcast %279 : vector<1x128xf32> to vector<8x128xf32>
    %289 = vector.broadcast %287 : vector<8x1xf32> to vector<8x128xf32>
    %290 = arith.mulf %288, %289 : vector<8x128xf32>
    %291 = arith.addf %285, %290 : vector<8x128xf32>
    %292 = arith.addf %278, %291 : vector<8x128xf32>
    %293 = vector.extract_strided_slice %6 {offsets = [2, 512], sizes = [1, 128], strides = [1, 1]} : vector<32x1024xf32> to vector<1x128xf32>
    %294 = vector.extract_strided_slice %7 {offsets = [2, 0, 4], sizes = [1, 8, 1], strides = [1, 1, 1]} : vector<8x8x8xf32> to vector<1x8x1xf32>
    %295 = vector.shape_cast %294 : vector<1x8x1xf32> to vector<8x1xf32>
    %296 = vector.broadcast %293 : vector<1x128xf32> to vector<8x128xf32>
    %297 = vector.broadcast %295 : vector<8x1xf32> to vector<8x128xf32>
    %298 = arith.addf %296, %297 : vector<8x128xf32>
    %299 = arith.mulf %36, %298 : vector<8x128xf32>
    %300 = vector.extract_strided_slice %8 {offsets = [2, 0, 4], sizes = [1, 8, 1], strides = [1, 1, 1]} : vector<8x8x8xf32> to vector<1x8x1xf32>
    %301 = vector.shape_cast %300 : vector<1x8x1xf32> to vector<8x1xf32>
    %302 = vector.broadcast %293 : vector<1x128xf32> to vector<8x128xf32>
    %303 = vector.broadcast %301 : vector<8x1xf32> to vector<8x128xf32>
    %304 = arith.mulf %302, %303 : vector<8x128xf32>
    %305 = arith.addf %299, %304 : vector<8x128xf32>
    %306 = arith.addf %292, %305 : vector<8x128xf32>
    %307 = vector.extract_strided_slice %6 {offsets = [3, 512], sizes = [1, 128], strides = [1, 1]} : vector<32x1024xf32> to vector<1x128xf32>
    %308 = vector.extract_strided_slice %7 {offsets = [3, 0, 4], sizes = [1, 8, 1], strides = [1, 1, 1]} : vector<8x8x8xf32> to vector<1x8x1xf32>
    %309 = vector.shape_cast %308 : vector<1x8x1xf32> to vector<8x1xf32>
    %310 = vector.broadcast %307 : vector<1x128xf32> to vector<8x128xf32>
    %311 = vector.broadcast %309 : vector<8x1xf32> to vector<8x128xf32>
    %312 = arith.addf %310, %311 : vector<8x128xf32>
    %313 = arith.mulf %45, %312 : vector<8x128xf32>
    %314 = vector.extract_strided_slice %8 {offsets = [3, 0, 4], sizes = [1, 8, 1], strides = [1, 1, 1]} : vector<8x8x8xf32> to vector<1x8x1xf32>
    %315 = vector.shape_cast %314 : vector<1x8x1xf32> to vector<8x1xf32>
    %316 = vector.broadcast %307 : vector<1x128xf32> to vector<8x128xf32>
    %317 = vector.broadcast %315 : vector<8x1xf32> to vector<8x128xf32>
    %318 = arith.mulf %316, %317 : vector<8x128xf32>
    %319 = arith.addf %313, %318 : vector<8x128xf32>
    %320 = arith.addf %306, %319 : vector<8x128xf32>
    %321 = vector.extract_strided_slice %6 {offsets = [0, 640], sizes = [1, 128], strides = [1, 1]} : vector<32x1024xf32> to vector<1x128xf32>
    %322 = vector.extract_strided_slice %7 {offsets = [0, 0, 5], sizes = [1, 8, 1], strides = [1, 1, 1]} : vector<8x8x8xf32> to vector<1x8x1xf32>
    %323 = vector.shape_cast %322 : vector<1x8x1xf32> to vector<8x1xf32>
    %324 = vector.broadcast %321 : vector<1x128xf32> to vector<8x128xf32>
    %325 = vector.broadcast %323 : vector<8x1xf32> to vector<8x128xf32>
    %326 = arith.addf %324, %325 : vector<8x128xf32>
    %327 = arith.mulf %18, %326 : vector<8x128xf32>
    %328 = vector.extract_strided_slice %8 {offsets = [0, 0, 5], sizes = [1, 8, 1], strides = [1, 1, 1]} : vector<8x8x8xf32> to vector<1x8x1xf32>
    %329 = vector.shape_cast %328 : vector<1x8x1xf32> to vector<8x1xf32>
    %330 = vector.broadcast %321 : vector<1x128xf32> to vector<8x128xf32>
    %331 = vector.broadcast %329 : vector<8x1xf32> to vector<8x128xf32>
    %332 = arith.mulf %330, %331 : vector<8x128xf32>
    %333 = arith.addf %327, %332 : vector<8x128xf32>
    %334 = vector.extract_strided_slice %6 {offsets = [1, 640], sizes = [1, 128], strides = [1, 1]} : vector<32x1024xf32> to vector<1x128xf32>
    %335 = vector.extract_strided_slice %7 {offsets = [1, 0, 5], sizes = [1, 8, 1], strides = [1, 1, 1]} : vector<8x8x8xf32> to vector<1x8x1xf32>
    %336 = vector.shape_cast %335 : vector<1x8x1xf32> to vector<8x1xf32>
    %337 = vector.broadcast %334 : vector<1x128xf32> to vector<8x128xf32>
    %338 = vector.broadcast %336 : vector<8x1xf32> to vector<8x128xf32>
    %339 = arith.addf %337, %338 : vector<8x128xf32>
    %340 = arith.mulf %27, %339 : vector<8x128xf32>
    %341 = vector.extract_strided_slice %8 {offsets = [1, 0, 5], sizes = [1, 8, 1], strides = [1, 1, 1]} : vector<8x8x8xf32> to vector<1x8x1xf32>
    %342 = vector.shape_cast %341 : vector<1x8x1xf32> to vector<8x1xf32>
    %343 = vector.broadcast %334 : vector<1x128xf32> to vector<8x128xf32>
    %344 = vector.broadcast %342 : vector<8x1xf32> to vector<8x128xf32>
    %345 = arith.mulf %343, %344 : vector<8x128xf32>
    %346 = arith.addf %340, %345 : vector<8x128xf32>
    %347 = arith.addf %333, %346 : vector<8x128xf32>
    %348 = vector.extract_strided_slice %6 {offsets = [2, 640], sizes = [1, 128], strides = [1, 1]} : vector<32x1024xf32> to vector<1x128xf32>
    %349 = vector.extract_strided_slice %7 {offsets = [2, 0, 5], sizes = [1, 8, 1], strides = [1, 1, 1]} : vector<8x8x8xf32> to vector<1x8x1xf32>
    %350 = vector.shape_cast %349 : vector<1x8x1xf32> to vector<8x1xf32>
    %351 = vector.broadcast %348 : vector<1x128xf32> to vector<8x128xf32>
    %352 = vector.broadcast %350 : vector<8x1xf32> to vector<8x128xf32>
    %353 = arith.addf %351, %352 : vector<8x128xf32>
    %354 = arith.mulf %36, %353 : vector<8x128xf32>
    %355 = vector.extract_strided_slice %8 {offsets = [2, 0, 5], sizes = [1, 8, 1], strides = [1, 1, 1]} : vector<8x8x8xf32> to vector<1x8x1xf32>
    %356 = vector.shape_cast %355 : vector<1x8x1xf32> to vector<8x1xf32>
    %357 = vector.broadcast %348 : vector<1x128xf32> to vector<8x128xf32>
    %358 = vector.broadcast %356 : vector<8x1xf32> to vector<8x128xf32>
    %359 = arith.mulf %357, %358 : vector<8x128xf32>
    %360 = arith.addf %354, %359 : vector<8x128xf32>
    %361 = arith.addf %347, %360 : vector<8x128xf32>
    %362 = vector.extract_strided_slice %6 {offsets = [3, 640], sizes = [1, 128], strides = [1, 1]} : vector<32x1024xf32> to vector<1x128xf32>
    %363 = vector.extract_strided_slice %7 {offsets = [3, 0, 5], sizes = [1, 8, 1], strides = [1, 1, 1]} : vector<8x8x8xf32> to vector<1x8x1xf32>
    %364 = vector.shape_cast %363 : vector<1x8x1xf32> to vector<8x1xf32>
    %365 = vector.broadcast %362 : vector<1x128xf32> to vector<8x128xf32>
    %366 = vector.broadcast %364 : vector<8x1xf32> to vector<8x128xf32>
    %367 = arith.addf %365, %366 : vector<8x128xf32>
    %368 = arith.mulf %45, %367 : vector<8x128xf32>
    %369 = vector.extract_strided_slice %8 {offsets = [3, 0, 5], sizes = [1, 8, 1], strides = [1, 1, 1]} : vector<8x8x8xf32> to vector<1x8x1xf32>
    %370 = vector.shape_cast %369 : vector<1x8x1xf32> to vector<8x1xf32>
    %371 = vector.broadcast %362 : vector<1x128xf32> to vector<8x128xf32>
    %372 = vector.broadcast %370 : vector<8x1xf32> to vector<8x128xf32>
    %373 = arith.mulf %371, %372 : vector<8x128xf32>
    %374 = arith.addf %368, %373 : vector<8x128xf32>
    %375 = arith.addf %361, %374 : vector<8x128xf32>
    %376 = vector.extract_strided_slice %6 {offsets = [0, 768], sizes = [1, 128], strides = [1, 1]} : vector<32x1024xf32> to vector<1x128xf32>
    %377 = vector.extract_strided_slice %7 {offsets = [0, 0, 6], sizes = [1, 8, 1], strides = [1, 1, 1]} : vector<8x8x8xf32> to vector<1x8x1xf32>
    %378 = vector.shape_cast %377 : vector<1x8x1xf32> to vector<8x1xf32>
    %379 = vector.broadcast %376 : vector<1x128xf32> to vector<8x128xf32>
    %380 = vector.broadcast %378 : vector<8x1xf32> to vector<8x128xf32>
    %381 = arith.addf %379, %380 : vector<8x128xf32>
    %382 = arith.mulf %18, %381 : vector<8x128xf32>
    %383 = vector.extract_strided_slice %8 {offsets = [0, 0, 6], sizes = [1, 8, 1], strides = [1, 1, 1]} : vector<8x8x8xf32> to vector<1x8x1xf32>
    %384 = vector.shape_cast %383 : vector<1x8x1xf32> to vector<8x1xf32>
    %385 = vector.broadcast %376 : vector<1x128xf32> to vector<8x128xf32>
    %386 = vector.broadcast %384 : vector<8x1xf32> to vector<8x128xf32>
    %387 = arith.mulf %385, %386 : vector<8x128xf32>
    %388 = arith.addf %382, %387 : vector<8x128xf32>
    %389 = vector.extract_strided_slice %6 {offsets = [1, 768], sizes = [1, 128], strides = [1, 1]} : vector<32x1024xf32> to vector<1x128xf32>
    %390 = vector.extract_strided_slice %7 {offsets = [1, 0, 6], sizes = [1, 8, 1], strides = [1, 1, 1]} : vector<8x8x8xf32> to vector<1x8x1xf32>
    %391 = vector.shape_cast %390 : vector<1x8x1xf32> to vector<8x1xf32>
    %392 = vector.broadcast %389 : vector<1x128xf32> to vector<8x128xf32>
    %393 = vector.broadcast %391 : vector<8x1xf32> to vector<8x128xf32>
    %394 = arith.addf %392, %393 : vector<8x128xf32>
    %395 = arith.mulf %27, %394 : vector<8x128xf32>
    %396 = vector.extract_strided_slice %8 {offsets = [1, 0, 6], sizes = [1, 8, 1], strides = [1, 1, 1]} : vector<8x8x8xf32> to vector<1x8x1xf32>
    %397 = vector.shape_cast %396 : vector<1x8x1xf32> to vector<8x1xf32>
    %398 = vector.broadcast %389 : vector<1x128xf32> to vector<8x128xf32>
    %399 = vector.broadcast %397 : vector<8x1xf32> to vector<8x128xf32>
    %400 = arith.mulf %398, %399 : vector<8x128xf32>
    %401 = arith.addf %395, %400 : vector<8x128xf32>
    %402 = arith.addf %388, %401 : vector<8x128xf32>
    %403 = vector.extract_strided_slice %6 {offsets = [2, 768], sizes = [1, 128], strides = [1, 1]} : vector<32x1024xf32> to vector<1x128xf32>
    %404 = vector.extract_strided_slice %7 {offsets = [2, 0, 6], sizes = [1, 8, 1], strides = [1, 1, 1]} : vector<8x8x8xf32> to vector<1x8x1xf32>
    %405 = vector.shape_cast %404 : vector<1x8x1xf32> to vector<8x1xf32>
    %406 = vector.broadcast %403 : vector<1x128xf32> to vector<8x128xf32>
    %407 = vector.broadcast %405 : vector<8x1xf32> to vector<8x128xf32>
    %408 = arith.addf %406, %407 : vector<8x128xf32>
    %409 = arith.mulf %36, %408 : vector<8x128xf32>
    %410 = vector.extract_strided_slice %8 {offsets = [2, 0, 6], sizes = [1, 8, 1], strides = [1, 1, 1]} : vector<8x8x8xf32> to vector<1x8x1xf32>
    %411 = vector.shape_cast %410 : vector<1x8x1xf32> to vector<8x1xf32>
    %412 = vector.broadcast %403 : vector<1x128xf32> to vector<8x128xf32>
    %413 = vector.broadcast %411 : vector<8x1xf32> to vector<8x128xf32>
    %414 = arith.mulf %412, %413 : vector<8x128xf32>
    %415 = arith.addf %409, %414 : vector<8x128xf32>
    %416 = arith.addf %402, %415 : vector<8x128xf32>
    %417 = vector.extract_strided_slice %6 {offsets = [3, 768], sizes = [1, 128], strides = [1, 1]} : vector<32x1024xf32> to vector<1x128xf32>
    %418 = vector.extract_strided_slice %7 {offsets = [3, 0, 6], sizes = [1, 8, 1], strides = [1, 1, 1]} : vector<8x8x8xf32> to vector<1x8x1xf32>
    %419 = vector.shape_cast %418 : vector<1x8x1xf32> to vector<8x1xf32>
    %420 = vector.broadcast %417 : vector<1x128xf32> to vector<8x128xf32>
    %421 = vector.broadcast %419 : vector<8x1xf32> to vector<8x128xf32>
    %422 = arith.addf %420, %421 : vector<8x128xf32>
    %423 = arith.mulf %45, %422 : vector<8x128xf32>
    %424 = vector.extract_strided_slice %8 {offsets = [3, 0, 6], sizes = [1, 8, 1], strides = [1, 1, 1]} : vector<8x8x8xf32> to vector<1x8x1xf32>
    %425 = vector.shape_cast %424 : vector<1x8x1xf32> to vector<8x1xf32>
    %426 = vector.broadcast %417 : vector<1x128xf32> to vector<8x128xf32>
    %427 = vector.broadcast %425 : vector<8x1xf32> to vector<8x128xf32>
    %428 = arith.mulf %426, %427 : vector<8x128xf32>
    %429 = arith.addf %423, %428 : vector<8x128xf32>
    %430 = arith.addf %416, %429 : vector<8x128xf32>
    %431 = vector.extract_strided_slice %6 {offsets = [0, 896], sizes = [1, 128], strides = [1, 1]} : vector<32x1024xf32> to vector<1x128xf32>
    %432 = vector.extract_strided_slice %7 {offsets = [0, 0, 7], sizes = [1, 8, 1], strides = [1, 1, 1]} : vector<8x8x8xf32> to vector<1x8x1xf32>
    %433 = vector.shape_cast %432 : vector<1x8x1xf32> to vector<8x1xf32>
    %434 = vector.broadcast %431 : vector<1x128xf32> to vector<8x128xf32>
    %435 = vector.broadcast %433 : vector<8x1xf32> to vector<8x128xf32>
    %436 = arith.addf %434, %435 : vector<8x128xf32>
    %437 = arith.mulf %18, %436 : vector<8x128xf32>
    %438 = vector.extract_strided_slice %8 {offsets = [0, 0, 7], sizes = [1, 8, 1], strides = [1, 1, 1]} : vector<8x8x8xf32> to vector<1x8x1xf32>
    %439 = vector.shape_cast %438 : vector<1x8x1xf32> to vector<8x1xf32>
    %440 = vector.broadcast %431 : vector<1x128xf32> to vector<8x128xf32>
    %441 = vector.broadcast %439 : vector<8x1xf32> to vector<8x128xf32>
    %442 = arith.mulf %440, %441 : vector<8x128xf32>
    %443 = arith.addf %437, %442 : vector<8x128xf32>
    %444 = vector.extract_strided_slice %6 {offsets = [1, 896], sizes = [1, 128], strides = [1, 1]} : vector<32x1024xf32> to vector<1x128xf32>
    %445 = vector.extract_strided_slice %7 {offsets = [1, 0, 7], sizes = [1, 8, 1], strides = [1, 1, 1]} : vector<8x8x8xf32> to vector<1x8x1xf32>
    %446 = vector.shape_cast %445 : vector<1x8x1xf32> to vector<8x1xf32>
    %447 = vector.broadcast %444 : vector<1x128xf32> to vector<8x128xf32>
    %448 = vector.broadcast %446 : vector<8x1xf32> to vector<8x128xf32>
    %449 = arith.addf %447, %448 : vector<8x128xf32>
    %450 = arith.mulf %27, %449 : vector<8x128xf32>
    %451 = vector.extract_strided_slice %8 {offsets = [1, 0, 7], sizes = [1, 8, 1], strides = [1, 1, 1]} : vector<8x8x8xf32> to vector<1x8x1xf32>
    %452 = vector.shape_cast %451 : vector<1x8x1xf32> to vector<8x1xf32>
    %453 = vector.broadcast %444 : vector<1x128xf32> to vector<8x128xf32>
    %454 = vector.broadcast %452 : vector<8x1xf32> to vector<8x128xf32>
    %455 = arith.mulf %453, %454 : vector<8x128xf32>
    %456 = arith.addf %450, %455 : vector<8x128xf32>
    %457 = arith.addf %443, %456 : vector<8x128xf32>
    %458 = vector.extract_strided_slice %6 {offsets = [2, 896], sizes = [1, 128], strides = [1, 1]} : vector<32x1024xf32> to vector<1x128xf32>
    %459 = vector.extract_strided_slice %7 {offsets = [2, 0, 7], sizes = [1, 8, 1], strides = [1, 1, 1]} : vector<8x8x8xf32> to vector<1x8x1xf32>
    %460 = vector.shape_cast %459 : vector<1x8x1xf32> to vector<8x1xf32>
    %461 = vector.broadcast %458 : vector<1x128xf32> to vector<8x128xf32>
    %462 = vector.broadcast %460 : vector<8x1xf32> to vector<8x128xf32>
    %463 = arith.addf %461, %462 : vector<8x128xf32>
    %464 = arith.mulf %36, %463 : vector<8x128xf32>
    %465 = vector.extract_strided_slice %8 {offsets = [2, 0, 7], sizes = [1, 8, 1], strides = [1, 1, 1]} : vector<8x8x8xf32> to vector<1x8x1xf32>
    %466 = vector.shape_cast %465 : vector<1x8x1xf32> to vector<8x1xf32>
    %467 = vector.broadcast %458 : vector<1x128xf32> to vector<8x128xf32>
    %468 = vector.broadcast %466 : vector<8x1xf32> to vector<8x128xf32>
    %469 = arith.mulf %467, %468 : vector<8x128xf32>
    %470 = arith.addf %464, %469 : vector<8x128xf32>
    %471 = arith.addf %457, %470 : vector<8x128xf32>
    %472 = vector.extract_strided_slice %6 {offsets = [3, 896], sizes = [1, 128], strides = [1, 1]} : vector<32x1024xf32> to vector<1x128xf32>
    %473 = vector.extract_strided_slice %7 {offsets = [3, 0, 7], sizes = [1, 8, 1], strides = [1, 1, 1]} : vector<8x8x8xf32> to vector<1x8x1xf32>
    %474 = vector.shape_cast %473 : vector<1x8x1xf32> to vector<8x1xf32>
    %475 = vector.broadcast %472 : vector<1x128xf32> to vector<8x128xf32>
    %476 = vector.broadcast %474 : vector<8x1xf32> to vector<8x128xf32>
    %477 = arith.addf %475, %476 : vector<8x128xf32>
    %478 = arith.mulf %45, %477 : vector<8x128xf32>
    %479 = vector.extract_strided_slice %8 {offsets = [3, 0, 7], sizes = [1, 8, 1], strides = [1, 1, 1]} : vector<8x8x8xf32> to vector<1x8x1xf32>
    %480 = vector.shape_cast %479 : vector<1x8x1xf32> to vector<8x1xf32>
    %481 = vector.broadcast %472 : vector<1x128xf32> to vector<8x128xf32>
    %482 = vector.broadcast %480 : vector<8x1xf32> to vector<8x128xf32>
    %483 = arith.mulf %481, %482 : vector<8x128xf32>
    %484 = arith.addf %478, %483 : vector<8x128xf32>
    %485 = arith.addf %471, %484 : vector<8x128xf32>
    %486 = arith.maximumf %100, %155 : vector<8x128xf32>
    %487 = arith.maximumf %486, %210 : vector<8x128xf32>
    %488 = arith.maximumf %487, %265 : vector<8x128xf32>
    %489 = arith.maximumf %488, %320 : vector<8x128xf32>
    %490 = arith.maximumf %489, %375 : vector<8x128xf32>
    %491 = arith.maximumf %490, %430 : vector<8x128xf32>
    %492 = arith.maximumf %491, %485 : vector<8x128xf32>
    %493 = arith.subf %100, %492 : vector<8x128xf32>
    %494 = math.exp %493 : vector<8x128xf32>
    %495 = arith.subf %155, %492 : vector<8x128xf32>
    %496 = math.exp %495 : vector<8x128xf32>
    %497 = arith.subf %210, %492 : vector<8x128xf32>
    %498 = math.exp %497 : vector<8x128xf32>
    %499 = arith.subf %265, %492 : vector<8x128xf32>
    %500 = math.exp %499 : vector<8x128xf32>
    %501 = arith.subf %320, %492 : vector<8x128xf32>
    %502 = math.exp %501 : vector<8x128xf32>
    %503 = arith.subf %375, %492 : vector<8x128xf32>
    %504 = math.exp %503 : vector<8x128xf32>
    %505 = arith.subf %430, %492 : vector<8x128xf32>
    %506 = math.exp %505 : vector<8x128xf32>
    %507 = arith.subf %485, %492 : vector<8x128xf32>
    %508 = math.exp %507 : vector<8x128xf32>
    %509 = arith.addf %494, %496 : vector<8x128xf32>
    %510 = arith.addf %509, %498 : vector<8x128xf32>
    %511 = arith.addf %510, %500 : vector<8x128xf32>
    %512 = arith.addf %511, %502 : vector<8x128xf32>
    %513 = arith.addf %512, %504 : vector<8x128xf32>
    %514 = arith.addf %513, %506 : vector<8x128xf32>
    %515 = arith.addf %514, %508 : vector<8x128xf32>
    %cst_15 = arith.constant 1.000000e+00 : f32
    %516 = vector.broadcast %cst_15 : f32 to vector<8x128xf32>
    %517 = arith.divf %516, %515 : vector<8x128xf32>
    %518 = vector.extract_strided_slice %6 {offsets = [16, 0], sizes = [1, 128], strides = [1, 1]} : vector<32x1024xf32> to vector<1x128xf32>
    %519 = vector.extract_strided_slice %9 {offsets = [0, 0, 0], sizes = [1, 8, 1], strides = [1, 1, 1]} : vector<8x8x8xf32> to vector<1x8x1xf32>
    %520 = vector.shape_cast %519 : vector<1x8x1xf32> to vector<8x1xf32>
    %521 = vector.broadcast %518 : vector<1x128xf32> to vector<8x128xf32>
    %522 = vector.broadcast %520 : vector<8x1xf32> to vector<8x128xf32>
    %523 = arith.addf %521, %522 : vector<8x128xf32>
    %524 = arith.mulf %494, %523 : vector<8x128xf32>
    %525 = vector.extract_strided_slice %6 {offsets = [16, 128], sizes = [1, 128], strides = [1, 1]} : vector<32x1024xf32> to vector<1x128xf32>
    %526 = vector.extract_strided_slice %9 {offsets = [0, 0, 1], sizes = [1, 8, 1], strides = [1, 1, 1]} : vector<8x8x8xf32> to vector<1x8x1xf32>
    %527 = vector.shape_cast %526 : vector<1x8x1xf32> to vector<8x1xf32>
    %528 = vector.broadcast %525 : vector<1x128xf32> to vector<8x128xf32>
    %529 = vector.broadcast %527 : vector<8x1xf32> to vector<8x128xf32>
    %530 = arith.addf %528, %529 : vector<8x128xf32>
    %531 = arith.mulf %496, %530 : vector<8x128xf32>
    %532 = arith.addf %524, %531 : vector<8x128xf32>
    %533 = vector.extract_strided_slice %6 {offsets = [16, 256], sizes = [1, 128], strides = [1, 1]} : vector<32x1024xf32> to vector<1x128xf32>
    %534 = vector.extract_strided_slice %9 {offsets = [0, 0, 2], sizes = [1, 8, 1], strides = [1, 1, 1]} : vector<8x8x8xf32> to vector<1x8x1xf32>
    %535 = vector.shape_cast %534 : vector<1x8x1xf32> to vector<8x1xf32>
    %536 = vector.broadcast %533 : vector<1x128xf32> to vector<8x128xf32>
    %537 = vector.broadcast %535 : vector<8x1xf32> to vector<8x128xf32>
    %538 = arith.addf %536, %537 : vector<8x128xf32>
    %539 = arith.mulf %498, %538 : vector<8x128xf32>
    %540 = arith.addf %532, %539 : vector<8x128xf32>
    %541 = vector.extract_strided_slice %6 {offsets = [16, 384], sizes = [1, 128], strides = [1, 1]} : vector<32x1024xf32> to vector<1x128xf32>
    %542 = vector.extract_strided_slice %9 {offsets = [0, 0, 3], sizes = [1, 8, 1], strides = [1, 1, 1]} : vector<8x8x8xf32> to vector<1x8x1xf32>
    %543 = vector.shape_cast %542 : vector<1x8x1xf32> to vector<8x1xf32>
    %544 = vector.broadcast %541 : vector<1x128xf32> to vector<8x128xf32>
    %545 = vector.broadcast %543 : vector<8x1xf32> to vector<8x128xf32>
    %546 = arith.addf %544, %545 : vector<8x128xf32>
    %547 = arith.mulf %500, %546 : vector<8x128xf32>
    %548 = arith.addf %540, %547 : vector<8x128xf32>
    %549 = vector.extract_strided_slice %6 {offsets = [16, 512], sizes = [1, 128], strides = [1, 1]} : vector<32x1024xf32> to vector<1x128xf32>
    %550 = vector.extract_strided_slice %9 {offsets = [0, 0, 4], sizes = [1, 8, 1], strides = [1, 1, 1]} : vector<8x8x8xf32> to vector<1x8x1xf32>
    %551 = vector.shape_cast %550 : vector<1x8x1xf32> to vector<8x1xf32>
    %552 = vector.broadcast %549 : vector<1x128xf32> to vector<8x128xf32>
    %553 = vector.broadcast %551 : vector<8x1xf32> to vector<8x128xf32>
    %554 = arith.addf %552, %553 : vector<8x128xf32>
    %555 = arith.mulf %502, %554 : vector<8x128xf32>
    %556 = arith.addf %548, %555 : vector<8x128xf32>
    %557 = vector.extract_strided_slice %6 {offsets = [16, 640], sizes = [1, 128], strides = [1, 1]} : vector<32x1024xf32> to vector<1x128xf32>
    %558 = vector.extract_strided_slice %9 {offsets = [0, 0, 5], sizes = [1, 8, 1], strides = [1, 1, 1]} : vector<8x8x8xf32> to vector<1x8x1xf32>
    %559 = vector.shape_cast %558 : vector<1x8x1xf32> to vector<8x1xf32>
    %560 = vector.broadcast %557 : vector<1x128xf32> to vector<8x128xf32>
    %561 = vector.broadcast %559 : vector<8x1xf32> to vector<8x128xf32>
    %562 = arith.addf %560, %561 : vector<8x128xf32>
    %563 = arith.mulf %504, %562 : vector<8x128xf32>
    %564 = arith.addf %556, %563 : vector<8x128xf32>
    %565 = vector.extract_strided_slice %6 {offsets = [16, 768], sizes = [1, 128], strides = [1, 1]} : vector<32x1024xf32> to vector<1x128xf32>
    %566 = vector.extract_strided_slice %9 {offsets = [0, 0, 6], sizes = [1, 8, 1], strides = [1, 1, 1]} : vector<8x8x8xf32> to vector<1x8x1xf32>
    %567 = vector.shape_cast %566 : vector<1x8x1xf32> to vector<8x1xf32>
    %568 = vector.broadcast %565 : vector<1x128xf32> to vector<8x128xf32>
    %569 = vector.broadcast %567 : vector<8x1xf32> to vector<8x128xf32>
    %570 = arith.addf %568, %569 : vector<8x128xf32>
    %571 = arith.mulf %506, %570 : vector<8x128xf32>
    %572 = arith.addf %564, %571 : vector<8x128xf32>
    %573 = vector.extract_strided_slice %6 {offsets = [16, 896], sizes = [1, 128], strides = [1, 1]} : vector<32x1024xf32> to vector<1x128xf32>
    %574 = vector.extract_strided_slice %9 {offsets = [0, 0, 7], sizes = [1, 8, 1], strides = [1, 1, 1]} : vector<8x8x8xf32> to vector<1x8x1xf32>
    %575 = vector.shape_cast %574 : vector<1x8x1xf32> to vector<8x1xf32>
    %576 = vector.broadcast %573 : vector<1x128xf32> to vector<8x128xf32>
    %577 = vector.broadcast %575 : vector<8x1xf32> to vector<8x128xf32>
    %578 = arith.addf %576, %577 : vector<8x128xf32>
    %579 = arith.mulf %508, %578 : vector<8x128xf32>
    %580 = arith.addf %572, %579 : vector<8x128xf32>
    %581 = arith.mulf %580, %517 : vector<8x128xf32>
    %c0_16 = arith.constant 0 : index
    %c0_17 = arith.constant 0 : index
    %c0_18 = arith.constant 0 : index
    %582 = vector.load %arg7[%c0_16, %c0_17, %c0_18] : memref<16x8x128xf32, #tpu.memory_space<vmem>>, vector<1x8x128xf32>
    %583 = vector.shape_cast %582 : vector<1x8x128xf32> to vector<8x128xf32>
    %584 = vector.shape_cast %581 : vector<8x128xf32> to vector<1x8x128xf32>
    tpu.vector_store %arg7[%c0_16, %c0_17, %c0_18], %584 {strides = array<i32>} : memref<16x8x128xf32, #tpu.memory_space<vmem>>, vector<1x8x128xf32>,
    %585 = vector.extract_strided_slice %6 {offsets = [17, 0], sizes = [1, 128], strides = [1, 1]} : vector<32x1024xf32> to vector<1x128xf32>
    %586 = vector.extract_strided_slice %9 {offsets = [1, 0, 0], sizes = [1, 8, 1], strides = [1, 1, 1]} : vector<8x8x8xf32> to vector<1x8x1xf32>
    %587 = vector.shape_cast %586 : vector<1x8x1xf32> to vector<8x1xf32>
    %588 = vector.broadcast %585 : vector<1x128xf32> to vector<8x128xf32>
    %589 = vector.broadcast %587 : vector<8x1xf32> to vector<8x128xf32>
    %590 = arith.addf %588, %589 : vector<8x128xf32>
    %591 = arith.mulf %494, %590 : vector<8x128xf32>
    %592 = vector.extract_strided_slice %6 {offsets = [17, 128], sizes = [1, 128], strides = [1, 1]} : vector<32x1024xf32> to vector<1x128xf32>
    %593 = vector.extract_strided_slice %9 {offsets = [1, 0, 1], sizes = [1, 8, 1], strides = [1, 1, 1]} : vector<8x8x8xf32> to vector<1x8x1xf32>
    %594 = vector.shape_cast %593 : vector<1x8x1xf32> to vector<8x1xf32>
    %595 = vector.broadcast %592 : vector<1x128xf32> to vector<8x128xf32>
    %596 = vector.broadcast %594 : vector<8x1xf32> to vector<8x128xf32>
    %597 = arith.addf %595, %596 : vector<8x128xf32>
    %598 = arith.mulf %496, %597 : vector<8x128xf32>
    %599 = arith.addf %591, %598 : vector<8x128xf32>
    %600 = vector.extract_strided_slice %6 {offsets = [17, 256], sizes = [1, 128], strides = [1, 1]} : vector<32x1024xf32> to vector<1x128xf32>
    %601 = vector.extract_strided_slice %9 {offsets = [1, 0, 2], sizes = [1, 8, 1], strides = [1, 1, 1]} : vector<8x8x8xf32> to vector<1x8x1xf32>
    %602 = vector.shape_cast %601 : vector<1x8x1xf32> to vector<8x1xf32>
    %603 = vector.broadcast %600 : vector<1x128xf32> to vector<8x128xf32>
    %604 = vector.broadcast %602 : vector<8x1xf32> to vector<8x128xf32>
    %605 = arith.addf %603, %604 : vector<8x128xf32>
    %606 = arith.mulf %498, %605 : vector<8x128xf32>
    %607 = arith.addf %599, %606 : vector<8x128xf32>
    %608 = vector.extract_strided_slice %6 {offsets = [17, 384], sizes = [1, 128], strides = [1, 1]} : vector<32x1024xf32> to vector<1x128xf32>
    %609 = vector.extract_strided_slice %9 {offsets = [1, 0, 3], sizes = [1, 8, 1], strides = [1, 1, 1]} : vector<8x8x8xf32> to vector<1x8x1xf32>
    %610 = vector.shape_cast %609 : vector<1x8x1xf32> to vector<8x1xf32>
    %611 = vector.broadcast %608 : vector<1x128xf32> to vector<8x128xf32>
    %612 = vector.broadcast %610 : vector<8x1xf32> to vector<8x128xf32>
    %613 = arith.addf %611, %612 : vector<8x128xf32>
    %614 = arith.mulf %500, %613 : vector<8x128xf32>
    %615 = arith.addf %607, %614 : vector<8x128xf32>
    %616 = vector.extract_strided_slice %6 {offsets = [17, 512], sizes = [1, 128], strides = [1, 1]} : vector<32x1024xf32> to vector<1x128xf32>
    %617 = vector.extract_strided_slice %9 {offsets = [1, 0, 4], sizes = [1, 8, 1], strides = [1, 1, 1]} : vector<8x8x8xf32> to vector<1x8x1xf32>
    %618 = vector.shape_cast %617 : vector<1x8x1xf32> to vector<8x1xf32>
    %619 = vector.broadcast %616 : vector<1x128xf32> to vector<8x128xf32>
    %620 = vector.broadcast %618 : vector<8x1xf32> to vector<8x128xf32>
    %621 = arith.addf %619, %620 : vector<8x128xf32>
    %622 = arith.mulf %502, %621 : vector<8x128xf32>
    %623 = arith.addf %615, %622 : vector<8x128xf32>
    %624 = vector.extract_strided_slice %6 {offsets = [17, 640], sizes = [1, 128], strides = [1, 1]} : vector<32x1024xf32> to vector<1x128xf32>
    %625 = vector.extract_strided_slice %9 {offsets = [1, 0, 5], sizes = [1, 8, 1], strides = [1, 1, 1]} : vector<8x8x8xf32> to vector<1x8x1xf32>
    %626 = vector.shape_cast %625 : vector<1x8x1xf32> to vector<8x1xf32>
    %627 = vector.broadcast %624 : vector<1x128xf32> to vector<8x128xf32>
    %628 = vector.broadcast %626 : vector<8x1xf32> to vector<8x128xf32>
    %629 = arith.addf %627, %628 : vector<8x128xf32>
    %630 = arith.mulf %504, %629 : vector<8x128xf32>
    %631 = arith.addf %623, %630 : vector<8x128xf32>
    %632 = vector.extract_strided_slice %6 {offsets = [17, 768], sizes = [1, 128], strides = [1, 1]} : vector<32x1024xf32> to vector<1x128xf32>
    %633 = vector.extract_strided_slice %9 {offsets = [1, 0, 6], sizes = [1, 8, 1], strides = [1, 1, 1]} : vector<8x8x8xf32> to vector<1x8x1xf32>
    %634 = vector.shape_cast %633 : vector<1x8x1xf32> to vector<8x1xf32>
    %635 = vector.broadcast %632 : vector<1x128xf32> to vector<8x128xf32>
    %636 = vector.broadcast %634 : vector<8x1xf32> to vector<8x128xf32>
    %637 = arith.addf %635, %636 : vector<8x128xf32>
    %638 = arith.mulf %506, %637 : vector<8x128xf32>
    %639 = arith.addf %631, %638 : vector<8x128xf32>
    %640 = vector.extract_strided_slice %6 {offsets = [17, 896], sizes = [1, 128], strides = [1, 1]} : vector<32x1024xf32> to vector<1x128xf32>
    %641 = vector.extract_strided_slice %9 {offsets = [1, 0, 7], sizes = [1, 8, 1], strides = [1, 1, 1]} : vector<8x8x8xf32> to vector<1x8x1xf32>
    %642 = vector.shape_cast %641 : vector<1x8x1xf32> to vector<8x1xf32>
    %643 = vector.broadcast %640 : vector<1x128xf32> to vector<8x128xf32>
    %644 = vector.broadcast %642 : vector<8x1xf32> to vector<8x128xf32>
    %645 = arith.addf %643, %644 : vector<8x128xf32>
    %646 = arith.mulf %508, %645 : vector<8x128xf32>
    %647 = arith.addf %639, %646 : vector<8x128xf32>
    %648 = arith.mulf %647, %517 : vector<8x128xf32>
    %c1 = arith.constant 1 : index
    %c0_19 = arith.constant 0 : index
    %c0_20 = arith.constant 0 : index
    %649 = vector.load %arg7[%c1, %c0_19, %c0_20] : memref<16x8x128xf32, #tpu.memory_space<vmem>>, vector<1x8x128xf32>
    %650 = vector.shape_cast %649 : vector<1x8x128xf32> to vector<8x128xf32>
    %651 = vector.shape_cast %648 : vector<8x128xf32> to vector<1x8x128xf32>
    tpu.vector_store %arg7[%c1, %c0_19, %c0_20], %651 {strides = array<i32>} : memref<16x8x128xf32, #tpu.memory_space<vmem>>, vector<1x8x128xf32>,
    %652 = vector.extract_strided_slice %6 {offsets = [18, 0], sizes = [1, 128], strides = [1, 1]} : vector<32x1024xf32> to vector<1x128xf32>
    %653 = vector.extract_strided_slice %9 {offsets = [2, 0, 0], sizes = [1, 8, 1], strides = [1, 1, 1]} : vector<8x8x8xf32> to vector<1x8x1xf32>
    %654 = vector.shape_cast %653 : vector<1x8x1xf32> to vector<8x1xf32>
    %655 = vector.broadcast %652 : vector<1x128xf32> to vector<8x128xf32>
    %656 = vector.broadcast %654 : vector<8x1xf32> to vector<8x128xf32>
    %657 = arith.addf %655, %656 : vector<8x128xf32>
    %658 = arith.mulf %494, %657 : vector<8x128xf32>
    %659 = vector.extract_strided_slice %6 {offsets = [18, 128], sizes = [1, 128], strides = [1, 1]} : vector<32x1024xf32> to vector<1x128xf32>
    %660 = vector.extract_strided_slice %9 {offsets = [2, 0, 1], sizes = [1, 8, 1], strides = [1, 1, 1]} : vector<8x8x8xf32> to vector<1x8x1xf32>
    %661 = vector.shape_cast %660 : vector<1x8x1xf32> to vector<8x1xf32>
    %662 = vector.broadcast %659 : vector<1x128xf32> to vector<8x128xf32>
    %663 = vector.broadcast %661 : vector<8x1xf32> to vector<8x128xf32>
    %664 = arith.addf %662, %663 : vector<8x128xf32>
    %665 = arith.mulf %496, %664 : vector<8x128xf32>
    %666 = arith.addf %658, %665 : vector<8x128xf32>
    %667 = vector.extract_strided_slice %6 {offsets = [18, 256], sizes = [1, 128], strides = [1, 1]} : vector<32x1024xf32> to vector<1x128xf32>
    %668 = vector.extract_strided_slice %9 {offsets = [2, 0, 2], sizes = [1, 8, 1], strides = [1, 1, 1]} : vector<8x8x8xf32> to vector<1x8x1xf32>
    %669 = vector.shape_cast %668 : vector<1x8x1xf32> to vector<8x1xf32>
    %670 = vector.broadcast %667 : vector<1x128xf32> to vector<8x128xf32>
    %671 = vector.broadcast %669 : vector<8x1xf32> to vector<8x128xf32>
    %672 = arith.addf %670, %671 : vector<8x128xf32>
    %673 = arith.mulf %498, %672 : vector<8x128xf32>
    %674 = arith.addf %666, %673 : vector<8x128xf32>
    %675 = vector.extract_strided_slice %6 {offsets = [18, 384], sizes = [1, 128], strides = [1, 1]} : vector<32x1024xf32> to vector<1x128xf32>
    %676 = vector.extract_strided_slice %9 {offsets = [2, 0, 3], sizes = [1, 8, 1], strides = [1, 1, 1]} : vector<8x8x8xf32> to vector<1x8x1xf32>
    %677 = vector.shape_cast %676 : vector<1x8x1xf32> to vector<8x1xf32>
    %678 = vector.broadcast %675 : vector<1x128xf32> to vector<8x128xf32>
    %679 = vector.broadcast %677 : vector<8x1xf32> to vector<8x128xf32>
    %680 = arith.addf %678, %679 : vector<8x128xf32>
    %681 = arith.mulf %500, %680 : vector<8x128xf32>
    %682 = arith.addf %674, %681 : vector<8x128xf32>
    %683 = vector.extract_strided_slice %6 {offsets = [18, 512], sizes = [1, 128], strides = [1, 1]} : vector<32x1024xf32> to vector<1x128xf32>
    %684 = vector.extract_strided_slice %9 {offsets = [2, 0, 4], sizes = [1, 8, 1], strides = [1, 1, 1]} : vector<8x8x8xf32> to vector<1x8x1xf32>
    %685 = vector.shape_cast %684 : vector<1x8x1xf32> to vector<8x1xf32>
    %686 = vector.broadcast %683 : vector<1x128xf32> to vector<8x128xf32>
    %687 = vector.broadcast %685 : vector<8x1xf32> to vector<8x128xf32>
    %688 = arith.addf %686, %687 : vector<8x128xf32>
    %689 = arith.mulf %502, %688 : vector<8x128xf32>
    %690 = arith.addf %682, %689 : vector<8x128xf32>
    %691 = vector.extract_strided_slice %6 {offsets = [18, 640], sizes = [1, 128], strides = [1, 1]} : vector<32x1024xf32> to vector<1x128xf32>
    %692 = vector.extract_strided_slice %9 {offsets = [2, 0, 5], sizes = [1, 8, 1], strides = [1, 1, 1]} : vector<8x8x8xf32> to vector<1x8x1xf32>
    %693 = vector.shape_cast %692 : vector<1x8x1xf32> to vector<8x1xf32>
    %694 = vector.broadcast %691 : vector<1x128xf32> to vector<8x128xf32>
    %695 = vector.broadcast %693 : vector<8x1xf32> to vector<8x128xf32>
    %696 = arith.addf %694, %695 : vector<8x128xf32>
    %697 = arith.mulf %504, %696 : vector<8x128xf32>
    %698 = arith.addf %690, %697 : vector<8x128xf32>
    %699 = vector.extract_strided_slice %6 {offsets = [18, 768], sizes = [1, 128], strides = [1, 1]} : vector<32x1024xf32> to vector<1x128xf32>
    %700 = vector.extract_strided_slice %9 {offsets = [2, 0, 6], sizes = [1, 8, 1], strides = [1, 1, 1]} : vector<8x8x8xf32> to vector<1x8x1xf32>
    %701 = vector.shape_cast %700 : vector<1x8x1xf32> to vector<8x1xf32>
    %702 = vector.broadcast %699 : vector<1x128xf32> to vector<8x128xf32>
    %703 = vector.broadcast %701 : vector<8x1xf32> to vector<8x128xf32>
    %704 = arith.addf %702, %703 : vector<8x128xf32>
    %705 = arith.mulf %506, %704 : vector<8x128xf32>
    %706 = arith.addf %698, %705 : vector<8x128xf32>
    %707 = vector.extract_strided_slice %6 {offsets = [18, 896], sizes = [1, 128], strides = [1, 1]} : vector<32x1024xf32> to vector<1x128xf32>
    %708 = vector.extract_strided_slice %9 {offsets = [2, 0, 7], sizes = [1, 8, 1], strides = [1, 1, 1]} : vector<8x8x8xf32> to vector<1x8x1xf32>
    %709 = vector.shape_cast %708 : vector<1x8x1xf32> to vector<8x1xf32>
    %710 = vector.broadcast %707 : vector<1x128xf32> to vector<8x128xf32>
    %711 = vector.broadcast %709 : vector<8x1xf32> to vector<8x128xf32>
    %712 = arith.addf %710, %711 : vector<8x128xf32>
    %713 = arith.mulf %508, %712 : vector<8x128xf32>
    %714 = arith.addf %706, %713 : vector<8x128xf32>
    %715 = arith.mulf %714, %517 : vector<8x128xf32>
    %c2 = arith.constant 2 : index
    %c0_21 = arith.constant 0 : index
    %c0_22 = arith.constant 0 : index
    %716 = vector.load %arg7[%c2, %c0_21, %c0_22] : memref<16x8x128xf32, #tpu.memory_space<vmem>>, vector<1x8x128xf32>
    %717 = vector.shape_cast %716 : vector<1x8x128xf32> to vector<8x128xf32>
    %718 = vector.shape_cast %715 : vector<8x128xf32> to vector<1x8x128xf32>
    tpu.vector_store %arg7[%c2, %c0_21, %c0_22], %718 {strides = array<i32>} : memref<16x8x128xf32, #tpu.memory_space<vmem>>, vector<1x8x128xf32>,
    %719 = vector.extract_strided_slice %6 {offsets = [19, 0], sizes = [1, 128], strides = [1, 1]} : vector<32x1024xf32> to vector<1x128xf32>
    %720 = vector.extract_strided_slice %9 {offsets = [3, 0, 0], sizes = [1, 8, 1], strides = [1, 1, 1]} : vector<8x8x8xf32> to vector<1x8x1xf32>
    %721 = vector.shape_cast %720 : vector<1x8x1xf32> to vector<8x1xf32>
    %722 = vector.broadcast %719 : vector<1x128xf32> to vector<8x128xf32>
    %723 = vector.broadcast %721 : vector<8x1xf32> to vector<8x128xf32>
    %724 = arith.addf %722, %723 : vector<8x128xf32>
    %725 = arith.mulf %494, %724 : vector<8x128xf32>
    %726 = vector.extract_strided_slice %6 {offsets = [19, 128], sizes = [1, 128], strides = [1, 1]} : vector<32x1024xf32> to vector<1x128xf32>
    %727 = vector.extract_strided_slice %9 {offsets = [3, 0, 1], sizes = [1, 8, 1], strides = [1, 1, 1]} : vector<8x8x8xf32> to vector<1x8x1xf32>
    %728 = vector.shape_cast %727 : vector<1x8x1xf32> to vector<8x1xf32>
    %729 = vector.broadcast %726 : vector<1x128xf32> to vector<8x128xf32>
    %730 = vector.broadcast %728 : vector<8x1xf32> to vector<8x128xf32>
    %731 = arith.addf %729, %730 : vector<8x128xf32>
    %732 = arith.mulf %496, %731 : vector<8x128xf32>
    %733 = arith.addf %725, %732 : vector<8x128xf32>
    %734 = vector.extract_strided_slice %6 {offsets = [19, 256], sizes = [1, 128], strides = [1, 1]} : vector<32x1024xf32> to vector<1x128xf32>
    %735 = vector.extract_strided_slice %9 {offsets = [3, 0, 2], sizes = [1, 8, 1], strides = [1, 1, 1]} : vector<8x8x8xf32> to vector<1x8x1xf32>
    %736 = vector.shape_cast %735 : vector<1x8x1xf32> to vector<8x1xf32>
    %737 = vector.broadcast %734 : vector<1x128xf32> to vector<8x128xf32>
    %738 = vector.broadcast %736 : vector<8x1xf32> to vector<8x128xf32>
    %739 = arith.addf %737, %738 : vector<8x128xf32>
    %740 = arith.mulf %498, %739 : vector<8x128xf32>
    %741 = arith.addf %733, %740 : vector<8x128xf32>
    %742 = vector.extract_strided_slice %6 {offsets = [19, 384], sizes = [1, 128], strides = [1, 1]} : vector<32x1024xf32> to vector<1x128xf32>
    %743 = vector.extract_strided_slice %9 {offsets = [3, 0, 3], sizes = [1, 8, 1], strides = [1, 1, 1]} : vector<8x8x8xf32> to vector<1x8x1xf32>
    %744 = vector.shape_cast %743 : vector<1x8x1xf32> to vector<8x1xf32>
    %745 = vector.broadcast %742 : vector<1x128xf32> to vector<8x128xf32>
    %746 = vector.broadcast %744 : vector<8x1xf32> to vector<8x128xf32>
    %747 = arith.addf %745, %746 : vector<8x128xf32>
    %748 = arith.mulf %500, %747 : vector<8x128xf32>
    %749 = arith.addf %741, %748 : vector<8x128xf32>
    %750 = vector.extract_strided_slice %6 {offsets = [19, 512], sizes = [1, 128], strides = [1, 1]} : vector<32x1024xf32> to vector<1x128xf32>
    %751 = vector.extract_strided_slice %9 {offsets = [3, 0, 4], sizes = [1, 8, 1], strides = [1, 1, 1]} : vector<8x8x8xf32> to vector<1x8x1xf32>
    %752 = vector.shape_cast %751 : vector<1x8x1xf32> to vector<8x1xf32>
    %753 = vector.broadcast %750 : vector<1x128xf32> to vector<8x128xf32>
    %754 = vector.broadcast %752 : vector<8x1xf32> to vector<8x128xf32>
    %755 = arith.addf %753, %754 : vector<8x128xf32>
    %756 = arith.mulf %502, %755 : vector<8x128xf32>
    %757 = arith.addf %749, %756 : vector<8x128xf32>
    %758 = vector.extract_strided_slice %6 {offsets = [19, 640], sizes = [1, 128], strides = [1, 1]} : vector<32x1024xf32> to vector<1x128xf32>
    %759 = vector.extract_strided_slice %9 {offsets = [3, 0, 5], sizes = [1, 8, 1], strides = [1, 1, 1]} : vector<8x8x8xf32> to vector<1x8x1xf32>
    %760 = vector.shape_cast %759 : vector<1x8x1xf32> to vector<8x1xf32>
    %761 = vector.broadcast %758 : vector<1x128xf32> to vector<8x128xf32>
    %762 = vector.broadcast %760 : vector<8x1xf32> to vector<8x128xf32>
    %763 = arith.addf %761, %762 : vector<8x128xf32>
    %764 = arith.mulf %504, %763 : vector<8x128xf32>
    %765 = arith.addf %757, %764 : vector<8x128xf32>
    %766 = vector.extract_strided_slice %6 {offsets = [19, 768], sizes = [1, 128], strides = [1, 1]} : vector<32x1024xf32> to vector<1x128xf32>
    %767 = vector.extract_strided_slice %9 {offsets = [3, 0, 6], sizes = [1, 8, 1], strides = [1, 1, 1]} : vector<8x8x8xf32> to vector<1x8x1xf32>
    %768 = vector.shape_cast %767 : vector<1x8x1xf32> to vector<8x1xf32>
    %769 = vector.broadcast %766 : vector<1x128xf32> to vector<8x128xf32>
    %770 = vector.broadcast %768 : vector<8x1xf32> to vector<8x128xf32>
    %771 = arith.addf %769, %770 : vector<8x128xf32>
    %772 = arith.mulf %506, %771 : vector<8x128xf32>
    %773 = arith.addf %765, %772 : vector<8x128xf32>
    %774 = vector.extract_strided_slice %6 {offsets = [19, 896], sizes = [1, 128], strides = [1, 1]} : vector<32x1024xf32> to vector<1x128xf32>
    %775 = vector.extract_strided_slice %9 {offsets = [3, 0, 7], sizes = [1, 8, 1], strides = [1, 1, 1]} : vector<8x8x8xf32> to vector<1x8x1xf32>
    %776 = vector.shape_cast %775 : vector<1x8x1xf32> to vector<8x1xf32>
    %777 = vector.broadcast %774 : vector<1x128xf32> to vector<8x128xf32>
    %778 = vector.broadcast %776 : vector<8x1xf32> to vector<8x128xf32>
    %779 = arith.addf %777, %778 : vector<8x128xf32>
    %780 = arith.mulf %508, %779 : vector<8x128xf32>
    %781 = arith.addf %773, %780 : vector<8x128xf32>
    %782 = arith.mulf %781, %517 : vector<8x128xf32>
    %c3 = arith.constant 3 : index
    %c0_23 = arith.constant 0 : index
    %c0_24 = arith.constant 0 : index
    %783 = vector.load %arg7[%c3, %c0_23, %c0_24] : memref<16x8x128xf32, #tpu.memory_space<vmem>>, vector<1x8x128xf32>
    %784 = vector.shape_cast %783 : vector<1x8x128xf32> to vector<8x128xf32>
    %785 = vector.shape_cast %782 : vector<8x128xf32> to vector<1x8x128xf32>
    tpu.vector_store %arg7[%c3, %c0_23, %c0_24], %785 {strides = array<i32>} : memref<16x8x128xf32, #tpu.memory_space<vmem>>, vector<1x8x128xf32>,
    %786 = vector.extract_strided_slice %6 {offsets = [20, 0], sizes = [1, 128], strides = [1, 1]} : vector<32x1024xf32> to vector<1x128xf32>
    %787 = vector.extract_strided_slice %9 {offsets = [4, 0, 0], sizes = [1, 8, 1], strides = [1, 1, 1]} : vector<8x8x8xf32> to vector<1x8x1xf32>
    %788 = vector.shape_cast %787 : vector<1x8x1xf32> to vector<8x1xf32>
    %789 = vector.broadcast %786 : vector<1x128xf32> to vector<8x128xf32>
    %790 = vector.broadcast %788 : vector<8x1xf32> to vector<8x128xf32>
    %791 = arith.addf %789, %790 : vector<8x128xf32>
    %792 = arith.mulf %494, %791 : vector<8x128xf32>
    %793 = vector.extract_strided_slice %6 {offsets = [20, 128], sizes = [1, 128], strides = [1, 1]} : vector<32x1024xf32> to vector<1x128xf32>
    %794 = vector.extract_strided_slice %9 {offsets = [4, 0, 1], sizes = [1, 8, 1], strides = [1, 1, 1]} : vector<8x8x8xf32> to vector<1x8x1xf32>
    %795 = vector.shape_cast %794 : vector<1x8x1xf32> to vector<8x1xf32>
    %796 = vector.broadcast %793 : vector<1x128xf32> to vector<8x128xf32>
    %797 = vector.broadcast %795 : vector<8x1xf32> to vector<8x128xf32>
    %798 = arith.addf %796, %797 : vector<8x128xf32>
    %799 = arith.mulf %496, %798 : vector<8x128xf32>
    %800 = arith.addf %792, %799 : vector<8x128xf32>
    %801 = vector.extract_strided_slice %6 {offsets = [20, 256], sizes = [1, 128], strides = [1, 1]} : vector<32x1024xf32> to vector<1x128xf32>
    %802 = vector.extract_strided_slice %9 {offsets = [4, 0, 2], sizes = [1, 8, 1], strides = [1, 1, 1]} : vector<8x8x8xf32> to vector<1x8x1xf32>
    %803 = vector.shape_cast %802 : vector<1x8x1xf32> to vector<8x1xf32>
    %804 = vector.broadcast %801 : vector<1x128xf32> to vector<8x128xf32>
    %805 = vector.broadcast %803 : vector<8x1xf32> to vector<8x128xf32>
    %806 = arith.addf %804, %805 : vector<8x128xf32>
    %807 = arith.mulf %498, %806 : vector<8x128xf32>
    %808 = arith.addf %800, %807 : vector<8x128xf32>
    %809 = vector.extract_strided_slice %6 {offsets = [20, 384], sizes = [1, 128], strides = [1, 1]} : vector<32x1024xf32> to vector<1x128xf32>
    %810 = vector.extract_strided_slice %9 {offsets = [4, 0, 3], sizes = [1, 8, 1], strides = [1, 1, 1]} : vector<8x8x8xf32> to vector<1x8x1xf32>
    %811 = vector.shape_cast %810 : vector<1x8x1xf32> to vector<8x1xf32>
    %812 = vector.broadcast %809 : vector<1x128xf32> to vector<8x128xf32>
    %813 = vector.broadcast %811 : vector<8x1xf32> to vector<8x128xf32>
    %814 = arith.addf %812, %813 : vector<8x128xf32>
    %815 = arith.mulf %500, %814 : vector<8x128xf32>
    %816 = arith.addf %808, %815 : vector<8x128xf32>
    %817 = vector.extract_strided_slice %6 {offsets = [20, 512], sizes = [1, 128], strides = [1, 1]} : vector<32x1024xf32> to vector<1x128xf32>
    %818 = vector.extract_strided_slice %9 {offsets = [4, 0, 4], sizes = [1, 8, 1], strides = [1, 1, 1]} : vector<8x8x8xf32> to vector<1x8x1xf32>
    %819 = vector.shape_cast %818 : vector<1x8x1xf32> to vector<8x1xf32>
    %820 = vector.broadcast %817 : vector<1x128xf32> to vector<8x128xf32>
    %821 = vector.broadcast %819 : vector<8x1xf32> to vector<8x128xf32>
    %822 = arith.addf %820, %821 : vector<8x128xf32>
    %823 = arith.mulf %502, %822 : vector<8x128xf32>
    %824 = arith.addf %816, %823 : vector<8x128xf32>
    %825 = vector.extract_strided_slice %6 {offsets = [20, 640], sizes = [1, 128], strides = [1, 1]} : vector<32x1024xf32> to vector<1x128xf32>
    %826 = vector.extract_strided_slice %9 {offsets = [4, 0, 5], sizes = [1, 8, 1], strides = [1, 1, 1]} : vector<8x8x8xf32> to vector<1x8x1xf32>
    %827 = vector.shape_cast %826 : vector<1x8x1xf32> to vector<8x1xf32>
    %828 = vector.broadcast %825 : vector<1x128xf32> to vector<8x128xf32>
    %829 = vector.broadcast %827 : vector<8x1xf32> to vector<8x128xf32>
    %830 = arith.addf %828, %829 : vector<8x128xf32>
    %831 = arith.mulf %504, %830 : vector<8x128xf32>
    %832 = arith.addf %824, %831 : vector<8x128xf32>
    %833 = vector.extract_strided_slice %6 {offsets = [20, 768], sizes = [1, 128], strides = [1, 1]} : vector<32x1024xf32> to vector<1x128xf32>
    %834 = vector.extract_strided_slice %9 {offsets = [4, 0, 6], sizes = [1, 8, 1], strides = [1, 1, 1]} : vector<8x8x8xf32> to vector<1x8x1xf32>
    %835 = vector.shape_cast %834 : vector<1x8x1xf32> to vector<8x1xf32>
    %836 = vector.broadcast %833 : vector<1x128xf32> to vector<8x128xf32>
    %837 = vector.broadcast %835 : vector<8x1xf32> to vector<8x128xf32>
    %838 = arith.addf %836, %837 : vector<8x128xf32>
    %839 = arith.mulf %506, %838 : vector<8x128xf32>
    %840 = arith.addf %832, %839 : vector<8x128xf32>
    %841 = vector.extract_strided_slice %6 {offsets = [20, 896], sizes = [1, 128], strides = [1, 1]} : vector<32x1024xf32> to vector<1x128xf32>
    %842 = vector.extract_strided_slice %9 {offsets = [4, 0, 7], sizes = [1, 8, 1], strides = [1, 1, 1]} : vector<8x8x8xf32> to vector<1x8x1xf32>
    %843 = vector.shape_cast %842 : vector<1x8x1xf32> to vector<8x1xf32>
    %844 = vector.broadcast %841 : vector<1x128xf32> to vector<8x128xf32>
    %845 = vector.broadcast %843 : vector<8x1xf32> to vector<8x128xf32>
    %846 = arith.addf %844, %845 : vector<8x128xf32>
    %847 = arith.mulf %508, %846 : vector<8x128xf32>
    %848 = arith.addf %840, %847 : vector<8x128xf32>
    %849 = arith.mulf %848, %517 : vector<8x128xf32>
    %c4 = arith.constant 4 : index
    %c0_25 = arith.constant 0 : index
    %c0_26 = arith.constant 0 : index
    %850 = vector.load %arg7[%c4, %c0_25, %c0_26] : memref<16x8x128xf32, #tpu.memory_space<vmem>>, vector<1x8x128xf32>
    %851 = vector.shape_cast %850 : vector<1x8x128xf32> to vector<8x128xf32>
    %852 = vector.shape_cast %849 : vector<8x128xf32> to vector<1x8x128xf32>
    tpu.vector_store %arg7[%c4, %c0_25, %c0_26], %852 {strides = array<i32>} : memref<16x8x128xf32, #tpu.memory_space<vmem>>, vector<1x8x128xf32>,
    %853 = vector.extract_strided_slice %6 {offsets = [21, 0], sizes = [1, 128], strides = [1, 1]} : vector<32x1024xf32> to vector<1x128xf32>
    %854 = vector.extract_strided_slice %9 {offsets = [5, 0, 0], sizes = [1, 8, 1], strides = [1, 1, 1]} : vector<8x8x8xf32> to vector<1x8x1xf32>
    %855 = vector.shape_cast %854 : vector<1x8x1xf32> to vector<8x1xf32>
    %856 = vector.broadcast %853 : vector<1x128xf32> to vector<8x128xf32>
    %857 = vector.broadcast %855 : vector<8x1xf32> to vector<8x128xf32>
    %858 = arith.addf %856, %857 : vector<8x128xf32>
    %859 = arith.mulf %494, %858 : vector<8x128xf32>
    %860 = vector.extract_strided_slice %6 {offsets = [21, 128], sizes = [1, 128], strides = [1, 1]} : vector<32x1024xf32> to vector<1x128xf32>
    %861 = vector.extract_strided_slice %9 {offsets = [5, 0, 1], sizes = [1, 8, 1], strides = [1, 1, 1]} : vector<8x8x8xf32> to vector<1x8x1xf32>
    %862 = vector.shape_cast %861 : vector<1x8x1xf32> to vector<8x1xf32>
    %863 = vector.broadcast %860 : vector<1x128xf32> to vector<8x128xf32>
    %864 = vector.broadcast %862 : vector<8x1xf32> to vector<8x128xf32>
    %865 = arith.addf %863, %864 : vector<8x128xf32>
    %866 = arith.mulf %496, %865 : vector<8x128xf32>
    %867 = arith.addf %859, %866 : vector<8x128xf32>
    %868 = vector.extract_strided_slice %6 {offsets = [21, 256], sizes = [1, 128], strides = [1, 1]} : vector<32x1024xf32> to vector<1x128xf32>
    %869 = vector.extract_strided_slice %9 {offsets = [5, 0, 2], sizes = [1, 8, 1], strides = [1, 1, 1]} : vector<8x8x8xf32> to vector<1x8x1xf32>
    %870 = vector.shape_cast %869 : vector<1x8x1xf32> to vector<8x1xf32>
    %871 = vector.broadcast %868 : vector<1x128xf32> to vector<8x128xf32>
    %872 = vector.broadcast %870 : vector<8x1xf32> to vector<8x128xf32>
    %873 = arith.addf %871, %872 : vector<8x128xf32>
    %874 = arith.mulf %498, %873 : vector<8x128xf32>
    %875 = arith.addf %867, %874 : vector<8x128xf32>
    %876 = vector.extract_strided_slice %6 {offsets = [21, 384], sizes = [1, 128], strides = [1, 1]} : vector<32x1024xf32> to vector<1x128xf32>
    %877 = vector.extract_strided_slice %9 {offsets = [5, 0, 3], sizes = [1, 8, 1], strides = [1, 1, 1]} : vector<8x8x8xf32> to vector<1x8x1xf32>
    %878 = vector.shape_cast %877 : vector<1x8x1xf32> to vector<8x1xf32>
    %879 = vector.broadcast %876 : vector<1x128xf32> to vector<8x128xf32>
    %880 = vector.broadcast %878 : vector<8x1xf32> to vector<8x128xf32>
    %881 = arith.addf %879, %880 : vector<8x128xf32>
    %882 = arith.mulf %500, %881 : vector<8x128xf32>
    %883 = arith.addf %875, %882 : vector<8x128xf32>
    %884 = vector.extract_strided_slice %6 {offsets = [21, 512], sizes = [1, 128], strides = [1, 1]} : vector<32x1024xf32> to vector<1x128xf32>
    %885 = vector.extract_strided_slice %9 {offsets = [5, 0, 4], sizes = [1, 8, 1], strides = [1, 1, 1]} : vector<8x8x8xf32> to vector<1x8x1xf32>
    %886 = vector.shape_cast %885 : vector<1x8x1xf32> to vector<8x1xf32>
    %887 = vector.broadcast %884 : vector<1x128xf32> to vector<8x128xf32>
    %888 = vector.broadcast %886 : vector<8x1xf32> to vector<8x128xf32>
    %889 = arith.addf %887, %888 : vector<8x128xf32>
    %890 = arith.mulf %502, %889 : vector<8x128xf32>
    %891 = arith.addf %883, %890 : vector<8x128xf32>
    %892 = vector.extract_strided_slice %6 {offsets = [21, 640], sizes = [1, 128], strides = [1, 1]} : vector<32x1024xf32> to vector<1x128xf32>
    %893 = vector.extract_strided_slice %9 {offsets = [5, 0, 5], sizes = [1, 8, 1], strides = [1, 1, 1]} : vector<8x8x8xf32> to vector<1x8x1xf32>
    %894 = vector.shape_cast %893 : vector<1x8x1xf32> to vector<8x1xf32>
    %895 = vector.broadcast %892 : vector<1x128xf32> to vector<8x128xf32>
    %896 = vector.broadcast %894 : vector<8x1xf32> to vector<8x128xf32>
    %897 = arith.addf %895, %896 : vector<8x128xf32>
    %898 = arith.mulf %504, %897 : vector<8x128xf32>
    %899 = arith.addf %891, %898 : vector<8x128xf32>
    %900 = vector.extract_strided_slice %6 {offsets = [21, 768], sizes = [1, 128], strides = [1, 1]} : vector<32x1024xf32> to vector<1x128xf32>
    %901 = vector.extract_strided_slice %9 {offsets = [5, 0, 6], sizes = [1, 8, 1], strides = [1, 1, 1]} : vector<8x8x8xf32> to vector<1x8x1xf32>
    %902 = vector.shape_cast %901 : vector<1x8x1xf32> to vector<8x1xf32>
    %903 = vector.broadcast %900 : vector<1x128xf32> to vector<8x128xf32>
    %904 = vector.broadcast %902 : vector<8x1xf32> to vector<8x128xf32>
    %905 = arith.addf %903, %904 : vector<8x128xf32>
    %906 = arith.mulf %506, %905 : vector<8x128xf32>
    %907 = arith.addf %899, %906 : vector<8x128xf32>
    %908 = vector.extract_strided_slice %6 {offsets = [21, 896], sizes = [1, 128], strides = [1, 1]} : vector<32x1024xf32> to vector<1x128xf32>
    %909 = vector.extract_strided_slice %9 {offsets = [5, 0, 7], sizes = [1, 8, 1], strides = [1, 1, 1]} : vector<8x8x8xf32> to vector<1x8x1xf32>
    %910 = vector.shape_cast %909 : vector<1x8x1xf32> to vector<8x1xf32>
    %911 = vector.broadcast %908 : vector<1x128xf32> to vector<8x128xf32>
    %912 = vector.broadcast %910 : vector<8x1xf32> to vector<8x128xf32>
    %913 = arith.addf %911, %912 : vector<8x128xf32>
    %914 = arith.mulf %508, %913 : vector<8x128xf32>
    %915 = arith.addf %907, %914 : vector<8x128xf32>
    %916 = arith.mulf %915, %517 : vector<8x128xf32>
    %c5 = arith.constant 5 : index
    %c0_27 = arith.constant 0 : index
    %c0_28 = arith.constant 0 : index
    %917 = vector.load %arg7[%c5, %c0_27, %c0_28] : memref<16x8x128xf32, #tpu.memory_space<vmem>>, vector<1x8x128xf32>
    %918 = vector.shape_cast %917 : vector<1x8x128xf32> to vector<8x128xf32>
    %919 = vector.shape_cast %916 : vector<8x128xf32> to vector<1x8x128xf32>
    tpu.vector_store %arg7[%c5, %c0_27, %c0_28], %919 {strides = array<i32>} : memref<16x8x128xf32, #tpu.memory_space<vmem>>, vector<1x8x128xf32>,
    %920 = vector.extract_strided_slice %6 {offsets = [22, 0], sizes = [1, 128], strides = [1, 1]} : vector<32x1024xf32> to vector<1x128xf32>
    %921 = vector.extract_strided_slice %9 {offsets = [6, 0, 0], sizes = [1, 8, 1], strides = [1, 1, 1]} : vector<8x8x8xf32> to vector<1x8x1xf32>
    %922 = vector.shape_cast %921 : vector<1x8x1xf32> to vector<8x1xf32>
    %923 = vector.broadcast %920 : vector<1x128xf32> to vector<8x128xf32>
    %924 = vector.broadcast %922 : vector<8x1xf32> to vector<8x128xf32>
    %925 = arith.addf %923, %924 : vector<8x128xf32>
    %926 = arith.mulf %494, %925 : vector<8x128xf32>
    %927 = vector.extract_strided_slice %6 {offsets = [22, 128], sizes = [1, 128], strides = [1, 1]} : vector<32x1024xf32> to vector<1x128xf32>
    %928 = vector.extract_strided_slice %9 {offsets = [6, 0, 1], sizes = [1, 8, 1], strides = [1, 1, 1]} : vector<8x8x8xf32> to vector<1x8x1xf32>
    %929 = vector.shape_cast %928 : vector<1x8x1xf32> to vector<8x1xf32>
    %930 = vector.broadcast %927 : vector<1x128xf32> to vector<8x128xf32>
    %931 = vector.broadcast %929 : vector<8x1xf32> to vector<8x128xf32>
    %932 = arith.addf %930, %931 : vector<8x128xf32>
    %933 = arith.mulf %496, %932 : vector<8x128xf32>
    %934 = arith.addf %926, %933 : vector<8x128xf32>
    %935 = vector.extract_strided_slice %6 {offsets = [22, 256], sizes = [1, 128], strides = [1, 1]} : vector<32x1024xf32> to vector<1x128xf32>
    %936 = vector.extract_strided_slice %9 {offsets = [6, 0, 2], sizes = [1, 8, 1], strides = [1, 1, 1]} : vector<8x8x8xf32> to vector<1x8x1xf32>
    %937 = vector.shape_cast %936 : vector<1x8x1xf32> to vector<8x1xf32>
    %938 = vector.broadcast %935 : vector<1x128xf32> to vector<8x128xf32>
    %939 = vector.broadcast %937 : vector<8x1xf32> to vector<8x128xf32>
    %940 = arith.addf %938, %939 : vector<8x128xf32>
    %941 = arith.mulf %498, %940 : vector<8x128xf32>
    %942 = arith.addf %934, %941 : vector<8x128xf32>
    %943 = vector.extract_strided_slice %6 {offsets = [22, 384], sizes = [1, 128], strides = [1, 1]} : vector<32x1024xf32> to vector<1x128xf32>
    %944 = vector.extract_strided_slice %9 {offsets = [6, 0, 3], sizes = [1, 8, 1], strides = [1, 1, 1]} : vector<8x8x8xf32> to vector<1x8x1xf32>
    %945 = vector.shape_cast %944 : vector<1x8x1xf32> to vector<8x1xf32>
    %946 = vector.broadcast %943 : vector<1x128xf32> to vector<8x128xf32>
    %947 = vector.broadcast %945 : vector<8x1xf32> to vector<8x128xf32>
    %948 = arith.addf %946, %947 : vector<8x128xf32>
    %949 = arith.mulf %500, %948 : vector<8x128xf32>
    %950 = arith.addf %942, %949 : vector<8x128xf32>
    %951 = vector.extract_strided_slice %6 {offsets = [22, 512], sizes = [1, 128], strides = [1, 1]} : vector<32x1024xf32> to vector<1x128xf32>
    %952 = vector.extract_strided_slice %9 {offsets = [6, 0, 4], sizes = [1, 8, 1], strides = [1, 1, 1]} : vector<8x8x8xf32> to vector<1x8x1xf32>
    %953 = vector.shape_cast %952 : vector<1x8x1xf32> to vector<8x1xf32>
    %954 = vector.broadcast %951 : vector<1x128xf32> to vector<8x128xf32>
    %955 = vector.broadcast %953 : vector<8x1xf32> to vector<8x128xf32>
    %956 = arith.addf %954, %955 : vector<8x128xf32>
    %957 = arith.mulf %502, %956 : vector<8x128xf32>
    %958 = arith.addf %950, %957 : vector<8x128xf32>
    %959 = vector.extract_strided_slice %6 {offsets = [22, 640], sizes = [1, 128], strides = [1, 1]} : vector<32x1024xf32> to vector<1x128xf32>
    %960 = vector.extract_strided_slice %9 {offsets = [6, 0, 5], sizes = [1, 8, 1], strides = [1, 1, 1]} : vector<8x8x8xf32> to vector<1x8x1xf32>
    %961 = vector.shape_cast %960 : vector<1x8x1xf32> to vector<8x1xf32>
    %962 = vector.broadcast %959 : vector<1x128xf32> to vector<8x128xf32>
    %963 = vector.broadcast %961 : vector<8x1xf32> to vector<8x128xf32>
    %964 = arith.addf %962, %963 : vector<8x128xf32>
    %965 = arith.mulf %504, %964 : vector<8x128xf32>
    %966 = arith.addf %958, %965 : vector<8x128xf32>
    %967 = vector.extract_strided_slice %6 {offsets = [22, 768], sizes = [1, 128], strides = [1, 1]} : vector<32x1024xf32> to vector<1x128xf32>
    %968 = vector.extract_strided_slice %9 {offsets = [6, 0, 6], sizes = [1, 8, 1], strides = [1, 1, 1]} : vector<8x8x8xf32> to vector<1x8x1xf32>
    %969 = vector.shape_cast %968 : vector<1x8x1xf32> to vector<8x1xf32>
    %970 = vector.broadcast %967 : vector<1x128xf32> to vector<8x128xf32>
    %971 = vector.broadcast %969 : vector<8x1xf32> to vector<8x128xf32>
    %972 = arith.addf %970, %971 : vector<8x128xf32>
    %973 = arith.mulf %506, %972 : vector<8x128xf32>
    %974 = arith.addf %966, %973 : vector<8x128xf32>
    %975 = vector.extract_strided_slice %6 {offsets = [22, 896], sizes = [1, 128], strides = [1, 1]} : vector<32x1024xf32> to vector<1x128xf32>
    %976 = vector.extract_strided_slice %9 {offsets = [6, 0, 7], sizes = [1, 8, 1], strides = [1, 1, 1]} : vector<8x8x8xf32> to vector<1x8x1xf32>
    %977 = vector.shape_cast %976 : vector<1x8x1xf32> to vector<8x1xf32>
    %978 = vector.broadcast %975 : vector<1x128xf32> to vector<8x128xf32>
    %979 = vector.broadcast %977 : vector<8x1xf32> to vector<8x128xf32>
    %980 = arith.addf %978, %979 : vector<8x128xf32>
    %981 = arith.mulf %508, %980 : vector<8x128xf32>
    %982 = arith.addf %974, %981 : vector<8x128xf32>
    %983 = arith.mulf %982, %517 : vector<8x128xf32>
    %c6 = arith.constant 6 : index
    %c0_29 = arith.constant 0 : index
    %c0_30 = arith.constant 0 : index
    %984 = vector.load %arg7[%c6, %c0_29, %c0_30] : memref<16x8x128xf32, #tpu.memory_space<vmem>>, vector<1x8x128xf32>
    %985 = vector.shape_cast %984 : vector<1x8x128xf32> to vector<8x128xf32>
    %986 = vector.shape_cast %983 : vector<8x128xf32> to vector<1x8x128xf32>
    tpu.vector_store %arg7[%c6, %c0_29, %c0_30], %986 {strides = array<i32>} : memref<16x8x128xf32, #tpu.memory_space<vmem>>, vector<1x8x128xf32>,
    %987 = vector.extract_strided_slice %6 {offsets = [23, 0], sizes = [1, 128], strides = [1, 1]} : vector<32x1024xf32> to vector<1x128xf32>
    %988 = vector.extract_strided_slice %9 {offsets = [7, 0, 0], sizes = [1, 8, 1], strides = [1, 1, 1]} : vector<8x8x8xf32> to vector<1x8x1xf32>
    %989 = vector.shape_cast %988 : vector<1x8x1xf32> to vector<8x1xf32>
    %990 = vector.broadcast %987 : vector<1x128xf32> to vector<8x128xf32>
    %991 = vector.broadcast %989 : vector<8x1xf32> to vector<8x128xf32>
    %992 = arith.addf %990, %991 : vector<8x128xf32>
    %993 = arith.mulf %494, %992 : vector<8x128xf32>
    %994 = vector.extract_strided_slice %6 {offsets = [23, 128], sizes = [1, 128], strides = [1, 1]} : vector<32x1024xf32> to vector<1x128xf32>
    %995 = vector.extract_strided_slice %9 {offsets = [7, 0, 1], sizes = [1, 8, 1], strides = [1, 1, 1]} : vector<8x8x8xf32> to vector<1x8x1xf32>
    %996 = vector.shape_cast %995 : vector<1x8x1xf32> to vector<8x1xf32>
    %997 = vector.broadcast %994 : vector<1x128xf32> to vector<8x128xf32>
    %998 = vector.broadcast %996 : vector<8x1xf32> to vector<8x128xf32>
    %999 = arith.addf %997, %998 : vector<8x128xf32>
    %1000 = arith.mulf %496, %999 : vector<8x128xf32>
    %1001 = arith.addf %993, %1000 : vector<8x128xf32>
    %1002 = vector.extract_strided_slice %6 {offsets = [23, 256], sizes = [1, 128], strides = [1, 1]} : vector<32x1024xf32> to vector<1x128xf32>
    %1003 = vector.extract_strided_slice %9 {offsets = [7, 0, 2], sizes = [1, 8, 1], strides = [1, 1, 1]} : vector<8x8x8xf32> to vector<1x8x1xf32>
    %1004 = vector.shape_cast %1003 : vector<1x8x1xf32> to vector<8x1xf32>
    %1005 = vector.broadcast %1002 : vector<1x128xf32> to vector<8x128xf32>
    %1006 = vector.broadcast %1004 : vector<8x1xf32> to vector<8x128xf32>
    %1007 = arith.addf %1005, %1006 : vector<8x128xf32>
    %1008 = arith.mulf %498, %1007 : vector<8x128xf32>
    %1009 = arith.addf %1001, %1008 : vector<8x128xf32>
    %1010 = vector.extract_strided_slice %6 {offsets = [23, 384], sizes = [1, 128], strides = [1, 1]} : vector<32x1024xf32> to vector<1x128xf32>
    %1011 = vector.extract_strided_slice %9 {offsets = [7, 0, 3], sizes = [1, 8, 1], strides = [1, 1, 1]} : vector<8x8x8xf32> to vector<1x8x1xf32>
    %1012 = vector.shape_cast %1011 : vector<1x8x1xf32> to vector<8x1xf32>
    %1013 = vector.broadcast %1010 : vector<1x128xf32> to vector<8x128xf32>
    %1014 = vector.broadcast %1012 : vector<8x1xf32> to vector<8x128xf32>
    %1015 = arith.addf %1013, %1014 : vector<8x128xf32>
    %1016 = arith.mulf %500, %1015 : vector<8x128xf32>
    %1017 = arith.addf %1009, %1016 : vector<8x128xf32>
    %1018 = vector.extract_strided_slice %6 {offsets = [23, 512], sizes = [1, 128], strides = [1, 1]} : vector<32x1024xf32> to vector<1x128xf32>
    %1019 = vector.extract_strided_slice %9 {offsets = [7, 0, 4], sizes = [1, 8, 1], strides = [1, 1, 1]} : vector<8x8x8xf32> to vector<1x8x1xf32>
    %1020 = vector.shape_cast %1019 : vector<1x8x1xf32> to vector<8x1xf32>
    %1021 = vector.broadcast %1018 : vector<1x128xf32> to vector<8x128xf32>
    %1022 = vector.broadcast %1020 : vector<8x1xf32> to vector<8x128xf32>
    %1023 = arith.addf %1021, %1022 : vector<8x128xf32>
    %1024 = arith.mulf %502, %1023 : vector<8x128xf32>
    %1025 = arith.addf %1017, %1024 : vector<8x128xf32>
    %1026 = vector.extract_strided_slice %6 {offsets = [23, 640], sizes = [1, 128], strides = [1, 1]} : vector<32x1024xf32> to vector<1x128xf32>
    %1027 = vector.extract_strided_slice %9 {offsets = [7, 0, 5], sizes = [1, 8, 1], strides = [1, 1, 1]} : vector<8x8x8xf32> to vector<1x8x1xf32>
    %1028 = vector.shape_cast %1027 : vector<1x8x1xf32> to vector<8x1xf32>
    %1029 = vector.broadcast %1026 : vector<1x128xf32> to vector<8x128xf32>
    %1030 = vector.broadcast %1028 : vector<8x1xf32> to vector<8x128xf32>
    %1031 = arith.addf %1029, %1030 : vector<8x128xf32>
    %1032 = arith.mulf %504, %1031 : vector<8x128xf32>
    %1033 = arith.addf %1025, %1032 : vector<8x128xf32>
    %1034 = vector.extract_strided_slice %6 {offsets = [23, 768], sizes = [1, 128], strides = [1, 1]} : vector<32x1024xf32> to vector<1x128xf32>
    %1035 = vector.extract_strided_slice %9 {offsets = [7, 0, 6], sizes = [1, 8, 1], strides = [1, 1, 1]} : vector<8x8x8xf32> to vector<1x8x1xf32>
    %1036 = vector.shape_cast %1035 : vector<1x8x1xf32> to vector<8x1xf32>
    %1037 = vector.broadcast %1034 : vector<1x128xf32> to vector<8x128xf32>
    %1038 = vector.broadcast %1036 : vector<8x1xf32> to vector<8x128xf32>
    %1039 = arith.addf %1037, %1038 : vector<8x128xf32>
    %1040 = arith.mulf %506, %1039 : vector<8x128xf32>
    %1041 = arith.addf %1033, %1040 : vector<8x128xf32>
    %1042 = vector.extract_strided_slice %6 {offsets = [23, 896], sizes = [1, 128], strides = [1, 1]} : vector<32x1024xf32> to vector<1x128xf32>
    %1043 = vector.extract_strided_slice %9 {offsets = [7, 0, 7], sizes = [1, 8, 1], strides = [1, 1, 1]} : vector<8x8x8xf32> to vector<1x8x1xf32>
    %1044 = vector.shape_cast %1043 : vector<1x8x1xf32> to vector<8x1xf32>
    %1045 = vector.broadcast %1042 : vector<1x128xf32> to vector<8x128xf32>
    %1046 = vector.broadcast %1044 : vector<8x1xf32> to vector<8x128xf32>
    %1047 = arith.addf %1045, %1046 : vector<8x128xf32>
    %1048 = arith.mulf %508, %1047 : vector<8x128xf32>
    %1049 = arith.addf %1041, %1048 : vector<8x128xf32>
    %1050 = arith.mulf %1049, %517 : vector<8x128xf32>
    %c7 = arith.constant 7 : index
    %c0_31 = arith.constant 0 : index
    %c0_32 = arith.constant 0 : index
    %1051 = vector.load %arg7[%c7, %c0_31, %c0_32] : memref<16x8x128xf32, #tpu.memory_space<vmem>>, vector<1x8x128xf32>
    %1052 = vector.shape_cast %1051 : vector<1x8x128xf32> to vector<8x128xf32>
    %1053 = vector.shape_cast %1050 : vector<8x128xf32> to vector<1x8x128xf32>
    tpu.vector_store %arg7[%c7, %c0_31, %c0_32], %1053 {strides = array<i32>} : memref<16x8x128xf32, #tpu.memory_space<vmem>>, vector<1x8x128xf32>,
    %1054 = vector.extract_strided_slice %6 {offsets = [12, 0], sizes = [1, 128], strides = [1, 1]} : vector<32x1024xf32> to vector<1x128xf32>
    %1055 = vector.extract_strided_slice %6 {offsets = [12, 128], sizes = [1, 128], strides = [1, 1]} : vector<32x1024xf32> to vector<1x128xf32>
    %1056 = vector.extract_strided_slice %6 {offsets = [12, 256], sizes = [1, 128], strides = [1, 1]} : vector<32x1024xf32> to vector<1x128xf32>
    %1057 = vector.extract_strided_slice %6 {offsets = [12, 384], sizes = [1, 128], strides = [1, 1]} : vector<32x1024xf32> to vector<1x128xf32>
    %1058 = vector.extract_strided_slice %6 {offsets = [12, 512], sizes = [1, 128], strides = [1, 1]} : vector<32x1024xf32> to vector<1x128xf32>
    %1059 = vector.extract_strided_slice %6 {offsets = [12, 640], sizes = [1, 128], strides = [1, 1]} : vector<32x1024xf32> to vector<1x128xf32>
    %1060 = vector.extract_strided_slice %6 {offsets = [12, 768], sizes = [1, 128], strides = [1, 1]} : vector<32x1024xf32> to vector<1x128xf32>
    %1061 = vector.extract_strided_slice %6 {offsets = [12, 896], sizes = [1, 128], strides = [1, 1]} : vector<32x1024xf32> to vector<1x128xf32>
    %1062 = tpu.concatenate %1054, %1055, %1056, %1057, %1058, %1059, %1060, %1061 in 0 : vector<1x128xf32>, vector<1x128xf32>, vector<1x128xf32>, vector<1x128xf32>, vector<1x128xf32>, vector<1x128xf32>, vector<1x128xf32>, vector<1x128xf32> -> vector<8x128xf32>
    %1063 = vector.extract_strided_slice %6 {offsets = [13, 0], sizes = [1, 128], strides = [1, 1]} : vector<32x1024xf32> to vector<1x128xf32>
    %1064 = vector.extract_strided_slice %6 {offsets = [13, 128], sizes = [1, 128], strides = [1, 1]} : vector<32x1024xf32> to vector<1x128xf32>
    %1065 = vector.extract_strided_slice %6 {offsets = [13, 256], sizes = [1, 128], strides = [1, 1]} : vector<32x1024xf32> to vector<1x128xf32>
    %1066 = vector.extract_strided_slice %6 {offsets = [13, 384], sizes = [1, 128], strides = [1, 1]} : vector<32x1024xf32> to vector<1x128xf32>
    %1067 = vector.extract_strided_slice %6 {offsets = [13, 512], sizes = [1, 128], strides = [1, 1]} : vector<32x1024xf32> to vector<1x128xf32>
    %1068 = vector.extract_strided_slice %6 {offsets = [13, 640], sizes = [1, 128], strides = [1, 1]} : vector<32x1024xf32> to vector<1x128xf32>
    %1069 = vector.extract_strided_slice %6 {offsets = [13, 768], sizes = [1, 128], strides = [1, 1]} : vector<32x1024xf32> to vector<1x128xf32>
    %1070 = vector.extract_strided_slice %6 {offsets = [13, 896], sizes = [1, 128], strides = [1, 1]} : vector<32x1024xf32> to vector<1x128xf32>
    %1071 = tpu.concatenate %1063, %1064, %1065, %1066, %1067, %1068, %1069, %1070 in 0 : vector<1x128xf32>, vector<1x128xf32>, vector<1x128xf32>, vector<1x128xf32>, vector<1x128xf32>, vector<1x128xf32>, vector<1x128xf32>, vector<1x128xf32> -> vector<8x128xf32>
    %1072 = vector.extract_strided_slice %6 {offsets = [14, 0], sizes = [1, 128], strides = [1, 1]} : vector<32x1024xf32> to vector<1x128xf32>
    %1073 = vector.extract_strided_slice %6 {offsets = [14, 128], sizes = [1, 128], strides = [1, 1]} : vector<32x1024xf32> to vector<1x128xf32>
    %1074 = vector.extract_strided_slice %6 {offsets = [14, 256], sizes = [1, 128], strides = [1, 1]} : vector<32x1024xf32> to vector<1x128xf32>
    %1075 = vector.extract_strided_slice %6 {offsets = [14, 384], sizes = [1, 128], strides = [1, 1]} : vector<32x1024xf32> to vector<1x128xf32>
    %1076 = vector.extract_strided_slice %6 {offsets = [14, 512], sizes = [1, 128], strides = [1, 1]} : vector<32x1024xf32> to vector<1x128xf32>
    %1077 = vector.extract_strided_slice %6 {offsets = [14, 640], sizes = [1, 128], strides = [1, 1]} : vector<32x1024xf32> to vector<1x128xf32>
    %1078 = vector.extract_strided_slice %6 {offsets = [14, 768], sizes = [1, 128], strides = [1, 1]} : vector<32x1024xf32> to vector<1x128xf32>
    %1079 = vector.extract_strided_slice %6 {offsets = [14, 896], sizes = [1, 128], strides = [1, 1]} : vector<32x1024xf32> to vector<1x128xf32>
    %1080 = tpu.concatenate %1072, %1073, %1074, %1075, %1076, %1077, %1078, %1079 in 0 : vector<1x128xf32>, vector<1x128xf32>, vector<1x128xf32>, vector<1x128xf32>, vector<1x128xf32>, vector<1x128xf32>, vector<1x128xf32>, vector<1x128xf32> -> vector<8x128xf32>
    %1081 = vector.extract_strided_slice %6 {offsets = [15, 0], sizes = [1, 128], strides = [1, 1]} : vector<32x1024xf32> to vector<1x128xf32>
    %1082 = vector.extract_strided_slice %6 {offsets = [15, 128], sizes = [1, 128], strides = [1, 1]} : vector<32x1024xf32> to vector<1x128xf32>
    %1083 = vector.extract_strided_slice %6 {offsets = [15, 256], sizes = [1, 128], strides = [1, 1]} : vector<32x1024xf32> to vector<1x128xf32>
    %1084 = vector.extract_strided_slice %6 {offsets = [15, 384], sizes = [1, 128], strides = [1, 1]} : vector<32x1024xf32> to vector<1x128xf32>
    %1085 = vector.extract_strided_slice %6 {offsets = [15, 512], sizes = [1, 128], strides = [1, 1]} : vector<32x1024xf32> to vector<1x128xf32>
    %1086 = vector.extract_strided_slice %6 {offsets = [15, 640], sizes = [1, 128], strides = [1, 1]} : vector<32x1024xf32> to vector<1x128xf32>
    %1087 = vector.extract_strided_slice %6 {offsets = [15, 768], sizes = [1, 128], strides = [1, 1]} : vector<32x1024xf32> to vector<1x128xf32>
    %1088 = vector.extract_strided_slice %6 {offsets = [15, 896], sizes = [1, 128], strides = [1, 1]} : vector<32x1024xf32> to vector<1x128xf32>
    %1089 = tpu.concatenate %1081, %1082, %1083, %1084, %1085, %1086, %1087, %1088 in 0 : vector<1x128xf32>, vector<1x128xf32>, vector<1x128xf32>, vector<1x128xf32>, vector<1x128xf32>, vector<1x128xf32>, vector<1x128xf32>, vector<1x128xf32> -> vector<8x128xf32>
    %1090 = vector.extract_strided_slice %6 {offsets = [4, 0], sizes = [1, 128], strides = [1, 1]} : vector<32x1024xf32> to vector<1x128xf32>
    %1091 = vector.extract_strided_slice %7 {offsets = [4, 0, 0], sizes = [1, 8, 1], strides = [1, 1, 1]} : vector<8x8x8xf32> to vector<1x8x1xf32>
    %1092 = vector.shape_cast %1091 : vector<1x8x1xf32> to vector<8x1xf32>
    %1093 = vector.broadcast %1090 : vector<1x128xf32> to vector<8x128xf32>
    %1094 = vector.broadcast %1092 : vector<8x1xf32> to vector<8x128xf32>
    %1095 = arith.addf %1093, %1094 : vector<8x128xf32>
    %1096 = arith.mulf %1062, %1095 : vector<8x128xf32>
    %1097 = vector.extract_strided_slice %8 {offsets = [4, 0, 0], sizes = [1, 8, 1], strides = [1, 1, 1]} : vector<8x8x8xf32> to vector<1x8x1xf32>
    %1098 = vector.shape_cast %1097 : vector<1x8x1xf32> to vector<8x1xf32>
    %1099 = vector.broadcast %1090 : vector<1x128xf32> to vector<8x128xf32>
    %1100 = vector.broadcast %1098 : vector<8x1xf32> to vector<8x128xf32>
    %1101 = arith.mulf %1099, %1100 : vector<8x128xf32>
    %1102 = arith.addf %1096, %1101 : vector<8x128xf32>
    %1103 = vector.extract_strided_slice %6 {offsets = [5, 0], sizes = [1, 128], strides = [1, 1]} : vector<32x1024xf32> to vector<1x128xf32>
    %1104 = vector.extract_strided_slice %7 {offsets = [5, 0, 0], sizes = [1, 8, 1], strides = [1, 1, 1]} : vector<8x8x8xf32> to vector<1x8x1xf32>
    %1105 = vector.shape_cast %1104 : vector<1x8x1xf32> to vector<8x1xf32>
    %1106 = vector.broadcast %1103 : vector<1x128xf32> to vector<8x128xf32>
    %1107 = vector.broadcast %1105 : vector<8x1xf32> to vector<8x128xf32>
    %1108 = arith.addf %1106, %1107 : vector<8x128xf32>
    %1109 = arith.mulf %1071, %1108 : vector<8x128xf32>
    %1110 = vector.extract_strided_slice %8 {offsets = [5, 0, 0], sizes = [1, 8, 1], strides = [1, 1, 1]} : vector<8x8x8xf32> to vector<1x8x1xf32>
    %1111 = vector.shape_cast %1110 : vector<1x8x1xf32> to vector<8x1xf32>
    %1112 = vector.broadcast %1103 : vector<1x128xf32> to vector<8x128xf32>
    %1113 = vector.broadcast %1111 : vector<8x1xf32> to vector<8x128xf32>
    %1114 = arith.mulf %1112, %1113 : vector<8x128xf32>
    %1115 = arith.addf %1109, %1114 : vector<8x128xf32>
    %1116 = arith.addf %1102, %1115 : vector<8x128xf32>
    %1117 = vector.extract_strided_slice %6 {offsets = [6, 0], sizes = [1, 128], strides = [1, 1]} : vector<32x1024xf32> to vector<1x128xf32>
    %1118 = vector.extract_strided_slice %7 {offsets = [6, 0, 0], sizes = [1, 8, 1], strides = [1, 1, 1]} : vector<8x8x8xf32> to vector<1x8x1xf32>
    %1119 = vector.shape_cast %1118 : vector<1x8x1xf32> to vector<8x1xf32>
    %1120 = vector.broadcast %1117 : vector<1x128xf32> to vector<8x128xf32>
    %1121 = vector.broadcast %1119 : vector<8x1xf32> to vector<8x128xf32>
    %1122 = arith.addf %1120, %1121 : vector<8x128xf32>
    %1123 = arith.mulf %1080, %1122 : vector<8x128xf32>
    %1124 = vector.extract_strided_slice %8 {offsets = [6, 0, 0], sizes = [1, 8, 1], strides = [1, 1, 1]} : vector<8x8x8xf32> to vector<1x8x1xf32>
    %1125 = vector.shape_cast %1124 : vector<1x8x1xf32> to vector<8x1xf32>
    %1126 = vector.broadcast %1117 : vector<1x128xf32> to vector<8x128xf32>
    %1127 = vector.broadcast %1125 : vector<8x1xf32> to vector<8x128xf32>
    %1128 = arith.mulf %1126, %1127 : vector<8x128xf32>
    %1129 = arith.addf %1123, %1128 : vector<8x128xf32>
    %1130 = arith.addf %1116, %1129 : vector<8x128xf32>
    %1131 = vector.extract_strided_slice %6 {offsets = [7, 0], sizes = [1, 128], strides = [1, 1]} : vector<32x1024xf32> to vector<1x128xf32>
    %1132 = vector.extract_strided_slice %7 {offsets = [7, 0, 0], sizes = [1, 8, 1], strides = [1, 1, 1]} : vector<8x8x8xf32> to vector<1x8x1xf32>
    %1133 = vector.shape_cast %1132 : vector<1x8x1xf32> to vector<8x1xf32>
    %1134 = vector.broadcast %1131 : vector<1x128xf32> to vector<8x128xf32>
    %1135 = vector.broadcast %1133 : vector<8x1xf32> to vector<8x128xf32>
    %1136 = arith.addf %1134, %1135 : vector<8x128xf32>
    %1137 = arith.mulf %1089, %1136 : vector<8x128xf32>
    %1138 = vector.extract_strided_slice %8 {offsets = [7, 0, 0], sizes = [1, 8, 1], strides = [1, 1, 1]} : vector<8x8x8xf32> to vector<1x8x1xf32>
    %1139 = vector.shape_cast %1138 : vector<1x8x1xf32> to vector<8x1xf32>
    %1140 = vector.broadcast %1131 : vector<1x128xf32> to vector<8x128xf32>
    %1141 = vector.broadcast %1139 : vector<8x1xf32> to vector<8x128xf32>
    %1142 = arith.mulf %1140, %1141 : vector<8x128xf32>
    %1143 = arith.addf %1137, %1142 : vector<8x128xf32>
    %1144 = arith.addf %1130, %1143 : vector<8x128xf32>
    %1145 = vector.extract_strided_slice %6 {offsets = [4, 128], sizes = [1, 128], strides = [1, 1]} : vector<32x1024xf32> to vector<1x128xf32>
    %1146 = vector.extract_strided_slice %7 {offsets = [4, 0, 1], sizes = [1, 8, 1], strides = [1, 1, 1]} : vector<8x8x8xf32> to vector<1x8x1xf32>
    %1147 = vector.shape_cast %1146 : vector<1x8x1xf32> to vector<8x1xf32>
    %1148 = vector.broadcast %1145 : vector<1x128xf32> to vector<8x128xf32>
    %1149 = vector.broadcast %1147 : vector<8x1xf32> to vector<8x128xf32>
    %1150 = arith.addf %1148, %1149 : vector<8x128xf32>
    %1151 = arith.mulf %1062, %1150 : vector<8x128xf32>
    %1152 = vector.extract_strided_slice %8 {offsets = [4, 0, 1], sizes = [1, 8, 1], strides = [1, 1, 1]} : vector<8x8x8xf32> to vector<1x8x1xf32>
    %1153 = vector.shape_cast %1152 : vector<1x8x1xf32> to vector<8x1xf32>
    %1154 = vector.broadcast %1145 : vector<1x128xf32> to vector<8x128xf32>
    %1155 = vector.broadcast %1153 : vector<8x1xf32> to vector<8x128xf32>
    %1156 = arith.mulf %1154, %1155 : vector<8x128xf32>
    %1157 = arith.addf %1151, %1156 : vector<8x128xf32>
    %1158 = vector.extract_strided_slice %6 {offsets = [5, 128], sizes = [1, 128], strides = [1, 1]} : vector<32x1024xf32> to vector<1x128xf32>
    %1159 = vector.extract_strided_slice %7 {offsets = [5, 0, 1], sizes = [1, 8, 1], strides = [1, 1, 1]} : vector<8x8x8xf32> to vector<1x8x1xf32>
    %1160 = vector.shape_cast %1159 : vector<1x8x1xf32> to vector<8x1xf32>
    %1161 = vector.broadcast %1158 : vector<1x128xf32> to vector<8x128xf32>
    %1162 = vector.broadcast %1160 : vector<8x1xf32> to vector<8x128xf32>
    %1163 = arith.addf %1161, %1162 : vector<8x128xf32>
    %1164 = arith.mulf %1071, %1163 : vector<8x128xf32>
    %1165 = vector.extract_strided_slice %8 {offsets = [5, 0, 1], sizes = [1, 8, 1], strides = [1, 1, 1]} : vector<8x8x8xf32> to vector<1x8x1xf32>
    %1166 = vector.shape_cast %1165 : vector<1x8x1xf32> to vector<8x1xf32>
    %1167 = vector.broadcast %1158 : vector<1x128xf32> to vector<8x128xf32>
    %1168 = vector.broadcast %1166 : vector<8x1xf32> to vector<8x128xf32>
    %1169 = arith.mulf %1167, %1168 : vector<8x128xf32>
    %1170 = arith.addf %1164, %1169 : vector<8x128xf32>
    %1171 = arith.addf %1157, %1170 : vector<8x128xf32>
    %1172 = vector.extract_strided_slice %6 {offsets = [6, 128], sizes = [1, 128], strides = [1, 1]} : vector<32x1024xf32> to vector<1x128xf32>
    %1173 = vector.extract_strided_slice %7 {offsets = [6, 0, 1], sizes = [1, 8, 1], strides = [1, 1, 1]} : vector<8x8x8xf32> to vector<1x8x1xf32>
    %1174 = vector.shape_cast %1173 : vector<1x8x1xf32> to vector<8x1xf32>
    %1175 = vector.broadcast %1172 : vector<1x128xf32> to vector<8x128xf32>
    %1176 = vector.broadcast %1174 : vector<8x1xf32> to vector<8x128xf32>
    %1177 = arith.addf %1175, %1176 : vector<8x128xf32>
    %1178 = arith.mulf %1080, %1177 : vector<8x128xf32>
    %1179 = vector.extract_strided_slice %8 {offsets = [6, 0, 1], sizes = [1, 8, 1], strides = [1, 1, 1]} : vector<8x8x8xf32> to vector<1x8x1xf32>
    %1180 = vector.shape_cast %1179 : vector<1x8x1xf32> to vector<8x1xf32>
    %1181 = vector.broadcast %1172 : vector<1x128xf32> to vector<8x128xf32>
    %1182 = vector.broadcast %1180 : vector<8x1xf32> to vector<8x128xf32>
    %1183 = arith.mulf %1181, %1182 : vector<8x128xf32>
    %1184 = arith.addf %1178, %1183 : vector<8x128xf32>
    %1185 = arith.addf %1171, %1184 : vector<8x128xf32>
    %1186 = vector.extract_strided_slice %6 {offsets = [7, 128], sizes = [1, 128], strides = [1, 1]} : vector<32x1024xf32> to vector<1x128xf32>
    %1187 = vector.extract_strided_slice %7 {offsets = [7, 0, 1], sizes = [1, 8, 1], strides = [1, 1, 1]} : vector<8x8x8xf32> to vector<1x8x1xf32>
    %1188 = vector.shape_cast %1187 : vector<1x8x1xf32> to vector<8x1xf32>
    %1189 = vector.broadcast %1186 : vector<1x128xf32> to vector<8x128xf32>
    %1190 = vector.broadcast %1188 : vector<8x1xf32> to vector<8x128xf32>
    %1191 = arith.addf %1189, %1190 : vector<8x128xf32>
    %1192 = arith.mulf %1089, %1191 : vector<8x128xf32>
    %1193 = vector.extract_strided_slice %8 {offsets = [7, 0, 1], sizes = [1, 8, 1], strides = [1, 1, 1]} : vector<8x8x8xf32> to vector<1x8x1xf32>
    %1194 = vector.shape_cast %1193 : vector<1x8x1xf32> to vector<8x1xf32>
    %1195 = vector.broadcast %1186 : vector<1x128xf32> to vector<8x128xf32>
    %1196 = vector.broadcast %1194 : vector<8x1xf32> to vector<8x128xf32>
    %1197 = arith.mulf %1195, %1196 : vector<8x128xf32>
    %1198 = arith.addf %1192, %1197 : vector<8x128xf32>
    %1199 = arith.addf %1185, %1198 : vector<8x128xf32>
    %1200 = vector.extract_strided_slice %6 {offsets = [4, 256], sizes = [1, 128], strides = [1, 1]} : vector<32x1024xf32> to vector<1x128xf32>
    %1201 = vector.extract_strided_slice %7 {offsets = [4, 0, 2], sizes = [1, 8, 1], strides = [1, 1, 1]} : vector<8x8x8xf32> to vector<1x8x1xf32>
    %1202 = vector.shape_cast %1201 : vector<1x8x1xf32> to vector<8x1xf32>
    %1203 = vector.broadcast %1200 : vector<1x128xf32> to vector<8x128xf32>
    %1204 = vector.broadcast %1202 : vector<8x1xf32> to vector<8x128xf32>
    %1205 = arith.addf %1203, %1204 : vector<8x128xf32>
    %1206 = arith.mulf %1062, %1205 : vector<8x128xf32>
    %1207 = vector.extract_strided_slice %8 {offsets = [4, 0, 2], sizes = [1, 8, 1], strides = [1, 1, 1]} : vector<8x8x8xf32> to vector<1x8x1xf32>
    %1208 = vector.shape_cast %1207 : vector<1x8x1xf32> to vector<8x1xf32>
    %1209 = vector.broadcast %1200 : vector<1x128xf32> to vector<8x128xf32>
    %1210 = vector.broadcast %1208 : vector<8x1xf32> to vector<8x128xf32>
    %1211 = arith.mulf %1209, %1210 : vector<8x128xf32>
    %1212 = arith.addf %1206, %1211 : vector<8x128xf32>
    %1213 = vector.extract_strided_slice %6 {offsets = [5, 256], sizes = [1, 128], strides = [1, 1]} : vector<32x1024xf32> to vector<1x128xf32>
    %1214 = vector.extract_strided_slice %7 {offsets = [5, 0, 2], sizes = [1, 8, 1], strides = [1, 1, 1]} : vector<8x8x8xf32> to vector<1x8x1xf32>
    %1215 = vector.shape_cast %1214 : vector<1x8x1xf32> to vector<8x1xf32>
    %1216 = vector.broadcast %1213 : vector<1x128xf32> to vector<8x128xf32>
    %1217 = vector.broadcast %1215 : vector<8x1xf32> to vector<8x128xf32>
    %1218 = arith.addf %1216, %1217 : vector<8x128xf32>
    %1219 = arith.mulf %1071, %1218 : vector<8x128xf32>
    %1220 = vector.extract_strided_slice %8 {offsets = [5, 0, 2], sizes = [1, 8, 1], strides = [1, 1, 1]} : vector<8x8x8xf32> to vector<1x8x1xf32>
    %1221 = vector.shape_cast %1220 : vector<1x8x1xf32> to vector<8x1xf32>
    %1222 = vector.broadcast %1213 : vector<1x128xf32> to vector<8x128xf32>
    %1223 = vector.broadcast %1221 : vector<8x1xf32> to vector<8x128xf32>
    %1224 = arith.mulf %1222, %1223 : vector<8x128xf32>
    %1225 = arith.addf %1219, %1224 : vector<8x128xf32>
    %1226 = arith.addf %1212, %1225 : vector<8x128xf32>
    %1227 = vector.extract_strided_slice %6 {offsets = [6, 256], sizes = [1, 128], strides = [1, 1]} : vector<32x1024xf32> to vector<1x128xf32>
    %1228 = vector.extract_strided_slice %7 {offsets = [6, 0, 2], sizes = [1, 8, 1], strides = [1, 1, 1]} : vector<8x8x8xf32> to vector<1x8x1xf32>
    %1229 = vector.shape_cast %1228 : vector<1x8x1xf32> to vector<8x1xf32>
    %1230 = vector.broadcast %1227 : vector<1x128xf32> to vector<8x128xf32>
    %1231 = vector.broadcast %1229 : vector<8x1xf32> to vector<8x128xf32>
    %1232 = arith.addf %1230, %1231 : vector<8x128xf32>
    %1233 = arith.mulf %1080, %1232 : vector<8x128xf32>
    %1234 = vector.extract_strided_slice %8 {offsets = [6, 0, 2], sizes = [1, 8, 1], strides = [1, 1, 1]} : vector<8x8x8xf32> to vector<1x8x1xf32>
    %1235 = vector.shape_cast %1234 : vector<1x8x1xf32> to vector<8x1xf32>
    %1236 = vector.broadcast %1227 : vector<1x128xf32> to vector<8x128xf32>
    %1237 = vector.broadcast %1235 : vector<8x1xf32> to vector<8x128xf32>
    %1238 = arith.mulf %1236, %1237 : vector<8x128xf32>
    %1239 = arith.addf %1233, %1238 : vector<8x128xf32>
    %1240 = arith.addf %1226, %1239 : vector<8x128xf32>
    %1241 = vector.extract_strided_slice %6 {offsets = [7, 256], sizes = [1, 128], strides = [1, 1]} : vector<32x1024xf32> to vector<1x128xf32>
    %1242 = vector.extract_strided_slice %7 {offsets = [7, 0, 2], sizes = [1, 8, 1], strides = [1, 1, 1]} : vector<8x8x8xf32> to vector<1x8x1xf32>
    %1243 = vector.shape_cast %1242 : vector<1x8x1xf32> to vector<8x1xf32>
    %1244 = vector.broadcast %1241 : vector<1x128xf32> to vector<8x128xf32>
    %1245 = vector.broadcast %1243 : vector<8x1xf32> to vector<8x128xf32>
    %1246 = arith.addf %1244, %1245 : vector<8x128xf32>
    %1247 = arith.mulf %1089, %1246 : vector<8x128xf32>
    %1248 = vector.extract_strided_slice %8 {offsets = [7, 0, 2], sizes = [1, 8, 1], strides = [1, 1, 1]} : vector<8x8x8xf32> to vector<1x8x1xf32>
    %1249 = vector.shape_cast %1248 : vector<1x8x1xf32> to vector<8x1xf32>
    %1250 = vector.broadcast %1241 : vector<1x128xf32> to vector<8x128xf32>
    %1251 = vector.broadcast %1249 : vector<8x1xf32> to vector<8x128xf32>
    %1252 = arith.mulf %1250, %1251 : vector<8x128xf32>
    %1253 = arith.addf %1247, %1252 : vector<8x128xf32>
    %1254 = arith.addf %1240, %1253 : vector<8x128xf32>
    %1255 = vector.extract_strided_slice %6 {offsets = [4, 384], sizes = [1, 128], strides = [1, 1]} : vector<32x1024xf32> to vector<1x128xf32>
    %1256 = vector.extract_strided_slice %7 {offsets = [4, 0, 3], sizes = [1, 8, 1], strides = [1, 1, 1]} : vector<8x8x8xf32> to vector<1x8x1xf32>
    %1257 = vector.shape_cast %1256 : vector<1x8x1xf32> to vector<8x1xf32>
    %1258 = vector.broadcast %1255 : vector<1x128xf32> to vector<8x128xf32>
    %1259 = vector.broadcast %1257 : vector<8x1xf32> to vector<8x128xf32>
    %1260 = arith.addf %1258, %1259 : vector<8x128xf32>
    %1261 = arith.mulf %1062, %1260 : vector<8x128xf32>
    %1262 = vector.extract_strided_slice %8 {offsets = [4, 0, 3], sizes = [1, 8, 1], strides = [1, 1, 1]} : vector<8x8x8xf32> to vector<1x8x1xf32>
    %1263 = vector.shape_cast %1262 : vector<1x8x1xf32> to vector<8x1xf32>
    %1264 = vector.broadcast %1255 : vector<1x128xf32> to vector<8x128xf32>
    %1265 = vector.broadcast %1263 : vector<8x1xf32> to vector<8x128xf32>
    %1266 = arith.mulf %1264, %1265 : vector<8x128xf32>
    %1267 = arith.addf %1261, %1266 : vector<8x128xf32>
    %1268 = vector.extract_strided_slice %6 {offsets = [5, 384], sizes = [1, 128], strides = [1, 1]} : vector<32x1024xf32> to vector<1x128xf32>
    %1269 = vector.extract_strided_slice %7 {offsets = [5, 0, 3], sizes = [1, 8, 1], strides = [1, 1, 1]} : vector<8x8x8xf32> to vector<1x8x1xf32>
    %1270 = vector.shape_cast %1269 : vector<1x8x1xf32> to vector<8x1xf32>
    %1271 = vector.broadcast %1268 : vector<1x128xf32> to vector<8x128xf32>
    %1272 = vector.broadcast %1270 : vector<8x1xf32> to vector<8x128xf32>
    %1273 = arith.addf %1271, %1272 : vector<8x128xf32>
    %1274 = arith.mulf %1071, %1273 : vector<8x128xf32>
    %1275 = vector.extract_strided_slice %8 {offsets = [5, 0, 3], sizes = [1, 8, 1], strides = [1, 1, 1]} : vector<8x8x8xf32> to vector<1x8x1xf32>
    %1276 = vector.shape_cast %1275 : vector<1x8x1xf32> to vector<8x1xf32>
    %1277 = vector.broadcast %1268 : vector<1x128xf32> to vector<8x128xf32>
    %1278 = vector.broadcast %1276 : vector<8x1xf32> to vector<8x128xf32>
    %1279 = arith.mulf %1277, %1278 : vector<8x128xf32>
    %1280 = arith.addf %1274, %1279 : vector<8x128xf32>
    %1281 = arith.addf %1267, %1280 : vector<8x128xf32>
    %1282 = vector.extract_strided_slice %6 {offsets = [6, 384], sizes = [1, 128], strides = [1, 1]} : vector<32x1024xf32> to vector<1x128xf32>
    %1283 = vector.extract_strided_slice %7 {offsets = [6, 0, 3], sizes = [1, 8, 1], strides = [1, 1, 1]} : vector<8x8x8xf32> to vector<1x8x1xf32>
    %1284 = vector.shape_cast %1283 : vector<1x8x1xf32> to vector<8x1xf32>
    %1285 = vector.broadcast %1282 : vector<1x128xf32> to vector<8x128xf32>
    %1286 = vector.broadcast %1284 : vector<8x1xf32> to vector<8x128xf32>
    %1287 = arith.addf %1285, %1286 : vector<8x128xf32>
    %1288 = arith.mulf %1080, %1287 : vector<8x128xf32>
    %1289 = vector.extract_strided_slice %8 {offsets = [6, 0, 3], sizes = [1, 8, 1], strides = [1, 1, 1]} : vector<8x8x8xf32> to vector<1x8x1xf32>
    %1290 = vector.shape_cast %1289 : vector<1x8x1xf32> to vector<8x1xf32>
    %1291 = vector.broadcast %1282 : vector<1x128xf32> to vector<8x128xf32>
    %1292 = vector.broadcast %1290 : vector<8x1xf32> to vector<8x128xf32>
    %1293 = arith.mulf %1291, %1292 : vector<8x128xf32>
    %1294 = arith.addf %1288, %1293 : vector<8x128xf32>
    %1295 = arith.addf %1281, %1294 : vector<8x128xf32>
    %1296 = vector.extract_strided_slice %6 {offsets = [7, 384], sizes = [1, 128], strides = [1, 1]} : vector<32x1024xf32> to vector<1x128xf32>
    %1297 = vector.extract_strided_slice %7 {offsets = [7, 0, 3], sizes = [1, 8, 1], strides = [1, 1, 1]} : vector<8x8x8xf32> to vector<1x8x1xf32>
    %1298 = vector.shape_cast %1297 : vector<1x8x1xf32> to vector<8x1xf32>
    %1299 = vector.broadcast %1296 : vector<1x128xf32> to vector<8x128xf32>
    %1300 = vector.broadcast %1298 : vector<8x1xf32> to vector<8x128xf32>
    %1301 = arith.addf %1299, %1300 : vector<8x128xf32>
    %1302 = arith.mulf %1089, %1301 : vector<8x128xf32>
    %1303 = vector.extract_strided_slice %8 {offsets = [7, 0, 3], sizes = [1, 8, 1], strides = [1, 1, 1]} : vector<8x8x8xf32> to vector<1x8x1xf32>
    %1304 = vector.shape_cast %1303 : vector<1x8x1xf32> to vector<8x1xf32>
    %1305 = vector.broadcast %1296 : vector<1x128xf32> to vector<8x128xf32>
    %1306 = vector.broadcast %1304 : vector<8x1xf32> to vector<8x128xf32>
    %1307 = arith.mulf %1305, %1306 : vector<8x128xf32>
    %1308 = arith.addf %1302, %1307 : vector<8x128xf32>
    %1309 = arith.addf %1295, %1308 : vector<8x128xf32>
    %1310 = vector.extract_strided_slice %6 {offsets = [4, 512], sizes = [1, 128], strides = [1, 1]} : vector<32x1024xf32> to vector<1x128xf32>
    %1311 = vector.extract_strided_slice %7 {offsets = [4, 0, 4], sizes = [1, 8, 1], strides = [1, 1, 1]} : vector<8x8x8xf32> to vector<1x8x1xf32>
    %1312 = vector.shape_cast %1311 : vector<1x8x1xf32> to vector<8x1xf32>
    %1313 = vector.broadcast %1310 : vector<1x128xf32> to vector<8x128xf32>
    %1314 = vector.broadcast %1312 : vector<8x1xf32> to vector<8x128xf32>
    %1315 = arith.addf %1313, %1314 : vector<8x128xf32>
    %1316 = arith.mulf %1062, %1315 : vector<8x128xf32>
    %1317 = vector.extract_strided_slice %8 {offsets = [4, 0, 4], sizes = [1, 8, 1], strides = [1, 1, 1]} : vector<8x8x8xf32> to vector<1x8x1xf32>
    %1318 = vector.shape_cast %1317 : vector<1x8x1xf32> to vector<8x1xf32>
    %1319 = vector.broadcast %1310 : vector<1x128xf32> to vector<8x128xf32>
    %1320 = vector.broadcast %1318 : vector<8x1xf32> to vector<8x128xf32>
    %1321 = arith.mulf %1319, %1320 : vector<8x128xf32>
    %1322 = arith.addf %1316, %1321 : vector<8x128xf32>
    %1323 = vector.extract_strided_slice %6 {offsets = [5, 512], sizes = [1, 128], strides = [1, 1]} : vector<32x1024xf32> to vector<1x128xf32>
    %1324 = vector.extract_strided_slice %7 {offsets = [5, 0, 4], sizes = [1, 8, 1], strides = [1, 1, 1]} : vector<8x8x8xf32> to vector<1x8x1xf32>
    %1325 = vector.shape_cast %1324 : vector<1x8x1xf32> to vector<8x1xf32>
    %1326 = vector.broadcast %1323 : vector<1x128xf32> to vector<8x128xf32>
    %1327 = vector.broadcast %1325 : vector<8x1xf32> to vector<8x128xf32>
    %1328 = arith.addf %1326, %1327 : vector<8x128xf32>
    %1329 = arith.mulf %1071, %1328 : vector<8x128xf32>
    %1330 = vector.extract_strided_slice %8 {offsets = [5, 0, 4], sizes = [1, 8, 1], strides = [1, 1, 1]} : vector<8x8x8xf32> to vector<1x8x1xf32>
    %1331 = vector.shape_cast %1330 : vector<1x8x1xf32> to vector<8x1xf32>
    %1332 = vector.broadcast %1323 : vector<1x128xf32> to vector<8x128xf32>
    %1333 = vector.broadcast %1331 : vector<8x1xf32> to vector<8x128xf32>
    %1334 = arith.mulf %1332, %1333 : vector<8x128xf32>
    %1335 = arith.addf %1329, %1334 : vector<8x128xf32>
    %1336 = arith.addf %1322, %1335 : vector<8x128xf32>
    %1337 = vector.extract_strided_slice %6 {offsets = [6, 512], sizes = [1, 128], strides = [1, 1]} : vector<32x1024xf32> to vector<1x128xf32>
    %1338 = vector.extract_strided_slice %7 {offsets = [6, 0, 4], sizes = [1, 8, 1], strides = [1, 1, 1]} : vector<8x8x8xf32> to vector<1x8x1xf32>
    %1339 = vector.shape_cast %1338 : vector<1x8x1xf32> to vector<8x1xf32>
    %1340 = vector.broadcast %1337 : vector<1x128xf32> to vector<8x128xf32>
    %1341 = vector.broadcast %1339 : vector<8x1xf32> to vector<8x128xf32>
    %1342 = arith.addf %1340, %1341 : vector<8x128xf32>
    %1343 = arith.mulf %1080, %1342 : vector<8x128xf32>
    %1344 = vector.extract_strided_slice %8 {offsets = [6, 0, 4], sizes = [1, 8, 1], strides = [1, 1, 1]} : vector<8x8x8xf32> to vector<1x8x1xf32>
    %1345 = vector.shape_cast %1344 : vector<1x8x1xf32> to vector<8x1xf32>
    %1346 = vector.broadcast %1337 : vector<1x128xf32> to vector<8x128xf32>
    %1347 = vector.broadcast %1345 : vector<8x1xf32> to vector<8x128xf32>
    %1348 = arith.mulf %1346, %1347 : vector<8x128xf32>
    %1349 = arith.addf %1343, %1348 : vector<8x128xf32>
    %1350 = arith.addf %1336, %1349 : vector<8x128xf32>
    %1351 = vector.extract_strided_slice %6 {offsets = [7, 512], sizes = [1, 128], strides = [1, 1]} : vector<32x1024xf32> to vector<1x128xf32>
    %1352 = vector.extract_strided_slice %7 {offsets = [7, 0, 4], sizes = [1, 8, 1], strides = [1, 1, 1]} : vector<8x8x8xf32> to vector<1x8x1xf32>
    %1353 = vector.shape_cast %1352 : vector<1x8x1xf32> to vector<8x1xf32>
    %1354 = vector.broadcast %1351 : vector<1x128xf32> to vector<8x128xf32>
    %1355 = vector.broadcast %1353 : vector<8x1xf32> to vector<8x128xf32>
    %1356 = arith.addf %1354, %1355 : vector<8x128xf32>
    %1357 = arith.mulf %1089, %1356 : vector<8x128xf32>
    %1358 = vector.extract_strided_slice %8 {offsets = [7, 0, 4], sizes = [1, 8, 1], strides = [1, 1, 1]} : vector<8x8x8xf32> to vector<1x8x1xf32>
    %1359 = vector.shape_cast %1358 : vector<1x8x1xf32> to vector<8x1xf32>
    %1360 = vector.broadcast %1351 : vector<1x128xf32> to vector<8x128xf32>
    %1361 = vector.broadcast %1359 : vector<8x1xf32> to vector<8x128xf32>
    %1362 = arith.mulf %1360, %1361 : vector<8x128xf32>
    %1363 = arith.addf %1357, %1362 : vector<8x128xf32>
    %1364 = arith.addf %1350, %1363 : vector<8x128xf32>
    %1365 = vector.extract_strided_slice %6 {offsets = [4, 640], sizes = [1, 128], strides = [1, 1]} : vector<32x1024xf32> to vector<1x128xf32>
    %1366 = vector.extract_strided_slice %7 {offsets = [4, 0, 5], sizes = [1, 8, 1], strides = [1, 1, 1]} : vector<8x8x8xf32> to vector<1x8x1xf32>
    %1367 = vector.shape_cast %1366 : vector<1x8x1xf32> to vector<8x1xf32>
    %1368 = vector.broadcast %1365 : vector<1x128xf32> to vector<8x128xf32>
    %1369 = vector.broadcast %1367 : vector<8x1xf32> to vector<8x128xf32>
    %1370 = arith.addf %1368, %1369 : vector<8x128xf32>
    %1371 = arith.mulf %1062, %1370 : vector<8x128xf32>
    %1372 = vector.extract_strided_slice %8 {offsets = [4, 0, 5], sizes = [1, 8, 1], strides = [1, 1, 1]} : vector<8x8x8xf32> to vector<1x8x1xf32>
    %1373 = vector.shape_cast %1372 : vector<1x8x1xf32> to vector<8x1xf32>
    %1374 = vector.broadcast %1365 : vector<1x128xf32> to vector<8x128xf32>
    %1375 = vector.broadcast %1373 : vector<8x1xf32> to vector<8x128xf32>
    %1376 = arith.mulf %1374, %1375 : vector<8x128xf32>
    %1377 = arith.addf %1371, %1376 : vector<8x128xf32>
    %1378 = vector.extract_strided_slice %6 {offsets = [5, 640], sizes = [1, 128], strides = [1, 1]} : vector<32x1024xf32> to vector<1x128xf32>
    %1379 = vector.extract_strided_slice %7 {offsets = [5, 0, 5], sizes = [1, 8, 1], strides = [1, 1, 1]} : vector<8x8x8xf32> to vector<1x8x1xf32>
    %1380 = vector.shape_cast %1379 : vector<1x8x1xf32> to vector<8x1xf32>
    %1381 = vector.broadcast %1378 : vector<1x128xf32> to vector<8x128xf32>
    %1382 = vector.broadcast %1380 : vector<8x1xf32> to vector<8x128xf32>
    %1383 = arith.addf %1381, %1382 : vector<8x128xf32>
    %1384 = arith.mulf %1071, %1383 : vector<8x128xf32>
    %1385 = vector.extract_strided_slice %8 {offsets = [5, 0, 5], sizes = [1, 8, 1], strides = [1, 1, 1]} : vector<8x8x8xf32> to vector<1x8x1xf32>
    %1386 = vector.shape_cast %1385 : vector<1x8x1xf32> to vector<8x1xf32>
    %1387 = vector.broadcast %1378 : vector<1x128xf32> to vector<8x128xf32>
    %1388 = vector.broadcast %1386 : vector<8x1xf32> to vector<8x128xf32>
    %1389 = arith.mulf %1387, %1388 : vector<8x128xf32>
    %1390 = arith.addf %1384, %1389 : vector<8x128xf32>
    %1391 = arith.addf %1377, %1390 : vector<8x128xf32>
    %1392 = vector.extract_strided_slice %6 {offsets = [6, 640], sizes = [1, 128], strides = [1, 1]} : vector<32x1024xf32> to vector<1x128xf32>
    %1393 = vector.extract_strided_slice %7 {offsets = [6, 0, 5], sizes = [1, 8, 1], strides = [1, 1, 1]} : vector<8x8x8xf32> to vector<1x8x1xf32>
    %1394 = vector.shape_cast %1393 : vector<1x8x1xf32> to vector<8x1xf32>
    %1395 = vector.broadcast %1392 : vector<1x128xf32> to vector<8x128xf32>
    %1396 = vector.broadcast %1394 : vector<8x1xf32> to vector<8x128xf32>
    %1397 = arith.addf %1395, %1396 : vector<8x128xf32>
    %1398 = arith.mulf %1080, %1397 : vector<8x128xf32>
    %1399 = vector.extract_strided_slice %8 {offsets = [6, 0, 5], sizes = [1, 8, 1], strides = [1, 1, 1]} : vector<8x8x8xf32> to vector<1x8x1xf32>
    %1400 = vector.shape_cast %1399 : vector<1x8x1xf32> to vector<8x1xf32>
    %1401 = vector.broadcast %1392 : vector<1x128xf32> to vector<8x128xf32>
    %1402 = vector.broadcast %1400 : vector<8x1xf32> to vector<8x128xf32>
    %1403 = arith.mulf %1401, %1402 : vector<8x128xf32>
    %1404 = arith.addf %1398, %1403 : vector<8x128xf32>
    %1405 = arith.addf %1391, %1404 : vector<8x128xf32>
    %1406 = vector.extract_strided_slice %6 {offsets = [7, 640], sizes = [1, 128], strides = [1, 1]} : vector<32x1024xf32> to vector<1x128xf32>
    %1407 = vector.extract_strided_slice %7 {offsets = [7, 0, 5], sizes = [1, 8, 1], strides = [1, 1, 1]} : vector<8x8x8xf32> to vector<1x8x1xf32>
    %1408 = vector.shape_cast %1407 : vector<1x8x1xf32> to vector<8x1xf32>
    %1409 = vector.broadcast %1406 : vector<1x128xf32> to vector<8x128xf32>
    %1410 = vector.broadcast %1408 : vector<8x1xf32> to vector<8x128xf32>
    %1411 = arith.addf %1409, %1410 : vector<8x128xf32>
    %1412 = arith.mulf %1089, %1411 : vector<8x128xf32>
    %1413 = vector.extract_strided_slice %8 {offsets = [7, 0, 5], sizes = [1, 8, 1], strides = [1, 1, 1]} : vector<8x8x8xf32> to vector<1x8x1xf32>
    %1414 = vector.shape_cast %1413 : vector<1x8x1xf32> to vector<8x1xf32>
    %1415 = vector.broadcast %1406 : vector<1x128xf32> to vector<8x128xf32>
    %1416 = vector.broadcast %1414 : vector<8x1xf32> to vector<8x128xf32>
    %1417 = arith.mulf %1415, %1416 : vector<8x128xf32>
    %1418 = arith.addf %1412, %1417 : vector<8x128xf32>
    %1419 = arith.addf %1405, %1418 : vector<8x128xf32>
    %1420 = vector.extract_strided_slice %6 {offsets = [4, 768], sizes = [1, 128], strides = [1, 1]} : vector<32x1024xf32> to vector<1x128xf32>
    %1421 = vector.extract_strided_slice %7 {offsets = [4, 0, 6], sizes = [1, 8, 1], strides = [1, 1, 1]} : vector<8x8x8xf32> to vector<1x8x1xf32>
    %1422 = vector.shape_cast %1421 : vector<1x8x1xf32> to vector<8x1xf32>
    %1423 = vector.broadcast %1420 : vector<1x128xf32> to vector<8x128xf32>
    %1424 = vector.broadcast %1422 : vector<8x1xf32> to vector<8x128xf32>
    %1425 = arith.addf %1423, %1424 : vector<8x128xf32>
    %1426 = arith.mulf %1062, %1425 : vector<8x128xf32>
    %1427 = vector.extract_strided_slice %8 {offsets = [4, 0, 6], sizes = [1, 8, 1], strides = [1, 1, 1]} : vector<8x8x8xf32> to vector<1x8x1xf32>
    %1428 = vector.shape_cast %1427 : vector<1x8x1xf32> to vector<8x1xf32>
    %1429 = vector.broadcast %1420 : vector<1x128xf32> to vector<8x128xf32>
    %1430 = vector.broadcast %1428 : vector<8x1xf32> to vector<8x128xf32>
    %1431 = arith.mulf %1429, %1430 : vector<8x128xf32>
    %1432 = arith.addf %1426, %1431 : vector<8x128xf32>
    %1433 = vector.extract_strided_slice %6 {offsets = [5, 768], sizes = [1, 128], strides = [1, 1]} : vector<32x1024xf32> to vector<1x128xf32>
    %1434 = vector.extract_strided_slice %7 {offsets = [5, 0, 6], sizes = [1, 8, 1], strides = [1, 1, 1]} : vector<8x8x8xf32> to vector<1x8x1xf32>
    %1435 = vector.shape_cast %1434 : vector<1x8x1xf32> to vector<8x1xf32>
    %1436 = vector.broadcast %1433 : vector<1x128xf32> to vector<8x128xf32>
    %1437 = vector.broadcast %1435 : vector<8x1xf32> to vector<8x128xf32>
    %1438 = arith.addf %1436, %1437 : vector<8x128xf32>
    %1439 = arith.mulf %1071, %1438 : vector<8x128xf32>
    %1440 = vector.extract_strided_slice %8 {offsets = [5, 0, 6], sizes = [1, 8, 1], strides = [1, 1, 1]} : vector<8x8x8xf32> to vector<1x8x1xf32>
    %1441 = vector.shape_cast %1440 : vector<1x8x1xf32> to vector<8x1xf32>
    %1442 = vector.broadcast %1433 : vector<1x128xf32> to vector<8x128xf32>
    %1443 = vector.broadcast %1441 : vector<8x1xf32> to vector<8x128xf32>
    %1444 = arith.mulf %1442, %1443 : vector<8x128xf32>
    %1445 = arith.addf %1439, %1444 : vector<8x128xf32>
    %1446 = arith.addf %1432, %1445 : vector<8x128xf32>
    %1447 = vector.extract_strided_slice %6 {offsets = [6, 768], sizes = [1, 128], strides = [1, 1]} : vector<32x1024xf32> to vector<1x128xf32>
    %1448 = vector.extract_strided_slice %7 {offsets = [6, 0, 6], sizes = [1, 8, 1], strides = [1, 1, 1]} : vector<8x8x8xf32> to vector<1x8x1xf32>
    %1449 = vector.shape_cast %1448 : vector<1x8x1xf32> to vector<8x1xf32>
    %1450 = vector.broadcast %1447 : vector<1x128xf32> to vector<8x128xf32>
    %1451 = vector.broadcast %1449 : vector<8x1xf32> to vector<8x128xf32>
    %1452 = arith.addf %1450, %1451 : vector<8x128xf32>
    %1453 = arith.mulf %1080, %1452 : vector<8x128xf32>
    %1454 = vector.extract_strided_slice %8 {offsets = [6, 0, 6], sizes = [1, 8, 1], strides = [1, 1, 1]} : vector<8x8x8xf32> to vector<1x8x1xf32>
    %1455 = vector.shape_cast %1454 : vector<1x8x1xf32> to vector<8x1xf32>
    %1456 = vector.broadcast %1447 : vector<1x128xf32> to vector<8x128xf32>
    %1457 = vector.broadcast %1455 : vector<8x1xf32> to vector<8x128xf32>
    %1458 = arith.mulf %1456, %1457 : vector<8x128xf32>
    %1459 = arith.addf %1453, %1458 : vector<8x128xf32>
    %1460 = arith.addf %1446, %1459 : vector<8x128xf32>
    %1461 = vector.extract_strided_slice %6 {offsets = [7, 768], sizes = [1, 128], strides = [1, 1]} : vector<32x1024xf32> to vector<1x128xf32>
    %1462 = vector.extract_strided_slice %7 {offsets = [7, 0, 6], sizes = [1, 8, 1], strides = [1, 1, 1]} : vector<8x8x8xf32> to vector<1x8x1xf32>
    %1463 = vector.shape_cast %1462 : vector<1x8x1xf32> to vector<8x1xf32>
    %1464 = vector.broadcast %1461 : vector<1x128xf32> to vector<8x128xf32>
    %1465 = vector.broadcast %1463 : vector<8x1xf32> to vector<8x128xf32>
    %1466 = arith.addf %1464, %1465 : vector<8x128xf32>
    %1467 = arith.mulf %1089, %1466 : vector<8x128xf32>
    %1468 = vector.extract_strided_slice %8 {offsets = [7, 0, 6], sizes = [1, 8, 1], strides = [1, 1, 1]} : vector<8x8x8xf32> to vector<1x8x1xf32>
    %1469 = vector.shape_cast %1468 : vector<1x8x1xf32> to vector<8x1xf32>
    %1470 = vector.broadcast %1461 : vector<1x128xf32> to vector<8x128xf32>
    %1471 = vector.broadcast %1469 : vector<8x1xf32> to vector<8x128xf32>
    %1472 = arith.mulf %1470, %1471 : vector<8x128xf32>
    %1473 = arith.addf %1467, %1472 : vector<8x128xf32>
    %1474 = arith.addf %1460, %1473 : vector<8x128xf32>
    %1475 = vector.extract_strided_slice %6 {offsets = [4, 896], sizes = [1, 128], strides = [1, 1]} : vector<32x1024xf32> to vector<1x128xf32>
    %1476 = vector.extract_strided_slice %7 {offsets = [4, 0, 7], sizes = [1, 8, 1], strides = [1, 1, 1]} : vector<8x8x8xf32> to vector<1x8x1xf32>
    %1477 = vector.shape_cast %1476 : vector<1x8x1xf32> to vector<8x1xf32>
    %1478 = vector.broadcast %1475 : vector<1x128xf32> to vector<8x128xf32>
    %1479 = vector.broadcast %1477 : vector<8x1xf32> to vector<8x128xf32>
    %1480 = arith.addf %1478, %1479 : vector<8x128xf32>
    %1481 = arith.mulf %1062, %1480 : vector<8x128xf32>
    %1482 = vector.extract_strided_slice %8 {offsets = [4, 0, 7], sizes = [1, 8, 1], strides = [1, 1, 1]} : vector<8x8x8xf32> to vector<1x8x1xf32>
    %1483 = vector.shape_cast %1482 : vector<1x8x1xf32> to vector<8x1xf32>
    %1484 = vector.broadcast %1475 : vector<1x128xf32> to vector<8x128xf32>
    %1485 = vector.broadcast %1483 : vector<8x1xf32> to vector<8x128xf32>
    %1486 = arith.mulf %1484, %1485 : vector<8x128xf32>
    %1487 = arith.addf %1481, %1486 : vector<8x128xf32>
    %1488 = vector.extract_strided_slice %6 {offsets = [5, 896], sizes = [1, 128], strides = [1, 1]} : vector<32x1024xf32> to vector<1x128xf32>
    %1489 = vector.extract_strided_slice %7 {offsets = [5, 0, 7], sizes = [1, 8, 1], strides = [1, 1, 1]} : vector<8x8x8xf32> to vector<1x8x1xf32>
    %1490 = vector.shape_cast %1489 : vector<1x8x1xf32> to vector<8x1xf32>
    %1491 = vector.broadcast %1488 : vector<1x128xf32> to vector<8x128xf32>
    %1492 = vector.broadcast %1490 : vector<8x1xf32> to vector<8x128xf32>
    %1493 = arith.addf %1491, %1492 : vector<8x128xf32>
    %1494 = arith.mulf %1071, %1493 : vector<8x128xf32>
    %1495 = vector.extract_strided_slice %8 {offsets = [5, 0, 7], sizes = [1, 8, 1], strides = [1, 1, 1]} : vector<8x8x8xf32> to vector<1x8x1xf32>
    %1496 = vector.shape_cast %1495 : vector<1x8x1xf32> to vector<8x1xf32>
    %1497 = vector.broadcast %1488 : vector<1x128xf32> to vector<8x128xf32>
    %1498 = vector.broadcast %1496 : vector<8x1xf32> to vector<8x128xf32>
    %1499 = arith.mulf %1497, %1498 : vector<8x128xf32>
    %1500 = arith.addf %1494, %1499 : vector<8x128xf32>
    %1501 = arith.addf %1487, %1500 : vector<8x128xf32>
    %1502 = vector.extract_strided_slice %6 {offsets = [6, 896], sizes = [1, 128], strides = [1, 1]} : vector<32x1024xf32> to vector<1x128xf32>
    %1503 = vector.extract_strided_slice %7 {offsets = [6, 0, 7], sizes = [1, 8, 1], strides = [1, 1, 1]} : vector<8x8x8xf32> to vector<1x8x1xf32>
    %1504 = vector.shape_cast %1503 : vector<1x8x1xf32> to vector<8x1xf32>
    %1505 = vector.broadcast %1502 : vector<1x128xf32> to vector<8x128xf32>
    %1506 = vector.broadcast %1504 : vector<8x1xf32> to vector<8x128xf32>
    %1507 = arith.addf %1505, %1506 : vector<8x128xf32>
    %1508 = arith.mulf %1080, %1507 : vector<8x128xf32>
    %1509 = vector.extract_strided_slice %8 {offsets = [6, 0, 7], sizes = [1, 8, 1], strides = [1, 1, 1]} : vector<8x8x8xf32> to vector<1x8x1xf32>
    %1510 = vector.shape_cast %1509 : vector<1x8x1xf32> to vector<8x1xf32>
    %1511 = vector.broadcast %1502 : vector<1x128xf32> to vector<8x128xf32>
    %1512 = vector.broadcast %1510 : vector<8x1xf32> to vector<8x128xf32>
    %1513 = arith.mulf %1511, %1512 : vector<8x128xf32>
    %1514 = arith.addf %1508, %1513 : vector<8x128xf32>
    %1515 = arith.addf %1501, %1514 : vector<8x128xf32>
    %1516 = vector.extract_strided_slice %6 {offsets = [7, 896], sizes = [1, 128], strides = [1, 1]} : vector<32x1024xf32> to vector<1x128xf32>
    %1517 = vector.extract_strided_slice %7 {offsets = [7, 0, 7], sizes = [1, 8, 1], strides = [1, 1, 1]} : vector<8x8x8xf32> to vector<1x8x1xf32>
    %1518 = vector.shape_cast %1517 : vector<1x8x1xf32> to vector<8x1xf32>
    %1519 = vector.broadcast %1516 : vector<1x128xf32> to vector<8x128xf32>
    %1520 = vector.broadcast %1518 : vector<8x1xf32> to vector<8x128xf32>
    %1521 = arith.addf %1519, %1520 : vector<8x128xf32>
    %1522 = arith.mulf %1089, %1521 : vector<8x128xf32>
    %1523 = vector.extract_strided_slice %8 {offsets = [7, 0, 7], sizes = [1, 8, 1], strides = [1, 1, 1]} : vector<8x8x8xf32> to vector<1x8x1xf32>
    %1524 = vector.shape_cast %1523 : vector<1x8x1xf32> to vector<8x1xf32>
    %1525 = vector.broadcast %1516 : vector<1x128xf32> to vector<8x128xf32>
    %1526 = vector.broadcast %1524 : vector<8x1xf32> to vector<8x128xf32>
    %1527 = arith.mulf %1525, %1526 : vector<8x128xf32>
    %1528 = arith.addf %1522, %1527 : vector<8x128xf32>
    %1529 = arith.addf %1515, %1528 : vector<8x128xf32>
    %1530 = arith.maximumf %1144, %1199 : vector<8x128xf32>
    %1531 = arith.maximumf %1530, %1254 : vector<8x128xf32>
    %1532 = arith.maximumf %1531, %1309 : vector<8x128xf32>
    %1533 = arith.maximumf %1532, %1364 : vector<8x128xf32>
    %1534 = arith.maximumf %1533, %1419 : vector<8x128xf32>
    %1535 = arith.maximumf %1534, %1474 : vector<8x128xf32>
    %1536 = arith.maximumf %1535, %1529 : vector<8x128xf32>
    %1537 = arith.subf %1144, %1536 : vector<8x128xf32>
    %1538 = math.exp %1537 : vector<8x128xf32>
    %1539 = arith.subf %1199, %1536 : vector<8x128xf32>
    %1540 = math.exp %1539 : vector<8x128xf32>
    %1541 = arith.subf %1254, %1536 : vector<8x128xf32>
    %1542 = math.exp %1541 : vector<8x128xf32>
    %1543 = arith.subf %1309, %1536 : vector<8x128xf32>
    %1544 = math.exp %1543 : vector<8x128xf32>
    %1545 = arith.subf %1364, %1536 : vector<8x128xf32>
    %1546 = math.exp %1545 : vector<8x128xf32>
    %1547 = arith.subf %1419, %1536 : vector<8x128xf32>
    %1548 = math.exp %1547 : vector<8x128xf32>
    %1549 = arith.subf %1474, %1536 : vector<8x128xf32>
    %1550 = math.exp %1549 : vector<8x128xf32>
    %1551 = arith.subf %1529, %1536 : vector<8x128xf32>
    %1552 = math.exp %1551 : vector<8x128xf32>
    %1553 = arith.addf %1538, %1540 : vector<8x128xf32>
    %1554 = arith.addf %1553, %1542 : vector<8x128xf32>
    %1555 = arith.addf %1554, %1544 : vector<8x128xf32>
    %1556 = arith.addf %1555, %1546 : vector<8x128xf32>
    %1557 = arith.addf %1556, %1548 : vector<8x128xf32>
    %1558 = arith.addf %1557, %1550 : vector<8x128xf32>
    %1559 = arith.addf %1558, %1552 : vector<8x128xf32>
    %cst_33 = arith.constant 1.000000e+00 : f32
    %1560 = vector.broadcast %cst_33 : f32 to vector<8x128xf32>
    %1561 = arith.divf %1560, %1559 : vector<8x128xf32>
    %1562 = vector.extract_strided_slice %6 {offsets = [24, 0], sizes = [1, 128], strides = [1, 1]} : vector<32x1024xf32> to vector<1x128xf32>
    %1563 = vector.extract_strided_slice %9 {offsets = [0, 0, 0], sizes = [1, 8, 1], strides = [1, 1, 1]} : vector<8x8x8xf32> to vector<1x8x1xf32>
    %1564 = vector.shape_cast %1563 : vector<1x8x1xf32> to vector<8x1xf32>
    %1565 = vector.broadcast %1562 : vector<1x128xf32> to vector<8x128xf32>
    %1566 = vector.broadcast %1564 : vector<8x1xf32> to vector<8x128xf32>
    %1567 = arith.addf %1565, %1566 : vector<8x128xf32>
    %1568 = arith.mulf %1538, %1567 : vector<8x128xf32>
    %1569 = vector.extract_strided_slice %6 {offsets = [24, 128], sizes = [1, 128], strides = [1, 1]} : vector<32x1024xf32> to vector<1x128xf32>
    %1570 = vector.extract_strided_slice %9 {offsets = [0, 0, 1], sizes = [1, 8, 1], strides = [1, 1, 1]} : vector<8x8x8xf32> to vector<1x8x1xf32>
    %1571 = vector.shape_cast %1570 : vector<1x8x1xf32> to vector<8x1xf32>
    %1572 = vector.broadcast %1569 : vector<1x128xf32> to vector<8x128xf32>
    %1573 = vector.broadcast %1571 : vector<8x1xf32> to vector<8x128xf32>
    %1574 = arith.addf %1572, %1573 : vector<8x128xf32>
    %1575 = arith.mulf %1540, %1574 : vector<8x128xf32>
    %1576 = arith.addf %1568, %1575 : vector<8x128xf32>
    %1577 = vector.extract_strided_slice %6 {offsets = [24, 256], sizes = [1, 128], strides = [1, 1]} : vector<32x1024xf32> to vector<1x128xf32>
    %1578 = vector.extract_strided_slice %9 {offsets = [0, 0, 2], sizes = [1, 8, 1], strides = [1, 1, 1]} : vector<8x8x8xf32> to vector<1x8x1xf32>
    %1579 = vector.shape_cast %1578 : vector<1x8x1xf32> to vector<8x1xf32>
    %1580 = vector.broadcast %1577 : vector<1x128xf32> to vector<8x128xf32>
    %1581 = vector.broadcast %1579 : vector<8x1xf32> to vector<8x128xf32>
    %1582 = arith.addf %1580, %1581 : vector<8x128xf32>
    %1583 = arith.mulf %1542, %1582 : vector<8x128xf32>
    %1584 = arith.addf %1576, %1583 : vector<8x128xf32>
    %1585 = vector.extract_strided_slice %6 {offsets = [24, 384], sizes = [1, 128], strides = [1, 1]} : vector<32x1024xf32> to vector<1x128xf32>
    %1586 = vector.extract_strided_slice %9 {offsets = [0, 0, 3], sizes = [1, 8, 1], strides = [1, 1, 1]} : vector<8x8x8xf32> to vector<1x8x1xf32>
    %1587 = vector.shape_cast %1586 : vector<1x8x1xf32> to vector<8x1xf32>
    %1588 = vector.broadcast %1585 : vector<1x128xf32> to vector<8x128xf32>
    %1589 = vector.broadcast %1587 : vector<8x1xf32> to vector<8x128xf32>
    %1590 = arith.addf %1588, %1589 : vector<8x128xf32>
    %1591 = arith.mulf %1544, %1590 : vector<8x128xf32>
    %1592 = arith.addf %1584, %1591 : vector<8x128xf32>
    %1593 = vector.extract_strided_slice %6 {offsets = [24, 512], sizes = [1, 128], strides = [1, 1]} : vector<32x1024xf32> to vector<1x128xf32>
    %1594 = vector.extract_strided_slice %9 {offsets = [0, 0, 4], sizes = [1, 8, 1], strides = [1, 1, 1]} : vector<8x8x8xf32> to vector<1x8x1xf32>
    %1595 = vector.shape_cast %1594 : vector<1x8x1xf32> to vector<8x1xf32>
    %1596 = vector.broadcast %1593 : vector<1x128xf32> to vector<8x128xf32>
    %1597 = vector.broadcast %1595 : vector<8x1xf32> to vector<8x128xf32>
    %1598 = arith.addf %1596, %1597 : vector<8x128xf32>
    %1599 = arith.mulf %1546, %1598 : vector<8x128xf32>
    %1600 = arith.addf %1592, %1599 : vector<8x128xf32>
    %1601 = vector.extract_strided_slice %6 {offsets = [24, 640], sizes = [1, 128], strides = [1, 1]} : vector<32x1024xf32> to vector<1x128xf32>
    %1602 = vector.extract_strided_slice %9 {offsets = [0, 0, 5], sizes = [1, 8, 1], strides = [1, 1, 1]} : vector<8x8x8xf32> to vector<1x8x1xf32>
    %1603 = vector.shape_cast %1602 : vector<1x8x1xf32> to vector<8x1xf32>
    %1604 = vector.broadcast %1601 : vector<1x128xf32> to vector<8x128xf32>
    %1605 = vector.broadcast %1603 : vector<8x1xf32> to vector<8x128xf32>
    %1606 = arith.addf %1604, %1605 : vector<8x128xf32>
    %1607 = arith.mulf %1548, %1606 : vector<8x128xf32>
    %1608 = arith.addf %1600, %1607 : vector<8x128xf32>
    %1609 = vector.extract_strided_slice %6 {offsets = [24, 768], sizes = [1, 128], strides = [1, 1]} : vector<32x1024xf32> to vector<1x128xf32>
    %1610 = vector.extract_strided_slice %9 {offsets = [0, 0, 6], sizes = [1, 8, 1], strides = [1, 1, 1]} : vector<8x8x8xf32> to vector<1x8x1xf32>
    %1611 = vector.shape_cast %1610 : vector<1x8x1xf32> to vector<8x1xf32>
    %1612 = vector.broadcast %1609 : vector<1x128xf32> to vector<8x128xf32>
    %1613 = vector.broadcast %1611 : vector<8x1xf32> to vector<8x128xf32>
    %1614 = arith.addf %1612, %1613 : vector<8x128xf32>
    %1615 = arith.mulf %1550, %1614 : vector<8x128xf32>
    %1616 = arith.addf %1608, %1615 : vector<8x128xf32>
    %1617 = vector.extract_strided_slice %6 {offsets = [24, 896], sizes = [1, 128], strides = [1, 1]} : vector<32x1024xf32> to vector<1x128xf32>
    %1618 = vector.extract_strided_slice %9 {offsets = [0, 0, 7], sizes = [1, 8, 1], strides = [1, 1, 1]} : vector<8x8x8xf32> to vector<1x8x1xf32>
    %1619 = vector.shape_cast %1618 : vector<1x8x1xf32> to vector<8x1xf32>
    %1620 = vector.broadcast %1617 : vector<1x128xf32> to vector<8x128xf32>
    %1621 = vector.broadcast %1619 : vector<8x1xf32> to vector<8x128xf32>
    %1622 = arith.addf %1620, %1621 : vector<8x128xf32>
    %1623 = arith.mulf %1552, %1622 : vector<8x128xf32>
    %1624 = arith.addf %1616, %1623 : vector<8x128xf32>
    %1625 = arith.mulf %1624, %1561 : vector<8x128xf32>
    %c8 = arith.constant 8 : index
    %c0_34 = arith.constant 0 : index
    %c0_35 = arith.constant 0 : index
    %1626 = vector.load %arg7[%c8, %c0_34, %c0_35] : memref<16x8x128xf32, #tpu.memory_space<vmem>>, vector<1x8x128xf32>
    %1627 = vector.shape_cast %1626 : vector<1x8x128xf32> to vector<8x128xf32>
    %1628 = vector.shape_cast %1625 : vector<8x128xf32> to vector<1x8x128xf32>
    tpu.vector_store %arg7[%c8, %c0_34, %c0_35], %1628 {strides = array<i32>} : memref<16x8x128xf32, #tpu.memory_space<vmem>>, vector<1x8x128xf32>,
    %1629 = vector.extract_strided_slice %6 {offsets = [25, 0], sizes = [1, 128], strides = [1, 1]} : vector<32x1024xf32> to vector<1x128xf32>
    %1630 = vector.extract_strided_slice %9 {offsets = [1, 0, 0], sizes = [1, 8, 1], strides = [1, 1, 1]} : vector<8x8x8xf32> to vector<1x8x1xf32>
    %1631 = vector.shape_cast %1630 : vector<1x8x1xf32> to vector<8x1xf32>
    %1632 = vector.broadcast %1629 : vector<1x128xf32> to vector<8x128xf32>
    %1633 = vector.broadcast %1631 : vector<8x1xf32> to vector<8x128xf32>
    %1634 = arith.addf %1632, %1633 : vector<8x128xf32>
    %1635 = arith.mulf %1538, %1634 : vector<8x128xf32>
    %1636 = vector.extract_strided_slice %6 {offsets = [25, 128], sizes = [1, 128], strides = [1, 1]} : vector<32x1024xf32> to vector<1x128xf32>
    %1637 = vector.extract_strided_slice %9 {offsets = [1, 0, 1], sizes = [1, 8, 1], strides = [1, 1, 1]} : vector<8x8x8xf32> to vector<1x8x1xf32>
    %1638 = vector.shape_cast %1637 : vector<1x8x1xf32> to vector<8x1xf32>
    %1639 = vector.broadcast %1636 : vector<1x128xf32> to vector<8x128xf32>
    %1640 = vector.broadcast %1638 : vector<8x1xf32> to vector<8x128xf32>
    %1641 = arith.addf %1639, %1640 : vector<8x128xf32>
    %1642 = arith.mulf %1540, %1641 : vector<8x128xf32>
    %1643 = arith.addf %1635, %1642 : vector<8x128xf32>
    %1644 = vector.extract_strided_slice %6 {offsets = [25, 256], sizes = [1, 128], strides = [1, 1]} : vector<32x1024xf32> to vector<1x128xf32>
    %1645 = vector.extract_strided_slice %9 {offsets = [1, 0, 2], sizes = [1, 8, 1], strides = [1, 1, 1]} : vector<8x8x8xf32> to vector<1x8x1xf32>
    %1646 = vector.shape_cast %1645 : vector<1x8x1xf32> to vector<8x1xf32>
    %1647 = vector.broadcast %1644 : vector<1x128xf32> to vector<8x128xf32>
    %1648 = vector.broadcast %1646 : vector<8x1xf32> to vector<8x128xf32>
    %1649 = arith.addf %1647, %1648 : vector<8x128xf32>
    %1650 = arith.mulf %1542, %1649 : vector<8x128xf32>
    %1651 = arith.addf %1643, %1650 : vector<8x128xf32>
    %1652 = vector.extract_strided_slice %6 {offsets = [25, 384], sizes = [1, 128], strides = [1, 1]} : vector<32x1024xf32> to vector<1x128xf32>
    %1653 = vector.extract_strided_slice %9 {offsets = [1, 0, 3], sizes = [1, 8, 1], strides = [1, 1, 1]} : vector<8x8x8xf32> to vector<1x8x1xf32>
    %1654 = vector.shape_cast %1653 : vector<1x8x1xf32> to vector<8x1xf32>
    %1655 = vector.broadcast %1652 : vector<1x128xf32> to vector<8x128xf32>
    %1656 = vector.broadcast %1654 : vector<8x1xf32> to vector<8x128xf32>
    %1657 = arith.addf %1655, %1656 : vector<8x128xf32>
    %1658 = arith.mulf %1544, %1657 : vector<8x128xf32>
    %1659 = arith.addf %1651, %1658 : vector<8x128xf32>
    %1660 = vector.extract_strided_slice %6 {offsets = [25, 512], sizes = [1, 128], strides = [1, 1]} : vector<32x1024xf32> to vector<1x128xf32>
    %1661 = vector.extract_strided_slice %9 {offsets = [1, 0, 4], sizes = [1, 8, 1], strides = [1, 1, 1]} : vector<8x8x8xf32> to vector<1x8x1xf32>
    %1662 = vector.shape_cast %1661 : vector<1x8x1xf32> to vector<8x1xf32>
    %1663 = vector.broadcast %1660 : vector<1x128xf32> to vector<8x128xf32>
    %1664 = vector.broadcast %1662 : vector<8x1xf32> to vector<8x128xf32>
    %1665 = arith.addf %1663, %1664 : vector<8x128xf32>
    %1666 = arith.mulf %1546, %1665 : vector<8x128xf32>
    %1667 = arith.addf %1659, %1666 : vector<8x128xf32>
    %1668 = vector.extract_strided_slice %6 {offsets = [25, 640], sizes = [1, 128], strides = [1, 1]} : vector<32x1024xf32> to vector<1x128xf32>
    %1669 = vector.extract_strided_slice %9 {offsets = [1, 0, 5], sizes = [1, 8, 1], strides = [1, 1, 1]} : vector<8x8x8xf32> to vector<1x8x1xf32>
    %1670 = vector.shape_cast %1669 : vector<1x8x1xf32> to vector<8x1xf32>
    %1671 = vector.broadcast %1668 : vector<1x128xf32> to vector<8x128xf32>
    %1672 = vector.broadcast %1670 : vector<8x1xf32> to vector<8x128xf32>
    %1673 = arith.addf %1671, %1672 : vector<8x128xf32>
    %1674 = arith.mulf %1548, %1673 : vector<8x128xf32>
    %1675 = arith.addf %1667, %1674 : vector<8x128xf32>
    %1676 = vector.extract_strided_slice %6 {offsets = [25, 768], sizes = [1, 128], strides = [1, 1]} : vector<32x1024xf32> to vector<1x128xf32>
    %1677 = vector.extract_strided_slice %9 {offsets = [1, 0, 6], sizes = [1, 8, 1], strides = [1, 1, 1]} : vector<8x8x8xf32> to vector<1x8x1xf32>
    %1678 = vector.shape_cast %1677 : vector<1x8x1xf32> to vector<8x1xf32>
    %1679 = vector.broadcast %1676 : vector<1x128xf32> to vector<8x128xf32>
    %1680 = vector.broadcast %1678 : vector<8x1xf32> to vector<8x128xf32>
    %1681 = arith.addf %1679, %1680 : vector<8x128xf32>
    %1682 = arith.mulf %1550, %1681 : vector<8x128xf32>
    %1683 = arith.addf %1675, %1682 : vector<8x128xf32>
    %1684 = vector.extract_strided_slice %6 {offsets = [25, 896], sizes = [1, 128], strides = [1, 1]} : vector<32x1024xf32> to vector<1x128xf32>
    %1685 = vector.extract_strided_slice %9 {offsets = [1, 0, 7], sizes = [1, 8, 1], strides = [1, 1, 1]} : vector<8x8x8xf32> to vector<1x8x1xf32>
    %1686 = vector.shape_cast %1685 : vector<1x8x1xf32> to vector<8x1xf32>
    %1687 = vector.broadcast %1684 : vector<1x128xf32> to vector<8x128xf32>
    %1688 = vector.broadcast %1686 : vector<8x1xf32> to vector<8x128xf32>
    %1689 = arith.addf %1687, %1688 : vector<8x128xf32>
    %1690 = arith.mulf %1552, %1689 : vector<8x128xf32>
    %1691 = arith.addf %1683, %1690 : vector<8x128xf32>
    %1692 = arith.mulf %1691, %1561 : vector<8x128xf32>
    %c9 = arith.constant 9 : index
    %c0_36 = arith.constant 0 : index
    %c0_37 = arith.constant 0 : index
    %1693 = vector.load %arg7[%c9, %c0_36, %c0_37] : memref<16x8x128xf32, #tpu.memory_space<vmem>>, vector<1x8x128xf32>
    %1694 = vector.shape_cast %1693 : vector<1x8x128xf32> to vector<8x128xf32>
    %1695 = vector.shape_cast %1692 : vector<8x128xf32> to vector<1x8x128xf32>
    tpu.vector_store %arg7[%c9, %c0_36, %c0_37], %1695 {strides = array<i32>} : memref<16x8x128xf32, #tpu.memory_space<vmem>>, vector<1x8x128xf32>,
    %1696 = vector.extract_strided_slice %6 {offsets = [26, 0], sizes = [1, 128], strides = [1, 1]} : vector<32x1024xf32> to vector<1x128xf32>
    %1697 = vector.extract_strided_slice %9 {offsets = [2, 0, 0], sizes = [1, 8, 1], strides = [1, 1, 1]} : vector<8x8x8xf32> to vector<1x8x1xf32>
    %1698 = vector.shape_cast %1697 : vector<1x8x1xf32> to vector<8x1xf32>
    %1699 = vector.broadcast %1696 : vector<1x128xf32> to vector<8x128xf32>
    %1700 = vector.broadcast %1698 : vector<8x1xf32> to vector<8x128xf32>
    %1701 = arith.addf %1699, %1700 : vector<8x128xf32>
    %1702 = arith.mulf %1538, %1701 : vector<8x128xf32>
    %1703 = vector.extract_strided_slice %6 {offsets = [26, 128], sizes = [1, 128], strides = [1, 1]} : vector<32x1024xf32> to vector<1x128xf32>
    %1704 = vector.extract_strided_slice %9 {offsets = [2, 0, 1], sizes = [1, 8, 1], strides = [1, 1, 1]} : vector<8x8x8xf32> to vector<1x8x1xf32>
    %1705 = vector.shape_cast %1704 : vector<1x8x1xf32> to vector<8x1xf32>
    %1706 = vector.broadcast %1703 : vector<1x128xf32> to vector<8x128xf32>
    %1707 = vector.broadcast %1705 : vector<8x1xf32> to vector<8x128xf32>
    %1708 = arith.addf %1706, %1707 : vector<8x128xf32>
    %1709 = arith.mulf %1540, %1708 : vector<8x128xf32>
    %1710 = arith.addf %1702, %1709 : vector<8x128xf32>
    %1711 = vector.extract_strided_slice %6 {offsets = [26, 256], sizes = [1, 128], strides = [1, 1]} : vector<32x1024xf32> to vector<1x128xf32>
    %1712 = vector.extract_strided_slice %9 {offsets = [2, 0, 2], sizes = [1, 8, 1], strides = [1, 1, 1]} : vector<8x8x8xf32> to vector<1x8x1xf32>
    %1713 = vector.shape_cast %1712 : vector<1x8x1xf32> to vector<8x1xf32>
    %1714 = vector.broadcast %1711 : vector<1x128xf32> to vector<8x128xf32>
    %1715 = vector.broadcast %1713 : vector<8x1xf32> to vector<8x128xf32>
    %1716 = arith.addf %1714, %1715 : vector<8x128xf32>
    %1717 = arith.mulf %1542, %1716 : vector<8x128xf32>
    %1718 = arith.addf %1710, %1717 : vector<8x128xf32>
    %1719 = vector.extract_strided_slice %6 {offsets = [26, 384], sizes = [1, 128], strides = [1, 1]} : vector<32x1024xf32> to vector<1x128xf32>
    %1720 = vector.extract_strided_slice %9 {offsets = [2, 0, 3], sizes = [1, 8, 1], strides = [1, 1, 1]} : vector<8x8x8xf32> to vector<1x8x1xf32>
    %1721 = vector.shape_cast %1720 : vector<1x8x1xf32> to vector<8x1xf32>
    %1722 = vector.broadcast %1719 : vector<1x128xf32> to vector<8x128xf32>
    %1723 = vector.broadcast %1721 : vector<8x1xf32> to vector<8x128xf32>
    %1724 = arith.addf %1722, %1723 : vector<8x128xf32>
    %1725 = arith.mulf %1544, %1724 : vector<8x128xf32>
    %1726 = arith.addf %1718, %1725 : vector<8x128xf32>
    %1727 = vector.extract_strided_slice %6 {offsets = [26, 512], sizes = [1, 128], strides = [1, 1]} : vector<32x1024xf32> to vector<1x128xf32>
    %1728 = vector.extract_strided_slice %9 {offsets = [2, 0, 4], sizes = [1, 8, 1], strides = [1, 1, 1]} : vector<8x8x8xf32> to vector<1x8x1xf32>
    %1729 = vector.shape_cast %1728 : vector<1x8x1xf32> to vector<8x1xf32>
    %1730 = vector.broadcast %1727 : vector<1x128xf32> to vector<8x128xf32>
    %1731 = vector.broadcast %1729 : vector<8x1xf32> to vector<8x128xf32>
    %1732 = arith.addf %1730, %1731 : vector<8x128xf32>
    %1733 = arith.mulf %1546, %1732 : vector<8x128xf32>
    %1734 = arith.addf %1726, %1733 : vector<8x128xf32>
    %1735 = vector.extract_strided_slice %6 {offsets = [26, 640], sizes = [1, 128], strides = [1, 1]} : vector<32x1024xf32> to vector<1x128xf32>
    %1736 = vector.extract_strided_slice %9 {offsets = [2, 0, 5], sizes = [1, 8, 1], strides = [1, 1, 1]} : vector<8x8x8xf32> to vector<1x8x1xf32>
    %1737 = vector.shape_cast %1736 : vector<1x8x1xf32> to vector<8x1xf32>
    %1738 = vector.broadcast %1735 : vector<1x128xf32> to vector<8x128xf32>
    %1739 = vector.broadcast %1737 : vector<8x1xf32> to vector<8x128xf32>
    %1740 = arith.addf %1738, %1739 : vector<8x128xf32>
    %1741 = arith.mulf %1548, %1740 : vector<8x128xf32>
    %1742 = arith.addf %1734, %1741 : vector<8x128xf32>
    %1743 = vector.extract_strided_slice %6 {offsets = [26, 768], sizes = [1, 128], strides = [1, 1]} : vector<32x1024xf32> to vector<1x128xf32>
    %1744 = vector.extract_strided_slice %9 {offsets = [2, 0, 6], sizes = [1, 8, 1], strides = [1, 1, 1]} : vector<8x8x8xf32> to vector<1x8x1xf32>
    %1745 = vector.shape_cast %1744 : vector<1x8x1xf32> to vector<8x1xf32>
    %1746 = vector.broadcast %1743 : vector<1x128xf32> to vector<8x128xf32>
    %1747 = vector.broadcast %1745 : vector<8x1xf32> to vector<8x128xf32>
    %1748 = arith.addf %1746, %1747 : vector<8x128xf32>
    %1749 = arith.mulf %1550, %1748 : vector<8x128xf32>
    %1750 = arith.addf %1742, %1749 : vector<8x128xf32>
    %1751 = vector.extract_strided_slice %6 {offsets = [26, 896], sizes = [1, 128], strides = [1, 1]} : vector<32x1024xf32> to vector<1x128xf32>
    %1752 = vector.extract_strided_slice %9 {offsets = [2, 0, 7], sizes = [1, 8, 1], strides = [1, 1, 1]} : vector<8x8x8xf32> to vector<1x8x1xf32>
    %1753 = vector.shape_cast %1752 : vector<1x8x1xf32> to vector<8x1xf32>
    %1754 = vector.broadcast %1751 : vector<1x128xf32> to vector<8x128xf32>
    %1755 = vector.broadcast %1753 : vector<8x1xf32> to vector<8x128xf32>
    %1756 = arith.addf %1754, %1755 : vector<8x128xf32>
    %1757 = arith.mulf %1552, %1756 : vector<8x128xf32>
    %1758 = arith.addf %1750, %1757 : vector<8x128xf32>
    %1759 = arith.mulf %1758, %1561 : vector<8x128xf32>
    %c10 = arith.constant 10 : index
    %c0_38 = arith.constant 0 : index
    %c0_39 = arith.constant 0 : index
    %1760 = vector.load %arg7[%c10, %c0_38, %c0_39] : memref<16x8x128xf32, #tpu.memory_space<vmem>>, vector<1x8x128xf32>
    %1761 = vector.shape_cast %1760 : vector<1x8x128xf32> to vector<8x128xf32>
    %1762 = vector.shape_cast %1759 : vector<8x128xf32> to vector<1x8x128xf32>
    tpu.vector_store %arg7[%c10, %c0_38, %c0_39], %1762 {strides = array<i32>} : memref<16x8x128xf32, #tpu.memory_space<vmem>>, vector<1x8x128xf32>,
    %1763 = vector.extract_strided_slice %6 {offsets = [27, 0], sizes = [1, 128], strides = [1, 1]} : vector<32x1024xf32> to vector<1x128xf32>
    %1764 = vector.extract_strided_slice %9 {offsets = [3, 0, 0], sizes = [1, 8, 1], strides = [1, 1, 1]} : vector<8x8x8xf32> to vector<1x8x1xf32>
    %1765 = vector.shape_cast %1764 : vector<1x8x1xf32> to vector<8x1xf32>
    %1766 = vector.broadcast %1763 : vector<1x128xf32> to vector<8x128xf32>
    %1767 = vector.broadcast %1765 : vector<8x1xf32> to vector<8x128xf32>
    %1768 = arith.addf %1766, %1767 : vector<8x128xf32>
    %1769 = arith.mulf %1538, %1768 : vector<8x128xf32>
    %1770 = vector.extract_strided_slice %6 {offsets = [27, 128], sizes = [1, 128], strides = [1, 1]} : vector<32x1024xf32> to vector<1x128xf32>
    %1771 = vector.extract_strided_slice %9 {offsets = [3, 0, 1], sizes = [1, 8, 1], strides = [1, 1, 1]} : vector<8x8x8xf32> to vector<1x8x1xf32>
    %1772 = vector.shape_cast %1771 : vector<1x8x1xf32> to vector<8x1xf32>
    %1773 = vector.broadcast %1770 : vector<1x128xf32> to vector<8x128xf32>
    %1774 = vector.broadcast %1772 : vector<8x1xf32> to vector<8x128xf32>
    %1775 = arith.addf %1773, %1774 : vector<8x128xf32>
    %1776 = arith.mulf %1540, %1775 : vector<8x128xf32>
    %1777 = arith.addf %1769, %1776 : vector<8x128xf32>
    %1778 = vector.extract_strided_slice %6 {offsets = [27, 256], sizes = [1, 128], strides = [1, 1]} : vector<32x1024xf32> to vector<1x128xf32>
    %1779 = vector.extract_strided_slice %9 {offsets = [3, 0, 2], sizes = [1, 8, 1], strides = [1, 1, 1]} : vector<8x8x8xf32> to vector<1x8x1xf32>
    %1780 = vector.shape_cast %1779 : vector<1x8x1xf32> to vector<8x1xf32>
    %1781 = vector.broadcast %1778 : vector<1x128xf32> to vector<8x128xf32>
    %1782 = vector.broadcast %1780 : vector<8x1xf32> to vector<8x128xf32>
    %1783 = arith.addf %1781, %1782 : vector<8x128xf32>
    %1784 = arith.mulf %1542, %1783 : vector<8x128xf32>
    %1785 = arith.addf %1777, %1784 : vector<8x128xf32>
    %1786 = vector.extract_strided_slice %6 {offsets = [27, 384], sizes = [1, 128], strides = [1, 1]} : vector<32x1024xf32> to vector<1x128xf32>
    %1787 = vector.extract_strided_slice %9 {offsets = [3, 0, 3], sizes = [1, 8, 1], strides = [1, 1, 1]} : vector<8x8x8xf32> to vector<1x8x1xf32>
    %1788 = vector.shape_cast %1787 : vector<1x8x1xf32> to vector<8x1xf32>
    %1789 = vector.broadcast %1786 : vector<1x128xf32> to vector<8x128xf32>
    %1790 = vector.broadcast %1788 : vector<8x1xf32> to vector<8x128xf32>
    %1791 = arith.addf %1789, %1790 : vector<8x128xf32>
    %1792 = arith.mulf %1544, %1791 : vector<8x128xf32>
    %1793 = arith.addf %1785, %1792 : vector<8x128xf32>
    %1794 = vector.extract_strided_slice %6 {offsets = [27, 512], sizes = [1, 128], strides = [1, 1]} : vector<32x1024xf32> to vector<1x128xf32>
    %1795 = vector.extract_strided_slice %9 {offsets = [3, 0, 4], sizes = [1, 8, 1], strides = [1, 1, 1]} : vector<8x8x8xf32> to vector<1x8x1xf32>
    %1796 = vector.shape_cast %1795 : vector<1x8x1xf32> to vector<8x1xf32>
    %1797 = vector.broadcast %1794 : vector<1x128xf32> to vector<8x128xf32>
    %1798 = vector.broadcast %1796 : vector<8x1xf32> to vector<8x128xf32>
    %1799 = arith.addf %1797, %1798 : vector<8x128xf32>
    %1800 = arith.mulf %1546, %1799 : vector<8x128xf32>
    %1801 = arith.addf %1793, %1800 : vector<8x128xf32>
    %1802 = vector.extract_strided_slice %6 {offsets = [27, 640], sizes = [1, 128], strides = [1, 1]} : vector<32x1024xf32> to vector<1x128xf32>
    %1803 = vector.extract_strided_slice %9 {offsets = [3, 0, 5], sizes = [1, 8, 1], strides = [1, 1, 1]} : vector<8x8x8xf32> to vector<1x8x1xf32>
    %1804 = vector.shape_cast %1803 : vector<1x8x1xf32> to vector<8x1xf32>
    %1805 = vector.broadcast %1802 : vector<1x128xf32> to vector<8x128xf32>
    %1806 = vector.broadcast %1804 : vector<8x1xf32> to vector<8x128xf32>
    %1807 = arith.addf %1805, %1806 : vector<8x128xf32>
    %1808 = arith.mulf %1548, %1807 : vector<8x128xf32>
    %1809 = arith.addf %1801, %1808 : vector<8x128xf32>
    %1810 = vector.extract_strided_slice %6 {offsets = [27, 768], sizes = [1, 128], strides = [1, 1]} : vector<32x1024xf32> to vector<1x128xf32>
    %1811 = vector.extract_strided_slice %9 {offsets = [3, 0, 6], sizes = [1, 8, 1], strides = [1, 1, 1]} : vector<8x8x8xf32> to vector<1x8x1xf32>
    %1812 = vector.shape_cast %1811 : vector<1x8x1xf32> to vector<8x1xf32>
    %1813 = vector.broadcast %1810 : vector<1x128xf32> to vector<8x128xf32>
    %1814 = vector.broadcast %1812 : vector<8x1xf32> to vector<8x128xf32>
    %1815 = arith.addf %1813, %1814 : vector<8x128xf32>
    %1816 = arith.mulf %1550, %1815 : vector<8x128xf32>
    %1817 = arith.addf %1809, %1816 : vector<8x128xf32>
    %1818 = vector.extract_strided_slice %6 {offsets = [27, 896], sizes = [1, 128], strides = [1, 1]} : vector<32x1024xf32> to vector<1x128xf32>
    %1819 = vector.extract_strided_slice %9 {offsets = [3, 0, 7], sizes = [1, 8, 1], strides = [1, 1, 1]} : vector<8x8x8xf32> to vector<1x8x1xf32>
    %1820 = vector.shape_cast %1819 : vector<1x8x1xf32> to vector<8x1xf32>
    %1821 = vector.broadcast %1818 : vector<1x128xf32> to vector<8x128xf32>
    %1822 = vector.broadcast %1820 : vector<8x1xf32> to vector<8x128xf32>
    %1823 = arith.addf %1821, %1822 : vector<8x128xf32>
    %1824 = arith.mulf %1552, %1823 : vector<8x128xf32>
    %1825 = arith.addf %1817, %1824 : vector<8x128xf32>
    %1826 = arith.mulf %1825, %1561 : vector<8x128xf32>
    %c11 = arith.constant 11 : index
    %c0_40 = arith.constant 0 : index
    %c0_41 = arith.constant 0 : index
    %1827 = vector.load %arg7[%c11, %c0_40, %c0_41] : memref<16x8x128xf32, #tpu.memory_space<vmem>>, vector<1x8x128xf32>
    %1828 = vector.shape_cast %1827 : vector<1x8x128xf32> to vector<8x128xf32>
    %1829 = vector.shape_cast %1826 : vector<8x128xf32> to vector<1x8x128xf32>
    tpu.vector_store %arg7[%c11, %c0_40, %c0_41], %1829 {strides = array<i32>} : memref<16x8x128xf32, #tpu.memory_space<vmem>>, vector<1x8x128xf32>,
    %1830 = vector.extract_strided_slice %6 {offsets = [28, 0], sizes = [1, 128], strides = [1, 1]} : vector<32x1024xf32> to vector<1x128xf32>
    %1831 = vector.extract_strided_slice %9 {offsets = [4, 0, 0], sizes = [1, 8, 1], strides = [1, 1, 1]} : vector<8x8x8xf32> to vector<1x8x1xf32>
    %1832 = vector.shape_cast %1831 : vector<1x8x1xf32> to vector<8x1xf32>
    %1833 = vector.broadcast %1830 : vector<1x128xf32> to vector<8x128xf32>
    %1834 = vector.broadcast %1832 : vector<8x1xf32> to vector<8x128xf32>
    %1835 = arith.addf %1833, %1834 : vector<8x128xf32>
    %1836 = arith.mulf %1538, %1835 : vector<8x128xf32>
    %1837 = vector.extract_strided_slice %6 {offsets = [28, 128], sizes = [1, 128], strides = [1, 1]} : vector<32x1024xf32> to vector<1x128xf32>
    %1838 = vector.extract_strided_slice %9 {offsets = [4, 0, 1], sizes = [1, 8, 1], strides = [1, 1, 1]} : vector<8x8x8xf32> to vector<1x8x1xf32>
    %1839 = vector.shape_cast %1838 : vector<1x8x1xf32> to vector<8x1xf32>
    %1840 = vector.broadcast %1837 : vector<1x128xf32> to vector<8x128xf32>
    %1841 = vector.broadcast %1839 : vector<8x1xf32> to vector<8x128xf32>
    %1842 = arith.addf %1840, %1841 : vector<8x128xf32>
    %1843 = arith.mulf %1540, %1842 : vector<8x128xf32>
    %1844 = arith.addf %1836, %1843 : vector<8x128xf32>
    %1845 = vector.extract_strided_slice %6 {offsets = [28, 256], sizes = [1, 128], strides = [1, 1]} : vector<32x1024xf32> to vector<1x128xf32>
    %1846 = vector.extract_strided_slice %9 {offsets = [4, 0, 2], sizes = [1, 8, 1], strides = [1, 1, 1]} : vector<8x8x8xf32> to vector<1x8x1xf32>
    %1847 = vector.shape_cast %1846 : vector<1x8x1xf32> to vector<8x1xf32>
    %1848 = vector.broadcast %1845 : vector<1x128xf32> to vector<8x128xf32>
    %1849 = vector.broadcast %1847 : vector<8x1xf32> to vector<8x128xf32>
    %1850 = arith.addf %1848, %1849 : vector<8x128xf32>
    %1851 = arith.mulf %1542, %1850 : vector<8x128xf32>
    %1852 = arith.addf %1844, %1851 : vector<8x128xf32>
    %1853 = vector.extract_strided_slice %6 {offsets = [28, 384], sizes = [1, 128], strides = [1, 1]} : vector<32x1024xf32> to vector<1x128xf32>
    %1854 = vector.extract_strided_slice %9 {offsets = [4, 0, 3], sizes = [1, 8, 1], strides = [1, 1, 1]} : vector<8x8x8xf32> to vector<1x8x1xf32>
    %1855 = vector.shape_cast %1854 : vector<1x8x1xf32> to vector<8x1xf32>
    %1856 = vector.broadcast %1853 : vector<1x128xf32> to vector<8x128xf32>
    %1857 = vector.broadcast %1855 : vector<8x1xf32> to vector<8x128xf32>
    %1858 = arith.addf %1856, %1857 : vector<8x128xf32>
    %1859 = arith.mulf %1544, %1858 : vector<8x128xf32>
    %1860 = arith.addf %1852, %1859 : vector<8x128xf32>
    %1861 = vector.extract_strided_slice %6 {offsets = [28, 512], sizes = [1, 128], strides = [1, 1]} : vector<32x1024xf32> to vector<1x128xf32>
    %1862 = vector.extract_strided_slice %9 {offsets = [4, 0, 4], sizes = [1, 8, 1], strides = [1, 1, 1]} : vector<8x8x8xf32> to vector<1x8x1xf32>
    %1863 = vector.shape_cast %1862 : vector<1x8x1xf32> to vector<8x1xf32>
    %1864 = vector.broadcast %1861 : vector<1x128xf32> to vector<8x128xf32>
    %1865 = vector.broadcast %1863 : vector<8x1xf32> to vector<8x128xf32>
    %1866 = arith.addf %1864, %1865 : vector<8x128xf32>
    %1867 = arith.mulf %1546, %1866 : vector<8x128xf32>
    %1868 = arith.addf %1860, %1867 : vector<8x128xf32>
    %1869 = vector.extract_strided_slice %6 {offsets = [28, 640], sizes = [1, 128], strides = [1, 1]} : vector<32x1024xf32> to vector<1x128xf32>
    %1870 = vector.extract_strided_slice %9 {offsets = [4, 0, 5], sizes = [1, 8, 1], strides = [1, 1, 1]} : vector<8x8x8xf32> to vector<1x8x1xf32>
    %1871 = vector.shape_cast %1870 : vector<1x8x1xf32> to vector<8x1xf32>
    %1872 = vector.broadcast %1869 : vector<1x128xf32> to vector<8x128xf32>
    %1873 = vector.broadcast %1871 : vector<8x1xf32> to vector<8x128xf32>
    %1874 = arith.addf %1872, %1873 : vector<8x128xf32>
    %1875 = arith.mulf %1548, %1874 : vector<8x128xf32>
    %1876 = arith.addf %1868, %1875 : vector<8x128xf32>
    %1877 = vector.extract_strided_slice %6 {offsets = [28, 768], sizes = [1, 128], strides = [1, 1]} : vector<32x1024xf32> to vector<1x128xf32>
    %1878 = vector.extract_strided_slice %9 {offsets = [4, 0, 6], sizes = [1, 8, 1], strides = [1, 1, 1]} : vector<8x8x8xf32> to vector<1x8x1xf32>
    %1879 = vector.shape_cast %1878 : vector<1x8x1xf32> to vector<8x1xf32>
    %1880 = vector.broadcast %1877 : vector<1x128xf32> to vector<8x128xf32>
    %1881 = vector.broadcast %1879 : vector<8x1xf32> to vector<8x128xf32>
    %1882 = arith.addf %1880, %1881 : vector<8x128xf32>
    %1883 = arith.mulf %1550, %1882 : vector<8x128xf32>
    %1884 = arith.addf %1876, %1883 : vector<8x128xf32>
    %1885 = vector.extract_strided_slice %6 {offsets = [28, 896], sizes = [1, 128], strides = [1, 1]} : vector<32x1024xf32> to vector<1x128xf32>
    %1886 = vector.extract_strided_slice %9 {offsets = [4, 0, 7], sizes = [1, 8, 1], strides = [1, 1, 1]} : vector<8x8x8xf32> to vector<1x8x1xf32>
    %1887 = vector.shape_cast %1886 : vector<1x8x1xf32> to vector<8x1xf32>
    %1888 = vector.broadcast %1885 : vector<1x128xf32> to vector<8x128xf32>
    %1889 = vector.broadcast %1887 : vector<8x1xf32> to vector<8x128xf32>
    %1890 = arith.addf %1888, %1889 : vector<8x128xf32>
    %1891 = arith.mulf %1552, %1890 : vector<8x128xf32>
    %1892 = arith.addf %1884, %1891 : vector<8x128xf32>
    %1893 = arith.mulf %1892, %1561 : vector<8x128xf32>
    %c12 = arith.constant 12 : index
    %c0_42 = arith.constant 0 : index
    %c0_43 = arith.constant 0 : index
    %1894 = vector.load %arg7[%c12, %c0_42, %c0_43] : memref<16x8x128xf32, #tpu.memory_space<vmem>>, vector<1x8x128xf32>
    %1895 = vector.shape_cast %1894 : vector<1x8x128xf32> to vector<8x128xf32>
    %1896 = vector.shape_cast %1893 : vector<8x128xf32> to vector<1x8x128xf32>
    tpu.vector_store %arg7[%c12, %c0_42, %c0_43], %1896 {strides = array<i32>} : memref<16x8x128xf32, #tpu.memory_space<vmem>>, vector<1x8x128xf32>,
    %1897 = vector.extract_strided_slice %6 {offsets = [29, 0], sizes = [1, 128], strides = [1, 1]} : vector<32x1024xf32> to vector<1x128xf32>
    %1898 = vector.extract_strided_slice %9 {offsets = [5, 0, 0], sizes = [1, 8, 1], strides = [1, 1, 1]} : vector<8x8x8xf32> to vector<1x8x1xf32>
    %1899 = vector.shape_cast %1898 : vector<1x8x1xf32> to vector<8x1xf32>
    %1900 = vector.broadcast %1897 : vector<1x128xf32> to vector<8x128xf32>
    %1901 = vector.broadcast %1899 : vector<8x1xf32> to vector<8x128xf32>
    %1902 = arith.addf %1900, %1901 : vector<8x128xf32>
    %1903 = arith.mulf %1538, %1902 : vector<8x128xf32>
    %1904 = vector.extract_strided_slice %6 {offsets = [29, 128], sizes = [1, 128], strides = [1, 1]} : vector<32x1024xf32> to vector<1x128xf32>
    %1905 = vector.extract_strided_slice %9 {offsets = [5, 0, 1], sizes = [1, 8, 1], strides = [1, 1, 1]} : vector<8x8x8xf32> to vector<1x8x1xf32>
    %1906 = vector.shape_cast %1905 : vector<1x8x1xf32> to vector<8x1xf32>
    %1907 = vector.broadcast %1904 : vector<1x128xf32> to vector<8x128xf32>
    %1908 = vector.broadcast %1906 : vector<8x1xf32> to vector<8x128xf32>
    %1909 = arith.addf %1907, %1908 : vector<8x128xf32>
    %1910 = arith.mulf %1540, %1909 : vector<8x128xf32>
    %1911 = arith.addf %1903, %1910 : vector<8x128xf32>
    %1912 = vector.extract_strided_slice %6 {offsets = [29, 256], sizes = [1, 128], strides = [1, 1]} : vector<32x1024xf32> to vector<1x128xf32>
    %1913 = vector.extract_strided_slice %9 {offsets = [5, 0, 2], sizes = [1, 8, 1], strides = [1, 1, 1]} : vector<8x8x8xf32> to vector<1x8x1xf32>
    %1914 = vector.shape_cast %1913 : vector<1x8x1xf32> to vector<8x1xf32>
    %1915 = vector.broadcast %1912 : vector<1x128xf32> to vector<8x128xf32>
    %1916 = vector.broadcast %1914 : vector<8x1xf32> to vector<8x128xf32>
    %1917 = arith.addf %1915, %1916 : vector<8x128xf32>
    %1918 = arith.mulf %1542, %1917 : vector<8x128xf32>
    %1919 = arith.addf %1911, %1918 : vector<8x128xf32>
    %1920 = vector.extract_strided_slice %6 {offsets = [29, 384], sizes = [1, 128], strides = [1, 1]} : vector<32x1024xf32> to vector<1x128xf32>
    %1921 = vector.extract_strided_slice %9 {offsets = [5, 0, 3], sizes = [1, 8, 1], strides = [1, 1, 1]} : vector<8x8x8xf32> to vector<1x8x1xf32>
    %1922 = vector.shape_cast %1921 : vector<1x8x1xf32> to vector<8x1xf32>
    %1923 = vector.broadcast %1920 : vector<1x128xf32> to vector<8x128xf32>
    %1924 = vector.broadcast %1922 : vector<8x1xf32> to vector<8x128xf32>
    %1925 = arith.addf %1923, %1924 : vector<8x128xf32>
    %1926 = arith.mulf %1544, %1925 : vector<8x128xf32>
    %1927 = arith.addf %1919, %1926 : vector<8x128xf32>
    %1928 = vector.extract_strided_slice %6 {offsets = [29, 512], sizes = [1, 128], strides = [1, 1]} : vector<32x1024xf32> to vector<1x128xf32>
    %1929 = vector.extract_strided_slice %9 {offsets = [5, 0, 4], sizes = [1, 8, 1], strides = [1, 1, 1]} : vector<8x8x8xf32> to vector<1x8x1xf32>
    %1930 = vector.shape_cast %1929 : vector<1x8x1xf32> to vector<8x1xf32>
    %1931 = vector.broadcast %1928 : vector<1x128xf32> to vector<8x128xf32>
    %1932 = vector.broadcast %1930 : vector<8x1xf32> to vector<8x128xf32>
    %1933 = arith.addf %1931, %1932 : vector<8x128xf32>
    %1934 = arith.mulf %1546, %1933 : vector<8x128xf32>
    %1935 = arith.addf %1927, %1934 : vector<8x128xf32>
    %1936 = vector.extract_strided_slice %6 {offsets = [29, 640], sizes = [1, 128], strides = [1, 1]} : vector<32x1024xf32> to vector<1x128xf32>
    %1937 = vector.extract_strided_slice %9 {offsets = [5, 0, 5], sizes = [1, 8, 1], strides = [1, 1, 1]} : vector<8x8x8xf32> to vector<1x8x1xf32>
    %1938 = vector.shape_cast %1937 : vector<1x8x1xf32> to vector<8x1xf32>
    %1939 = vector.broadcast %1936 : vector<1x128xf32> to vector<8x128xf32>
    %1940 = vector.broadcast %1938 : vector<8x1xf32> to vector<8x128xf32>
    %1941 = arith.addf %1939, %1940 : vector<8x128xf32>
    %1942 = arith.mulf %1548, %1941 : vector<8x128xf32>
    %1943 = arith.addf %1935, %1942 : vector<8x128xf32>
    %1944 = vector.extract_strided_slice %6 {offsets = [29, 768], sizes = [1, 128], strides = [1, 1]} : vector<32x1024xf32> to vector<1x128xf32>
    %1945 = vector.extract_strided_slice %9 {offsets = [5, 0, 6], sizes = [1, 8, 1], strides = [1, 1, 1]} : vector<8x8x8xf32> to vector<1x8x1xf32>
    %1946 = vector.shape_cast %1945 : vector<1x8x1xf32> to vector<8x1xf32>
    %1947 = vector.broadcast %1944 : vector<1x128xf32> to vector<8x128xf32>
    %1948 = vector.broadcast %1946 : vector<8x1xf32> to vector<8x128xf32>
    %1949 = arith.addf %1947, %1948 : vector<8x128xf32>
    %1950 = arith.mulf %1550, %1949 : vector<8x128xf32>
    %1951 = arith.addf %1943, %1950 : vector<8x128xf32>
    %1952 = vector.extract_strided_slice %6 {offsets = [29, 896], sizes = [1, 128], strides = [1, 1]} : vector<32x1024xf32> to vector<1x128xf32>
    %1953 = vector.extract_strided_slice %9 {offsets = [5, 0, 7], sizes = [1, 8, 1], strides = [1, 1, 1]} : vector<8x8x8xf32> to vector<1x8x1xf32>
    %1954 = vector.shape_cast %1953 : vector<1x8x1xf32> to vector<8x1xf32>
    %1955 = vector.broadcast %1952 : vector<1x128xf32> to vector<8x128xf32>
    %1956 = vector.broadcast %1954 : vector<8x1xf32> to vector<8x128xf32>
    %1957 = arith.addf %1955, %1956 : vector<8x128xf32>
    %1958 = arith.mulf %1552, %1957 : vector<8x128xf32>
    %1959 = arith.addf %1951, %1958 : vector<8x128xf32>
    %1960 = arith.mulf %1959, %1561 : vector<8x128xf32>
    %c13 = arith.constant 13 : index
    %c0_44 = arith.constant 0 : index
    %c0_45 = arith.constant 0 : index
    %1961 = vector.load %arg7[%c13, %c0_44, %c0_45] : memref<16x8x128xf32, #tpu.memory_space<vmem>>, vector<1x8x128xf32>
    %1962 = vector.shape_cast %1961 : vector<1x8x128xf32> to vector<8x128xf32>
    %1963 = vector.shape_cast %1960 : vector<8x128xf32> to vector<1x8x128xf32>
    tpu.vector_store %arg7[%c13, %c0_44, %c0_45], %1963 {strides = array<i32>} : memref<16x8x128xf32, #tpu.memory_space<vmem>>, vector<1x8x128xf32>,
    %1964 = vector.extract_strided_slice %6 {offsets = [30, 0], sizes = [1, 128], strides = [1, 1]} : vector<32x1024xf32> to vector<1x128xf32>
    %1965 = vector.extract_strided_slice %9 {offsets = [6, 0, 0], sizes = [1, 8, 1], strides = [1, 1, 1]} : vector<8x8x8xf32> to vector<1x8x1xf32>
    %1966 = vector.shape_cast %1965 : vector<1x8x1xf32> to vector<8x1xf32>
    %1967 = vector.broadcast %1964 : vector<1x128xf32> to vector<8x128xf32>
    %1968 = vector.broadcast %1966 : vector<8x1xf32> to vector<8x128xf32>
    %1969 = arith.addf %1967, %1968 : vector<8x128xf32>
    %1970 = arith.mulf %1538, %1969 : vector<8x128xf32>
    %1971 = vector.extract_strided_slice %6 {offsets = [30, 128], sizes = [1, 128], strides = [1, 1]} : vector<32x1024xf32> to vector<1x128xf32>
    %1972 = vector.extract_strided_slice %9 {offsets = [6, 0, 1], sizes = [1, 8, 1], strides = [1, 1, 1]} : vector<8x8x8xf32> to vector<1x8x1xf32>
    %1973 = vector.shape_cast %1972 : vector<1x8x1xf32> to vector<8x1xf32>
    %1974 = vector.broadcast %1971 : vector<1x128xf32> to vector<8x128xf32>
    %1975 = vector.broadcast %1973 : vector<8x1xf32> to vector<8x128xf32>
    %1976 = arith.addf %1974, %1975 : vector<8x128xf32>
    %1977 = arith.mulf %1540, %1976 : vector<8x128xf32>
    %1978 = arith.addf %1970, %1977 : vector<8x128xf32>
    %1979 = vector.extract_strided_slice %6 {offsets = [30, 256], sizes = [1, 128], strides = [1, 1]} : vector<32x1024xf32> to vector<1x128xf32>
    %1980 = vector.extract_strided_slice %9 {offsets = [6, 0, 2], sizes = [1, 8, 1], strides = [1, 1, 1]} : vector<8x8x8xf32> to vector<1x8x1xf32>
    %1981 = vector.shape_cast %1980 : vector<1x8x1xf32> to vector<8x1xf32>
    %1982 = vector.broadcast %1979 : vector<1x128xf32> to vector<8x128xf32>
    %1983 = vector.broadcast %1981 : vector<8x1xf32> to vector<8x128xf32>
    %1984 = arith.addf %1982, %1983 : vector<8x128xf32>
    %1985 = arith.mulf %1542, %1984 : vector<8x128xf32>
    %1986 = arith.addf %1978, %1985 : vector<8x128xf32>
    %1987 = vector.extract_strided_slice %6 {offsets = [30, 384], sizes = [1, 128], strides = [1, 1]} : vector<32x1024xf32> to vector<1x128xf32>
    %1988 = vector.extract_strided_slice %9 {offsets = [6, 0, 3], sizes = [1, 8, 1], strides = [1, 1, 1]} : vector<8x8x8xf32> to vector<1x8x1xf32>
    %1989 = vector.shape_cast %1988 : vector<1x8x1xf32> to vector<8x1xf32>
    %1990 = vector.broadcast %1987 : vector<1x128xf32> to vector<8x128xf32>
    %1991 = vector.broadcast %1989 : vector<8x1xf32> to vector<8x128xf32>
    %1992 = arith.addf %1990, %1991 : vector<8x128xf32>
    %1993 = arith.mulf %1544, %1992 : vector<8x128xf32>
    %1994 = arith.addf %1986, %1993 : vector<8x128xf32>
    %1995 = vector.extract_strided_slice %6 {offsets = [30, 512], sizes = [1, 128], strides = [1, 1]} : vector<32x1024xf32> to vector<1x128xf32>
    %1996 = vector.extract_strided_slice %9 {offsets = [6, 0, 4], sizes = [1, 8, 1], strides = [1, 1, 1]} : vector<8x8x8xf32> to vector<1x8x1xf32>
    %1997 = vector.shape_cast %1996 : vector<1x8x1xf32> to vector<8x1xf32>
    %1998 = vector.broadcast %1995 : vector<1x128xf32> to vector<8x128xf32>
    %1999 = vector.broadcast %1997 : vector<8x1xf32> to vector<8x128xf32>
    %2000 = arith.addf %1998, %1999 : vector<8x128xf32>
    %2001 = arith.mulf %1546, %2000 : vector<8x128xf32>
    %2002 = arith.addf %1994, %2001 : vector<8x128xf32>
    %2003 = vector.extract_strided_slice %6 {offsets = [30, 640], sizes = [1, 128], strides = [1, 1]} : vector<32x1024xf32> to vector<1x128xf32>
    %2004 = vector.extract_strided_slice %9 {offsets = [6, 0, 5], sizes = [1, 8, 1], strides = [1, 1, 1]} : vector<8x8x8xf32> to vector<1x8x1xf32>
    %2005 = vector.shape_cast %2004 : vector<1x8x1xf32> to vector<8x1xf32>
    %2006 = vector.broadcast %2003 : vector<1x128xf32> to vector<8x128xf32>
    %2007 = vector.broadcast %2005 : vector<8x1xf32> to vector<8x128xf32>
    %2008 = arith.addf %2006, %2007 : vector<8x128xf32>
    %2009 = arith.mulf %1548, %2008 : vector<8x128xf32>
    %2010 = arith.addf %2002, %2009 : vector<8x128xf32>
    %2011 = vector.extract_strided_slice %6 {offsets = [30, 768], sizes = [1, 128], strides = [1, 1]} : vector<32x1024xf32> to vector<1x128xf32>
    %2012 = vector.extract_strided_slice %9 {offsets = [6, 0, 6], sizes = [1, 8, 1], strides = [1, 1, 1]} : vector<8x8x8xf32> to vector<1x8x1xf32>
    %2013 = vector.shape_cast %2012 : vector<1x8x1xf32> to vector<8x1xf32>
    %2014 = vector.broadcast %2011 : vector<1x128xf32> to vector<8x128xf32>
    %2015 = vector.broadcast %2013 : vector<8x1xf32> to vector<8x128xf32>
    %2016 = arith.addf %2014, %2015 : vector<8x128xf32>
    %2017 = arith.mulf %1550, %2016 : vector<8x128xf32>
    %2018 = arith.addf %2010, %2017 : vector<8x128xf32>
    %2019 = vector.extract_strided_slice %6 {offsets = [30, 896], sizes = [1, 128], strides = [1, 1]} : vector<32x1024xf32> to vector<1x128xf32>
    %2020 = vector.extract_strided_slice %9 {offsets = [6, 0, 7], sizes = [1, 8, 1], strides = [1, 1, 1]} : vector<8x8x8xf32> to vector<1x8x1xf32>
    %2021 = vector.shape_cast %2020 : vector<1x8x1xf32> to vector<8x1xf32>
    %2022 = vector.broadcast %2019 : vector<1x128xf32> to vector<8x128xf32>
    %2023 = vector.broadcast %2021 : vector<8x1xf32> to vector<8x128xf32>
    %2024 = arith.addf %2022, %2023 : vector<8x128xf32>
    %2025 = arith.mulf %1552, %2024 : vector<8x128xf32>
    %2026 = arith.addf %2018, %2025 : vector<8x128xf32>
    %2027 = arith.mulf %2026, %1561 : vector<8x128xf32>
    %c14 = arith.constant 14 : index
    %c0_46 = arith.constant 0 : index
    %c0_47 = arith.constant 0 : index
    %2028 = vector.load %arg7[%c14, %c0_46, %c0_47] : memref<16x8x128xf32, #tpu.memory_space<vmem>>, vector<1x8x128xf32>
    %2029 = vector.shape_cast %2028 : vector<1x8x128xf32> to vector<8x128xf32>
    %2030 = vector.shape_cast %2027 : vector<8x128xf32> to vector<1x8x128xf32>
    tpu.vector_store %arg7[%c14, %c0_46, %c0_47], %2030 {strides = array<i32>} : memref<16x8x128xf32, #tpu.memory_space<vmem>>, vector<1x8x128xf32>,
    %2031 = vector.extract_strided_slice %6 {offsets = [31, 0], sizes = [1, 128], strides = [1, 1]} : vector<32x1024xf32> to vector<1x128xf32>
    %2032 = vector.extract_strided_slice %9 {offsets = [7, 0, 0], sizes = [1, 8, 1], strides = [1, 1, 1]} : vector<8x8x8xf32> to vector<1x8x1xf32>
    %2033 = vector.shape_cast %2032 : vector<1x8x1xf32> to vector<8x1xf32>
    %2034 = vector.broadcast %2031 : vector<1x128xf32> to vector<8x128xf32>
    %2035 = vector.broadcast %2033 : vector<8x1xf32> to vector<8x128xf32>
    %2036 = arith.addf %2034, %2035 : vector<8x128xf32>
    %2037 = arith.mulf %1538, %2036 : vector<8x128xf32>
    %2038 = vector.extract_strided_slice %6 {offsets = [31, 128], sizes = [1, 128], strides = [1, 1]} : vector<32x1024xf32> to vector<1x128xf32>
    %2039 = vector.extract_strided_slice %9 {offsets = [7, 0, 1], sizes = [1, 8, 1], strides = [1, 1, 1]} : vector<8x8x8xf32> to vector<1x8x1xf32>
    %2040 = vector.shape_cast %2039 : vector<1x8x1xf32> to vector<8x1xf32>
    %2041 = vector.broadcast %2038 : vector<1x128xf32> to vector<8x128xf32>
    %2042 = vector.broadcast %2040 : vector<8x1xf32> to vector<8x128xf32>
    %2043 = arith.addf %2041, %2042 : vector<8x128xf32>
    %2044 = arith.mulf %1540, %2043 : vector<8x128xf32>
    %2045 = arith.addf %2037, %2044 : vector<8x128xf32>
    %2046 = vector.extract_strided_slice %6 {offsets = [31, 256], sizes = [1, 128], strides = [1, 1]} : vector<32x1024xf32> to vector<1x128xf32>
    %2047 = vector.extract_strided_slice %9 {offsets = [7, 0, 2], sizes = [1, 8, 1], strides = [1, 1, 1]} : vector<8x8x8xf32> to vector<1x8x1xf32>
    %2048 = vector.shape_cast %2047 : vector<1x8x1xf32> to vector<8x1xf32>
    %2049 = vector.broadcast %2046 : vector<1x128xf32> to vector<8x128xf32>
    %2050 = vector.broadcast %2048 : vector<8x1xf32> to vector<8x128xf32>
    %2051 = arith.addf %2049, %2050 : vector<8x128xf32>
    %2052 = arith.mulf %1542, %2051 : vector<8x128xf32>
    %2053 = arith.addf %2045, %2052 : vector<8x128xf32>
    %2054 = vector.extract_strided_slice %6 {offsets = [31, 384], sizes = [1, 128], strides = [1, 1]} : vector<32x1024xf32> to vector<1x128xf32>
    %2055 = vector.extract_strided_slice %9 {offsets = [7, 0, 3], sizes = [1, 8, 1], strides = [1, 1, 1]} : vector<8x8x8xf32> to vector<1x8x1xf32>
    %2056 = vector.shape_cast %2055 : vector<1x8x1xf32> to vector<8x1xf32>
    %2057 = vector.broadcast %2054 : vector<1x128xf32> to vector<8x128xf32>
    %2058 = vector.broadcast %2056 : vector<8x1xf32> to vector<8x128xf32>
    %2059 = arith.addf %2057, %2058 : vector<8x128xf32>
    %2060 = arith.mulf %1544, %2059 : vector<8x128xf32>
    %2061 = arith.addf %2053, %2060 : vector<8x128xf32>
    %2062 = vector.extract_strided_slice %6 {offsets = [31, 512], sizes = [1, 128], strides = [1, 1]} : vector<32x1024xf32> to vector<1x128xf32>
    %2063 = vector.extract_strided_slice %9 {offsets = [7, 0, 4], sizes = [1, 8, 1], strides = [1, 1, 1]} : vector<8x8x8xf32> to vector<1x8x1xf32>
    %2064 = vector.shape_cast %2063 : vector<1x8x1xf32> to vector<8x1xf32>
    %2065 = vector.broadcast %2062 : vector<1x128xf32> to vector<8x128xf32>
    %2066 = vector.broadcast %2064 : vector<8x1xf32> to vector<8x128xf32>
    %2067 = arith.addf %2065, %2066 : vector<8x128xf32>
    %2068 = arith.mulf %1546, %2067 : vector<8x128xf32>
    %2069 = arith.addf %2061, %2068 : vector<8x128xf32>
    %2070 = vector.extract_strided_slice %6 {offsets = [31, 640], sizes = [1, 128], strides = [1, 1]} : vector<32x1024xf32> to vector<1x128xf32>
    %2071 = vector.extract_strided_slice %9 {offsets = [7, 0, 5], sizes = [1, 8, 1], strides = [1, 1, 1]} : vector<8x8x8xf32> to vector<1x8x1xf32>
    %2072 = vector.shape_cast %2071 : vector<1x8x1xf32> to vector<8x1xf32>
    %2073 = vector.broadcast %2070 : vector<1x128xf32> to vector<8x128xf32>
    %2074 = vector.broadcast %2072 : vector<8x1xf32> to vector<8x128xf32>
    %2075 = arith.addf %2073, %2074 : vector<8x128xf32>
    %2076 = arith.mulf %1548, %2075 : vector<8x128xf32>
    %2077 = arith.addf %2069, %2076 : vector<8x128xf32>
    %2078 = vector.extract_strided_slice %6 {offsets = [31, 768], sizes = [1, 128], strides = [1, 1]} : vector<32x1024xf32> to vector<1x128xf32>
    %2079 = vector.extract_strided_slice %9 {offsets = [7, 0, 6], sizes = [1, 8, 1], strides = [1, 1, 1]} : vector<8x8x8xf32> to vector<1x8x1xf32>
    %2080 = vector.shape_cast %2079 : vector<1x8x1xf32> to vector<8x1xf32>
    %2081 = vector.broadcast %2078 : vector<1x128xf32> to vector<8x128xf32>
    %2082 = vector.broadcast %2080 : vector<8x1xf32> to vector<8x128xf32>
    %2083 = arith.addf %2081, %2082 : vector<8x128xf32>
    %2084 = arith.mulf %1550, %2083 : vector<8x128xf32>
    %2085 = arith.addf %2077, %2084 : vector<8x128xf32>
    %2086 = vector.extract_strided_slice %6 {offsets = [31, 896], sizes = [1, 128], strides = [1, 1]} : vector<32x1024xf32> to vector<1x128xf32>
    %2087 = vector.extract_strided_slice %9 {offsets = [7, 0, 7], sizes = [1, 8, 1], strides = [1, 1, 1]} : vector<8x8x8xf32> to vector<1x8x1xf32>
    %2088 = vector.shape_cast %2087 : vector<1x8x1xf32> to vector<8x1xf32>
    %2089 = vector.broadcast %2086 : vector<1x128xf32> to vector<8x128xf32>
    %2090 = vector.broadcast %2088 : vector<8x1xf32> to vector<8x128xf32>
    %2091 = arith.addf %2089, %2090 : vector<8x128xf32>
    %2092 = arith.mulf %1552, %2091 : vector<8x128xf32>
    %2093 = arith.addf %2085, %2092 : vector<8x128xf32>
    %2094 = arith.mulf %2093, %1561 : vector<8x128xf32>
    %c15 = arith.constant 15 : index
    %c0_48 = arith.constant 0 : index
    %c0_49 = arith.constant 0 : index
    %2095 = vector.load %arg7[%c15, %c0_48, %c0_49] : memref<16x8x128xf32, #tpu.memory_space<vmem>>, vector<1x8x128xf32>
    %2096 = vector.shape_cast %2095 : vector<1x8x128xf32> to vector<8x128xf32>
    %2097 = vector.shape_cast %2094 : vector<8x128xf32> to vector<1x8x128xf32>
    tpu.vector_store %arg7[%c15, %c0_48, %c0_49], %2097 {strides = array<i32>} : memref<16x8x128xf32, #tpu.memory_space<vmem>>, vector<1x8x128xf32>,
    return
  }
  func.func @transform_0(%arg0: i32) -> (i32, i32, i32) {
    %c0_i32 = arith.constant 0 : i32
    %c0_i32_0 = arith.constant 0 : i32
    %c0_i32_1 = arith.constant 0 : i32
    return %arg0, %c0_i32, %c0_i32_0 : i32, i32, i32
  }
  func.func @transform_1(%arg0: i32) -> (i32, i32) {
    %c0_i32 = arith.constant 0 : i32
    %c0_i32_0 = arith.constant 0 : i32
    %c0_i32_1 = arith.constant 0 : i32
    return %c0_i32, %c0_i32_0 : i32, i32
  }
  func.func @transform_2(%arg0: i32) -> (i32, i32) {
    %c0_i32 = arith.constant 0 : i32
    %c0_i32_0 = arith.constant 0 : i32
    %c0_i32_1 = arith.constant 0 : i32
    return %c0_i32, %c0_i32_0 : i32, i32
  }
  func.func @transform_3(%arg0: i32) -> (i32, i32, i32) {
    %c0_i32 = arith.constant 0 : i32
    %c0_i32_0 = arith.constant 0 : i32
    %c0_i32_1 = arith.constant 0 : i32
    %c0_i32_2 = arith.constant 0 : i32
    return %c0_i32, %c0_i32_0, %c0_i32_1 : i32, i32, i32
  }
  func.func @transform_4(%arg0: i32) -> (i32, i32, i32) {
    %c0_i32 = arith.constant 0 : i32
    %c0_i32_0 = arith.constant 0 : i32
    %c0_i32_1 = arith.constant 0 : i32
    %c0_i32_2 = arith.constant 0 : i32
    return %c0_i32, %c0_i32_0, %c0_i32_1 : i32, i32, i32
  }
  func.func @transform_5(%arg0: i32) -> (i32, i32, i32) {
    %c0_i32 = arith.constant 0 : i32
    %c0_i32_0 = arith.constant 0 : i32
    %c0_i32_1 = arith.constant 0 : i32
    %c0_i32_2 = arith.constant 0 : i32
    return %c0_i32, %c0_i32_0, %c0_i32_1 : i32, i32, i32
  }
  func.func @transform_6(%arg0: i32) -> (i32, i32, i32) {
    %c0_i32 = arith.constant 0 : i32
    %c0_i32_0 = arith.constant 0 : i32
    %c0_i32_1 = arith.constant 0 : i32
    return %c0_i32, %c0_i32_0, %arg0 : i32, i32, i32
  }
}

</mosaic_0001>

<llo_original>
// kernel: axial_layer_cross.1
$region0: #{axial_layer_cross.1}
  #allocation0 [shape = 'u32[]', space=smem, size = 0x4, offset = 0x4, fixed_abs, tag = 'smem constant byte address 0x4 - core index']
  #allocation1 [shape = 'u32[144,128]{1,0:T(1,128)}', space=vmem, size = 0x12000, scoped, tag = 'internal scratch']
  %s0 = inlined_call_operand.vmem [shape: f32[2,32,1024], index: 0, kind: input, shape index: {}]
  %s1 = inlined_call_operand.vmem [shape: f32[32,32], index: 1, kind: input, shape index: {}]
  %s2 = inlined_call_operand.vmem [shape: f32[32,1], index: 2, kind: input, shape index: {}]
  %s3 = inlined_call_operand.vmem [shape: f32[8,8,8], index: 3, kind: input, shape index: {}]
  %s4 = inlined_call_operand.vmem [shape: f32[8,8,8], index: 4, kind: input, shape index: {}]
  %s5 = inlined_call_operand.vmem [shape: f32[8,8,8], index: 5, kind: input, shape index: {}]
  %s6 = inlined_call_operand.vmem [shape: f32[16,8,256], index: 6, kind: output, shape index: {}]
  %s7 = sld [smem:[#allocation0]]
  $region91: #{axial_layer_cross.1} parent=0
    _
  %s9 = ssub.s32 1, %s7
  %s10 = scalar_select 0, %s9, %s7
  $region1: #{axial_layer_cross.1} parent=0
    #allocation2 [shape = 'u8[131072]{0}', space=vmem, size = 0x20000, scoped, tag = 'output window, operand 0']
    loop: start=0, step=1, limit=4
    $region2: #{axial_layer_cross.1} parent=1 // loop_pre_header
      _
    $region3: #{axial_layer_cross.1} parent=1 // loop_header
      %s12 = sphi 0, %s16
      %p13 = scmp.ge.s32.totalorder %s12, 4
      %s22 = sphi 0, %s24
      %s25 = sphi 0, %s22
      %s26 = sphi 0, %s25
      %s42 = sphi 0, %s26
      %s46 = sphi 0, %s46
      %s48 = sphi 0, %s46
      %s49 = sphi 0, %s48
      %s63 = sphi 0, %s49
      %s67 = sphi 0, %s67
      %s69 = sphi 0, %s67
      %s70 = sphi 0, %s69
      %s84 = sphi 0, %s70
      %s88 = sphi 0, %s88
      %s90 = sphi 0, %s88
      %s91 = sphi 0, %s90
      %s105 = sphi 0, %s91
      %s109 = sphi 0, %s109
      %s111 = sphi 0, %s109
      %s112 = sphi 0, %s111
      %s126 = sphi 0, %s112
      %s130 = sphi 0, %s130
      %s132 = sphi 0, %s130
      %s133 = sphi 0, %s132
      %s147 = sphi 0, %s133
      %s153 = sphi 0, %s155
      %s156 = sphi 0, %s153
      %s157 = sphi 0, %s156
      %s173 = sphi 0, %s157
    $region4: #{axial_layer_cross.1} parent=1 // loop_header_branch
      %15 = sbr.rel (%p13) target = $region8
    $region5: #{axial_layer_cross.1} parent=1 // loop_body
      %s17 = ssub.s32 %s12, 1
      %s18 = ssub.s32 %s12, 2
      %s19 = sadd.s32 %s12, 1
      %s20 = ssub.s32 %s12, %s19
      %p21 = scmp.eq.s32.totalorder %s20, 0
      %s23 = sadd.s32 %s22, 1
      %s24 = scalar_select %p21, %s22, %s23
      %p27 = pneg %p21
      %p28 = scmp.eq.s32.totalorder %s12, 1
      %p29 = por %p27, %p28
      %p30 = scmp.ne.s32.totalorder %s22, %s25
      %p31 = scmp.eq.s32.totalorder %s12, 0
      %p32 = por %p30, %p31
      %p33 = scmp.ne.s32.totalorder %s22, %s25
      %p34 = scmp.eq.s32.totalorder %s17, 1
      %p35 = por %p33, %p34
      %p36 = scmp.ne.s32.totalorder %s25, %s26
      %p37 = scmp.eq.s32.totalorder %s17, 0
      %p38 = por %p36, %p37
      %p39 = scmp.ne.s32.totalorder %s25, %s26
      %p40 = scmp.eq.s32.totalorder %s18, 1
      %p41 = por %p39, %p40
      %p43 = scmp.ne.s32.totalorder %s26, %s42
      %p44 = scmp.eq.s32.totalorder %s18, 0
      %p45 = por %p43, %p44
      %s47 = sadd.s32 %s46, 1
      %p50 = scmp.eq.s32.totalorder %s12, 1
      %p51 = scmp.ne.s32.totalorder %s46, %s48
      %p52 = scmp.eq.s32.totalorder %s12, 0
      %p53 = por %p51, %p52
      %p54 = scmp.ne.s32.totalorder %s46, %s48
      %p55 = scmp.eq.s32.totalorder %s17, 1
      %p56 = por %p54, %p55
      %p57 = scmp.ne.s32.totalorder %s48, %s49
      %p58 = scmp.eq.s32.totalorder %s17, 0
      %p59 = por %p57, %p58
      %p60 = scmp.ne.s32.totalorder %s48, %s49
      %p61 = scmp.eq.s32.totalorder %s18, 1
      %p62 = por %p60, %p61
      %p64 = scmp.ne.s32.totalorder %s49, %s63
      %p65 = scmp.eq.s32.totalorder %s18, 0
      %p66 = por %p64, %p65
      %s68 = sadd.s32 %s67, 1
      %p71 = scmp.eq.s32.totalorder %s12, 1
      %p72 = scmp.ne.s32.totalorder %s67, %s69
      %p73 = scmp.eq.s32.totalorder %s12, 0
      %p74 = por %p72, %p73
      %p75 = scmp.ne.s32.totalorder %s67, %s69
      %p76 = scmp.eq.s32.totalorder %s17, 1
      %p77 = por %p75, %p76
      %p78 = scmp.ne.s32.totalorder %s69, %s70
      %p79 = scmp.eq.s32.totalorder %s17, 0
      %p80 = por %p78, %p79
      %p81 = scmp.ne.s32.totalorder %s69, %s70
      %p82 = scmp.eq.s32.totalorder %s18, 1
      %p83 = por %p81, %p82
      %p85 = scmp.ne.s32.totalorder %s70, %s84
      %p86 = scmp.eq.s32.totalorder %s18, 0
      %p87 = por %p85, %p86
      %s89 = sadd.s32 %s88, 1
      %p92 = scmp.eq.s32.totalorder %s12, 1
      %p93 = scmp.ne.s32.totalorder %s88, %s90
      %p94 = scmp.eq.s32.totalorder %s12, 0
      %p95 = por %p93, %p94
      %p96 = scmp.ne.s32.totalorder %s88, %s90
      %p97 = scmp.eq.s32.totalorder %s17, 1
      %p98 = por %p96, %p97
      %p99 = scmp.ne.s32.totalorder %s90, %s91
      %p100 = scmp.eq.s32.totalorder %s17, 0
      %p101 = por %p99, %p100
      %p102 = scmp.ne.s32.totalorder %s90, %s91
      %p103 = scmp.eq.s32.totalorder %s18, 1
      %p104 = por %p102, %p103
      %p106 = scmp.ne.s32.totalorder %s91, %s105
      %p107 = scmp.eq.s32.totalorder %s18, 0
      %p108 = por %p106, %p107
      %s110 = sadd.s32 %s109, 1
      %p113 = scmp.eq.s32.totalorder %s12, 1
      %p114 = scmp.ne.s32.totalorder %s109, %s111
      %p115 = scmp.eq.s32.totalorder %s12, 0
      %p116 = por %p114, %p115
      %p117 = scmp.ne.s32.totalorder %s109, %s111
      %p118 = scmp.eq.s32.totalorder %s17, 1
      %p119 = por %p117, %p118
      %p120 = scmp.ne.s32.totalorder %s111, %s112
      %p121 = scmp.eq.s32.totalorder %s17, 0
      %p122 = por %p120, %p121
      %p123 = scmp.ne.s32.totalorder %s111, %s112
      %p124 = scmp.eq.s32.totalorder %s18, 1
      %p125 = por %p123, %p124
      %p127 = scmp.ne.s32.totalorder %s112, %s126
      %p128 = scmp.eq.s32.totalorder %s18, 0
      %p129 = por %p127, %p128
      %s131 = sadd.s32 %s130, 1
      %p134 = scmp.eq.s32.totalorder %s12, 1
      %p135 = scmp.ne.s32.totalorder %s130, %s132
      %p136 = scmp.eq.s32.totalorder %s12, 0
      %p137 = por %p135, %p136
      %p138 = scmp.ne.s32.totalorder %s130, %s132
      %p139 = scmp.eq.s32.totalorder %s17, 1
      %p140 = por %p138, %p139
      %p141 = scmp.ne.s32.totalorder %s132, %s133
      %p142 = scmp.eq.s32.totalorder %s17, 0
      %p143 = por %p141, %p142
      %p144 = scmp.ne.s32.totalorder %s132, %s133
      %p145 = scmp.eq.s32.totalorder %s18, 1
      %p146 = por %p144, %p145
      %p148 = scmp.ne.s32.totalorder %s133, %s147
      %p149 = scmp.eq.s32.totalorder %s18, 0
      %p150 = por %p148, %p149
      %s151 = ssub.s32 %s12, %s19
      %p152 = scmp.eq.s32.totalorder %s151, 0
      %s154 = sadd.s32 %s153, 1
      %s155 = scalar_select %p152, %s153, %s154
      %p158 = pneg %p152
      %p159 = scmp.eq.s32.totalorder %s12, 1
      %p160 = por %p158, %p159
      %p161 = scmp.ne.s32.totalorder %s153, %s156
      %p162 = scmp.eq.s32.totalorder %s12, 0
      %p163 = por %p161, %p162
      %p164 = scmp.ne.s32.totalorder %s153, %s156
      %p165 = scmp.eq.s32.totalorder %s17, 1
      %p166 = por %p164, %p165
      %p167 = scmp.ne.s32.totalorder %s156, %s157
      %p168 = scmp.eq.s32.totalorder %s17, 0
      %p169 = por %p167, %p168
      %p170 = scmp.ne.s32.totalorder %s156, %s157
      %p171 = scmp.eq.s32.totalorder %s18, 1
      %p172 = por %p170, %p171
      %p174 = scmp.ne.s32.totalorder %s157, %s173
      %p175 = scmp.eq.s32.totalorder %s18, 0
      %p176 = por %p174, %p175
      %p177 = scmp.le.s32.totalorder 1, %s12
      %p178 = scmp.lt.s32.totalorder %s12, 3
      %p179 = pnand %p177, %p178
      %p180 = pneg %p179
      // Predicated region
      $region9: #{axial_layer_cross.1} parent=5 // pred_check
        _
      $region10: #{axial_layer_cross.1} parent=5 // pred_check_branch
        %182 = sbr.rel (%p179) target = $region12
      $region11: #{axial_layer_cross.1} parent=5 // pred_region
        %s183 = ssub.s32 %s12, 1
        // Predicated region
        $region13: #{axial_layer_cross.1} parent=11 // pred_check
          %p184 = pneg %p59
        $region14: #{axial_layer_cross.1} parent=11 // pred_check_branch
          %186 = sbr.rel (%p184) target = $region16
        $region15: #{axial_layer_cross.1} parent=11 // pred_region
          _
        $region16: #{axial_layer_cross.1} parent=11 // pred_fallthru
          _
        // Predicated region
        $region17: #{axial_layer_cross.1} parent=11 // pred_check
          %p187 = pneg %p80
        $region18: #{axial_layer_cross.1} parent=11 // pred_check_branch
          %189 = sbr.rel (%p187) target = $region20
        $region19: #{axial_layer_cross.1} parent=11 // pred_region
          _
        $region20: #{axial_layer_cross.1} parent=11 // pred_fallthru
          _
        // Predicated region
        $region21: #{axial_layer_cross.1} parent=11 // pred_check
          %p190 = pneg %p101
        $region22: #{axial_layer_cross.1} parent=11 // pred_check_branch
          %192 = sbr.rel (%p190) target = $region24
        $region23: #{axial_layer_cross.1} parent=11 // pred_region
          _
        $region24: #{axial_layer_cross.1} parent=11 // pred_fallthru
          _
        // Predicated region
        $region25: #{axial_layer_cross.1} parent=11 // pred_check
          %p193 = pneg %p122
        $region26: #{axial_layer_cross.1} parent=11 // pred_check_branch
          %195 = sbr.rel (%p193) target = $region28
        $region27: #{axial_layer_cross.1} parent=11 // pred_region
          _
        $region28: #{axial_layer_cross.1} parent=11 // pred_fallthru
          _
        // Predicated region
        $region29: #{axial_layer_cross.1} parent=11 // pred_check
          %p196 = pneg %p143
        $region30: #{axial_layer_cross.1} parent=11 // pred_check_branch
          %198 = sbr.rel (%p196) target = $region32
        $region31: #{axial_layer_cross.1} parent=11 // pred_region
          _
        $region32: #{axial_layer_cross.1} parent=11 // pred_fallthru
          _
      $region12: #{axial_layer_cross.1} parent=5 // pred_fallthru
        _
      %p199 = scmp.lt.s32.totalorder %s12, 2
      // Predicated region
      $region33: #{axial_layer_cross.1} parent=5 // pred_check
        %p200 = pneg %p199
      $region34: #{axial_layer_cross.1} parent=5 // pred_check_branch
        %202 = sbr.rel (%p200) target = $region36
      $region35: #{axial_layer_cross.1} parent=5 // pred_region
        // Predicated region
        $region37: #{axial_layer_cross.1} parent=35 // pred_check
          %p203 = pneg %p32
        $region38: #{axial_layer_cross.1} parent=35 // pred_check_branch
          %205 = sbr.rel (%p203) target = $region40
        $region39: #{axial_layer_cross.1} parent=35 // pred_region
          %p206 = scmp.lt.s32.totalorder %s12, 1
          %s207 = scalar_select %p206, %s12, 1
          %s208 = smul.addr %s207, 32
          %s209 = smul.addr %s208, 8
          %s210 = scalar_lea.vmem %s0, %s209
        $region40: #{axial_layer_cross.1} parent=35 // pred_fallthru
          _
      $region36: #{axial_layer_cross.1} parent=5 // pred_fallthru
        _
      %p211 = scmp.le.s32.totalorder 1, %s12
      %p212 = scmp.lt.s32.totalorder %s12, 3
      %p213 = pnand %p211, %p212
      %p214 = pneg %p213
      // Predicated region
      $region41: #{axial_layer_cross.1} parent=5 // pred_check
        _
      $region42: #{axial_layer_cross.1} parent=5 // pred_check_branch
        %216 = sbr.rel (%p213) target = $region44
      $region43: #{axial_layer_cross.1} parent=5 // pred_region
        %s217 = ssub.s32 %s12, 1
        %p218 = scmp.lt.s32.totalorder %s17, 1
        %s219 = scalar_select %p218, %s17, 1
        %s220 = smul.addr %s219, 32
        %s221 = smul.addr %s220, 8
        %s222 = scalar_lea.vmem %s0, %s221
        %p223 = pneg %p38
        %p224 = pneg %p35
        %p225 = pneg %p59
        %p226 = pneg %p56
        %p227 = pneg %p80
        %p228 = pneg %p77
        %p229 = pneg %p101
        %p230 = pneg %p98
        %p231 = pneg %p122
        %p232 = pneg %p119
        %p233 = pneg %p143
        %p234 = pneg %p140
        %p235 = pneg %p169
        %p236 = pneg %p166
        %s237 = sand.u32 %s156, 1
        %s238 = sand.u32 %s156, 1
        %s239 = smul.addr %s238, 128
        %s240 = scalar_lea.vmem [#allocation2], %s239
        %p241 = scmp.lt.s32.totalorder %s17, 1
        %s242 = scalar_select %p241, %s17, 1
        %s243 = smul.addr %s242, 32
        %s244 = smul.addr %s243, 8
        %s245 = scalar_lea.vmem %s0, %s244
        %v246 = vld [vmem:[%s1] sm:$0xff]
        %v247 = vld [vmem:[%s1 + $0x8] sm:$0xff]
        %v248 = vld [vmem:[%s1 + $0x10] sm:$0xff]
        %v249 = vld [vmem:[%s1 + $0x18] sm:$0xff]
        %v250 = vld [vmem:[%s245] sm:$0xff]
        %v251 = vld [vmem:[%s245 + $0x8] sm:$0xff]
        %v252 = vld [vmem:[%s245 + $0x10] sm:$0xff]
        %v253 = vld [vmem:[%s245 + $0x18] sm:$0xff]
        %v254 = vld [vmem:[%s245 + $0x20] sm:$0xff]
        %v255 = vld [vmem:[%s245 + $0x28] sm:$0xff]
        %v256 = vld [vmem:[%s245 + $0x30] sm:$0xff]
        %v257 = vld [vmem:[%s245 + $0x38] sm:$0xff]
        %v258 = vld [vmem:[%s245 + $0x40] sm:$0xff]
        %v259 = vld [vmem:[%s245 + $0x48] sm:$0xff]
        %v260 = vld [vmem:[%s245 + $0x50] sm:$0xff]
        %v261 = vld [vmem:[%s245 + $0x58] sm:$0xff]
        %v262 = vld [vmem:[%s245 + $0x60] sm:$0xff]
        %v263 = vld [vmem:[%s245 + $0x68] sm:$0xff]
        %v264 = vld [vmem:[%s245 + $0x70] sm:$0xff]
        %v265 = vld [vmem:[%s245 + $0x78] sm:$0xff]
        %v266 = vld [vmem:[%s245 + $0x80] sm:$0xff]
        %v267 = vld [vmem:[%s245 + $0x88] sm:$0xff]
        %v268 = vld [vmem:[%s245 + $0x90] sm:$0xff]
        %v269 = vld [vmem:[%s245 + $0x98] sm:$0xff]
        %v270 = vld [vmem:[%s245 + $0xa0] sm:$0xff]
        %v271 = vld [vmem:[%s245 + $0xa8] sm:$0xff]
        %v272 = vld [vmem:[%s245 + $0xb0] sm:$0xff]
        %v273 = vld [vmem:[%s245 + $0xb8] sm:$0xff]
        %v274 = vld [vmem:[%s245 + $0xc0] sm:$0xff]
        %v275 = vld [vmem:[%s245 + $0xc8] sm:$0xff]
        %v276 = vld [vmem:[%s245 + $0xd0] sm:$0xff]
        %v277 = vld [vmem:[%s245 + $0xd8] sm:$0xff]
        %v278 = vld [vmem:[%s245 + $0xe0] sm:$0xff]
        %v279 = vld [vmem:[%s245 + $0xe8] sm:$0xff]
        %v280 = vld [vmem:[%s245 + $0xf0] sm:$0xff]
        %v281 = vld [vmem:[%s245 + $0xf8] sm:$0xff]
        %v282 = vld [vmem:[%s2] sm:$0xff]
        %v283 = vld [vmem:[%s2 + $0x8] sm:$0xff]
        %v284 = vld [vmem:[%s2 + $0x10] sm:$0xff]
        %v285 = vld [vmem:[%s2 + $0x18] sm:$0xff]
        %287 = vset.pattern.permute.xlu0 0
        %288 = vperm.xlu0 %287, %v282
        %v289 = vpop.permute.xlu0 %288
        %292 = vset.pattern.permute.xlu0 0
        %293 = vperm.xlu0 %292, %v283
        %v294 = vpop.permute.xlu0 %293
        %297 = vset.pattern.permute.xlu0 0
        %298 = vperm.xlu0 %297, %v284
        %v299 = vpop.permute.xlu0 %298
        %302 = vset.pattern.permute.xlu0 0
        %303 = vperm.xlu0 %302, %v285
        %v304 = vpop.permute.xlu0 %303
        %vm306 = vcmask 261120
        %v308 = vsel %vm306, %v246, 0
        %v311 = vsel %vm306, %v247, 0
        %v314 = vsel %vm306, %v248, 0
        %v317 = vsel %vm306, %v249, 0
        %319 = vmatprep.subr.mxu0 0.0
        %320 = vmatpush1.msra.mxu0 0.0
        %321 = vmatprep.subr.mxu0 0.0
        %322 = vmatpush1.msra.mxu0 0.0
        %323 = vmatprep.subr.mxu0 0.0
        %324 = vmatpush1.msra.mxu0 0.0
        %325 = vmatprep.subr.mxu0 0.0
        %326 = vmatpush1.msra.mxu0 0.0
        %327 = vmatprep.subr.mxu0 0.0
        %328 = vmatpush1.msra.mxu0 0.0
        %329 = vmatprep.subr.mxu0 0.0
        %330 = vmatpush1.msra.mxu0 0.0
        %331 = vmatprep.subr.mxu0 0.0
        %332 = vmatpush1.msra.mxu0 0.0
        %333 = vmatprep.subr.mxu0 0.0
        %334 = vmatpush1.msra.mxu0 0.0
        %335 = vmatprep.subr.mxu0 0.0
        %336 = vmatpush1.msra.mxu0 0.0
        %337 = vmatprep.subr.mxu0 0.0
        %338 = vmatpush1.msra.mxu0 0.0
        %339 = vmatprep.subr.mxu0 0.0
        %340 = vmatpush1.msra.mxu0 0.0
        %341 = vmatprep.subr.mxu0 0.0
        %342 = vmatpush1.msra.mxu0 0.0
        %343 = vmatprep.subr.mxu0 %v275
        %344 = vmatpush1.msra.mxu0 %v274
        %345 = vmatprep.subr.mxu0 %v267
        %346 = vmatpush1.msra.mxu0 %v266
        %347 = vmatprep.subr.mxu0 %v259
        %348 = vmatpush1.msra.mxu0 %v258
        %349 = vmatprep.subr.mxu0 %v251
        %350 = vmatpush1.msra.mxu0 %v250
        %351 = vmatprep.subr.mxu0 0.0
        %352 = vmatpush2.msra.mxu0 0.0
        %353 = vmatprep.subr.mxu0 0.0
        %354 = vmatpush2.msra.mxu0 0.0
        %355 = vmatprep.subr.mxu0 0.0
        %356 = vmatpush2.msra.mxu0 0.0
        %357 = vmatprep.subr.mxu0 0.0
        %358 = vmatpush2.msra.mxu0 0.0
        %359 = vmatprep.subr.mxu0 0.0
        %360 = vmatpush2.msra.mxu0 0.0
        %361 = vmatprep.subr.mxu0 0.0
        %362 = vmatpush2.msra.mxu0 0.0
        %363 = vmatprep.subr.mxu0 0.0
        %364 = vmatpush2.msra.mxu0 0.0
        %365 = vmatprep.subr.mxu0 0.0
        %366 = vmatpush2.msra.mxu0 0.0
        %367 = vmatprep.subr.mxu0 0.0
        %368 = vmatpush2.msra.mxu0 0.0
        %369 = vmatprep.subr.mxu0 0.0
        %370 = vmatpush2.msra.mxu0 0.0
        %371 = vmatprep.subr.mxu0 0.0
        %372 = vmatpush2.msra.mxu0 0.0
        %373 = vmatprep.subr.mxu0 0.0
        %374 = vmatpush2.msra.mxu0 0.0
        %375 = vmatprep.subr.mxu0 0.0
        %376 = vmatpush2.msra.mxu0 0.0
        %377 = vmatprep.subr.mxu0 0.0
        %378 = vmatpush2.msra.mxu0 0.0
        %379 = vmatprep.subr.mxu0 0.0
        %380 = vmatpush2.msra.mxu0 0.0
        %381 = vmatprep.subr.mxu0 0.0
        %382 = vmatpush2.msra.mxu0 0.0
        %383 = vmatprep.mubr.f32.mxu0 0.0
        %384 = vmatmul.mubr.f32.gmra.mxu0 %v308
        %v385 = vpop.f32.mrf.mxu0
        %v386 = vadd.f32 %v289, %v385
        %v387 = vpop.f32.mrf.mxu0
        %v388 = vadd.f32 %v289, %v387
        %389 = vmatprep.mubr.f32.mxu0 0.0
        %390 = vmatmul.mubr.f32.gmra.mxu0 %v311
        %v391 = vpop.f32.mrf.mxu0
        %v392 = vadd.f32 %v294, %v391
        %v393 = vpop.f32.mrf.mxu0
        %v394 = vadd.f32 %v294, %v393
        %395 = vmatprep.mubr.f32.mxu0 0.0
        %396 = vmatmul.mubr.f32.gmra.mxu0 %v314
        %v397 = vpop.f32.mrf.mxu0
        %v398 = vadd.f32 %v299, %v397
        %v399 = vpop.f32.mrf.mxu0
        %v400 = vadd.f32 %v299, %v399
        %401 = vmatprep.mubr.f32.mxu0 0.0
        %402 = vmatmul.mubr.f32.gmra.mxu0 %v317
        %v403 = vpop.f32.mrf.mxu0
        %v404 = vadd.f32 %v304, %v403
        %v405 = vpop.f32.mrf.mxu0
        %v406 = vadd.f32 %v304, %v405
        %407 = vdwg.mxu0
        %408 = vmatprep.subr.mxu0 0.0
        %409 = vmatpush1.msra.mxu0 0.0
        %410 = vmatprep.subr.mxu0 0.0
        %411 = vmatpush1.msra.mxu0 0.0
        %412 = vmatprep.subr.mxu0 0.0
        %413 = vmatpush1.msra.mxu0 0.0
        %414 = vmatprep.subr.mxu0 0.0
        %415 = vmatpush1.msra.mxu0 0.0
        %416 = vmatprep.subr.mxu0 0.0
        %417 = vmatpush1.msra.mxu0 0.0
        %418 = vmatprep.subr.mxu0 0.0
        %419 = vmatpush1.msra.mxu0 0.0
        %420 = vmatprep.subr.mxu0 0.0
        %421 = vmatpush1.msra.mxu0 0.0
        %422 = vmatprep.subr.mxu0 0.0
        %423 = vmatpush1.msra.mxu0 0.0
        %424 = vmatprep.subr.mxu0 0.0
        %425 = vmatpush1.msra.mxu0 0.0
        %426 = vmatprep.subr.mxu0 0.0
        %427 = vmatpush1.msra.mxu0 0.0
        %428 = vmatprep.subr.mxu0 0.0
        %429 = vmatpush1.msra.mxu0 0.0
        %430 = vmatprep.subr.mxu0 0.0
        %431 = vmatpush1.msra.mxu0 0.0
        %432 = vmatprep.subr.mxu0 %v277
        %433 = vmatpush1.msra.mxu0 %v276
        %434 = vmatprep.subr.mxu0 %v269
        %435 = vmatpush1.msra.mxu0 %v268
        %436 = vmatprep.subr.mxu0 %v261
        %437 = vmatpush1.msra.mxu0 %v260
        %438 = vmatprep.subr.mxu0 %v253
        %439 = vmatpush1.msra.mxu0 %v252
        %440 = vmatprep.subr.mxu0 0.0
        %441 = vmatpush2.msra.mxu0 0.0
        %442 = vmatprep.subr.mxu0 0.0
        %443 = vmatpush2.msra.mxu0 0.0
        %444 = vmatprep.subr.mxu0 0.0
        %445 = vmatpush2.msra.mxu0 0.0
        %446 = vmatprep.subr.mxu0 0.0
        %447 = vmatpush2.msra.mxu0 0.0
        %448 = vmatprep.subr.mxu0 0.0
        %449 = vmatpush2.msra.mxu0 0.0
        %450 = vmatprep.subr.mxu0 0.0
        %451 = vmatpush2.msra.mxu0 0.0
        %452 = vmatprep.subr.mxu0 0.0
        %453 = vmatpush2.msra.mxu0 0.0
        %454 = vmatprep.subr.mxu0 0.0
        %455 = vmatpush2.msra.mxu0 0.0
        %456 = vmatprep.subr.mxu0 0.0
        %457 = vmatpush2.msra.mxu0 0.0
        %458 = vmatprep.subr.mxu0 0.0
        %459 = vmatpush2.msra.mxu0 0.0
        %460 = vmatprep.subr.mxu0 0.0
        %461 = vmatpush2.msra.mxu0 0.0
        %462 = vmatprep.subr.mxu0 0.0
        %463 = vmatpush2.msra.mxu0 0.0
        %464 = vmatprep.subr.mxu0 0.0
        %465 = vmatpush2.msra.mxu0 0.0
        %466 = vmatprep.subr.mxu0 0.0
        %467 = vmatpush2.msra.mxu0 0.0
        %468 = vmatprep.subr.mxu0 0.0
        %469 = vmatpush2.msra.mxu0 0.0
        %470 = vmatprep.subr.mxu0 0.0
        %471 = vmatpush2.msra.mxu0 0.0
        %472 = vmatprep.mubr.f32.mxu0 0.0
        %473 = vmatmul.mubr.f32.gmra.mxu0 %v308
        %v474 = vpop.f32.mrf.mxu0
        %v475 = vadd.f32 %v289, %v474
        %v476 = vpop.f32.mrf.mxu0
        %v477 = vadd.f32 %v289, %v476
        %478 = vmatprep.mubr.f32.mxu0 0.0
        %479 = vmatmul.mubr.f32.gmra.mxu0 %v311
        %v480 = vpop.f32.mrf.mxu0
        %v481 = vadd.f32 %v294, %v480
        %v482 = vpop.f32.mrf.mxu0
        %v483 = vadd.f32 %v294, %v482
        %484 = vmatprep.mubr.f32.mxu0 0.0
        %485 = vmatmul.mubr.f32.gmra.mxu0 %v314
        %v486 = vpop.f32.mrf.mxu0
        %v487 = vadd.f32 %v299, %v486
        %v488 = vpop.f32.mrf.mxu0
        %v489 = vadd.f32 %v299, %v488
        %490 = vmatprep.mubr.f32.mxu0 0.0
        %491 = vmatmul.mubr.f32.gmra.mxu0 %v317
        %v492 = vpop.f32.mrf.mxu0
        %v493 = vadd.f32 %v304, %v492
        %v494 = vpop.f32.mrf.mxu0
        %v495 = vadd.f32 %v304, %v494
        %496 = vdwg.mxu0
        %497 = vmatprep.subr.mxu0 0.0
        %498 = vmatpush1.msra.mxu0 0.0
        %499 = vmatprep.subr.mxu0 0.0
        %500 = vmatpush1.msra.mxu0 0.0
        %501 = vmatprep.subr.mxu0 0.0
        %502 = vmatpush1.msra.mxu0 0.0
        %503 = vmatprep.subr.mxu0 0.0
        %504 = vmatpush1.msra.mxu0 0.0
        %505 = vmatprep.subr.mxu0 0.0
        %506 = vmatpush1.msra.mxu0 0.0
        %507 = vmatprep.subr.mxu0 0.0
        %508 = vmatpush1.msra.mxu0 0.0
        %509 = vmatprep.subr.mxu0 0.0
        %510 = vmatpush1.msra.mxu0 0.0
        %511 = vmatprep.subr.mxu0 0.0
        %512 = vmatpush1.msra.mxu0 0.0
        %513 = vmatprep.subr.mxu0 0.0
        %514 = vmatpush1.msra.mxu0 0.0
        %515 = vmatprep.subr.mxu0 0.0
        %516 = vmatpush1.msra.mxu0 0.0
        %517 = vmatprep.subr.mxu0 0.0
        %518 = vmatpush1.msra.mxu0 0.0
        %519 = vmatprep.subr.mxu0 0.0
        %520 = vmatpush1.msra.mxu0 0.0
        %521 = vmatprep.subr.mxu0 %v279
        %522 = vmatpush1.msra.mxu0 %v278
        %523 = vmatprep.subr.mxu0 %v271
        %524 = vmatpush1.msra.mxu0 %v270
        %525 = vmatprep.subr.mxu0 %v263
        %526 = vmatpush1.msra.mxu0 %v262
        %527 = vmatprep.subr.mxu0 %v255
        %528 = vmatpush1.msra.mxu0 %v254
        %529 = vmatprep.subr.mxu0 0.0
        %530 = vmatpush2.msra.mxu0 0.0
        %531 = vmatprep.subr.mxu0 0.0
        %532 = vmatpush2.msra.mxu0 0.0
        %533 = vmatprep.subr.mxu0 0.0
        %534 = vmatpush2.msra.mxu0 0.0
        %535 = vmatprep.subr.mxu0 0.0
        %536 = vmatpush2.msra.mxu0 0.0
        %537 = vmatprep.subr.mxu0 0.0
        %538 = vmatpush2.msra.mxu0 0.0
        %539 = vmatprep.subr.mxu0 0.0
        %540 = vmatpush2.msra.mxu0 0.0
        %541 = vmatprep.subr.mxu0 0.0
        %542 = vmatpush2.msra.mxu0 0.0
        %543 = vmatprep.subr.mxu0 0.0
        %544 = vmatpush2.msra.mxu0 0.0
        %545 = vmatprep.subr.mxu0 0.0
        %546 = vmatpush2.msra.mxu0 0.0
        %547 = vmatprep.subr.mxu0 0.0
        %548 = vmatpush2.msra.mxu0 0.0
        %549 = vmatprep.subr.mxu0 0.0
        %550 = vmatpush2.msra.mxu0 0.0
        %551 = vmatprep.subr.mxu0 0.0
        %552 = vmatpush2.msra.mxu0 0.0
        %553 = vmatprep.subr.mxu0 0.0
        %554 = vmatpush2.msra.mxu0 0.0
        %555 = vmatprep.subr.mxu0 0.0
        %556 = vmatpush2.msra.mxu0 0.0
        %557 = vmatprep.subr.mxu0 0.0
        %558 = vmatpush2.msra.mxu0 0.0
        %559 = vmatprep.subr.mxu0 0.0
        %560 = vmatpush2.msra.mxu0 0.0
        %561 = vmatprep.mubr.f32.mxu0 0.0
        %562 = vmatmul.mubr.f32.gmra.mxu0 %v308
        %v563 = vpop.f32.mrf.mxu0
        %v564 = vadd.f32 %v289, %v563
        %v565 = vpop.f32.mrf.mxu0
        %v566 = vadd.f32 %v289, %v565
        %567 = vmatprep.mubr.f32.mxu0 0.0
        %568 = vmatmul.mubr.f32.gmra.mxu0 %v311
        %v569 = vpop.f32.mrf.mxu0
        %v570 = vadd.f32 %v294, %v569
        %v571 = vpop.f32.mrf.mxu0
        %v572 = vadd.f32 %v294, %v571
        %573 = vmatprep.mubr.f32.mxu0 0.0
        %574 = vmatmul.mubr.f32.gmra.mxu0 %v314
        %v575 = vpop.f32.mrf.mxu0
        %v576 = vadd.f32 %v299, %v575
        %v577 = vpop.f32.mrf.mxu0
        %v578 = vadd.f32 %v299, %v577
        %579 = vmatprep.mubr.f32.mxu0 0.0
        %580 = vmatmul.mubr.f32.gmra.mxu0 %v317
        %v581 = vpop.f32.mrf.mxu0
        %v582 = vadd.f32 %v304, %v581
        %v583 = vpop.f32.mrf.mxu0
        %v584 = vadd.f32 %v304, %v583
        %585 = vdwg.mxu0
        %586 = vmatprep.subr.mxu0 0.0
        %587 = vmatpush1.msra.mxu0 0.0
        %588 = vmatprep.subr.mxu0 0.0
        %589 = vmatpush1.msra.mxu0 0.0
        %590 = vmatprep.subr.mxu0 0.0
        %591 = vmatpush1.msra.mxu0 0.0
        %592 = vmatprep.subr.mxu0 0.0
        %593 = vmatpush1.msra.mxu0 0.0
        %594 = vmatprep.subr.mxu0 0.0
        %595 = vmatpush1.msra.mxu0 0.0
        %596 = vmatprep.subr.mxu0 0.0
        %597 = vmatpush1.msra.mxu0 0.0
        %598 = vmatprep.subr.mxu0 0.0
        %599 = vmatpush1.msra.mxu0 0.0
        %600 = vmatprep.subr.mxu0 0.0
        %601 = vmatpush1.msra.mxu0 0.0
        %602 = vmatprep.subr.mxu0 0.0
        %603 = vmatpush1.msra.mxu0 0.0
        %604 = vmatprep.subr.mxu0 0.0
        %605 = vmatpush1.msra.mxu0 0.0
        %606 = vmatprep.subr.mxu0 0.0
        %607 = vmatpush1.msra.mxu0 0.0
        %608 = vmatprep.subr.mxu0 0.0
        %609 = vmatpush1.msra.mxu0 0.0
        %610 = vmatprep.subr.mxu0 %v281
        %611 = vmatpush1.msra.mxu0 %v280
        %612 = vmatprep.subr.mxu0 %v273
        %613 = vmatpush1.msra.mxu0 %v272
        %614 = vmatprep.subr.mxu0 %v265
        %615 = vmatpush1.msra.mxu0 %v264
        %616 = vmatprep.subr.mxu0 %v257
        %617 = vmatpush1.msra.mxu0 %v256
        %618 = vmatprep.subr.mxu0 0.0
        %619 = vmatpush2.msra.mxu0 0.0
        %620 = vmatprep.subr.mxu0 0.0
        %621 = vmatpush2.msra.mxu0 0.0
        %622 = vmatprep.subr.mxu0 0.0
        %623 = vmatpush2.msra.mxu0 0.0
        %624 = vmatprep.subr.mxu0 0.0
        %625 = vmatpush2.msra.mxu0 0.0
        %626 = vmatprep.subr.mxu0 0.0
        %627 = vmatpush2.msra.mxu0 0.0
        %628 = vmatprep.subr.mxu0 0.0
        %629 = vmatpush2.msra.mxu0 0.0
        %630 = vmatprep.subr.mxu0 0.0
        %631 = vmatpush2.msra.mxu0 0.0
        %632 = vmatprep.subr.mxu0 0.0
        %633 = vmatpush2.msra.mxu0 0.0
        %634 = vmatprep.subr.mxu0 0.0
        %635 = vmatpush2.msra.mxu0 0.0
        %636 = vmatprep.subr.mxu0 0.0
        %637 = vmatpush2.msra.mxu0 0.0
        %638 = vmatprep.subr.mxu0 0.0
        %639 = vmatpush2.msra.mxu0 0.0
        %640 = vmatprep.subr.mxu0 0.0
        %641 = vmatpush2.msra.mxu0 0.0
        %642 = vmatprep.subr.mxu0 0.0
        %643 = vmatpush2.msra.mxu0 0.0
        %644 = vmatprep.subr.mxu0 0.0
        %645 = vmatpush2.msra.mxu0 0.0
        %646 = vmatprep.subr.mxu0 0.0
        %647 = vmatpush2.msra.mxu0 0.0
        %648 = vmatprep.subr.mxu0 0.0
        %649 = vmatpush2.msra.mxu0 0.0
        %650 = vmatprep.mubr.f32.mxu0 0.0
        %651 = vmatmul.mubr.f32.gmra.mxu0 %v308
        %v652 = vpop.f32.mrf.mxu0
        %v653 = vadd.f32 %v289, %v652
        %v654 = vpop.f32.mrf.mxu0
        %v655 = vadd.f32 %v289, %v654
        %656 = vmatprep.mubr.f32.mxu0 0.0
        %657 = vmatmul.mubr.f32.gmra.mxu0 %v311
        %v658 = vpop.f32.mrf.mxu0
        %v659 = vadd.f32 %v294, %v658
        %v660 = vpop.f32.mrf.mxu0
        %v661 = vadd.f32 %v294, %v660
        %662 = vmatprep.mubr.f32.mxu0 0.0
        %663 = vmatmul.mubr.f32.gmra.mxu0 %v314
        %v664 = vpop.f32.mrf.mxu0
        %v665 = vadd.f32 %v299, %v664
        %v666 = vpop.f32.mrf.mxu0
        %v667 = vadd.f32 %v299, %v666
        %668 = vmatprep.mubr.f32.mxu0 0.0
        %669 = vmatmul.mubr.f32.gmra.mxu0 %v317
        %v670 = vpop.f32.mrf.mxu0
        %v671 = vadd.f32 %v304, %v670
        %v672 = vpop.f32.mrf.mxu0
        %v673 = vadd.f32 %v304, %v672
        %674 = vdwg.mxu0
        %v675 = vld [vmem:[%s3] sm:$0xff]
        %v676 = vld [vmem:[%s3 + $0x8] sm:$0xff]
        %v677 = vld [vmem:[%s3 + $0x10] sm:$0xff]
        %v678 = vld [vmem:[%s3 + $0x18] sm:$0xff]
        %v679 = vld [vmem:[%s3 + $0x20] sm:$0xff]
        %v680 = vld [vmem:[%s3 + $0x28] sm:$0xff]
        %v681 = vld [vmem:[%s3 + $0x30] sm:$0xff]
        %v682 = vld [vmem:[%s3 + $0x38] sm:$0xff]
        %v683 = vld [vmem:[%s4] sm:$0xff]
        %v684 = vld [vmem:[%s4 + $0x8] sm:$0xff]
        %v685 = vld [vmem:[%s4 + $0x10] sm:$0xff]
        %v686 = vld [vmem:[%s4 + $0x18] sm:$0xff]
        %v687 = vld [vmem:[%s4 + $0x20] sm:$0xff]
        %v688 = vld [vmem:[%s4 + $0x28] sm:$0xff]
        %v689 = vld [vmem:[%s4 + $0x30] sm:$0xff]
        %v690 = vld [vmem:[%s4 + $0x38] sm:$0xff]
        %v691 = vld [vmem:[%s5] sm:$0xff]
        %v692 = vld [vmem:[%s5 + $0x8] sm:$0xff]
        %v693 = vld [vmem:[%s5 + $0x10] sm:$0xff]
        %v694 = vld [vmem:[%s5 + $0x18] sm:$0xff]
        %v695 = vld [vmem:[%s5 + $0x20] sm:$0xff]
        %v696 = vld [vmem:[%s5 + $0x28] sm:$0xff]
        %v697 = vld [vmem:[%s5 + $0x30] sm:$0xff]
        %v698 = vld [vmem:[%s5 + $0x38] sm:$0xff]
        %v700 = vrot.slane %v394, 7
        %v703 = vrot.slane %v481, 6
        %v706 = vrot.slane %v483, 5
        %v709 = vrot.slane %v570, 4
        %v712 = vrot.slane %v572, 3
        %v715 = vrot.slane %v659, 2
        %v718 = vrot.slane %v661, 1
        %vm720 = vcmask 1040384
        %v721 = vsel %vm720, %v392, %v700
        %vm722 = vcmask 1041408
        %v723 = vsel %vm722, %v721, %v703
        %vm724 = vcmask 1042432
        %v725 = vsel %vm724, %v723, %v706
        %vm726 = vcmask 1043456
        %v727 = vsel %vm726, %v725, %v709
        %vm728 = vcmask 1044480
        %v729 = vsel %vm728, %v727, %v712
        %vm730 = vcmask 1045504
        %v731 = vsel %vm730, %v729, %v715
        %vm732 = vcmask 1046528
        %v733 = vsel %vm732, %v731, %v718
        %v735 = vrot.slane %v392, 1
        %v737 = vrot.slane %v481, 7
        %v739 = vrot.slane %v483, 6
        %v741 = vrot.slane %v570, 5
        %v743 = vrot.slane %v572, 4
        %v745 = vrot.slane %v659, 3
        %v747 = vrot.slane %v661, 2
        %v749 = vsel %vm720, %v735, %v394
        %v750 = vsel %vm722, %v749, %v737
        %v751 = vsel %vm724, %v750, %v739
        %v752 = vsel %vm726, %v751, %v741
        %v753 = vsel %vm728, %v752, %v743
        %v754 = vsel %vm730, %v753, %v745
        %v755 = vsel %vm732, %v754, %v747
        %v756 = vrot.slane %v392, 2
        %v758 = vrot.slane %v394, 1
        %v760 = vrot.slane %v483, 7
        %v762 = vrot.slane %v570, 6
        %v764 = vrot.slane %v572, 5
        %v766 = vrot.slane %v659, 4
        %v768 = vrot.slane %v661, 3
        %v770 = vsel %vm720, %v756, %v758
        %v771 = vsel %vm722, %v770, %v481
        %v772 = vsel %vm724, %v771, %v760
        %v773 = vsel %vm726, %v772, %v762
        %v774 = vsel %vm728, %v773, %v764
        %v775 = vsel %vm730, %v774, %v766
        %v776 = vsel %vm732, %v775, %v768
        %v777 = vrot.slane %v392, 3
        %v779 = vrot.slane %v394, 2
        %v781 = vrot.slane %v481, 1
        %v783 = vrot.slane %v570, 7
        %v785 = vrot.slane %v572, 6
        %v787 = vrot.slane %v659, 5
        %v789 = vrot.slane %v661, 4
        %v791 = vsel %vm720, %v777, %v779
        %v792 = vsel %vm722, %v791, %v781
        %v793 = vsel %vm724, %v792, %v483
        %v794 = vsel %vm726, %v793, %v783
        %v795 = vsel %vm728, %v794, %v785
        %v796 = vsel %vm730, %v795, %v787
        %v797 = vsel %vm732, %v796, %v789
        %v798 = vlaneseq
        %v799 = vshrl.u32 %v798, 7
        %v800 = vsub.s32 0, %v799
        %v801 = vrot.slane %v386, %v800
        %803 = vset.pattern.permute.xlu0 0
        %804 = vperm.xlu0 %803, %v675
        %v805 = vpop.permute.xlu0 %804
        %v807 = vadd.f32 %v801, %v805
        %v808 = vmul.f32 %v733, %v807
        %810 = vset.pattern.permute.xlu0 0
        %811 = vperm.xlu0 %810, %v683
        %v812 = vpop.permute.xlu0 %811
        %v814 = vmul.f32 %v801, %v812
        %v815 = vadd.f32 %v808, %v814
        %v816 = vlaneseq
        %v817 = vshrl.u32 %v816, 7
        %v818 = vsub.s32 1, %v817
        %v819 = vrot.slane %v386, %v818
        %821 = vset.pattern.permute.xlu0 0
        %822 = vperm.xlu0 %821, %v676
        %v823 = vpop.permute.xlu0 %822
        %v825 = vadd.f32 %v819, %v823
        %v826 = vmul.f32 %v755, %v825
        %828 = vset.pattern.permute.xlu0 0
        %829 = vperm.xlu0 %828, %v684
        %v830 = vpop.permute.xlu0 %829
        %v832 = vmul.f32 %v819, %v830
        %v833 = vadd.f32 %v826, %v832
        %v834 = vadd.f32 %v815, %v833
        %v835 = vlaneseq
        %v836 = vshrl.u32 %v835, 7
        %v837 = vsub.s32 2, %v836
        %v838 = vrot.slane %v386, %v837
        %840 = vset.pattern.permute.xlu0 0
        %841 = vperm.xlu0 %840, %v677
        %v842 = vpop.permute.xlu0 %841
        %v844 = vadd.f32 %v838, %v842
        %v845 = vmul.f32 %v776, %v844
        %847 = vset.pattern.permute.xlu0 0
        %848 = vperm.xlu0 %847, %v685
        %v849 = vpop.permute.xlu0 %848
        %v851 = vmul.f32 %v838, %v849
        %v852 = vadd.f32 %v845, %v851
        %v853 = vadd.f32 %v834, %v852
        %v854 = vlaneseq
        %v855 = vshrl.u32 %v854, 7
        %v856 = vsub.s32 3, %v855
        %v857 = vrot.slane %v386, %v856
        %859 = vset.pattern.permute.xlu0 0
        %860 = vperm.xlu0 %859, %v678
        %v861 = vpop.permute.xlu0 %860
        %v863 = vadd.f32 %v857, %v861
        %v864 = vmul.f32 %v797, %v863
        %866 = vset.pattern.permute.xlu0 0
        %867 = vperm.xlu0 %866, %v686
        %v868 = vpop.permute.xlu0 %867
        %v870 = vmul.f32 %v857, %v868
        %v871 = vadd.f32 %v864, %v870
        %v872 = vadd.f32 %v853, %v871
        %v873 = vlaneseq
        %v874 = vshrl.u32 %v873, 7
        %v875 = vsub.s32 0, %v874
        %v876 = vrot.slane %v388, %v875
        %877 = vset.pattern.permute.xlu0 1
        %878 = vperm.xlu0 %877, %v675
        %v879 = vpop.permute.xlu0 %878
        %v881 = vadd.f32 %v876, %v879
        %v882 = vmul.f32 %v733, %v881
        %883 = vset.pattern.permute.xlu0 1
        %884 = vperm.xlu0 %883, %v683
        %v885 = vpop.permute.xlu0 %884
        %v887 = vmul.f32 %v876, %v885
        %v888 = vadd.f32 %v882, %v887
        %v889 = vlaneseq
        %v890 = vshrl.u32 %v889, 7
        %v891 = vsub.s32 1, %v890
        %v892 = vrot.slane %v388, %v891
        %893 = vset.pattern.permute.xlu0 1
        %894 = vperm.xlu0 %893, %v676
        %v895 = vpop.permute.xlu0 %894
        %v897 = vadd.f32 %v892, %v895
        %v898 = vmul.f32 %v755, %v897
        %899 = vset.pattern.permute.xlu0 1
        %900 = vperm.xlu0 %899, %v684
        %v901 = vpop.permute.xlu0 %900
        %v903 = vmul.f32 %v892, %v901
        %v904 = vadd.f32 %v898, %v903
        %v905 = vadd.f32 %v888, %v904
        %v906 = vlaneseq
        %v907 = vshrl.u32 %v906, 7
        %v908 = vsub.s32 2, %v907
        %v909 = vrot.slane %v388, %v908
        %910 = vset.pattern.permute.xlu0 1
        %911 = vperm.xlu0 %910, %v677
        %v912 = vpop.permute.xlu0 %911
        %v914 = vadd.f32 %v909, %v912
        %v915 = vmul.f32 %v776, %v914
        %916 = vset.pattern.permute.xlu0 1
        %917 = vperm.xlu0 %916, %v685
        %v918 = vpop.permute.xlu0 %917
        %v920 = vmul.f32 %v909, %v918
        %v921 = vadd.f32 %v915, %v920
        %v922 = vadd.f32 %v905, %v921
        %v923 = vlaneseq
        %v924 = vshrl.u32 %v923, 7
        %v925 = vsub.s32 3, %v924
        %v926 = vrot.slane %v388, %v925
        %927 = vset.pattern.permute.xlu0 1
        %928 = vperm.xlu0 %927, %v678
        %v929 = vpop.permute.xlu0 %928
        %v931 = vadd.f32 %v926, %v929
        %v932 = vmul.f32 %v797, %v931
        %933 = vset.pattern.permute.xlu0 1
        %934 = vperm.xlu0 %933, %v686
        %v935 = vpop.permute.xlu0 %934
        %v937 = vmul.f32 %v926, %v935
        %v938 = vadd.f32 %v932, %v937
        %v939 = vadd.f32 %v922, %v938
        %v940 = vlaneseq
        %v941 = vshrl.u32 %v940, 7
        %v942 = vsub.s32 0, %v941
        %v943 = vrot.slane %v475, %v942
        %944 = vset.pattern.permute.xlu0 2
        %945 = vperm.xlu0 %944, %v675
        %v946 = vpop.permute.xlu0 %945
        %v948 = vadd.f32 %v943, %v946
        %v949 = vmul.f32 %v733, %v948
        %950 = vset.pattern.permute.xlu0 2
        %951 = vperm.xlu0 %950, %v683
        %v952 = vpop.permute.xlu0 %951
        %v954 = vmul.f32 %v943, %v952
        %v955 = vadd.f32 %v949, %v954
        %v956 = vlaneseq
        %v957 = vshrl.u32 %v956, 7
        %v958 = vsub.s32 1, %v957
        %v959 = vrot.slane %v475, %v958
        %960 = vset.pattern.permute.xlu0 2
        %961 = vperm.xlu0 %960, %v676
        %v962 = vpop.permute.xlu0 %961
        %v964 = vadd.f32 %v959, %v962
        %v965 = vmul.f32 %v755, %v964
        %966 = vset.pattern.permute.xlu0 2
        %967 = vperm.xlu0 %966, %v684
        %v968 = vpop.permute.xlu0 %967
        %v970 = vmul.f32 %v959, %v968
        %v971 = vadd.f32 %v965, %v970
        %v972 = vadd.f32 %v955, %v971
        %v973 = vlaneseq
        %v974 = vshrl.u32 %v973, 7
        %v975 = vsub.s32 2, %v974
        %v976 = vrot.slane %v475, %v975
        %977 = vset.pattern.permute.xlu0 2
        %978 = vperm.xlu0 %977, %v677
        %v979 = vpop.permute.xlu0 %978
        %v981 = vadd.f32 %v976, %v979
        %v982 = vmul.f32 %v776, %v981
        %983 = vset.pattern.permute.xlu0 2
        %984 = vperm.xlu0 %983, %v685
        %v985 = vpop.permute.xlu0 %984
        %v987 = vmul.f32 %v976, %v985
        %v988 = vadd.f32 %v982, %v987
        %v989 = vadd.f32 %v972, %v988
        %v990 = vlaneseq
        %v991 = vshrl.u32 %v990, 7
        %v992 = vsub.s32 3, %v991
        %v993 = vrot.slane %v475, %v992
        %994 = vset.pattern.permute.xlu0 2
        %995 = vperm.xlu0 %994, %v678
        %v996 = vpop.permute.xlu0 %995
        %v998 = vadd.f32 %v993, %v996
        %v999 = vmul.f32 %v797, %v998
        %1000 = vset.pattern.permute.xlu0 2
        %1001 = vperm.xlu0 %1000, %v686
        %v1002 = vpop.permute.xlu0 %1001
        %v1004 = vmul.f32 %v993, %v1002
        %v1005 = vadd.f32 %v999, %v1004
        %v1006 = vadd.f32 %v989, %v1005
        %v1007 = vlaneseq
        %v1008 = vshrl.u32 %v1007, 7
        %v1009 = vsub.s32 0, %v1008
        %v1010 = vrot.slane %v477, %v1009
        %1011 = vset.pattern.permute.xlu0 3
        %1012 = vperm.xlu0 %1011, %v675
        %v1013 = vpop.permute.xlu0 %1012
        %v1015 = vadd.f32 %v1010, %v1013
        %v1016 = vmul.f32 %v733, %v1015
        %1017 = vset.pattern.permute.xlu0 3
        %1018 = vperm.xlu0 %1017, %v683
        %v1019 = vpop.permute.xlu0 %1018
        %v1021 = vmul.f32 %v1010, %v1019
        %v1022 = vadd.f32 %v1016, %v1021
        %v1023 = vlaneseq
        %v1024 = vshrl.u32 %v1023, 7
        %v1025 = vsub.s32 1, %v1024
        %v1026 = vrot.slane %v477, %v1025
        %1027 = vset.pattern.permute.xlu0 3
        %1028 = vperm.xlu0 %1027, %v676
        %v1029 = vpop.permute.xlu0 %1028
        %v1031 = vadd.f32 %v1026, %v1029
        %v1032 = vmul.f32 %v755, %v1031
        %1033 = vset.pattern.permute.xlu0 3
        %1034 = vperm.xlu0 %1033, %v684
        %v1035 = vpop.permute.xlu0 %1034
        %v1037 = vmul.f32 %v1026, %v1035
        %v1038 = vadd.f32 %v1032, %v1037
        %v1039 = vadd.f32 %v1022, %v1038
        %v1040 = vlaneseq
        %v1041 = vshrl.u32 %v1040, 7
        %v1042 = vsub.s32 2, %v1041
        %v1043 = vrot.slane %v477, %v1042
        %1044 = vset.pattern.permute.xlu0 3
        %1045 = vperm.xlu0 %1044, %v677
        %v1046 = vpop.permute.xlu0 %1045
        %v1048 = vadd.f32 %v1043, %v1046
        %v1049 = vmul.f32 %v776, %v1048
        %1050 = vset.pattern.permute.xlu0 3
        %1051 = vperm.xlu0 %1050, %v685
        %v1052 = vpop.permute.xlu0 %1051
        %v1054 = vmul.f32 %v1043, %v1052
        %v1055 = vadd.f32 %v1049, %v1054
        %v1056 = vadd.f32 %v1039, %v1055
        %v1057 = vlaneseq
        %v1058 = vshrl.u32 %v1057, 7
        %v1059 = vsub.s32 3, %v1058
        %v1060 = vrot.slane %v477, %v1059
        %1061 = vset.pattern.permute.xlu0 3
        %1062 = vperm.xlu0 %1061, %v678
        %v1063 = vpop.permute.xlu0 %1062
        %v1065 = vadd.f32 %v1060, %v1063
        %v1066 = vmul.f32 %v797, %v1065
        %1067 = vset.pattern.permute.xlu0 3
        %1068 = vperm.xlu0 %1067, %v686
        %v1069 = vpop.permute.xlu0 %1068
        %v1071 = vmul.f32 %v1060, %v1069
        %v1072 = vadd.f32 %v1066, %v1071
        %v1073 = vadd.f32 %v1056, %v1072
        %v1074 = vlaneseq
        %v1075 = vshrl.u32 %v1074, 7
        %v1076 = vsub.s32 0, %v1075
        %v1077 = vrot.slane %v564, %v1076
        %1078 = vset.pattern.permute.xlu0 4
        %1079 = vperm.xlu0 %1078, %v675
        %v1080 = vpop.permute.xlu0 %1079
        %v1082 = vadd.f32 %v1077, %v1080
        %v1083 = vmul.f32 %v733, %v1082
        %1084 = vset.pattern.permute.xlu0 4
        %1085 = vperm.xlu0 %1084, %v683
        %v1086 = vpop.permute.xlu0 %1085
        %v1088 = vmul.f32 %v1077, %v1086
        %v1089 = vadd.f32 %v1083, %v1088
        %v1090 = vlaneseq
        %v1091 = vshrl.u32 %v1090, 7
        %v1092 = vsub.s32 1, %v1091
        %v1093 = vrot.slane %v564, %v1092
        %1094 = vset.pattern.permute.xlu0 4
        %1095 = vperm.xlu0 %1094, %v676
        %v1096 = vpop.permute.xlu0 %1095
        %v1098 = vadd.f32 %v1093, %v1096
        %v1099 = vmul.f32 %v755, %v1098
        %1100 = vset.pattern.permute.xlu0 4
        %1101 = vperm.xlu0 %1100, %v684
        %v1102 = vpop.permute.xlu0 %1101
        %v1104 = vmul.f32 %v1093, %v1102
        %v1105 = vadd.f32 %v1099, %v1104
        %v1106 = vadd.f32 %v1089, %v1105
        %v1107 = vlaneseq
        %v1108 = vshrl.u32 %v1107, 7
        %v1109 = vsub.s32 2, %v1108
        %v1110 = vrot.slane %v564, %v1109
        %1111 = vset.pattern.permute.xlu0 4
        %1112 = vperm.xlu0 %1111, %v677
        %v1113 = vpop.permute.xlu0 %1112
        %v1115 = vadd.f32 %v1110, %v1113
        %v1116 = vmul.f32 %v776, %v1115
        %1117 = vset.pattern.permute.xlu0 4
        %1118 = vperm.xlu0 %1117, %v685
        %v1119 = vpop.permute.xlu0 %1118
        %v1121 = vmul.f32 %v1110, %v1119
        %v1122 = vadd.f32 %v1116, %v1121
        %v1123 = vadd.f32 %v1106, %v1122
        %v1124 = vlaneseq
        %v1125 = vshrl.u32 %v1124, 7
        %v1126 = vsub.s32 3, %v1125
        %v1127 = vrot.slane %v564, %v1126
        %1128 = vset.pattern.permute.xlu0 4
        %1129 = vperm.xlu0 %1128, %v678
        %v1130 = vpop.permute.xlu0 %1129
        %v1132 = vadd.f32 %v1127, %v1130
        %v1133 = vmul.f32 %v797, %v1132
        %1134 = vset.pattern.permute.xlu0 4
        %1135 = vperm.xlu0 %1134, %v686
        %v1136 = vpop.permute.xlu0 %1135
        %v1138 = vmul.f32 %v1127, %v1136
        %v1139 = vadd.f32 %v1133, %v1138
        %v1140 = vadd.f32 %v1123, %v1139
        %v1141 = vlaneseq
        %v1142 = vshrl.u32 %v1141, 7
        %v1143 = vsub.s32 0, %v1142
        %v1144 = vrot.slane %v566, %v1143
        %1145 = vset.pattern.permute.xlu0 5
        %1146 = vperm.xlu0 %1145, %v675
        %v1147 = vpop.permute.xlu0 %1146
        %v1149 = vadd.f32 %v1144, %v1147
        %v1150 = vmul.f32 %v733, %v1149
        %1151 = vset.pattern.permute.xlu0 5
        %1152 = vperm.xlu0 %1151, %v683
        %v1153 = vpop.permute.xlu0 %1152
        %v1155 = vmul.f32 %v1144, %v1153
        %v1156 = vadd.f32 %v1150, %v1155
        %v1157 = vlaneseq
        %v1158 = vshrl.u32 %v1157, 7
        %v1159 = vsub.s32 1, %v1158
        %v1160 = vrot.slane %v566, %v1159
        %1161 = vset.pattern.permute.xlu0 5
        %1162 = vperm.xlu0 %1161, %v676
        %v1163 = vpop.permute.xlu0 %1162
        %v1165 = vadd.f32 %v1160, %v1163
        %v1166 = vmul.f32 %v755, %v1165
        %1167 = vset.pattern.permute.xlu0 5
        %1168 = vperm.xlu0 %1167, %v684
        %v1169 = vpop.permute.xlu0 %1168
        %v1171 = vmul.f32 %v1160, %v1169
        %v1172 = vadd.f32 %v1166, %v1171
        %v1173 = vadd.f32 %v1156, %v1172
        %v1174 = vlaneseq
        %v1175 = vshrl.u32 %v1174, 7
        %v1176 = vsub.s32 2, %v1175
        %v1177 = vrot.slane %v566, %v1176
        %1178 = vset.pattern.permute.xlu0 5
        %1179 = vperm.xlu0 %1178, %v677
        %v1180 = vpop.permute.xlu0 %1179
        %v1182 = vadd.f32 %v1177, %v1180
        %v1183 = vmul.f32 %v776, %v1182
        %1184 = vset.pattern.permute.xlu0 5
        %1185 = vperm.xlu0 %1184, %v685
        %v1186 = vpop.permute.xlu0 %1185
        %v1188 = vmul.f32 %v1177, %v1186
        %v1189 = vadd.f32 %v1183, %v1188
        %v1190 = vadd.f32 %v1173, %v1189
        %v1191 = vlaneseq
        %v1192 = vshrl.u32 %v1191, 7
        %v1193 = vsub.s32 3, %v1192
        %v1194 = vrot.slane %v566, %v1193
        %1195 = vset.pattern.permute.xlu0 5
        %1196 = vperm.xlu0 %1195, %v678
        %v1197 = vpop.permute.xlu0 %1196
        %v1199 = vadd.f32 %v1194, %v1197
        %v1200 = vmul.f32 %v797, %v1199
        %1201 = vset.pattern.permute.xlu0 5
        %1202 = vperm.xlu0 %1201, %v686
        %v1203 = vpop.permute.xlu0 %1202
        %v1205 = vmul.f32 %v1194, %v1203
        %v1206 = vadd.f32 %v1200, %v1205
        %v1207 = vadd.f32 %v1190, %v1206
        %v1208 = vlaneseq
        %v1209 = vshrl.u32 %v1208, 7
        %v1210 = vsub.s32 0, %v1209
        %v1211 = vrot.slane %v653, %v1210
        %1212 = vset.pattern.permute.xlu0 6
        %1213 = vperm.xlu0 %1212, %v675
        %v1214 = vpop.permute.xlu0 %1213
        %v1216 = vadd.f32 %v1211, %v1214
        %v1217 = vmul.f32 %v733, %v1216
        %1218 = vset.pattern.permute.xlu0 6
        %1219 = vperm.xlu0 %1218, %v683
        %v1220 = vpop.permute.xlu0 %1219
        %v1222 = vmul.f32 %v1211, %v1220
        %v1223 = vadd.f32 %v1217, %v1222
        %v1224 = vlaneseq
        %v1225 = vshrl.u32 %v1224, 7
        %v1226 = vsub.s32 1, %v1225
        %v1227 = vrot.slane %v653, %v1226
        %1228 = vset.pattern.permute.xlu0 6
        %1229 = vperm.xlu0 %1228, %v676
        %v1230 = vpop.permute.xlu0 %1229
        %v1232 = vadd.f32 %v1227, %v1230
        %v1233 = vmul.f32 %v755, %v1232
        %1234 = vset.pattern.permute.xlu0 6
        %1235 = vperm.xlu0 %1234, %v684
        %v1236 = vpop.permute.xlu0 %1235
        %v1238 = vmul.f32 %v1227, %v1236
        %v1239 = vadd.f32 %v1233, %v1238
        %v1240 = vadd.f32 %v1223, %v1239
        %v1241 = vlaneseq
        %v1242 = vshrl.u32 %v1241, 7
        %v1243 = vsub.s32 2, %v1242
        %v1244 = vrot.slane %v653, %v1243
        %1245 = vset.pattern.permute.xlu0 6
        %1246 = vperm.xlu0 %1245, %v677
        %v1247 = vpop.permute.xlu0 %1246
        %v1249 = vadd.f32 %v1244, %v1247
        %v1250 = vmul.f32 %v776, %v1249
        %1251 = vset.pattern.permute.xlu0 6
        %1252 = vperm.xlu0 %1251, %v685
        %v1253 = vpop.permute.xlu0 %1252
        %v1255 = vmul.f32 %v1244, %v1253
        %v1256 = vadd.f32 %v1250, %v1255
        %v1257 = vadd.f32 %v1240, %v1256
        %v1258 = vlaneseq
        %v1259 = vshrl.u32 %v1258, 7
        %v1260 = vsub.s32 3, %v1259
        %v1261 = vrot.slane %v653, %v1260
        %1262 = vset.pattern.permute.xlu0 6
        %1263 = vperm.xlu0 %1262, %v678
        %v1264 = vpop.permute.xlu0 %1263
        %v1266 = vadd.f32 %v1261, %v1264
        %v1267 = vmul.f32 %v797, %v1266
        %1268 = vset.pattern.permute.xlu0 6
        %1269 = vperm.xlu0 %1268, %v686
        %v1270 = vpop.permute.xlu0 %1269
        %v1272 = vmul.f32 %v1261, %v1270
        %v1273 = vadd.f32 %v1267, %v1272
        %v1274 = vadd.f32 %v1257, %v1273
        %v1275 = vlaneseq
        %v1276 = vshrl.u32 %v1275, 7
        %v1277 = vsub.s32 0, %v1276
        %v1278 = vrot.slane %v655, %v1277
        %1279 = vset.pattern.permute.xlu0 7
        %1280 = vperm.xlu0 %1279, %v675
        %v1281 = vpop.permute.xlu0 %1280
        %v1283 = vadd.f32 %v1278, %v1281
        %v1284 = vmul.f32 %v733, %v1283
        %1285 = vset.pattern.permute.xlu0 7
        %1286 = vperm.xlu0 %1285, %v683
        %v1287 = vpop.permute.xlu0 %1286
        %v1289 = vmul.f32 %v1278, %v1287
        %v1290 = vadd.f32 %v1284, %v1289
        %v1291 = vlaneseq
        %v1292 = vshrl.u32 %v1291, 7
        %v1293 = vsub.s32 1, %v1292
        %v1294 = vrot.slane %v655, %v1293
        %1295 = vset.pattern.permute.xlu0 7
        %1296 = vperm.xlu0 %1295, %v676
        %v1297 = vpop.permute.xlu0 %1296
        %v1299 = vadd.f32 %v1294, %v1297
        %v1300 = vmul.f32 %v755, %v1299
        %1301 = vset.pattern.permute.xlu0 7
        %1302 = vperm.xlu0 %1301, %v684
        %v1303 = vpop.permute.xlu0 %1302
        %v1305 = vmul.f32 %v1294, %v1303
        %v1306 = vadd.f32 %v1300, %v1305
        %v1307 = vadd.f32 %v1290, %v1306
        %v1308 = vlaneseq
        %v1309 = vshrl.u32 %v1308, 7
        %v1310 = vsub.s32 2, %v1309
        %v1311 = vrot.slane %v655, %v1310
        %1312 = vset.pattern.permute.xlu0 7
        %1313 = vperm.xlu0 %1312, %v677
        %v1314 = vpop.permute.xlu0 %1313
        %v1316 = vadd.f32 %v1311, %v1314
        %v1317 = vmul.f32 %v776, %v1316
        %1318 = vset.pattern.permute.xlu0 7
        %1319 = vperm.xlu0 %1318, %v685
        %v1320 = vpop.permute.xlu0 %1319
        %v1322 = vmul.f32 %v1311, %v1320
        %v1323 = vadd.f32 %v1317, %v1322
        %v1324 = vadd.f32 %v1307, %v1323
        %v1325 = vlaneseq
        %v1326 = vshrl.u32 %v1325, 7
        %v1327 = vsub.s32 3, %v1326
        %v1328 = vrot.slane %v655, %v1327
        %1329 = vset.pattern.permute.xlu0 7
        %1330 = vperm.xlu0 %1329, %v678
        %v1331 = vpop.permute.xlu0 %1330
        %v1333 = vadd.f32 %v1328, %v1331
        %v1334 = vmul.f32 %v797, %v1333
        %1335 = vset.pattern.permute.xlu0 7
        %1336 = vperm.xlu0 %1335, %v686
        %v1337 = vpop.permute.xlu0 %1336
        %v1339 = vmul.f32 %v1328, %v1337
        %v1340 = vadd.f32 %v1334, %v1339
        %v1341 = vadd.f32 %v1324, %v1340
        %v1342 = vmax.f32 %v872, %v939
        %v1343 = vmax.f32 %v1342, %v1006
        %v1344 = vmax.f32 %v1343, %v1073
        %v1345 = vmax.f32 %v1344, %v1140
        %v1346 = vmax.f32 %v1345, %v1207
        %v1347 = vmax.f32 %v1346, %v1274
        %v1348 = vmax.f32 %v1347, %v1341
        %v1349 = vsub.f32 %v872, %v1348
        %v1350 = vmul.f32 %v1349, 1.442695
        %v1351 = vpow.pop %v1350
        %v1352 = vsub.f32 %v939, %v1348
        %v1353 = vmul.f32 %v1352, 1.442695
        %v1354 = vpow.pop %v1353
        %v1355 = vsub.f32 %v1006, %v1348
        %v1356 = vmul.f32 %v1355, 1.442695
        %v1357 = vpow.pop %v1356
        %v1358 = vsub.f32 %v1073, %v1348
        %v1359 = vmul.f32 %v1358, 1.442695
        %v1360 = vpow.pop %v1359
        %v1361 = vsub.f32 %v1140, %v1348
        %v1362 = vmul.f32 %v1361, 1.442695
        %v1363 = vpow.pop %v1362
        %v1364 = vsub.f32 %v1207, %v1348
        %v1365 = vmul.f32 %v1364, 1.442695
        %v1366 = vpow.pop %v1365
        %v1367 = vsub.f32 %v1274, %v1348
        %v1368 = vmul.f32 %v1367, 1.442695
        %v1369 = vpow.pop %v1368
        %v1370 = vsub.f32 %v1341, %v1348
        %v1371 = vmul.f32 %v1370, 1.442695
        %v1372 = vpow.pop %v1371
        %v1373 = vadd.f32 %v1351, %v1354
        %v1374 = vadd.f32 %v1373, %v1357
        %v1375 = vadd.f32 %v1374, %v1360
        %v1376 = vadd.f32 %v1375, %v1363
        %v1377 = vadd.f32 %v1376, %v1366
        %v1378 = vadd.f32 %v1377, %v1369
        %v1379 = vadd.f32 %v1378, %v1372
        %v1380 = vrcp.pop %v1379
        %v1381 = vmul.f32 1.0, %v1380
        %v1382 = vlaneseq
        %v1383 = vshrl.u32 %v1382, 7
        %v1384 = vsub.s32 0, %v1383
        %v1385 = vrot.slane %v398, %v1384
        %1387 = vset.pattern.permute.xlu0 0
        %1388 = vperm.xlu0 %1387, %v691
        %v1389 = vpop.permute.xlu0 %1388
        %v1391 = vadd.f32 %v1385, %v1389
        %v1392 = vmul.f32 %v1351, %v1391
        %v1393 = vlaneseq
        %v1394 = vshrl.u32 %v1393, 7
        %v1395 = vsub.s32 0, %v1394
        %v1396 = vrot.slane %v400, %v1395
        %1397 = vset.pattern.permute.xlu0 1
        %1398 = vperm.xlu0 %1397, %v691
        %v1399 = vpop.permute.xlu0 %1398
        %v1401 = vadd.f32 %v1396, %v1399
        %v1402 = vmul.f32 %v1354, %v1401
        %v1403 = vadd.f32 %v1392, %v1402
        %v1404 = vlaneseq
        %v1405 = vshrl.u32 %v1404, 7
        %v1406 = vsub.s32 0, %v1405
        %v1407 = vrot.slane %v487, %v1406
        %1408 = vset.pattern.permute.xlu0 2
        %1409 = vperm.xlu0 %1408, %v691
        %v1410 = vpop.permute.xlu0 %1409
        %v1412 = vadd.f32 %v1407, %v1410
        %v1413 = vmul.f32 %v1357, %v1412
        %v1414 = vadd.f32 %v1403, %v1413
        %v1415 = vlaneseq
        %v1416 = vshrl.u32 %v1415, 7
        %v1417 = vsub.s32 0, %v1416
        %v1418 = vrot.slane %v489, %v1417
        %1419 = vset.pattern.permute.xlu0 3
        %1420 = vperm.xlu0 %1419, %v691
        %v1421 = vpop.permute.xlu0 %1420
        %v1423 = vadd.f32 %v1418, %v1421
        %v1424 = vmul.f32 %v1360, %v1423
        %v1425 = vadd.f32 %v1414, %v1424
        %v1426 = vlaneseq
        %v1427 = vshrl.u32 %v1426, 7
        %v1428 = vsub.s32 0, %v1427
        %v1429 = vrot.slane %v576, %v1428
        %1430 = vset.pattern.permute.xlu0 4
        %1431 = vperm.xlu0 %1430, %v691
        %v1432 = vpop.permute.xlu0 %1431
        %v1434 = vadd.f32 %v1429, %v1432
        %v1435 = vmul.f32 %v1363, %v1434
        %v1436 = vadd.f32 %v1425, %v1435
        %v1437 = vlaneseq
        %v1438 = vshrl.u32 %v1437, 7
        %v1439 = vsub.s32 0, %v1438
        %v1440 = vrot.slane %v578, %v1439
        %1441 = vset.pattern.permute.xlu0 5
        %1442 = vperm.xlu0 %1441, %v691
        %v1443 = vpop.permute.xlu0 %1442
        %v1445 = vadd.f32 %v1440, %v1443
        %v1446 = vmul.f32 %v1366, %v1445
        %v1447 = vadd.f32 %v1436, %v1446
        %v1448 = vlaneseq
        %v1449 = vshrl.u32 %v1448, 7
        %v1450 = vsub.s32 0, %v1449
        %v1451 = vrot.slane %v665, %v1450
        %1452 = vset.pattern.permute.xlu0 6
        %1453 = vperm.xlu0 %1452, %v691
        %v1454 = vpop.permute.xlu0 %1453
        %v1456 = vadd.f32 %v1451, %v1454
        %v1457 = vmul.f32 %v1369, %v1456
        %v1458 = vadd.f32 %v1447, %v1457
        %v1459 = vlaneseq
        %v1460 = vshrl.u32 %v1459, 7
        %v1461 = vsub.s32 0, %v1460
        %v1462 = vrot.slane %v667, %v1461
        %1463 = vset.pattern.permute.xlu0 7
        %1464 = vperm.xlu0 %1463, %v691
        %v1465 = vpop.permute.xlu0 %1464
        %v1467 = vadd.f32 %v1462, %v1465
        %v1468 = vmul.f32 %v1372, %v1467
        %v1469 = vadd.f32 %v1458, %v1468
        %v1470 = vmul.f32 %v1469, %v1381
        %1471 = vst [vmem:[%s240] sm:$0xff] %v1470
        %v1472 = vlaneseq
        %v1473 = vshrl.u32 %v1472, 7
        %v1474 = vsub.s32 1, %v1473
        %v1475 = vrot.slane %v398, %v1474
        %1477 = vset.pattern.permute.xlu0 0
        %1478 = vperm.xlu0 %1477, %v692
        %v1479 = vpop.permute.xlu0 %1478
        %v1481 = vadd.f32 %v1475, %v1479
        %v1482 = vmul.f32 %v1351, %v1481
        %v1483 = vlaneseq
        %v1484 = vshrl.u32 %v1483, 7
        %v1485 = vsub.s32 1, %v1484
        %v1486 = vrot.slane %v400, %v1485
        %1487 = vset.pattern.permute.xlu0 1
        %1488 = vperm.xlu0 %1487, %v692
        %v1489 = vpop.permute.xlu0 %1488
        %v1491 = vadd.f32 %v1486, %v1489
        %v1492 = vmul.f32 %v1354, %v1491
        %v1493 = vadd.f32 %v1482, %v1492
        %v1494 = vlaneseq
        %v1495 = vshrl.u32 %v1494, 7
        %v1496 = vsub.s32 1, %v1495
        %v1497 = vrot.slane %v487, %v1496
        %1498 = vset.pattern.permute.xlu0 2
        %1499 = vperm.xlu0 %1498, %v692
        %v1500 = vpop.permute.xlu0 %1499
        %v1502 = vadd.f32 %v1497, %v1500
        %v1503 = vmul.f32 %v1357, %v1502
        %v1504 = vadd.f32 %v1493, %v1503
        %v1505 = vlaneseq
        %v1506 = vshrl.u32 %v1505, 7
        %v1507 = vsub.s32 1, %v1506
        %v1508 = vrot.slane %v489, %v1507
        %1509 = vset.pattern.permute.xlu0 3
        %1510 = vperm.xlu0 %1509, %v692
        %v1511 = vpop.permute.xlu0 %1510
        %v1513 = vadd.f32 %v1508, %v1511
        %v1514 = vmul.f32 %v1360, %v1513
        %v1515 = vadd.f32 %v1504, %v1514
        %v1516 = vlaneseq
        %v1517 = vshrl.u32 %v1516, 7
        %v1518 = vsub.s32 1, %v1517
        %v1519 = vrot.slane %v576, %v1518
        %1520 = vset.pattern.permute.xlu0 4
        %1521 = vperm.xlu0 %1520, %v692
        %v1522 = vpop.permute.xlu0 %1521
        %v1524 = vadd.f32 %v1519, %v1522
        %v1525 = vmul.f32 %v1363, %v1524
        %v1526 = vadd.f32 %v1515, %v1525
        %v1527 = vlaneseq
        %v1528 = vshrl.u32 %v1527, 7
        %v1529 = vsub.s32 1, %v1528
        %v1530 = vrot.slane %v578, %v1529
        %1531 = vset.pattern.permute.xlu0 5
        %1532 = vperm.xlu0 %1531, %v692
        %v1533 = vpop.permute.xlu0 %1532
        %v1535 = vadd.f32 %v1530, %v1533
        %v1536 = vmul.f32 %v1366, %v1535
        %v1537 = vadd.f32 %v1526, %v1536
        %v1538 = vlaneseq
        %v1539 = vshrl.u32 %v1538, 7
        %v1540 = vsub.s32 1, %v1539
        %v1541 = vrot.slane %v665, %v1540
        %1542 = vset.pattern.permute.xlu0 6
        %1543 = vperm.xlu0 %1542, %v692
        %v1544 = vpop.permute.xlu0 %1543
        %v1546 = vadd.f32 %v1541, %v1544
        %v1547 = vmul.f32 %v1369, %v1546
        %v1548 = vadd.f32 %v1537, %v1547
        %v1549 = vlaneseq
        %v1550 = vshrl.u32 %v1549, 7
        %v1551 = vsub.s32 1, %v1550
        %v1552 = vrot.slane %v667, %v1551
        %1553 = vset.pattern.permute.xlu0 7
        %1554 = vperm.xlu0 %1553, %v692
        %v1555 = vpop.permute.xlu0 %1554
        %v1557 = vadd.f32 %v1552, %v1555
        %v1558 = vmul.f32 %v1372, %v1557
        %v1559 = vadd.f32 %v1548, %v1558
        %v1560 = vmul.f32 %v1559, %v1381
        %s1561 = scalar_lea.vmem %s240, 8 [#allocation2]
        %1562 = vst [vmem:[%s1561] sm:$0xff] %v1560
        %v1563 = vlaneseq
        %v1564 = vshrl.u32 %v1563, 7
        %v1565 = vsub.s32 2, %v1564
        %v1566 = vrot.slane %v398, %v1565
        %1568 = vset.pattern.permute.xlu0 0
        %1569 = vperm.xlu0 %1568, %v693
        %v1570 = vpop.permute.xlu0 %1569
        %v1572 = vadd.f32 %v1566, %v1570
        %v1573 = vmul.f32 %v1351, %v1572
        %v1574 = vlaneseq
        %v1575 = vshrl.u32 %v1574, 7
        %v1576 = vsub.s32 2, %v1575
        %v1577 = vrot.slane %v400, %v1576
        %1578 = vset.pattern.permute.xlu0 1
        %1579 = vperm.xlu0 %1578, %v693
        %v1580 = vpop.permute.xlu0 %1579
        %v1582 = vadd.f32 %v1577, %v1580
        %v1583 = vmul.f32 %v1354, %v1582
        %v1584 = vadd.f32 %v1573, %v1583
        %v1585 = vlaneseq
        %v1586 = vshrl.u32 %v1585, 7
        %v1587 = vsub.s32 2, %v1586
        %v1588 = vrot.slane %v487, %v1587
        %1589 = vset.pattern.permute.xlu0 2
        %1590 = vperm.xlu0 %1589, %v693
        %v1591 = vpop.permute.xlu0 %1590
        %v1593 = vadd.f32 %v1588, %v1591
        %v1594 = vmul.f32 %v1357, %v1593
        %v1595 = vadd.f32 %v1584, %v1594
        %v1596 = vlaneseq
        %v1597 = vshrl.u32 %v1596, 7
        %v1598 = vsub.s32 2, %v1597
        %v1599 = vrot.slane %v489, %v1598
        %1600 = vset.pattern.permute.xlu0 3
        %1601 = vperm.xlu0 %1600, %v693
        %v1602 = vpop.permute.xlu0 %1601
        %v1604 = vadd.f32 %v1599, %v1602
        %v1605 = vmul.f32 %v1360, %v1604
        %v1606 = vadd.f32 %v1595, %v1605
        %v1607 = vlaneseq
        %v1608 = vshrl.u32 %v1607, 7
        %v1609 = vsub.s32 2, %v1608
        %v1610 = vrot.slane %v576, %v1609
        %1611 = vset.pattern.permute.xlu0 4
        %1612 = vperm.xlu0 %1611, %v693
        %v1613 = vpop.permute.xlu0 %1612
        %v1615 = vadd.f32 %v1610, %v1613
        %v1616 = vmul.f32 %v1363, %v1615
        %v1617 = vadd.f32 %v1606, %v1616
        %v1618 = vlaneseq
        %v1619 = vshrl.u32 %v1618, 7
        %v1620 = vsub.s32 2, %v1619
        %v1621 = vrot.slane %v578, %v1620
        %1622 = vset.pattern.permute.xlu0 5
        %1623 = vperm.xlu0 %1622, %v693
        %v1624 = vpop.permute.xlu0 %1623
        %v1626 = vadd.f32 %v1621, %v1624
        %v1627 = vmul.f32 %v1366, %v1626
        %v1628 = vadd.f32 %v1617, %v1627
        %v1629 = vlaneseq
        %v1630 = vshrl.u32 %v1629, 7
        %v1631 = vsub.s32 2, %v1630
        %v1632 = vrot.slane %v665, %v1631
        %1633 = vset.pattern.permute.xlu0 6
        %1634 = vperm.xlu0 %1633, %v693
        %v1635 = vpop.permute.xlu0 %1634
        %v1637 = vadd.f32 %v1632, %v1635
        %v1638 = vmul.f32 %v1369, %v1637
        %v1639 = vadd.f32 %v1628, %v1638
        %v1640 = vlaneseq
        %v1641 = vshrl.u32 %v1640, 7
        %v1642 = vsub.s32 2, %v1641
        %v1643 = vrot.slane %v667, %v1642
        %1644 = vset.pattern.permute.xlu0 7
        %1645 = vperm.xlu0 %1644, %v693
        %v1646 = vpop.permute.xlu0 %1645
        %v1648 = vadd.f32 %v1643, %v1646
        %v1649 = vmul.f32 %v1372, %v1648
        %v1650 = vadd.f32 %v1639, %v1649
        %v1651 = vmul.f32 %v1650, %v1381
        %s1652 = scalar_lea.vmem %s240, 16 [#allocation2]
        %1653 = vst [vmem:[%s1652] sm:$0xff] %v1651
        %v1654 = vlaneseq
        %v1655 = vshrl.u32 %v1654, 7
        %v1656 = vsub.s32 3, %v1655
        %v1657 = vrot.slane %v398, %v1656
        %1659 = vset.pattern.permute.xlu0 0
        %1660 = vperm.xlu0 %1659, %v694
        %v1661 = vpop.permute.xlu0 %1660
        %v1663 = vadd.f32 %v1657, %v1661
        %v1664 = vmul.f32 %v1351, %v1663
        %v1665 = vlaneseq
        %v1666 = vshrl.u32 %v1665, 7
        %v1667 = vsub.s32 3, %v1666
        %v1668 = vrot.slane %v400, %v1667
        %1669 = vset.pattern.permute.xlu0 1
        %1670 = vperm.xlu0 %1669, %v694
        %v1671 = vpop.permute.xlu0 %1670
        %v1673 = vadd.f32 %v1668, %v1671
        %v1674 = vmul.f32 %v1354, %v1673
        %v1675 = vadd.f32 %v1664, %v1674
        %v1676 = vlaneseq
        %v1677 = vshrl.u32 %v1676, 7
        %v1678 = vsub.s32 3, %v1677
        %v1679 = vrot.slane %v487, %v1678
        %1680 = vset.pattern.permute.xlu0 2
        %1681 = vperm.xlu0 %1680, %v694
        %v1682 = vpop.permute.xlu0 %1681
        %v1684 = vadd.f32 %v1679, %v1682
        %v1685 = vmul.f32 %v1357, %v1684
        %v1686 = vadd.f32 %v1675, %v1685
        %v1687 = vlaneseq
        %v1688 = vshrl.u32 %v1687, 7
        %v1689 = vsub.s32 3, %v1688
        %v1690 = vrot.slane %v489, %v1689
        %1691 = vset.pattern.permute.xlu0 3
        %1692 = vperm.xlu0 %1691, %v694
        %v1693 = vpop.permute.xlu0 %1692
        %v1695 = vadd.f32 %v1690, %v1693
        %v1696 = vmul.f32 %v1360, %v1695
        %v1697 = vadd.f32 %v1686, %v1696
        %v1698 = vlaneseq
        %v1699 = vshrl.u32 %v1698, 7
        %v1700 = vsub.s32 3, %v1699
        %v1701 = vrot.slane %v576, %v1700
        %1702 = vset.pattern.permute.xlu0 4
        %1703 = vperm.xlu0 %1702, %v694
        %v1704 = vpop.permute.xlu0 %1703
        %v1706 = vadd.f32 %v1701, %v1704
        %v1707 = vmul.f32 %v1363, %v1706
        %v1708 = vadd.f32 %v1697, %v1707
        %v1709 = vlaneseq
        %v1710 = vshrl.u32 %v1709, 7
        %v1711 = vsub.s32 3, %v1710
        %v1712 = vrot.slane %v578, %v1711
        %1713 = vset.pattern.permute.xlu0 5
        %1714 = vperm.xlu0 %1713, %v694
        %v1715 = vpop.permute.xlu0 %1714
        %v1717 = vadd.f32 %v1712, %v1715
        %v1718 = vmul.f32 %v1366, %v1717
        %v1719 = vadd.f32 %v1708, %v1718
        %v1720 = vlaneseq
        %v1721 = vshrl.u32 %v1720, 7
        %v1722 = vsub.s32 3, %v1721
        %v1723 = vrot.slane %v665, %v1722
        %1724 = vset.pattern.permute.xlu0 6
        %1725 = vperm.xlu0 %1724, %v694
        %v1726 = vpop.permute.xlu0 %1725
        %v1728 = vadd.f32 %v1723, %v1726
        %v1729 = vmul.f32 %v1369, %v1728
        %v1730 = vadd.f32 %v1719, %v1729
        %v1731 = vlaneseq
        %v1732 = vshrl.u32 %v1731, 7
        %v1733 = vsub.s32 3, %v1732
        %v1734 = vrot.slane %v667, %v1733
        %1735 = vset.pattern.permute.xlu0 7
        %1736 = vperm.xlu0 %1735, %v694
        %v1737 = vpop.permute.xlu0 %1736
        %v1739 = vadd.f32 %v1734, %v1737
        %v1740 = vmul.f32 %v1372, %v1739
        %v1741 = vadd.f32 %v1730, %v1740
        %v1742 = vmul.f32 %v1741, %v1381
        %s1743 = scalar_lea.vmem %s240, 24 [#allocation2]
        %1744 = vst [vmem:[%s1743] sm:$0xff] %v1742
        %v1745 = vlaneseq
        %v1746 = vshrl.u32 %v1745, 7
        %v1747 = vsub.s32 4, %v1746
        %v1748 = vrot.slane %v398, %v1747
        %1750 = vset.pattern.permute.xlu0 0
        %1751 = vperm.xlu0 %1750, %v695
        %v1752 = vpop.permute.xlu0 %1751
        %v1754 = vadd.f32 %v1748, %v1752
        %v1755 = vmul.f32 %v1351, %v1754
        %v1756 = vlaneseq
        %v1757 = vshrl.u32 %v1756, 7
        %v1758 = vsub.s32 4, %v1757
        %v1759 = vrot.slane %v400, %v1758
        %1760 = vset.pattern.permute.xlu0 1
        %1761 = vperm.xlu0 %1760, %v695
        %v1762 = vpop.permute.xlu0 %1761
        %v1764 = vadd.f32 %v1759, %v1762
        %v1765 = vmul.f32 %v1354, %v1764
        %v1766 = vadd.f32 %v1755, %v1765
        %v1767 = vlaneseq
        %v1768 = vshrl.u32 %v1767, 7
        %v1769 = vsub.s32 4, %v1768
        %v1770 = vrot.slane %v487, %v1769
        %1771 = vset.pattern.permute.xlu0 2
        %1772 = vperm.xlu0 %1771, %v695
        %v1773 = vpop.permute.xlu0 %1772
        %v1775 = vadd.f32 %v1770, %v1773
        %v1776 = vmul.f32 %v1357, %v1775
        %v1777 = vadd.f32 %v1766, %v1776
        %v1778 = vlaneseq
        %v1779 = vshrl.u32 %v1778, 7
        %v1780 = vsub.s32 4, %v1779
        %v1781 = vrot.slane %v489, %v1780
        %1782 = vset.pattern.permute.xlu0 3
        %1783 = vperm.xlu0 %1782, %v695
        %v1784 = vpop.permute.xlu0 %1783
        %v1786 = vadd.f32 %v1781, %v1784
        %v1787 = vmul.f32 %v1360, %v1786
        %v1788 = vadd.f32 %v1777, %v1787
        %v1789 = vlaneseq
        %v1790 = vshrl.u32 %v1789, 7
        %v1791 = vsub.s32 4, %v1790
        %v1792 = vrot.slane %v576, %v1791
        %1793 = vset.pattern.permute.xlu0 4
        %1794 = vperm.xlu0 %1793, %v695
        %v1795 = vpop.permute.xlu0 %1794
        %v1797 = vadd.f32 %v1792, %v1795
        %v1798 = vmul.f32 %v1363, %v1797
        %v1799 = vadd.f32 %v1788, %v1798
        %v1800 = vlaneseq
        %v1801 = vshrl.u32 %v1800, 7
        %v1802 = vsub.s32 4, %v1801
        %v1803 = vrot.slane %v578, %v1802
        %1804 = vset.pattern.permute.xlu0 5
        %1805 = vperm.xlu0 %1804, %v695
        %v1806 = vpop.permute.xlu0 %1805
        %v1808 = vadd.f32 %v1803, %v1806
        %v1809 = vmul.f32 %v1366, %v1808
        %v1810 = vadd.f32 %v1799, %v1809
        %v1811 = vlaneseq
        %v1812 = vshrl.u32 %v1811, 7
        %v1813 = vsub.s32 4, %v1812
        %v1814 = vrot.slane %v665, %v1813
        %1815 = vset.pattern.permute.xlu0 6
        %1816 = vperm.xlu0 %1815, %v695
        %v1817 = vpop.permute.xlu0 %1816
        %v1819 = vadd.f32 %v1814, %v1817
        %v1820 = vmul.f32 %v1369, %v1819
        %v1821 = vadd.f32 %v1810, %v1820
        %v1822 = vlaneseq
        %v1823 = vshrl.u32 %v1822, 7
        %v1824 = vsub.s32 4, %v1823
        %v1825 = vrot.slane %v667, %v1824
        %1826 = vset.pattern.permute.xlu0 7
        %1827 = vperm.xlu0 %1826, %v695
        %v1828 = vpop.permute.xlu0 %1827
        %v1830 = vadd.f32 %v1825, %v1828
        %v1831 = vmul.f32 %v1372, %v1830
        %v1832 = vadd.f32 %v1821, %v1831
        %v1833 = vmul.f32 %v1832, %v1381
        %s1834 = scalar_lea.vmem %s240, 32 [#allocation2]
        %1835 = vst [vmem:[%s1834] sm:$0xff] %v1833
        %v1836 = vlaneseq
        %v1837 = vshrl.u32 %v1836, 7
        %v1838 = vsub.s32 5, %v1837
        %v1839 = vrot.slane %v398, %v1838
        %1841 = vset.pattern.permute.xlu0 0
        %1842 = vperm.xlu0 %1841, %v696
        %v1843 = vpop.permute.xlu0 %1842
        %v1845 = vadd.f32 %v1839, %v1843
        %v1846 = vmul.f32 %v1351, %v1845
        %v1847 = vlaneseq
        %v1848 = vshrl.u32 %v1847, 7
        %v1849 = vsub.s32 5, %v1848
        %v1850 = vrot.slane %v400, %v1849
        %1851 = vset.pattern.permute.xlu0 1
        %1852 = vperm.xlu0 %1851, %v696
        %v1853 = vpop.permute.xlu0 %1852
        %v1855 = vadd.f32 %v1850, %v1853
        %v1856 = vmul.f32 %v1354, %v1855
        %v1857 = vadd.f32 %v1846, %v1856
        %v1858 = vlaneseq
        %v1859 = vshrl.u32 %v1858, 7
        %v1860 = vsub.s32 5, %v1859
        %v1861 = vrot.slane %v487, %v1860
        %1862 = vset.pattern.permute.xlu0 2
        %1863 = vperm.xlu0 %1862, %v696
        %v1864 = vpop.permute.xlu0 %1863
        %v1866 = vadd.f32 %v1861, %v1864
        %v1867 = vmul.f32 %v1357, %v1866
        %v1868 = vadd.f32 %v1857, %v1867
        %v1869 = vlaneseq
        %v1870 = vshrl.u32 %v1869, 7
        %v1871 = vsub.s32 5, %v1870
        %v1872 = vrot.slane %v489, %v1871
        %1873 = vset.pattern.permute.xlu0 3
        %1874 = vperm.xlu0 %1873, %v696
        %v1875 = vpop.permute.xlu0 %1874
        %v1877 = vadd.f32 %v1872, %v1875
        %v1878 = vmul.f32 %v1360, %v1877
        %v1879 = vadd.f32 %v1868, %v1878
        %v1880 = vlaneseq
        %v1881 = vshrl.u32 %v1880, 7
        %v1882 = vsub.s32 5, %v1881
        %v1883 = vrot.slane %v576, %v1882
        %1884 = vset.pattern.permute.xlu0 4
        %1885 = vperm.xlu0 %1884, %v696
        %v1886 = vpop.permute.xlu0 %1885
        %v1888 = vadd.f32 %v1883, %v1886
        %v1889 = vmul.f32 %v1363, %v1888
        %v1890 = vadd.f32 %v1879, %v1889
        %v1891 = vlaneseq
        %v1892 = vshrl.u32 %v1891, 7
        %v1893 = vsub.s32 5, %v1892
        %v1894 = vrot.slane %v578, %v1893
        %1895 = vset.pattern.permute.xlu0 5
        %1896 = vperm.xlu0 %1895, %v696
        %v1897 = vpop.permute.xlu0 %1896
        %v1899 = vadd.f32 %v1894, %v1897
        %v1900 = vmul.f32 %v1366, %v1899
        %v1901 = vadd.f32 %v1890, %v1900
        %v1902 = vlaneseq
        %v1903 = vshrl.u32 %v1902, 7
        %v1904 = vsub.s32 5, %v1903
        %v1905 = vrot.slane %v665, %v1904
        %1906 = vset.pattern.permute.xlu0 6
        %1907 = vperm.xlu0 %1906, %v696
        %v1908 = vpop.permute.xlu0 %1907
        %v1910 = vadd.f32 %v1905, %v1908
        %v1911 = vmul.f32 %v1369, %v1910
        %v1912 = vadd.f32 %v1901, %v1911
        %v1913 = vlaneseq
        %v1914 = vshrl.u32 %v1913, 7
        %v1915 = vsub.s32 5, %v1914
        %v1916 = vrot.slane %v667, %v1915
        %1917 = vset.pattern.permute.xlu0 7
        %1918 = vperm.xlu0 %1917, %v696
        %v1919 = vpop.permute.xlu0 %1918
        %v1921 = vadd.f32 %v1916, %v1919
        %v1922 = vmul.f32 %v1372, %v1921
        %v1923 = vadd.f32 %v1912, %v1922
        %v1924 = vmul.f32 %v1923, %v1381
        %s1925 = scalar_lea.vmem %s240, 40 [#allocation2]
        %1926 = vst [vmem:[%s1925] sm:$0xff] %v1924
        %v1927 = vlaneseq
        %v1928 = vshrl.u32 %v1927, 7
        %v1929 = vsub.s32 6, %v1928
        %v1930 = vrot.slane %v398, %v1929
        %1932 = vset.pattern.permute.xlu0 0
        %1933 = vperm.xlu0 %1932, %v697
        %v1934 = vpop.permute.xlu0 %1933
        %v1936 = vadd.f32 %v1930, %v1934
        %v1937 = vmul.f32 %v1351, %v1936
        %v1938 = vlaneseq
        %v1939 = vshrl.u32 %v1938, 7
        %v1940 = vsub.s32 6, %v1939
        %v1941 = vrot.slane %v400, %v1940
        %1942 = vset.pattern.permute.xlu0 1
        %1943 = vperm.xlu0 %1942, %v697
        %v1944 = vpop.permute.xlu0 %1943
        %v1946 = vadd.f32 %v1941, %v1944
        %v1947 = vmul.f32 %v1354, %v1946
        %v1948 = vadd.f32 %v1937, %v1947
        %v1949 = vlaneseq
        %v1950 = vshrl.u32 %v1949, 7
        %v1951 = vsub.s32 6, %v1950
        %v1952 = vrot.slane %v487, %v1951
        %1953 = vset.pattern.permute.xlu0 2
        %1954 = vperm.xlu0 %1953, %v697
        %v1955 = vpop.permute.xlu0 %1954
        %v1957 = vadd.f32 %v1952, %v1955
        %v1958 = vmul.f32 %v1357, %v1957
        %v1959 = vadd.f32 %v1948, %v1958
        %v1960 = vlaneseq
        %v1961 = vshrl.u32 %v1960, 7
        %v1962 = vsub.s32 6, %v1961
        %v1963 = vrot.slane %v489, %v1962
        %1964 = vset.pattern.permute.xlu0 3
        %1965 = vperm.xlu0 %1964, %v697
        %v1966 = vpop.permute.xlu0 %1965
        %v1968 = vadd.f32 %v1963, %v1966
        %v1969 = vmul.f32 %v1360, %v1968
        %v1970 = vadd.f32 %v1959, %v1969
        %v1971 = vlaneseq
        %v1972 = vshrl.u32 %v1971, 7
        %v1973 = vsub.s32 6, %v1972
        %v1974 = vrot.slane %v576, %v1973
        %1975 = vset.pattern.permute.xlu0 4
        %1976 = vperm.xlu0 %1975, %v697
        %v1977 = vpop.permute.xlu0 %1976
        %v1979 = vadd.f32 %v1974, %v1977
        %v1980 = vmul.f32 %v1363, %v1979
        %v1981 = vadd.f32 %v1970, %v1980
        %v1982 = vlaneseq
        %v1983 = vshrl.u32 %v1982, 7
        %v1984 = vsub.s32 6, %v1983
        %v1985 = vrot.slane %v578, %v1984
        %1986 = vset.pattern.permute.xlu0 5
        %1987 = vperm.xlu0 %1986, %v697
        %v1988 = vpop.permute.xlu0 %1987
        %v1990 = vadd.f32 %v1985, %v1988
        %v1991 = vmul.f32 %v1366, %v1990
        %v1992 = vadd.f32 %v1981, %v1991
        %v1993 = vlaneseq
        %v1994 = vshrl.u32 %v1993, 7
        %v1995 = vsub.s32 6, %v1994
        %v1996 = vrot.slane %v665, %v1995
        %1997 = vset.pattern.permute.xlu0 6
        %1998 = vperm.xlu0 %1997, %v697
        %v1999 = vpop.permute.xlu0 %1998
        %v2001 = vadd.f32 %v1996, %v1999
        %v2002 = vmul.f32 %v1369, %v2001
        %v2003 = vadd.f32 %v1992, %v2002
        %v2004 = vlaneseq
        %v2005 = vshrl.u32 %v2004, 7
        %v2006 = vsub.s32 6, %v2005
        %v2007 = vrot.slane %v667, %v2006
        %2008 = vset.pattern.permute.xlu0 7
        %2009 = vperm.xlu0 %2008, %v697
        %v2010 = vpop.permute.xlu0 %2009
        %v2012 = vadd.f32 %v2007, %v2010
        %v2013 = vmul.f32 %v1372, %v2012
        %v2014 = vadd.f32 %v2003, %v2013
        %v2015 = vmul.f32 %v2014, %v1381
        %s2016 = scalar_lea.vmem %s240, 48 [#allocation2]
        %2017 = vst [vmem:[%s2016] sm:$0xff] %v2015
        %v2018 = vlaneseq
        %v2019 = vshrl.u32 %v2018, 7
        %v2020 = vsub.s32 7, %v2019
        %v2021 = vrot.slane %v398, %v2020
        %2023 = vset.pattern.permute.xlu0 0
        %2024 = vperm.xlu0 %2023, %v698
        %v2025 = vpop.permute.xlu0 %2024
        %v2027 = vadd.f32 %v2021, %v2025
        %v2028 = vmul.f32 %v1351, %v2027
        %v2029 = vlaneseq
        %v2030 = vshrl.u32 %v2029, 7
        %v2031 = vsub.s32 7, %v2030
        %v2032 = vrot.slane %v400, %v2031
        %2033 = vset.pattern.permute.xlu0 1
        %2034 = vperm.xlu0 %2033, %v698
        %v2035 = vpop.permute.xlu0 %2034
        %v2037 = vadd.f32 %v2032, %v2035
        %v2038 = vmul.f32 %v1354, %v2037
        %v2039 = vadd.f32 %v2028, %v2038
        %v2040 = vlaneseq
        %v2041 = vshrl.u32 %v2040, 7
        %v2042 = vsub.s32 7, %v2041
        %v2043 = vrot.slane %v487, %v2042
        %2044 = vset.pattern.permute.xlu0 2
        %2045 = vperm.xlu0 %2044, %v698
        %v2046 = vpop.permute.xlu0 %2045
        %v2048 = vadd.f32 %v2043, %v2046
        %v2049 = vmul.f32 %v1357, %v2048
        %v2050 = vadd.f32 %v2039, %v2049
        %v2051 = vlaneseq
        %v2052 = vshrl.u32 %v2051, 7
        %v2053 = vsub.s32 7, %v2052
        %v2054 = vrot.slane %v489, %v2053
        %2055 = vset.pattern.permute.xlu0 3
        %2056 = vperm.xlu0 %2055, %v698
        %v2057 = vpop.permute.xlu0 %2056
        %v2059 = vadd.f32 %v2054, %v2057
        %v2060 = vmul.f32 %v1360, %v2059
        %v2061 = vadd.f32 %v2050, %v2060
        %v2062 = vlaneseq
        %v2063 = vshrl.u32 %v2062, 7
        %v2064 = vsub.s32 7, %v2063
        %v2065 = vrot.slane %v576, %v2064
        %2066 = vset.pattern.permute.xlu0 4
        %2067 = vperm.xlu0 %2066, %v698
        %v2068 = vpop.permute.xlu0 %2067
        %v2070 = vadd.f32 %v2065, %v2068
        %v2071 = vmul.f32 %v1363, %v2070
        %v2072 = vadd.f32 %v2061, %v2071
        %v2073 = vlaneseq
        %v2074 = vshrl.u32 %v2073, 7
        %v2075 = vsub.s32 7, %v2074
        %v2076 = vrot.slane %v578, %v2075
        %2077 = vset.pattern.permute.xlu0 5
        %2078 = vperm.xlu0 %2077, %v698
        %v2079 = vpop.permute.xlu0 %2078
        %v2081 = vadd.f32 %v2076, %v2079
        %v2082 = vmul.f32 %v1366, %v2081
        %v2083 = vadd.f32 %v2072, %v2082
        %v2084 = vlaneseq
        %v2085 = vshrl.u32 %v2084, 7
        %v2086 = vsub.s32 7, %v2085
        %v2087 = vrot.slane %v665, %v2086
        %2088 = vset.pattern.permute.xlu0 6
        %2089 = vperm.xlu0 %2088, %v698
        %v2090 = vpop.permute.xlu0 %2089
        %v2092 = vadd.f32 %v2087, %v2090
        %v2093 = vmul.f32 %v1369, %v2092
        %v2094 = vadd.f32 %v2083, %v2093
        %v2095 = vlaneseq
        %v2096 = vshrl.u32 %v2095, 7
        %v2097 = vsub.s32 7, %v2096
        %v2098 = vrot.slane %v667, %v2097
        %2099 = vset.pattern.permute.xlu0 7
        %2100 = vperm.xlu0 %2099, %v698
        %v2101 = vpop.permute.xlu0 %2100
        %v2103 = vadd.f32 %v2098, %v2101
        %v2104 = vmul.f32 %v1372, %v2103
        %v2105 = vadd.f32 %v2094, %v2104
        %v2106 = vmul.f32 %v2105, %v1381
        %s2107 = scalar_lea.vmem %s240, 56 [#allocation2]
        %2108 = vst [vmem:[%s2107] sm:$0xff] %v2106
        %v2109 = vrot.slane %v392, 4
        %v2111 = vrot.slane %v394, 3
        %v2113 = vrot.slane %v481, 2
        %v2115 = vrot.slane %v483, 1
        %v2117 = vrot.slane %v572, 7
        %v2119 = vrot.slane %v659, 6
        %v2121 = vrot.slane %v661, 5
        %v2123 = vsel %vm720, %v2109, %v2111
        %v2124 = vsel %vm722, %v2123, %v2113
        %v2125 = vsel %vm724, %v2124, %v2115
        %v2126 = vsel %vm726, %v2125, %v570
        %v2127 = vsel %vm728, %v2126, %v2117
        %v2128 = vsel %vm730, %v2127, %v2119
        %v2129 = vsel %vm732, %v2128, %v2121
        %v2130 = vrot.slane %v392, 5
        %v2132 = vrot.slane %v394, 4
        %v2134 = vrot.slane %v481, 3
        %v2136 = vrot.slane %v483, 2
        %v2138 = vrot.slane %v570, 1
        %v2140 = vrot.slane %v659, 7
        %v2142 = vrot.slane %v661, 6
        %v2144 = vsel %vm720, %v2130, %v2132
        %v2145 = vsel %vm722, %v2144, %v2134
        %v2146 = vsel %vm724, %v2145, %v2136
        %v2147 = vsel %vm726, %v2146, %v2138
        %v2148 = vsel %vm728, %v2147, %v572
        %v2149 = vsel %vm730, %v2148, %v2140
        %v2150 = vsel %vm732, %v2149, %v2142
        %v2151 = vrot.slane %v392, 6
        %v2153 = vrot.slane %v394, 5
        %v2155 = vrot.slane %v481, 4
        %v2157 = vrot.slane %v483, 3
        %v2159 = vrot.slane %v570, 2
        %v2161 = vrot.slane %v572, 1
        %v2163 = vrot.slane %v661, 7
        %v2165 = vsel %vm720, %v2151, %v2153
        %v2166 = vsel %vm722, %v2165, %v2155
        %v2167 = vsel %vm724, %v2166, %v2157
        %v2168 = vsel %vm726, %v2167, %v2159
        %v2169 = vsel %vm728, %v2168, %v2161
        %v2170 = vsel %vm730, %v2169, %v659
        %v2171 = vsel %vm732, %v2170, %v2163
        %v2172 = vrot.slane %v392, 7
        %v2174 = vrot.slane %v394, 6
        %v2176 = vrot.slane %v481, 5
        %v2178 = vrot.slane %v483, 4
        %v2180 = vrot.slane %v570, 3
        %v2182 = vrot.slane %v572, 2
        %v2184 = vrot.slane %v659, 1
        %v2186 = vsel %vm720, %v2172, %v2174
        %v2187 = vsel %vm722, %v2186, %v2176
        %v2188 = vsel %vm724, %v2187, %v2178
        %v2189 = vsel %vm726, %v2188, %v2180
        %v2190 = vsel %vm728, %v2189, %v2182
        %v2191 = vsel %vm730, %v2190, %v2184
        %v2192 = vsel %vm732, %v2191, %v661
        %v2193 = vlaneseq
        %v2194 = vshrl.u32 %v2193, 7
        %v2195 = vsub.s32 4, %v2194
        %v2196 = vrot.slane %v386, %v2195
        %2198 = vset.pattern.permute.xlu0 0
        %2199 = vperm.xlu0 %2198, %v679
        %v2200 = vpop.permute.xlu0 %2199
        %v2202 = vadd.f32 %v2196, %v2200
        %v2203 = vmul.f32 %v2129, %v2202
        %2205 = vset.pattern.permute.xlu0 0
        %2206 = vperm.xlu0 %2205, %v687
        %v2207 = vpop.permute.xlu0 %2206
        %v2209 = vmul.f32 %v2196, %v2207
        %v2210 = vadd.f32 %v2203, %v2209
        %v2211 = vlaneseq
        %v2212 = vshrl.u32 %v2211, 7
        %v2213 = vsub.s32 5, %v2212
        %v2214 = vrot.slane %v386, %v2213
        %2216 = vset.pattern.permute.xlu0 0
        %2217 = vperm.xlu0 %2216, %v680
        %v2218 = vpop.permute.xlu0 %2217
        %v2220 = vadd.f32 %v2214, %v2218
        %v2221 = vmul.f32 %v2150, %v2220
        %2223 = vset.pattern.permute.xlu0 0
        %2224 = vperm.xlu0 %2223, %v688
        %v2225 = vpop.permute.xlu0 %2224
        %v2227 = vmul.f32 %v2214, %v2225
        %v2228 = vadd.f32 %v2221, %v2227
        %v2229 = vadd.f32 %v2210, %v2228
        %v2230 = vlaneseq
        %v2231 = vshrl.u32 %v2230, 7
        %v2232 = vsub.s32 6, %v2231
        %v2233 = vrot.slane %v386, %v2232
        %2235 = vset.pattern.permute.xlu0 0
        %2236 = vperm.xlu0 %2235, %v681
        %v2237 = vpop.permute.xlu0 %2236
        %v2239 = vadd.f32 %v2233, %v2237
        %v2240 = vmul.f32 %v2171, %v2239
        %2242 = vset.pattern.permute.xlu0 0
        %2243 = vperm.xlu0 %2242, %v689
        %v2244 = vpop.permute.xlu0 %2243
        %v2246 = vmul.f32 %v2233, %v2244
        %v2247 = vadd.f32 %v2240, %v2246
        %v2248 = vadd.f32 %v2229, %v2247
        %v2249 = vlaneseq
        %v2250 = vshrl.u32 %v2249, 7
        %v2251 = vsub.s32 7, %v2250
        %v2252 = vrot.slane %v386, %v2251
        %2254 = vset.pattern.permute.xlu0 0
        %2255 = vperm.xlu0 %2254, %v682
        %v2256 = vpop.permute.xlu0 %2255
        %v2258 = vadd.f32 %v2252, %v2256
        %v2259 = vmul.f32 %v2192, %v2258
        %2261 = vset.pattern.permute.xlu0 0
        %2262 = vperm.xlu0 %2261, %v690
        %v2263 = vpop.permute.xlu0 %2262
        %v2265 = vmul.f32 %v2252, %v2263
        %v2266 = vadd.f32 %v2259, %v2265
        %v2267 = vadd.f32 %v2248, %v2266
        %v2268 = vlaneseq
        %v2269 = vshrl.u32 %v2268, 7
        %v2270 = vsub.s32 4, %v2269
        %v2271 = vrot.slane %v388, %v2270
        %2272 = vset.pattern.permute.xlu0 1
        %2273 = vperm.xlu0 %2272, %v679
        %v2274 = vpop.permute.xlu0 %2273
        %v2276 = vadd.f32 %v2271, %v2274
        %v2277 = vmul.f32 %v2129, %v2276
        %2278 = vset.pattern.permute.xlu0 1
        %2279 = vperm.xlu0 %2278, %v687
        %v2280 = vpop.permute.xlu0 %2279
        %v2282 = vmul.f32 %v2271, %v2280
        %v2283 = vadd.f32 %v2277, %v2282
        %v2284 = vlaneseq
        %v2285 = vshrl.u32 %v2284, 7
        %v2286 = vsub.s32 5, %v2285
        %v2287 = vrot.slane %v388, %v2286
        %2288 = vset.pattern.permute.xlu0 1
        %2289 = vperm.xlu0 %2288, %v680
        %v2290 = vpop.permute.xlu0 %2289
        %v2292 = vadd.f32 %v2287, %v2290
        %v2293 = vmul.f32 %v2150, %v2292
        %2294 = vset.pattern.permute.xlu0 1
        %2295 = vperm.xlu0 %2294, %v688
        %v2296 = vpop.permute.xlu0 %2295
        %v2298 = vmul.f32 %v2287, %v2296
        %v2299 = vadd.f32 %v2293, %v2298
        %v2300 = vadd.f32 %v2283, %v2299
        %v2301 = vlaneseq
        %v2302 = vshrl.u32 %v2301, 7
        %v2303 = vsub.s32 6, %v2302
        %v2304 = vrot.slane %v388, %v2303
        %2305 = vset.pattern.permute.xlu0 1
        %2306 = vperm.xlu0 %2305, %v681
        %v2307 = vpop.permute.xlu0 %2306
        %v2309 = vadd.f32 %v2304, %v2307
        %v2310 = vmul.f32 %v2171, %v2309
        %2311 = vset.pattern.permute.xlu0 1
        %2312 = vperm.xlu0 %2311, %v689
        %v2313 = vpop.permute.xlu0 %2312
        %v2315 = vmul.f32 %v2304, %v2313
        %v2316 = vadd.f32 %v2310, %v2315
        %v2317 = vadd.f32 %v2300, %v2316
        %v2318 = vlaneseq
        %v2319 = vshrl.u32 %v2318, 7
        %v2320 = vsub.s32 7, %v2319
        %v2321 = vrot.slane %v388, %v2320
        %2322 = vset.pattern.permute.xlu0 1
        %2323 = vperm.xlu0 %2322, %v682
        %v2324 = vpop.permute.xlu0 %2323
        %v2326 = vadd.f32 %v2321, %v2324
        %v2327 = vmul.f32 %v2192, %v2326
        %2328 = vset.pattern.permute.xlu0 1
        %2329 = vperm.xlu0 %2328, %v690
        %v2330 = vpop.permute.xlu0 %2329
        %v2332 = vmul.f32 %v2321, %v2330
        %v2333 = vadd.f32 %v2327, %v2332
        %v2334 = vadd.f32 %v2317, %v2333
        %v2335 = vlaneseq
        %v2336 = vshrl.u32 %v2335, 7
        %v2337 = vsub.s32 4, %v2336
        %v2338 = vrot.slane %v475, %v2337
        %2339 = vset.pattern.permute.xlu0 2
        %2340 = vperm.xlu0 %2339, %v679
        %v2341 = vpop.permute.xlu0 %2340
        %v2343 = vadd.f32 %v2338, %v2341
        %v2344 = vmul.f32 %v2129, %v2343
        %2345 = vset.pattern.permute.xlu0 2
        %2346 = vperm.xlu0 %2345, %v687
        %v2347 = vpop.permute.xlu0 %2346
        %v2349 = vmul.f32 %v2338, %v2347
        %v2350 = vadd.f32 %v2344, %v2349
        %v2351 = vlaneseq
        %v2352 = vshrl.u32 %v2351, 7
        %v2353 = vsub.s32 5, %v2352
        %v2354 = vrot.slane %v475, %v2353
        %2355 = vset.pattern.permute.xlu0 2
        %2356 = vperm.xlu0 %2355, %v680
        %v2357 = vpop.permute.xlu0 %2356
        %v2359 = vadd.f32 %v2354, %v2357
        %v2360 = vmul.f32 %v2150, %v2359
        %2361 = vset.pattern.permute.xlu0 2
        %2362 = vperm.xlu0 %2361, %v688
        %v2363 = vpop.permute.xlu0 %2362
        %v2365 = vmul.f32 %v2354, %v2363
        %v2366 = vadd.f32 %v2360, %v2365
        %v2367 = vadd.f32 %v2350, %v2366
        %v2368 = vlaneseq
        %v2369 = vshrl.u32 %v2368, 7
        %v2370 = vsub.s32 6, %v2369
        %v2371 = vrot.slane %v475, %v2370
        %2372 = vset.pattern.permute.xlu0 2
        %2373 = vperm.xlu0 %2372, %v681
        %v2374 = vpop.permute.xlu0 %2373
        %v2376 = vadd.f32 %v2371, %v2374
        %v2377 = vmul.f32 %v2171, %v2376
        %2378 = vset.pattern.permute.xlu0 2
        %2379 = vperm.xlu0 %2378, %v689
        %v2380 = vpop.permute.xlu0 %2379
        %v2382 = vmul.f32 %v2371, %v2380
        %v2383 = vadd.f32 %v2377, %v2382
        %v2384 = vadd.f32 %v2367, %v2383
        %v2385 = vlaneseq
        %v2386 = vshrl.u32 %v2385, 7
        %v2387 = vsub.s32 7, %v2386
        %v2388 = vrot.slane %v475, %v2387
        %2389 = vset.pattern.permute.xlu0 2
        %2390 = vperm.xlu0 %2389, %v682
        %v2391 = vpop.permute.xlu0 %2390
        %v2393 = vadd.f32 %v2388, %v2391
        %v2394 = vmul.f32 %v2192, %v2393
        %2395 = vset.pattern.permute.xlu0 2
        %2396 = vperm.xlu0 %2395, %v690
        %v2397 = vpop.permute.xlu0 %2396
        %v2399 = vmul.f32 %v2388, %v2397
        %v2400 = vadd.f32 %v2394, %v2399
        %v2401 = vadd.f32 %v2384, %v2400
        %v2402 = vlaneseq
        %v2403 = vshrl.u32 %v2402, 7
        %v2404 = vsub.s32 4, %v2403
        %v2405 = vrot.slane %v477, %v2404
        %2406 = vset.pattern.permute.xlu0 3
        %2407 = vperm.xlu0 %2406, %v679
        %v2408 = vpop.permute.xlu0 %2407
        %v2410 = vadd.f32 %v2405, %v2408
        %v2411 = vmul.f32 %v2129, %v2410
        %2412 = vset.pattern.permute.xlu0 3
        %2413 = vperm.xlu0 %2412, %v687
        %v2414 = vpop.permute.xlu0 %2413
        %v2416 = vmul.f32 %v2405, %v2414
        %v2417 = vadd.f32 %v2411, %v2416
        %v2418 = vlaneseq
        %v2419 = vshrl.u32 %v2418, 7
        %v2420 = vsub.s32 5, %v2419
        %v2421 = vrot.slane %v477, %v2420
        %2422 = vset.pattern.permute.xlu0 3
        %2423 = vperm.xlu0 %2422, %v680
        %v2424 = vpop.permute.xlu0 %2423
        %v2426 = vadd.f32 %v2421, %v2424
        %v2427 = vmul.f32 %v2150, %v2426
        %2428 = vset.pattern.permute.xlu0 3
        %2429 = vperm.xlu0 %2428, %v688
        %v2430 = vpop.permute.xlu0 %2429
        %v2432 = vmul.f32 %v2421, %v2430
        %v2433 = vadd.f32 %v2427, %v2432
        %v2434 = vadd.f32 %v2417, %v2433
        %v2435 = vlaneseq
        %v2436 = vshrl.u32 %v2435, 7
        %v2437 = vsub.s32 6, %v2436
        %v2438 = vrot.slane %v477, %v2437
        %2439 = vset.pattern.permute.xlu0 3
        %2440 = vperm.xlu0 %2439, %v681
        %v2441 = vpop.permute.xlu0 %2440
        %v2443 = vadd.f32 %v2438, %v2441
        %v2444 = vmul.f32 %v2171, %v2443
        %2445 = vset.pattern.permute.xlu0 3
        %2446 = vperm.xlu0 %2445, %v689
        %v2447 = vpop.permute.xlu0 %2446
        %v2449 = vmul.f32 %v2438, %v2447
        %v2450 = vadd.f32 %v2444, %v2449
        %v2451 = vadd.f32 %v2434, %v2450
        %v2452 = vlaneseq
        %v2453 = vshrl.u32 %v2452, 7
        %v2454 = vsub.s32 7, %v2453
        %v2455 = vrot.slane %v477, %v2454
        %2456 = vset.pattern.permute.xlu0 3
        %2457 = vperm.xlu0 %2456, %v682
        %v2458 = vpop.permute.xlu0 %2457
        %v2460 = vadd.f32 %v2455, %v2458
        %v2461 = vmul.f32 %v2192, %v2460
        %2462 = vset.pattern.permute.xlu0 3
        %2463 = vperm.xlu0 %2462, %v690
        %v2464 = vpop.permute.xlu0 %2463
        %v2466 = vmul.f32 %v2455, %v2464
        %v2467 = vadd.f32 %v2461, %v2466
        %v2468 = vadd.f32 %v2451, %v2467
        %v2469 = vlaneseq
        %v2470 = vshrl.u32 %v2469, 7
        %v2471 = vsub.s32 4, %v2470
        %v2472 = vrot.slane %v564, %v2471
        %2473 = vset.pattern.permute.xlu0 4
        %2474 = vperm.xlu0 %2473, %v679
        %v2475 = vpop.permute.xlu0 %2474
        %v2477 = vadd.f32 %v2472, %v2475
        %v2478 = vmul.f32 %v2129, %v2477
        %2479 = vset.pattern.permute.xlu0 4
        %2480 = vperm.xlu0 %2479, %v687
        %v2481 = vpop.permute.xlu0 %2480
        %v2483 = vmul.f32 %v2472, %v2481
        %v2484 = vadd.f32 %v2478, %v2483
        %v2485 = vlaneseq
        %v2486 = vshrl.u32 %v2485, 7
        %v2487 = vsub.s32 5, %v2486
        %v2488 = vrot.slane %v564, %v2487
        %2489 = vset.pattern.permute.xlu0 4
        %2490 = vperm.xlu0 %2489, %v680
        %v2491 = vpop.permute.xlu0 %2490
        %v2493 = vadd.f32 %v2488, %v2491
        %v2494 = vmul.f32 %v2150, %v2493
        %2495 = vset.pattern.permute.xlu0 4
        %2496 = vperm.xlu0 %2495, %v688
        %v2497 = vpop.permute.xlu0 %2496
        %v2499 = vmul.f32 %v2488, %v2497
        %v2500 = vadd.f32 %v2494, %v2499
        %v2501 = vadd.f32 %v2484, %v2500
        %v2502 = vlaneseq
        %v2503 = vshrl.u32 %v2502, 7
        %v2504 = vsub.s32 6, %v2503
        %v2505 = vrot.slane %v564, %v2504
        %2506 = vset.pattern.permute.xlu0 4
        %2507 = vperm.xlu0 %2506, %v681
        %v2508 = vpop.permute.xlu0 %2507
        %v2510 = vadd.f32 %v2505, %v2508
        %v2511 = vmul.f32 %v2171, %v2510
        %2512 = vset.pattern.permute.xlu0 4
        %2513 = vperm.xlu0 %2512, %v689
        %v2514 = vpop.permute.xlu0 %2513
        %v2516 = vmul.f32 %v2505, %v2514
        %v2517 = vadd.f32 %v2511, %v2516
        %v2518 = vadd.f32 %v2501, %v2517
        %v2519 = vlaneseq
        %v2520 = vshrl.u32 %v2519, 7
        %v2521 = vsub.s32 7, %v2520
        %v2522 = vrot.slane %v564, %v2521
        %2523 = vset.pattern.permute.xlu0 4
        %2524 = vperm.xlu0 %2523, %v682
        %v2525 = vpop.permute.xlu0 %2524
        %v2527 = vadd.f32 %v2522, %v2525
        %v2528 = vmul.f32 %v2192, %v2527
        %2529 = vset.pattern.permute.xlu0 4
        %2530 = vperm.xlu0 %2529, %v690
        %v2531 = vpop.permute.xlu0 %2530
        %v2533 = vmul.f32 %v2522, %v2531
        %v2534 = vadd.f32 %v2528, %v2533
        %v2535 = vadd.f32 %v2518, %v2534
        %v2536 = vlaneseq
        %v2537 = vshrl.u32 %v2536, 7
        %v2538 = vsub.s32 4, %v2537
        %v2539 = vrot.slane %v566, %v2538
        %2540 = vset.pattern.permute.xlu0 5
        %2541 = vperm.xlu0 %2540, %v679
        %v2542 = vpop.permute.xlu0 %2541
        %v2544 = vadd.f32 %v2539, %v2542
        %v2545 = vmul.f32 %v2129, %v2544
        %2546 = vset.pattern.permute.xlu0 5
        %2547 = vperm.xlu0 %2546, %v687
        %v2548 = vpop.permute.xlu0 %2547
        %v2550 = vmul.f32 %v2539, %v2548
        %v2551 = vadd.f32 %v2545, %v2550
        %v2552 = vlaneseq
        %v2553 = vshrl.u32 %v2552, 7
        %v2554 = vsub.s32 5, %v2553
        %v2555 = vrot.slane %v566, %v2554
        %2556 = vset.pattern.permute.xlu0 5
        %2557 = vperm.xlu0 %2556, %v680
        %v2558 = vpop.permute.xlu0 %2557
        %v2560 = vadd.f32 %v2555, %v2558
        %v2561 = vmul.f32 %v2150, %v2560
        %2562 = vset.pattern.permute.xlu0 5
        %2563 = vperm.xlu0 %2562, %v688
        %v2564 = vpop.permute.xlu0 %2563
        %v2566 = vmul.f32 %v2555, %v2564
        %v2567 = vadd.f32 %v2561, %v2566
        %v2568 = vadd.f32 %v2551, %v2567
        %v2569 = vlaneseq
        %v2570 = vshrl.u32 %v2569, 7
        %v2571 = vsub.s32 6, %v2570
        %v2572 = vrot.slane %v566, %v2571
        %2573 = vset.pattern.permute.xlu0 5
        %2574 = vperm.xlu0 %2573, %v681
        %v2575 = vpop.permute.xlu0 %2574
        %v2577 = vadd.f32 %v2572, %v2575
        %v2578 = vmul.f32 %v2171, %v2577
        %2579 = vset.pattern.permute.xlu0 5
        %2580 = vperm.xlu0 %2579, %v689
        %v2581 = vpop.permute.xlu0 %2580
        %v2583 = vmul.f32 %v2572, %v2581
        %v2584 = vadd.f32 %v2578, %v2583
        %v2585 = vadd.f32 %v2568, %v2584
        %v2586 = vlaneseq
        %v2587 = vshrl.u32 %v2586, 7
        %v2588 = vsub.s32 7, %v2587
        %v2589 = vrot.slane %v566, %v2588
        %2590 = vset.pattern.permute.xlu0 5
        %2591 = vperm.xlu0 %2590, %v682
        %v2592 = vpop.permute.xlu0 %2591
        %v2594 = vadd.f32 %v2589, %v2592
        %v2595 = vmul.f32 %v2192, %v2594
        %2596 = vset.pattern.permute.xlu0 5
        %2597 = vperm.xlu0 %2596, %v690
        %v2598 = vpop.permute.xlu0 %2597
        %v2600 = vmul.f32 %v2589, %v2598
        %v2601 = vadd.f32 %v2595, %v2600
        %v2602 = vadd.f32 %v2585, %v2601
        %v2603 = vlaneseq
        %v2604 = vshrl.u32 %v2603, 7
        %v2605 = vsub.s32 4, %v2604
        %v2606 = vrot.slane %v653, %v2605
        %2607 = vset.pattern.permute.xlu0 6
        %2608 = vperm.xlu0 %2607, %v679
        %v2609 = vpop.permute.xlu0 %2608
        %v2611 = vadd.f32 %v2606, %v2609
        %v2612 = vmul.f32 %v2129, %v2611
        %2613 = vset.pattern.permute.xlu0 6
        %2614 = vperm.xlu0 %2613, %v687
        %v2615 = vpop.permute.xlu0 %2614
        %v2617 = vmul.f32 %v2606, %v2615
        %v2618 = vadd.f32 %v2612, %v2617
        %v2619 = vlaneseq
        %v2620 = vshrl.u32 %v2619, 7
        %v2621 = vsub.s32 5, %v2620
        %v2622 = vrot.slane %v653, %v2621
        %2623 = vset.pattern.permute.xlu0 6
        %2624 = vperm.xlu0 %2623, %v680
        %v2625 = vpop.permute.xlu0 %2624
        %v2627 = vadd.f32 %v2622, %v2625
        %v2628 = vmul.f32 %v2150, %v2627
        %2629 = vset.pattern.permute.xlu0 6
        %2630 = vperm.xlu0 %2629, %v688
        %v2631 = vpop.permute.xlu0 %2630
        %v2633 = vmul.f32 %v2622, %v2631
        %v2634 = vadd.f32 %v2628, %v2633
        %v2635 = vadd.f32 %v2618, %v2634
        %v2636 = vlaneseq
        %v2637 = vshrl.u32 %v2636, 7
        %v2638 = vsub.s32 6, %v2637
        %v2639 = vrot.slane %v653, %v2638
        %2640 = vset.pattern.permute.xlu0 6
        %2641 = vperm.xlu0 %2640, %v681
        %v2642 = vpop.permute.xlu0 %2641
        %v2644 = vadd.f32 %v2639, %v2642
        %v2645 = vmul.f32 %v2171, %v2644
        %2646 = vset.pattern.permute.xlu0 6
        %2647 = vperm.xlu0 %2646, %v689
        %v2648 = vpop.permute.xlu0 %2647
        %v2650 = vmul.f32 %v2639, %v2648
        %v2651 = vadd.f32 %v2645, %v2650
        %v2652 = vadd.f32 %v2635, %v2651
        %v2653 = vlaneseq
        %v2654 = vshrl.u32 %v2653, 7
        %v2655 = vsub.s32 7, %v2654
        %v2656 = vrot.slane %v653, %v2655
        %2657 = vset.pattern.permute.xlu0 6
        %2658 = vperm.xlu0 %2657, %v682
        %v2659 = vpop.permute.xlu0 %2658
        %v2661 = vadd.f32 %v2656, %v2659
        %v2662 = vmul.f32 %v2192, %v2661
        %2663 = vset.pattern.permute.xlu0 6
        %2664 = vperm.xlu0 %2663, %v690
        %v2665 = vpop.permute.xlu0 %2664
        %v2667 = vmul.f32 %v2656, %v2665
        %v2668 = vadd.f32 %v2662, %v2667
        %v2669 = vadd.f32 %v2652, %v2668
        %v2670 = vlaneseq
        %v2671 = vshrl.u32 %v2670, 7
        %v2672 = vsub.s32 4, %v2671
        %v2673 = vrot.slane %v655, %v2672
        %2674 = vset.pattern.permute.xlu0 7
        %2675 = vperm.xlu0 %2674, %v679
        %v2676 = vpop.permute.xlu0 %2675
        %v2678 = vadd.f32 %v2673, %v2676
        %v2679 = vmul.f32 %v2129, %v2678
        %2680 = vset.pattern.permute.xlu0 7
        %2681 = vperm.xlu0 %2680, %v687
        %v2682 = vpop.permute.xlu0 %2681
        %v2684 = vmul.f32 %v2673, %v2682
        %v2685 = vadd.f32 %v2679, %v2684
        %v2686 = vlaneseq
        %v2687 = vshrl.u32 %v2686, 7
        %v2688 = vsub.s32 5, %v2687
        %v2689 = vrot.slane %v655, %v2688
        %2690 = vset.pattern.permute.xlu0 7
        %2691 = vperm.xlu0 %2690, %v680
        %v2692 = vpop.permute.xlu0 %2691
        %v2694 = vadd.f32 %v2689, %v2692
        %v2695 = vmul.f32 %v2150, %v2694
        %2696 = vset.pattern.permute.xlu0 7
        %2697 = vperm.xlu0 %2696, %v688
        %v2698 = vpop.permute.xlu0 %2697
        %v2700 = vmul.f32 %v2689, %v2698
        %v2701 = vadd.f32 %v2695, %v2700
        %v2702 = vadd.f32 %v2685, %v2701
        %v2703 = vlaneseq
        %v2704 = vshrl.u32 %v2703, 7
        %v2705 = vsub.s32 6, %v2704
        %v2706 = vrot.slane %v655, %v2705
        %2707 = vset.pattern.permute.xlu0 7
        %2708 = vperm.xlu0 %2707, %v681
        %v2709 = vpop.permute.xlu0 %2708
        %v2711 = vadd.f32 %v2706, %v2709
        %v2712 = vmul.f32 %v2171, %v2711
        %2713 = vset.pattern.permute.xlu0 7
        %2714 = vperm.xlu0 %2713, %v689
        %v2715 = vpop.permute.xlu0 %2714
        %v2717 = vmul.f32 %v2706, %v2715
        %v2718 = vadd.f32 %v2712, %v2717
        %v2719 = vadd.f32 %v2702, %v2718
        %v2720 = vlaneseq
        %v2721 = vshrl.u32 %v2720, 7
        %v2722 = vsub.s32 7, %v2721
        %v2723 = vrot.slane %v655, %v2722
        %2724 = vset.pattern.permute.xlu0 7
        %2725 = vperm.xlu0 %2724, %v682
        %v2726 = vpop.permute.xlu0 %2725
        %v2728 = vadd.f32 %v2723, %v2726
        %v2729 = vmul.f32 %v2192, %v2728
        %2730 = vset.pattern.permute.xlu0 7
        %2731 = vperm.xlu0 %2730, %v690
        %v2732 = vpop.permute.xlu0 %2731
        %v2734 = vmul.f32 %v2723, %v2732
        %v2735 = vadd.f32 %v2729, %v2734
        %v2736 = vadd.f32 %v2719, %v2735
        %v2737 = vmax.f32 %v2267, %v2334
        %v2738 = vmax.f32 %v2737, %v2401
        %v2739 = vmax.f32 %v2738, %v2468
        %v2740 = vmax.f32 %v2739, %v2535
        %v2741 = vmax.f32 %v2740, %v2602
        %v2742 = vmax.f32 %v2741, %v2669
        %v2743 = vmax.f32 %v2742, %v2736
        %v2744 = vsub.f32 %v2267, %v2743
        %v2745 = vmul.f32 %v2744, 1.442695
        %v2746 = vpow.pop %v2745
        %v2747 = vsub.f32 %v2334, %v2743
        %v2748 = vmul.f32 %v2747, 1.442695
        %v2749 = vpow.pop %v2748
        %v2750 = vsub.f32 %v2401, %v2743
        %v2751 = vmul.f32 %v2750, 1.442695
        %v2752 = vpow.pop %v2751
        %v2753 = vsub.f32 %v2468, %v2743
        %v2754 = vmul.f32 %v2753, 1.442695
        %v2755 = vpow.pop %v2754
        %v2756 = vsub.f32 %v2535, %v2743
        %v2757 = vmul.f32 %v2756, 1.442695
        %v2758 = vpow.pop %v2757
        %v2759 = vsub.f32 %v2602, %v2743
        %v2760 = vmul.f32 %v2759, 1.442695
        %v2761 = vpow.pop %v2760
        %v2762 = vsub.f32 %v2669, %v2743
        %v2763 = vmul.f32 %v2762, 1.442695
        %v2764 = vpow.pop %v2763
        %v2765 = vsub.f32 %v2736, %v2743
        %v2766 = vmul.f32 %v2765, 1.442695
        %v2767 = vpow.pop %v2766
        %v2768 = vadd.f32 %v2746, %v2749
        %v2769 = vadd.f32 %v2768, %v2752
        %v2770 = vadd.f32 %v2769, %v2755
        %v2771 = vadd.f32 %v2770, %v2758
        %v2772 = vadd.f32 %v2771, %v2761
        %v2773 = vadd.f32 %v2772, %v2764
        %v2774 = vadd.f32 %v2773, %v2767
        %v2775 = vrcp.pop %v2774
        %v2776 = vmul.f32 1.0, %v2775
        %v2777 = vlaneseq
        %v2778 = vshrl.u32 %v2777, 7
        %v2779 = vsub.s32 0, %v2778
        %v2780 = vrot.slane %v404, %v2779
        %v2781 = vadd.f32 %v2780, %v1389
        %v2782 = vmul.f32 %v2746, %v2781
        %v2783 = vlaneseq
        %v2784 = vshrl.u32 %v2783, 7
        %v2785 = vsub.s32 0, %v2784
        %v2786 = vrot.slane %v406, %v2785
        %v2787 = vadd.f32 %v2786, %v1399
        %v2788 = vmul.f32 %v2749, %v2787
        %v2789 = vadd.f32 %v2782, %v2788
        %v2790 = vlaneseq
        %v2791 = vshrl.u32 %v2790, 7
        %v2792 = vsub.s32 0, %v2791
        %v2793 = vrot.slane %v493, %v2792
        %v2794 = vadd.f32 %v2793, %v1410
        %v2795 = vmul.f32 %v2752, %v2794
        %v2796 = vadd.f32 %v2789, %v2795
        %v2797 = vlaneseq
        %v2798 = vshrl.u32 %v2797, 7
        %v2799 = vsub.s32 0, %v2798
        %v2800 = vrot.slane %v495, %v2799
        %v2801 = vadd.f32 %v2800, %v1421
        %v2802 = vmul.f32 %v2755, %v2801
        %v2803 = vadd.f32 %v2796, %v2802
        %v2804 = vlaneseq
        %v2805 = vshrl.u32 %v2804, 7
        %v2806 = vsub.s32 0, %v2805
        %v2807 = vrot.slane %v582, %v2806
        %v2808 = vadd.f32 %v2807, %v1432
        %v2809 = vmul.f32 %v2758, %v2808
        %v2810 = vadd.f32 %v2803, %v2809
        %v2811 = vlaneseq
        %v2812 = vshrl.u32 %v2811, 7
        %v2813 = vsub.s32 0, %v2812
        %v2814 = vrot.slane %v584, %v2813
        %v2815 = vadd.f32 %v2814, %v1443
        %v2816 = vmul.f32 %v2761, %v2815
        %v2817 = vadd.f32 %v2810, %v2816
        %v2818 = vlaneseq
        %v2819 = vshrl.u32 %v2818, 7
        %v2820 = vsub.s32 0, %v2819
        %v2821 = vrot.slane %v671, %v2820
        %v2822 = vadd.f32 %v2821, %v1454
        %v2823 = vmul.f32 %v2764, %v2822
        %v2824 = vadd.f32 %v2817, %v2823
        %v2825 = vlaneseq
        %v2826 = vshrl.u32 %v2825, 7
        %v2827 = vsub.s32 0, %v2826
        %v2828 = vrot.slane %v673, %v2827
        %v2829 = vadd.f32 %v2828, %v1465
        %v2830 = vmul.f32 %v2767, %v2829
        %v2831 = vadd.f32 %v2824, %v2830
        %v2832 = vmul.f32 %v2831, %v2776
        %s2833 = scalar_lea.vmem %s240, 64 [#allocation2]
        %2834 = vst [vmem:[%s2833] sm:$0xff] %v2832
        %v2835 = vlaneseq
        %v2836 = vshrl.u32 %v2835, 7
        %v2837 = vsub.s32 1, %v2836
        %v2838 = vrot.slane %v404, %v2837
        %v2839 = vadd.f32 %v2838, %v1479
        %v2840 = vmul.f32 %v2746, %v2839
        %v2841 = vlaneseq
        %v2842 = vshrl.u32 %v2841, 7
        %v2843 = vsub.s32 1, %v2842
        %v2844 = vrot.slane %v406, %v2843
        %v2845 = vadd.f32 %v2844, %v1489
        %v2846 = vmul.f32 %v2749, %v2845
        %v2847 = vadd.f32 %v2840, %v2846
        %v2848 = vlaneseq
        %v2849 = vshrl.u32 %v2848, 7
        %v2850 = vsub.s32 1, %v2849
        %v2851 = vrot.slane %v493, %v2850
        %v2852 = vadd.f32 %v2851, %v1500
        %v2853 = vmul.f32 %v2752, %v2852
        %v2854 = vadd.f32 %v2847, %v2853
        %v2855 = vlaneseq
        %v2856 = vshrl.u32 %v2855, 7
        %v2857 = vsub.s32 1, %v2856
        %v2858 = vrot.slane %v495, %v2857
        %v2859 = vadd.f32 %v2858, %v1511
        %v2860 = vmul.f32 %v2755, %v2859
        %v2861 = vadd.f32 %v2854, %v2860
        %v2862 = vlaneseq
        %v2863 = vshrl.u32 %v2862, 7
        %v2864 = vsub.s32 1, %v2863
        %v2865 = vrot.slane %v582, %v2864
        %v2866 = vadd.f32 %v2865, %v1522
        %v2867 = vmul.f32 %v2758, %v2866
        %v2868 = vadd.f32 %v2861, %v2867
        %v2869 = vlaneseq
        %v2870 = vshrl.u32 %v2869, 7
        %v2871 = vsub.s32 1, %v2870
        %v2872 = vrot.slane %v584, %v2871
        %v2873 = vadd.f32 %v2872, %v1533
        %v2874 = vmul.f32 %v2761, %v2873
        %v2875 = vadd.f32 %v2868, %v2874
        %v2876 = vlaneseq
        %v2877 = vshrl.u32 %v2876, 7
        %v2878 = vsub.s32 1, %v2877
        %v2879 = vrot.slane %v671, %v2878
        %v2880 = vadd.f32 %v2879, %v1544
        %v2881 = vmul.f32 %v2764, %v2880
        %v2882 = vadd.f32 %v2875, %v2881
        %v2883 = vlaneseq
        %v2884 = vshrl.u32 %v2883, 7
        %v2885 = vsub.s32 1, %v2884
        %v2886 = vrot.slane %v673, %v2885
        %v2887 = vadd.f32 %v2886, %v1555
        %v2888 = vmul.f32 %v2767, %v2887
        %v2889 = vadd.f32 %v2882, %v2888
        %v2890 = vmul.f32 %v2889, %v2776
        %s2891 = scalar_lea.vmem %s240, 72 [#allocation2]
        %2892 = vst [vmem:[%s2891] sm:$0xff] %v2890
        %v2893 = vlaneseq
        %v2894 = vshrl.u32 %v2893, 7
        %v2895 = vsub.s32 2, %v2894
        %v2896 = vrot.slane %v404, %v2895
        %v2897 = vadd.f32 %v2896, %v1570
        %v2898 = vmul.f32 %v2746, %v2897
        %v2899 = vlaneseq
        %v2900 = vshrl.u32 %v2899, 7
        %v2901 = vsub.s32 2, %v2900
        %v2902 = vrot.slane %v406, %v2901
        %v2903 = vadd.f32 %v2902, %v1580
        %v2904 = vmul.f32 %v2749, %v2903
        %v2905 = vadd.f32 %v2898, %v2904
        %v2906 = vlaneseq
        %v2907 = vshrl.u32 %v2906, 7
        %v2908 = vsub.s32 2, %v2907
        %v2909 = vrot.slane %v493, %v2908
        %v2910 = vadd.f32 %v2909, %v1591
        %v2911 = vmul.f32 %v2752, %v2910
        %v2912 = vadd.f32 %v2905, %v2911
        %v2913 = vlaneseq
        %v2914 = vshrl.u32 %v2913, 7
        %v2915 = vsub.s32 2, %v2914
        %v2916 = vrot.slane %v495, %v2915
        %v2917 = vadd.f32 %v2916, %v1602
        %v2918 = vmul.f32 %v2755, %v2917
        %v2919 = vadd.f32 %v2912, %v2918
        %v2920 = vlaneseq
        %v2921 = vshrl.u32 %v2920, 7
        %v2922 = vsub.s32 2, %v2921
        %v2923 = vrot.slane %v582, %v2922
        %v2924 = vadd.f32 %v2923, %v1613
        %v2925 = vmul.f32 %v2758, %v2924
        %v2926 = vadd.f32 %v2919, %v2925
        %v2927 = vlaneseq
        %v2928 = vshrl.u32 %v2927, 7
        %v2929 = vsub.s32 2, %v2928
        %v2930 = vrot.slane %v584, %v2929
        %v2931 = vadd.f32 %v2930, %v1624
        %v2932 = vmul.f32 %v2761, %v2931
        %v2933 = vadd.f32 %v2926, %v2932
        %v2934 = vlaneseq
        %v2935 = vshrl.u32 %v2934, 7
        %v2936 = vsub.s32 2, %v2935
        %v2937 = vrot.slane %v671, %v2936
        %v2938 = vadd.f32 %v2937, %v1635
        %v2939 = vmul.f32 %v2764, %v2938
        %v2940 = vadd.f32 %v2933, %v2939
        %v2941 = vlaneseq
        %v2942 = vshrl.u32 %v2941, 7
        %v2943 = vsub.s32 2, %v2942
        %v2944 = vrot.slane %v673, %v2943
        %v2945 = vadd.f32 %v2944, %v1646
        %v2946 = vmul.f32 %v2767, %v2945
        %v2947 = vadd.f32 %v2940, %v2946
        %v2948 = vmul.f32 %v2947, %v2776
        %s2949 = scalar_lea.vmem %s240, 80 [#allocation2]
        %2950 = vst [vmem:[%s2949] sm:$0xff] %v2948
        %v2951 = vlaneseq
        %v2952 = vshrl.u32 %v2951, 7
        %v2953 = vsub.s32 3, %v2952
        %v2954 = vrot.slane %v404, %v2953
        %v2955 = vadd.f32 %v2954, %v1661
        %v2956 = vmul.f32 %v2746, %v2955
        %v2957 = vlaneseq
        %v2958 = vshrl.u32 %v2957, 7
        %v2959 = vsub.s32 3, %v2958
        %v2960 = vrot.slane %v406, %v2959
        %v2961 = vadd.f32 %v2960, %v1671
        %v2962 = vmul.f32 %v2749, %v2961
        %v2963 = vadd.f32 %v2956, %v2962
        %v2964 = vlaneseq
        %v2965 = vshrl.u32 %v2964, 7
        %v2966 = vsub.s32 3, %v2965
        %v2967 = vrot.slane %v493, %v2966
        %v2968 = vadd.f32 %v2967, %v1682
        %v2969 = vmul.f32 %v2752, %v2968
        %v2970 = vadd.f32 %v2963, %v2969
        %v2971 = vlaneseq
        %v2972 = vshrl.u32 %v2971, 7
        %v2973 = vsub.s32 3, %v2972
        %v2974 = vrot.slane %v495, %v2973
        %v2975 = vadd.f32 %v2974, %v1693
        %v2976 = vmul.f32 %v2755, %v2975
        %v2977 = vadd.f32 %v2970, %v2976
        %v2978 = vlaneseq
        %v2979 = vshrl.u32 %v2978, 7
        %v2980 = vsub.s32 3, %v2979
        %v2981 = vrot.slane %v582, %v2980
        %v2982 = vadd.f32 %v2981, %v1704
        %v2983 = vmul.f32 %v2758, %v2982
        %v2984 = vadd.f32 %v2977, %v2983
        %v2985 = vlaneseq
        %v2986 = vshrl.u32 %v2985, 7
        %v2987 = vsub.s32 3, %v2986
        %v2988 = vrot.slane %v584, %v2987
        %v2989 = vadd.f32 %v2988, %v1715
        %v2990 = vmul.f32 %v2761, %v2989
        %v2991 = vadd.f32 %v2984, %v2990
        %v2992 = vlaneseq
        %v2993 = vshrl.u32 %v2992, 7
        %v2994 = vsub.s32 3, %v2993
        %v2995 = vrot.slane %v671, %v2994
        %v2996 = vadd.f32 %v2995, %v1726
        %v2997 = vmul.f32 %v2764, %v2996
        %v2998 = vadd.f32 %v2991, %v2997
        %v2999 = vlaneseq
        %v3000 = vshrl.u32 %v2999, 7
        %v3001 = vsub.s32 3, %v3000
        %v3002 = vrot.slane %v673, %v3001
        %v3003 = vadd.f32 %v3002, %v1737
        %v3004 = vmul.f32 %v2767, %v3003
        %v3005 = vadd.f32 %v2998, %v3004
        %v3006 = vmul.f32 %v3005, %v2776
        %s3007 = scalar_lea.vmem %s240, 88 [#allocation2]
        %3008 = vst [vmem:[%s3007] sm:$0xff] %v3006
        %v3009 = vlaneseq
        %v3010 = vshrl.u32 %v3009, 7
        %v3011 = vsub.s32 4, %v3010
        %v3012 = vrot.slane %v404, %v3011
        %v3013 = vadd.f32 %v3012, %v1752
        %v3014 = vmul.f32 %v2746, %v3013
        %v3015 = vlaneseq
        %v3016 = vshrl.u32 %v3015, 7
        %v3017 = vsub.s32 4, %v3016
        %v3018 = vrot.slane %v406, %v3017
        %v3019 = vadd.f32 %v3018, %v1762
        %v3020 = vmul.f32 %v2749, %v3019
        %v3021 = vadd.f32 %v3014, %v3020
        %v3022 = vlaneseq
        %v3023 = vshrl.u32 %v3022, 7
        %v3024 = vsub.s32 4, %v3023
        %v3025 = vrot.slane %v493, %v3024
        %v3026 = vadd.f32 %v3025, %v1773
        %v3027 = vmul.f32 %v2752, %v3026
        %v3028 = vadd.f32 %v3021, %v3027
        %v3029 = vlaneseq
        %v3030 = vshrl.u32 %v3029, 7
        %v3031 = vsub.s32 4, %v3030
        %v3032 = vrot.slane %v495, %v3031
        %v3033 = vadd.f32 %v3032, %v1784
        %v3034 = vmul.f32 %v2755, %v3033
        %v3035 = vadd.f32 %v3028, %v3034
        %v3036 = vlaneseq
        %v3037 = vshrl.u32 %v3036, 7
        %v3038 = vsub.s32 4, %v3037
        %v3039 = vrot.slane %v582, %v3038
        %v3040 = vadd.f32 %v3039, %v1795
        %v3041 = vmul.f32 %v2758, %v3040
        %v3042 = vadd.f32 %v3035, %v3041
        %v3043 = vlaneseq
        %v3044 = vshrl.u32 %v3043, 7
        %v3045 = vsub.s32 4, %v3044
        %v3046 = vrot.slane %v584, %v3045
        %v3047 = vadd.f32 %v3046, %v1806
        %v3048 = vmul.f32 %v2761, %v3047
        %v3049 = vadd.f32 %v3042, %v3048
        %v3050 = vlaneseq
        %v3051 = vshrl.u32 %v3050, 7
        %v3052 = vsub.s32 4, %v3051
        %v3053 = vrot.slane %v671, %v3052
        %v3054 = vadd.f32 %v3053, %v1817
        %v3055 = vmul.f32 %v2764, %v3054
        %v3056 = vadd.f32 %v3049, %v3055
        %v3057 = vlaneseq
        %v3058 = vshrl.u32 %v3057, 7
        %v3059 = vsub.s32 4, %v3058
        %v3060 = vrot.slane %v673, %v3059
        %v3061 = vadd.f32 %v3060, %v1828
        %v3062 = vmul.f32 %v2767, %v3061
        %v3063 = vadd.f32 %v3056, %v3062
        %v3064 = vmul.f32 %v3063, %v2776
        %s3065 = scalar_lea.vmem %s240, 96 [#allocation2]
        %3066 = vst [vmem:[%s3065] sm:$0xff] %v3064
        %v3067 = vlaneseq
        %v3068 = vshrl.u32 %v3067, 7
        %v3069 = vsub.s32 5, %v3068
        %v3070 = vrot.slane %v404, %v3069
        %v3071 = vadd.f32 %v3070, %v1843
        %v3072 = vmul.f32 %v2746, %v3071
        %v3073 = vlaneseq
        %v3074 = vshrl.u32 %v3073, 7
        %v3075 = vsub.s32 5, %v3074
        %v3076 = vrot.slane %v406, %v3075
        %v3077 = vadd.f32 %v3076, %v1853
        %v3078 = vmul.f32 %v2749, %v3077
        %v3079 = vadd.f32 %v3072, %v3078
        %v3080 = vlaneseq
        %v3081 = vshrl.u32 %v3080, 7
        %v3082 = vsub.s32 5, %v3081
        %v3083 = vrot.slane %v493, %v3082
        %v3084 = vadd.f32 %v3083, %v1864
        %v3085 = vmul.f32 %v2752, %v3084
        %v3086 = vadd.f32 %v3079, %v3085
        %v3087 = vlaneseq
        %v3088 = vshrl.u32 %v3087, 7
        %v3089 = vsub.s32 5, %v3088
        %v3090 = vrot.slane %v495, %v3089
        %v3091 = vadd.f32 %v3090, %v1875
        %v3092 = vmul.f32 %v2755, %v3091
        %v3093 = vadd.f32 %v3086, %v3092
        %v3094 = vlaneseq
        %v3095 = vshrl.u32 %v3094, 7
        %v3096 = vsub.s32 5, %v3095
        %v3097 = vrot.slane %v582, %v3096
        %v3098 = vadd.f32 %v3097, %v1886
        %v3099 = vmul.f32 %v2758, %v3098
        %v3100 = vadd.f32 %v3093, %v3099
        %v3101 = vlaneseq
        %v3102 = vshrl.u32 %v3101, 7
        %v3103 = vsub.s32 5, %v3102
        %v3104 = vrot.slane %v584, %v3103
        %v3105 = vadd.f32 %v3104, %v1897
        %v3106 = vmul.f32 %v2761, %v3105
        %v3107 = vadd.f32 %v3100, %v3106
        %v3108 = vlaneseq
        %v3109 = vshrl.u32 %v3108, 7
        %v3110 = vsub.s32 5, %v3109
        %v3111 = vrot.slane %v671, %v3110
        %v3112 = vadd.f32 %v3111, %v1908
        %v3113 = vmul.f32 %v2764, %v3112
        %v3114 = vadd.f32 %v3107, %v3113
        %v3115 = vlaneseq
        %v3116 = vshrl.u32 %v3115, 7
        %v3117 = vsub.s32 5, %v3116
        %v3118 = vrot.slane %v673, %v3117
        %v3119 = vadd.f32 %v3118, %v1919
        %v3120 = vmul.f32 %v2767, %v3119
        %v3121 = vadd.f32 %v3114, %v3120
        %v3122 = vmul.f32 %v3121, %v2776
        %s3123 = scalar_lea.vmem %s240, 104 [#allocation2]
        %3124 = vst [vmem:[%s3123] sm:$0xff] %v3122
        %v3125 = vlaneseq
        %v3126 = vshrl.u32 %v3125, 7
        %v3127 = vsub.s32 6, %v3126
        %v3128 = vrot.slane %v404, %v3127
        %v3129 = vadd.f32 %v3128, %v1934
        %v3130 = vmul.f32 %v2746, %v3129
        %v3131 = vlaneseq
        %v3132 = vshrl.u32 %v3131, 7
        %v3133 = vsub.s32 6, %v3132
        %v3134 = vrot.slane %v406, %v3133
        %v3135 = vadd.f32 %v3134, %v1944
        %v3136 = vmul.f32 %v2749, %v3135
        %v3137 = vadd.f32 %v3130, %v3136
        %v3138 = vlaneseq
        %v3139 = vshrl.u32 %v3138, 7
        %v3140 = vsub.s32 6, %v3139
        %v3141 = vrot.slane %v493, %v3140
        %v3142 = vadd.f32 %v3141, %v1955
        %v3143 = vmul.f32 %v2752, %v3142
        %v3144 = vadd.f32 %v3137, %v3143
        %v3145 = vlaneseq
        %v3146 = vshrl.u32 %v3145, 7
        %v3147 = vsub.s32 6, %v3146
        %v3148 = vrot.slane %v495, %v3147
        %v3149 = vadd.f32 %v3148, %v1966
        %v3150 = vmul.f32 %v2755, %v3149
        %v3151 = vadd.f32 %v3144, %v3150
        %v3152 = vlaneseq
        %v3153 = vshrl.u32 %v3152, 7
        %v3154 = vsub.s32 6, %v3153
        %v3155 = vrot.slane %v582, %v3154
        %v3156 = vadd.f32 %v3155, %v1977
        %v3157 = vmul.f32 %v2758, %v3156
        %v3158 = vadd.f32 %v3151, %v3157
        %v3159 = vlaneseq
        %v3160 = vshrl.u32 %v3159, 7
        %v3161 = vsub.s32 6, %v3160
        %v3162 = vrot.slane %v584, %v3161
        %v3163 = vadd.f32 %v3162, %v1988
        %v3164 = vmul.f32 %v2761, %v3163
        %v3165 = vadd.f32 %v3158, %v3164
        %v3166 = vlaneseq
        %v3167 = vshrl.u32 %v3166, 7
        %v3168 = vsub.s32 6, %v3167
        %v3169 = vrot.slane %v671, %v3168
        %v3170 = vadd.f32 %v3169, %v1999
        %v3171 = vmul.f32 %v2764, %v3170
        %v3172 = vadd.f32 %v3165, %v3171
        %v3173 = vlaneseq
        %v3174 = vshrl.u32 %v3173, 7
        %v3175 = vsub.s32 6, %v3174
        %v3176 = vrot.slane %v673, %v3175
        %v3177 = vadd.f32 %v3176, %v2010
        %v3178 = vmul.f32 %v2767, %v3177
        %v3179 = vadd.f32 %v3172, %v3178
        %v3180 = vmul.f32 %v3179, %v2776
        %s3181 = scalar_lea.vmem %s240, 112 [#allocation2]
        %3182 = vst [vmem:[%s3181] sm:$0xff] %v3180
        %v3183 = vlaneseq
        %v3184 = vshrl.u32 %v3183, 7
        %v3185 = vsub.s32 7, %v3184
        %v3186 = vrot.slane %v404, %v3185
        %v3187 = vadd.f32 %v3186, %v2025
        %v3188 = vmul.f32 %v2746, %v3187
        %v3189 = vlaneseq
        %v3190 = vshrl.u32 %v3189, 7
        %v3191 = vsub.s32 7, %v3190
        %v3192 = vrot.slane %v406, %v3191
        %v3193 = vadd.f32 %v3192, %v2035
        %v3194 = vmul.f32 %v2749, %v3193
        %v3195 = vadd.f32 %v3188, %v3194
        %v3196 = vlaneseq
        %v3197 = vshrl.u32 %v3196, 7
        %v3198 = vsub.s32 7, %v3197
        %v3199 = vrot.slane %v493, %v3198
        %v3200 = vadd.f32 %v3199, %v2046
        %v3201 = vmul.f32 %v2752, %v3200
        %v3202 = vadd.f32 %v3195, %v3201
        %v3203 = vlaneseq
        %v3204 = vshrl.u32 %v3203, 7
        %v3205 = vsub.s32 7, %v3204
        %v3206 = vrot.slane %v495, %v3205
        %v3207 = vadd.f32 %v3206, %v2057
        %v3208 = vmul.f32 %v2755, %v3207
        %v3209 = vadd.f32 %v3202, %v3208
        %v3210 = vlaneseq
        %v3211 = vshrl.u32 %v3210, 7
        %v3212 = vsub.s32 7, %v3211
        %v3213 = vrot.slane %v582, %v3212
        %v3214 = vadd.f32 %v3213, %v2068
        %v3215 = vmul.f32 %v2758, %v3214
        %v3216 = vadd.f32 %v3209, %v3215
        %v3217 = vlaneseq
        %v3218 = vshrl.u32 %v3217, 7
        %v3219 = vsub.s32 7, %v3218
        %v3220 = vrot.slane %v584, %v3219
        %v3221 = vadd.f32 %v3220, %v2079
        %v3222 = vmul.f32 %v2761, %v3221
        %v3223 = vadd.f32 %v3216, %v3222
        %v3224 = vlaneseq
        %v3225 = vshrl.u32 %v3224, 7
        %v3226 = vsub.s32 7, %v3225
        %v3227 = vrot.slane %v671, %v3226
        %v3228 = vadd.f32 %v3227, %v2090
        %v3229 = vmul.f32 %v2764, %v3228
        %v3230 = vadd.f32 %v3223, %v3229
        %v3231 = vlaneseq
        %v3232 = vshrl.u32 %v3231, 7
        %v3233 = vsub.s32 7, %v3232
        %v3234 = vrot.slane %v673, %v3233
        %v3235 = vadd.f32 %v3234, %v2101
        %v3236 = vmul.f32 %v2767, %v3235
        %v3237 = vadd.f32 %v3230, %v3236
        %v3238 = vmul.f32 %v3237, %v2776
        %s3239 = scalar_lea.vmem %s240, 120 [#allocation2]
        %3240 = vst [vmem:[%s3239] sm:$0xff] %v3238
        %s3241 = sand.u32 %s156, 1
        %s3242 = sand.u32 %s156, 1
        %s3243 = smul.addr %s3242, 128
        %s3244 = scalar_lea.vmem [#allocation2], %s3243
        // Predicated region
        $region45: #{axial_layer_cross.1} parent=43 // pred_check
          %p3245 = pneg %p166
        $region46: #{axial_layer_cross.1} parent=43 // pred_check_branch
          %3247 = sbr.rel (%p3245) target = $region48
        $region47: #{axial_layer_cross.1} parent=43 // pred_region
          %s3248 = smul.addr %s17, 8
          %s3249 = scalar_lea.vmem %s6, %s3248
          // Predicated region
          $region49: #{axial_layer_cross.1} parent=47 // pred_check
            _
          $region50: #{axial_layer_cross.1} parent=47 // pred_check_branch
            %3251 = sbr.rel (0) target = $region52
          $region51: #{axial_layer_cross.1} parent=47 // pred_region
            // Predicated region
            $region53: #{axial_layer_cross.1} parent=51 // pred_check
              _
            $region54: #{axial_layer_cross.1} parent=51 // pred_check_branch
              %3253 = sbr.rel (0) target = $region56
            $region55: #{axial_layer_cross.1} parent=51 // pred_region
              // Predicated region
              $region68: #{axial_layer_cross.1} parent=55 // pred_check
                _
              $region69: #{axial_layer_cross.1} parent=55 // pred_check_branch
                %3299 = sbr.rel (0) target = $region71
              $region70: #{axial_layer_cross.1} parent=55 // pred_region
                loop: start=0, step=1, limit=1
                $region72: #{axial_layer_cross.1} parent=70 // loop_pre_header
                  _
                $region73: #{axial_layer_cross.1} parent=70 // loop_header
                  %s3301 = sphi 0, %s3305
                  %p3302 = scmp.ge.s32.totalorder %s3301, 1
                  %s3306 = sphi %s3244, %s3244
                  %s3307 = sphi %s3249, %s3249
                $region74: #{axial_layer_cross.1} parent=70 // loop_header_branch
                  %3304 = sbr.rel (%p3302) target = $region78
                $region75: #{axial_layer_cross.1} parent=70 // loop_body
                  %v3308 = vld [vmem:[%s3306] sm:$0xff]
                  %3309 = vst [vmem:[%s3307] sm:$0xff] %v3308
                  %v3310 = vld [vmem:[%s3306 + $0x8] sm:$0xff]
                  %3311 = vst [vmem:[%s3307 + $0x10] sm:$0xff] %v3310
                  %v3312 = vld [vmem:[%s3306 + $0x10] sm:$0xff]
                  %3313 = vst [vmem:[%s3307 + $0x20] sm:$0xff] %v3312
                  %v3314 = vld [vmem:[%s3306 + $0x18] sm:$0xff]
                  %3315 = vst [vmem:[%s3307 + $0x30] sm:$0xff] %v3314
                  %v3316 = vld [vmem:[%s3306 + $0x20] sm:$0xff]
                  %3317 = vst [vmem:[%s3307 + $0x40] sm:$0xff] %v3316
                  %v3318 = vld [vmem:[%s3306 + $0x28] sm:$0xff]
                  %3319 = vst [vmem:[%s3307 + $0x50] sm:$0xff] %v3318
                  %v3320 = vld [vmem:[%s3306 + $0x30] sm:$0xff]
                  %3321 = vst [vmem:[%s3307 + $0x60] sm:$0xff] %v3320
                  %v3322 = vld [vmem:[%s3306 + $0x38] sm:$0xff]
                  %3323 = vst [vmem:[%s3307 + $0x70] sm:$0xff] %v3322
                  %v3324 = vld [vmem:[%s3306 + $0x40] sm:$0xff]
                  %3325 = vst [vmem:[%s3307 + $0x80] sm:$0xff] %v3324
                  %v3326 = vld [vmem:[%s3306 + $0x48] sm:$0xff]
                  %3327 = vst [vmem:[%s3307 + $0x90] sm:$0xff] %v3326
                  %v3328 = vld [vmem:[%s3306 + $0x50] sm:$0xff]
                  %3329 = vst [vmem:[%s3307 + $0xa0] sm:$0xff] %v3328
                  %v3330 = vld [vmem:[%s3306 + $0x58] sm:$0xff]
                  %3331 = vst [vmem:[%s3307 + $0xb0] sm:$0xff] %v3330
                  %v3332 = vld [vmem:[%s3306 + $0x60] sm:$0xff]
                  %3333 = vst [vmem:[%s3307 + $0xc0] sm:$0xff] %v3332
                  %v3334 = vld [vmem:[%s3306 + $0x68] sm:$0xff]
                  %3335 = vst [vmem:[%s3307 + $0xd0] sm:$0xff] %v3334
                  %v3336 = vld [vmem:[%s3306 + $0x70] sm:$0xff]
                  %3337 = vst [vmem:[%s3307 + $0xe0] sm:$0xff] %v3336
                  %v3338 = vld [vmem:[%s3306 + $0x78] sm:$0xff]
                  %3339 = vst [vmem:[%s3307 + $0xf0] sm:$0xff] %v3338
                $region76: #{axial_layer_cross.1} parent=70 // loop_footer
                  %s3305 = sadd.s32 1, %s3301
                $region77: #{axial_layer_cross.1} parent=70 // loop_footer_branch
                  %3300 = sbr.rel target = $region73
                $region78: #{axial_layer_cross.1} parent=70 // loop_exit
                  _
              $region71: #{axial_layer_cross.1} parent=55 // pred_fallthru
                _
              // Predicated region
              $region79: #{axial_layer_cross.1} parent=55 // pred_check
                _
              $region80: #{axial_layer_cross.1} parent=55 // pred_check_branch
                %3341 = sbr.rel target = $region82
              $region81: #{axial_layer_cross.1} parent=55 // pred_region
                _
              $region82: #{axial_layer_cross.1} parent=55 // pred_fallthru
                _
            $region56: #{axial_layer_cross.1} parent=51 // pred_fallthru
              _
            // Predicated region
            $region57: #{axial_layer_cross.1} parent=51 // pred_check
              _
            $region58: #{axial_layer_cross.1} parent=51 // pred_check_branch
              %3255 = sbr.rel target = $region60
            $region59: #{axial_layer_cross.1} parent=51 // pred_region
              %s3257 = ssub.s32 256, 1
              loop: start=0, step=1, limit=1
              $region61: #{axial_layer_cross.1} parent=59 // loop_pre_header
                _
              $region62: #{axial_layer_cross.1} parent=59 // loop_header
                %s3259 = sphi 0, %s3263
                %p3260 = scmp.ge.s32.totalorder %s3259, 1
                %s3264 = sphi %s3244, %s3244
                %s3265 = sphi %s3249, %s3249
              $region63: #{axial_layer_cross.1} parent=59 // loop_header_branch
                %3262 = sbr.rel (%p3260) target = $region67
              $region64: #{axial_layer_cross.1} parent=59 // loop_body
                %v3266 = vld [vmem:[%s3264] sm:%s3257]
                %3267 = vst [vmem:[%s3265] sm:%s3257] %v3266
                %v3268 = vld [vmem:[%s3264 + $0x8] sm:%s3257]
                %3269 = vst [vmem:[%s3265 + $0x10] sm:%s3257] %v3268
                %v3270 = vld [vmem:[%s3264 + $0x10] sm:%s3257]
                %3271 = vst [vmem:[%s3265 + $0x20] sm:%s3257] %v3270
                %v3272 = vld [vmem:[%s3264 + $0x18] sm:%s3257]
                %3273 = vst [vmem:[%s3265 + $0x30] sm:%s3257] %v3272
                %v3274 = vld [vmem:[%s3264 + $0x20] sm:%s3257]
                %3275 = vst [vmem:[%s3265 + $0x40] sm:%s3257] %v3274
                %v3276 = vld [vmem:[%s3264 + $0x28] sm:%s3257]
                %3277 = vst [vmem:[%s3265 + $0x50] sm:%s3257] %v3276
                %v3278 = vld [vmem:[%s3264 + $0x30] sm:%s3257]
                %3279 = vst [vmem:[%s3265 + $0x60] sm:%s3257] %v3278
                %v3280 = vld [vmem:[%s3264 + $0x38] sm:%s3257]
                %3281 = vst [vmem:[%s3265 + $0x70] sm:%s3257] %v3280
                %v3282 = vld [vmem:[%s3264 + $0x40] sm:%s3257]
                %3283 = vst [vmem:[%s3265 + $0x80] sm:%s3257] %v3282
                %v3284 = vld [vmem:[%s3264 + $0x48] sm:%s3257]
                %3285 = vst [vmem:[%s3265 + $0x90] sm:%s3257] %v3284
                %v3286 = vld [vmem:[%s3264 + $0x50] sm:%s3257]
                %3287 = vst [vmem:[%s3265 + $0xa0] sm:%s3257] %v3286
                %v3288 = vld [vmem:[%s3264 + $0x58] sm:%s3257]
                %3289 = vst [vmem:[%s3265 + $0xb0] sm:%s3257] %v3288
                %v3290 = vld [vmem:[%s3264 + $0x60] sm:%s3257]
                %3291 = vst [vmem:[%s3265 + $0xc0] sm:%s3257] %v3290
                %v3292 = vld [vmem:[%s3264 + $0x68] sm:%s3257]
                %3293 = vst [vmem:[%s3265 + $0xd0] sm:%s3257] %v3292
                %v3294 = vld [vmem:[%s3264 + $0x70] sm:%s3257]
                %3295 = vst [vmem:[%s3265 + $0xe0] sm:%s3257] %v3294
                %v3296 = vld [vmem:[%s3264 + $0x78] sm:%s3257]
                %3297 = vst [vmem:[%s3265 + $0xf0] sm:%s3257] %v3296
              $region65: #{axial_layer_cross.1} parent=59 // loop_footer
                %s3263 = sadd.s32 1, %s3259
              $region66: #{axial_layer_cross.1} parent=59 // loop_footer_branch
                %3258 = sbr.rel target = $region62
              $region67: #{axial_layer_cross.1} parent=59 // loop_exit
                _
            $region60: #{axial_layer_cross.1} parent=51 // pred_fallthru
              _
          $region52: #{axial_layer_cross.1} parent=47 // pred_fallthru
            _
          %3342 = vnop
        $region48: #{axial_layer_cross.1} parent=43 // pred_fallthru
          _
      $region44: #{axial_layer_cross.1} parent=5 // pred_fallthru
        _
      %p3343 = scmp.le.s32.totalorder 2, %s12
      // Predicated region
      $region83: #{axial_layer_cross.1} parent=5 // pred_check
        %p3344 = pneg %p3343
      $region84: #{axial_layer_cross.1} parent=5 // pred_check_branch
        %3346 = sbr.rel (%p3344) target = $region86
      $region85: #{axial_layer_cross.1} parent=5 // pred_region
        %s3347 = ssub.s32 %s12, 2
        // Predicated region
        $region87: #{axial_layer_cross.1} parent=85 // pred_check
          %p3348 = pneg %p172
        $region88: #{axial_layer_cross.1} parent=85 // pred_check_branch
          %3350 = sbr.rel (%p3348) target = $region90
        $region89: #{axial_layer_cross.1} parent=85 // pred_region
          %s3351 = sand.u32 %s157, 1
          %s3352 = sand.u32 %s157, 1
          %s3353 = smul.addr %s3352, 128
          %s3354 = scalar_lea.vmem [#allocation2], %s3353
        $region90: #{axial_layer_cross.1} parent=85 // pred_fallthru
          _
      $region86: #{axial_layer_cross.1} parent=5 // pred_fallthru
        _
    $region6: #{axial_layer_cross.1} parent=1 // loop_footer
      %s16 = sadd.s32 1, %s12
    $region7: #{axial_layer_cross.1} parent=1 // loop_footer_branch
      %11 = sbr.rel target = $region3
    $region8: #{axial_layer_cross.1} parent=1 // loop_exit
      _

</llo_original>
